<compile_context>
chip_gen: v5e
topology: v5e:2x2
jax: 0.10.0
libtpu: 0.0.40
codegen_flags: <defaults>
</compile_context>

<pallas_src>
import jax
import jax.numpy as jnp
import numpy as np
from jax.experimental import pallas as pl
from jax.experimental.pallas import tpu as pltpu


def _sentence_attention_kernel(x_ref, h0_ref, wih_ref, whh_ref, bgi_ref, bhn_ref,
                               sw_ref, sb_ref, cw_ref, fcw_ref, fcb_ref,
                               out_ref, hout_ref,
                               gi_ref, f_ref):
    """Bidirectional GRU + sentence attention + fc_out, fused per batch tile.

    All working tensors are laid out (features, batch) with batch on lanes.
    """
    S, E, Bt = x_ref.shape
    H = h0_ref.shape[1]
    H2, H3 = 2 * H, 3 * H
    f32 = jnp.float32

    # ---- hoisted input projection --------------------------------------------
    # One fused fwd+bwd (6H, E) @ (E, Bt) bf16 MXU matmul per sentence with the
    # input bias (and the r/z half of b_hh) folded in, staged in VMEM scratch.
    w_all = wih_ref[...]                                         # (6H, E)
    b_gi = jnp.broadcast_to(bgi_ref[...], (2 * H3, Bt))          # hoisted bcast
    for s in range(S):
        gi_ref[s] = jnp.dot(w_all, x_ref[s],
                            preferred_element_type=f32) + b_gi   # (6H, Bt)

    # ---- fused fwd/bwd GRU recurrence (h is (H, Bt)) --------------------------
    whh_f, whh_b = whh_ref[0], whh_ref[1]                        # (3H, H)
    bhn_f = jnp.broadcast_to(bhn_ref[0], (H, Bt))                # n-gate b_hh
    bhn_b = jnp.broadcast_to(bhn_ref[1], (H, Bt))

    def gru_step(gi, h_prev, whh, bhn):
        # PyTorch gate order (r, z, n); b_ih and b_hh{r,z} already inside gi;
        # the n-gate b_hh must stay inside r * (W_hn h + b_hn).
        gh = jnp.dot(whh, h_prev, preferred_element_type=f32)    # (3H, Bt)
        rz = jax.nn.sigmoid(gi[0:H2] + gh[0:H2])                 # fused r|z
        r, z = rz[0:H], rz[H:H2]
        n = jnp.tanh(gi[H2:H3] + r * (gh[H2:H3] + bhn))
        return (1.0 - z) * n + z * h_prev

    h_f = h0_ref[0]
    h_b = h0_ref[1]
    # TODO(synk): for S >= 16 switch to lax.fori_loop(..., unroll=2) over gi_ref
    # (and stage gi in bf16 on v7x) to bound vreg live ranges / VMEM footprint.
    for t in range(S):
        h_f = gru_step(gi_ref[t, 0:H3, :], h_f, whh_f, bhn_f)
        h_b = gru_step(gi_ref[S - 1 - t, H3:2 * H3, :], h_b, whh_b, bhn_b)
        f_ref[t, 0:H, :] = h_f                 # fwd half of the (S, 2H, Bt) slab
        f_ref[S - 1 - t, H:H2, :] = h_b        # bwd half
    hout_ref[0] = h_f
    hout_ref[1] = h_b

    # ---- sentence attention + fc_out (lane-dense, batch on lanes) -------------
    # u[s]      = tanh(sent_weight^T @ f_out[s] + sent_bias)      (2H, Bt)
    # scores[s] = tanh(context_weight^T @ u[s])                   (1, Bt)
    sw_t = sw_ref[...]                                            # (2H, 2H)
    sb_b = jnp.broadcast_to(sb_ref[...], (H2, Bt))
    cw_b = jnp.broadcast_to(cw_ref[...], (H2, Bt))
    scores = []
    for s in range(S):
        u_s = jnp.tanh(jnp.dot(sw_t, f_ref[s], preferred_element_type=f32) + sb_b)
        scores.append(jnp.tanh(jnp.sum(u_s * cw_b, axis=0, keepdims=True)))

    # softmax over the sentence axis (torch: permute -> softmax(dim=1) -> permute)
    m = scores[0]
    for s in range(1, S):
        m = jnp.maximum(m, scores[s])
    es = [jnp.exp(sc - m) for sc in scores]
    denom = es[0]
    for s in range(1, S):
        denom = denom + es[s]
    inv = pl.reciprocal(denom, approx=False)                      # (1, Bt)

    # element_wise_mul: ctx = sum_t f_out[t] * att[t]   (2H, Bt)
    ctx = jnp.zeros((H2, Bt), f32)
    for s in range(S):
        ctx = ctx + f_ref[s] * (es[s] * inv)

    # fc_out: Linear(2H, 1), written lane-dense as (1, Bt).
    out_ref[...] = (jnp.sum(ctx * fcw_ref[...], axis=0, keepdims=True)
                    + fcb_ref[...])


def _round_up(v, m):
    return ((v + m - 1) // m) * m


def sentence_attention_net(x, hidden_state, params, *, b_tile=None,
                           matmul_dtype=jnp.bfloat16):
    """Batch-tiled (batch-on-lanes) pallas_call wrapper around the fused kernel."""
    S, B, E = x.shape
    H = hidden_state.shape[2]
    f32 = jnp.float32

    # ---- batch ("documents") tile: lane-dense, always a multiple of 8 ----------
    # 128 keeps every VPU/EUP/store op lane-dense and yields >= 2 grid steps
    # (pipelined x-DMA + v7x 2nd-TensorCore sharding) whenever B > 128.
    if b_tile is None:
        b_tile = 128
    b_tile = max(8, _round_up(b_tile, 8))
    Bp = _round_up(max(B, b_tile), b_tile)
    nb = Bp // b_tile
    pad = Bp - B

    # ---- batch-on-lanes inputs (wrapper-side layout plumbing) ------------------
    x_t = jnp.transpose(x.astype(matmul_dtype), (0, 2, 1))        # (S, E, B)
    h0_t = jnp.transpose(hidden_state.astype(f32), (0, 2, 1))     # (2, H, B)
    if pad:
        x_t = jnp.pad(x_t, ((0, 0), (0, 0), (0, pad)))
        h0_t = jnp.pad(h0_t, ((0, 0), (0, 0), (0, pad)))

    # ---- GRU weights (PyTorch layout: w_ih (3H,E), w_hh (3H,H), gates r|z|n) ---
    w_ih = params["w_ih"].astype(f32)            # (2, 3H, E)
    w_hh = params["w_hh"].astype(f32)            # (2, 3H, H)
    b_ih = params["b_ih"].astype(f32)            # (2, 3H)
    b_hh = params["b_hh"].astype(f32)            # (2, 3H)

    # Fold b_hh for the r/z gates into the hoisted input-projection bias; the
    # n-gate b_hh stays inside r * (W_hn h + b_hn) in the kernel.
    rz_mask = jnp.concatenate([jnp.ones((2 * H,), f32), jnp.zeros((H,), f32)])
    b_gi = (b_ih + b_hh * rz_mask).reshape(6 * H, 1)              # (6H, 1)
    b_hn = b_hh[:, 2 * H:].reshape(2, H, 1)                       # (2, H, 1)
    w_ih_all = w_ih.reshape(6 * H, E).astype(matmul_dtype)        # fwd rows 0:3H

    sw_t = params["sent_weight"].astype(f32).T                    # (2H, 2H)
    sb = params["sent_bias"].astype(f32).reshape(2 * H, 1)
    cw = params["context_weight"].astype(f32).reshape(2 * H, 1)
    fcw = params["fc_w"].astype(f32).reshape(2 * H, 1)
    fcb = params["fc_b"].astype(f32).reshape(1, 1)

    args = (x_t, h0_t, w_ih_all, w_hh, b_gi, b_hn, sw_t, sb, cw, fcw, fcb)

    def rep(a):                                   # resident (untiled) operand
        nd = a.ndim
        return pl.BlockSpec(a.shape, lambda b, _n=nd: (0,) * _n)

    in_specs = [
        pl.BlockSpec((S, E, b_tile), lambda b: (0, 0, b)),
        pl.BlockSpec((2, H, b_tile), lambda b: (0, 0, b)),
    ] + [rep(a) for a in args[2:]]

    out_specs = (
        pl.BlockSpec((1, b_tile), lambda b: (0, b)),              # lane-dense out
        pl.BlockSpec((2, H, b_tile), lambda b: (0, 0, b)),        # lane-dense h_out
    )
    out_shapes = (
        jax.ShapeDtypeStruct((1, Bp), f32),
        jax.ShapeDtypeStruct((2, H, Bp), f32),
    )

    # VMEM per grid step at test sizes is ~1.5 MiB; at production HAN sizes
    # (S~30, H=32, E=64, b_tile=128..256) it stays far below the v7x 64 MiB
    # ceiling even with double-buffered x blocks.
    out_row, hout_t = pl.pallas_call(
        _sentence_attention_kernel,
        out_shape=out_shapes,
        grid_spec=pltpu.PrefetchScalarGridSpec(
            num_scalar_prefetch=0,
            grid=(nb,),
            in_specs=in_specs,
            out_specs=out_specs,
            scratch_shapes=[
                pltpu.VMEM((S, 6 * H, b_tile), f32),   # hoisted gi (fwd | bwd)
                pltpu.VMEM((S, 2 * H, b_tile), f32),   # [fwd | bwd] hidden states
            ],
        ),
        compiler_params=pltpu.CompilerParams(
            dimension_semantics=("parallel",),
            vmem_limit_bytes=32 * 1024 * 1024,
        ),
    )(*args)

    # Layout plumbing back to the PyTorch shapes.
    out = out_row[0, :B].reshape(B, 1)
    h_out = jnp.transpose(hout_t, (0, 2, 1))[:, :B, :]
    return out, h_out


def _reference(x, h0, params):
    """Pure-JAX forward (mirrors the PyTorch module) for a correctness check."""
    S, B, E = x.shape
    H = h0.shape[2]

    def run_dir(d, h, order):
        wih, whh = params["w_ih"][d], params["w_hh"][d]
        bih, bhh = params["b_ih"][d], params["b_hh"][d]
        outs = [None] * S
        for t in order:
            gi = x[t] @ wih.T + bih
            gh = h @ whh.T + bhh
            r = jax.nn.sigmoid(gi[:, :H] + gh[:, :H])
            z = jax.nn.sigmoid(gi[:, H:2 * H] + gh[:, H:2 * H])
            n = jnp.tanh(gi[:, 2 * H:] + r * gh[:, 2 * H:])
            h = (1.0 - z) * n + z * h
            outs[t] = h
        return jnp.stack(outs), h

    f_fwd, hf = run_dir(0, h0[0], range(S))
    f_bwd, hb = run_dir(1, h0[1], range(S - 1, -1, -1))
    f_out = jnp.concatenate([f_fwd, f_bwd], axis=-1)              # (S, B, 2H)
    u = jnp.tanh(f_out @ params["sent_weight"] + params["sent_bias"])
    scores = jnp.tanh(u @ params["context_weight"])               # (S, B, 1)
    att = jax.nn.softmax(scores, axis=0)
    ctx = jnp.sum(f_out * att, axis=0)                            # (B, 2H)
    out = ctx @ params["fc_w"].T + params["fc_b"]
    return out, jnp.stack([hf, hb])


if __name__ == "__main__":
    Hs = 32                 # sent_hidden_size
    Hw = 32                 # word_hidden_size
    E = 2 * Hw              # GRU input size
    S, B = 8, 2             # sentences per document, document batch

    key = jax.random.PRNGKey(0)
    ks = jax.random.split(key, 12)

    # nn.GRU default init: U(-1/sqrt(H), 1/sqrt(H)), gate order (r, z, n).
    k = 1.0 / float(Hs) ** 0.5
    unif = lambda kk, shape: jax.random.uniform(kk, shape, jnp.float32, -k, k)
    k2 = 1.0 / float(2 * Hs) ** 0.5
    params = {
        "w_ih": jnp.stack([unif(ks[0], (3 * Hs, E)), unif(ks[1], (3 * Hs, E))]),
        "w_hh": jnp.stack([unif(ks[2], (3 * Hs, Hs)), unif(ks[3], (3 * Hs, Hs))]),
        "b_ih": jnp.stack([unif(ks[4], (3 * Hs,)), unif(ks[5], (3 * Hs,))]),
        "b_hh": jnp.stack([unif(ks[6], (3 * Hs,)), unif(ks[7], (3 * Hs,))]),
        "sent_weight": 0.05 * jax.random.normal(ks[8], (2 * Hs, 2 * Hs), jnp.float32),
        "sent_bias": jnp.zeros((1, 2 * Hs), jnp.float32),
        "context_weight": 0.05 * jax.random.normal(ks[9], (2 * Hs, 1), jnp.float32),
        "fc_w": jax.random.uniform(ks[10], (1, 2 * Hs), jnp.float32, -k2, k2),
        "fc_b": jax.random.uniform(ks[11], (1,), jnp.float32, -k2, k2),
    }

    x = jax.random.normal(jax.random.PRNGKey(1), (S, B, E), jnp.float32)
    hidden_state = 0.1 * jax.random.normal(jax.random.PRNGKey(2), (2, B, Hs),
                                           jnp.float32)

    run = jax.jit(lambda xx, hh: sentence_attention_net(xx, hh, params))
    out, h_out = run(x, hidden_state)
    jax.block_until_ready((out, h_out))
    assert out.shape == (B, 1) and h_out.shape == (2, B, Hs)

    # Pure-JAX reference (PyTorch semantics).  Tolerance covers the bf16-fed
    # input-projection matmul; the recurrence / elementwise math stays f32.
    with jax.default_matmul_precision("highest"):
        ref_out, ref_h = _reference(x, hidden_state, params)
    np.testing.assert_allclose(np.asarray(out), np.asarray(ref_out), rtol=3e-2, atol=3e-2)
    np.testing.assert_allclose(np.asarray(h_out), np.asarray(ref_h), rtol=3e-2, atol=3e-2)

    print("KERNEL_OK")
</pallas_src>

<mosaic_0001>
module attributes {stable_mosaic.version = 11 : i64} {
  func.func @_sentence_attention_kernel(%arg0: i32, %arg1: memref<8x64x128xbf16, #tpu.memory_space<vmem>>, %arg2: memref<2x32x128xf32, #tpu.memory_space<vmem>>, %arg3: memref<192x64xbf16, #tpu.memory_space<vmem>>, %arg4: memref<2x96x32xf32, #tpu.memory_space<vmem>>, %arg5: memref<192x1xf32, #tpu.memory_space<vmem>>, %arg6: memref<2x32x1xf32, #tpu.memory_space<vmem>>, %arg7: memref<64x64xf32, #tpu.memory_space<vmem>>, %arg8: memref<64x1xf32, #tpu.memory_space<vmem>>, %arg9: memref<64x1xf32, #tpu.memory_space<vmem>>, %arg10: memref<64x1xf32, #tpu.memory_space<vmem>>, %arg11: memref<1x1xf32, #tpu.memory_space<vmem>>, %arg12: memref<1x128xf32, #tpu.memory_space<vmem>>, %arg13: memref<2x32x128xf32, #tpu.memory_space<vmem>>, %arg14: memref<8x192x128xf32, #tpu.memory_space<vmem>>, %arg15: memref<8x64x128xf32, #tpu.memory_space<vmem>>) attributes {dimension_semantics = [#tpu.dimension_semantics<parallel>], iteration_bounds = array<i64: 1>, scalar_prefetch = 0 : i64, scratch_operands = 2 : i64, tpu.core_type = #tpu.core_type<tc>, window_params = [{transform_indices = @transform_0, window_bounds = array<i64: 8, 64, 128>}, {transform_indices = @transform_1, window_bounds = array<i64: 2, 32, 128>}, {pipeline_mode = #tpu.pipeline_mode<synchronous>, transform_indices = @transform_2, window_bounds = array<i64: 192, 64>}, {pipeline_mode = #tpu.pipeline_mode<synchronous>, transform_indices = @transform_3, window_bounds = array<i64: 2, 96, 32>}, {pipeline_mode = #tpu.pipeline_mode<synchronous>, transform_indices = @transform_4, window_bounds = array<i64: 192, 1>}, {pipeline_mode = #tpu.pipeline_mode<synchronous>, transform_indices = @transform_5, window_bounds = array<i64: 2, 32, 1>}, {pipeline_mode = #tpu.pipeline_mode<synchronous>, transform_indices = @transform_6, window_bounds = array<i64: 64, 64>}, {pipeline_mode = #tpu.pipeline_mode<synchronous>, transform_indices = @transform_7, window_bounds = array<i64: 64, 1>}, {pipeline_mode = #tpu.pipeline_mode<synchronous>, transform_indices = @transform_8, window_bounds = array<i64: 64, 1>}, {pipeline_mode = #tpu.pipeline_mode<synchronous>, transform_indices = @transform_9, window_bounds = array<i64: 64, 1>}, {pipeline_mode = #tpu.pipeline_mode<synchronous>, transform_indices = @transform_10, window_bounds = array<i64: 1, 1>}, {transform_indices = @transform_11, window_bounds = array<i64: 1, 128>}, {transform_indices = @transform_12, window_bounds = array<i64: 2, 32, 128>}]} {
    %c0 = arith.constant 0 : index
    %c0_0 = arith.constant 0 : index
    %0 = vector.load %arg3[%c0, %c0_0] : memref<192x64xbf16, #tpu.memory_space<vmem>>, vector<192x64xbf16>
    %c0_1 = arith.constant 0 : index
    %c0_2 = arith.constant 0 : index
    %1 = vector.load %arg5[%c0_1, %c0_2] : memref<192x1xf32, #tpu.memory_space<vmem>>, vector<192x1xf32>
    %2 = vector.shape_cast %1 : vector<192x1xf32> to vector<192x1xf32>
    %3 = vector.broadcast %2 : vector<192x1xf32> to vector<192x128xf32>
    %c0_3 = arith.constant 0 : index
    %c0_4 = arith.constant 0 : index
    %c0_5 = arith.constant 0 : index
    %4 = vector.load %arg1[%c0_3, %c0_4, %c0_5] : memref<8x64x128xbf16, #tpu.memory_space<vmem>>, vector<1x64x128xbf16>
    %5 = vector.shape_cast %4 : vector<1x64x128xbf16> to vector<64x128xbf16>
    %cst = arith.constant dense<0.000000e+00> : vector<192x128xf32>
    %6 = tpu.matmul %0, %5, %cst {dimension_numbers = #tpu.dot_dimension_numbers<[1], [0], [0], [1], [0, 0, 1, 1], [], []>} : vector<192x64xbf16>, vector<64x128xbf16>, vector<192x128xf32> -> vector<192x128xf32>
    %7 = arith.addf %6, %3 : vector<192x128xf32>
    %c0_6 = arith.constant 0 : index
    %c0_7 = arith.constant 0 : index
    %c0_8 = arith.constant 0 : index
    %8 = vector.load %arg14[%c0_6, %c0_7, %c0_8] : memref<8x192x128xf32, #tpu.memory_space<vmem>>, vector<1x192x128xf32>
    %9 = vector.shape_cast %8 : vector<1x192x128xf32> to vector<192x128xf32>
    %10 = vector.shape_cast %7 : vector<192x128xf32> to vector<1x192x128xf32>
    tpu.vector_store %arg14[%c0_6, %c0_7, %c0_8], %10 {strides = array<i32>} : memref<8x192x128xf32, #tpu.memory_space<vmem>>, vector<1x192x128xf32>,
    %c1 = arith.constant 1 : index
    %c0_9 = arith.constant 0 : index
    %c0_10 = arith.constant 0 : index
    %11 = vector.load %arg1[%c1, %c0_9, %c0_10] : memref<8x64x128xbf16, #tpu.memory_space<vmem>>, vector<1x64x128xbf16>
    %12 = vector.shape_cast %11 : vector<1x64x128xbf16> to vector<64x128xbf16>
    %cst_11 = arith.constant dense<0.000000e+00> : vector<192x128xf32>
    %13 = tpu.matmul %0, %12, %cst_11 {dimension_numbers = #tpu.dot_dimension_numbers<[1], [0], [0], [1], [0, 0, 1, 1], [], []>} : vector<192x64xbf16>, vector<64x128xbf16>, vector<192x128xf32> -> vector<192x128xf32>
    %14 = arith.addf %13, %3 : vector<192x128xf32>
    %c1_12 = arith.constant 1 : index
    %c0_13 = arith.constant 0 : index
    %c0_14 = arith.constant 0 : index
    %15 = vector.load %arg14[%c1_12, %c0_13, %c0_14] : memref<8x192x128xf32, #tpu.memory_space<vmem>>, vector<1x192x128xf32>
    %16 = vector.shape_cast %15 : vector<1x192x128xf32> to vector<192x128xf32>
    %17 = vector.shape_cast %14 : vector<192x128xf32> to vector<1x192x128xf32>
    tpu.vector_store %arg14[%c1_12, %c0_13, %c0_14], %17 {strides = array<i32>} : memref<8x192x128xf32, #tpu.memory_space<vmem>>, vector<1x192x128xf32>,
    %c2 = arith.constant 2 : index
    %c0_15 = arith.constant 0 : index
    %c0_16 = arith.constant 0 : index
    %18 = vector.load %arg1[%c2, %c0_15, %c0_16] : memref<8x64x128xbf16, #tpu.memory_space<vmem>>, vector<1x64x128xbf16>
    %19 = vector.shape_cast %18 : vector<1x64x128xbf16> to vector<64x128xbf16>
    %cst_17 = arith.constant dense<0.000000e+00> : vector<192x128xf32>
    %20 = tpu.matmul %0, %19, %cst_17 {dimension_numbers = #tpu.dot_dimension_numbers<[1], [0], [0], [1], [0, 0, 1, 1], [], []>} : vector<192x64xbf16>, vector<64x128xbf16>, vector<192x128xf32> -> vector<192x128xf32>
    %21 = arith.addf %20, %3 : vector<192x128xf32>
    %c2_18 = arith.constant 2 : index
    %c0_19 = arith.constant 0 : index
    %c0_20 = arith.constant 0 : index
    %22 = vector.load %arg14[%c2_18, %c0_19, %c0_20] : memref<8x192x128xf32, #tpu.memory_space<vmem>>, vector<1x192x128xf32>
    %23 = vector.shape_cast %22 : vector<1x192x128xf32> to vector<192x128xf32>
    %24 = vector.shape_cast %21 : vector<192x128xf32> to vector<1x192x128xf32>
    tpu.vector_store %arg14[%c2_18, %c0_19, %c0_20], %24 {strides = array<i32>} : memref<8x192x128xf32, #tpu.memory_space<vmem>>, vector<1x192x128xf32>,
    %c3 = arith.constant 3 : index
    %c0_21 = arith.constant 0 : index
    %c0_22 = arith.constant 0 : index
    %25 = vector.load %arg1[%c3, %c0_21, %c0_22] : memref<8x64x128xbf16, #tpu.memory_space<vmem>>, vector<1x64x128xbf16>
    %26 = vector.shape_cast %25 : vector<1x64x128xbf16> to vector<64x128xbf16>
    %cst_23 = arith.constant dense<0.000000e+00> : vector<192x128xf32>
    %27 = tpu.matmul %0, %26, %cst_23 {dimension_numbers = #tpu.dot_dimension_numbers<[1], [0], [0], [1], [0, 0, 1, 1], [], []>} : vector<192x64xbf16>, vector<64x128xbf16>, vector<192x128xf32> -> vector<192x128xf32>
    %28 = arith.addf %27, %3 : vector<192x128xf32>
    %c3_24 = arith.constant 3 : index
    %c0_25 = arith.constant 0 : index
    %c0_26 = arith.constant 0 : index
    %29 = vector.load %arg14[%c3_24, %c0_25, %c0_26] : memref<8x192x128xf32, #tpu.memory_space<vmem>>, vector<1x192x128xf32>
    %30 = vector.shape_cast %29 : vector<1x192x128xf32> to vector<192x128xf32>
    %31 = vector.shape_cast %28 : vector<192x128xf32> to vector<1x192x128xf32>
    tpu.vector_store %arg14[%c3_24, %c0_25, %c0_26], %31 {strides = array<i32>} : memref<8x192x128xf32, #tpu.memory_space<vmem>>, vector<1x192x128xf32>,
    %c4 = arith.constant 4 : index
    %c0_27 = arith.constant 0 : index
    %c0_28 = arith.constant 0 : index
    %32 = vector.load %arg1[%c4, %c0_27, %c0_28] : memref<8x64x128xbf16, #tpu.memory_space<vmem>>, vector<1x64x128xbf16>
    %33 = vector.shape_cast %32 : vector<1x64x128xbf16> to vector<64x128xbf16>
    %cst_29 = arith.constant dense<0.000000e+00> : vector<192x128xf32>
    %34 = tpu.matmul %0, %33, %cst_29 {dimension_numbers = #tpu.dot_dimension_numbers<[1], [0], [0], [1], [0, 0, 1, 1], [], []>} : vector<192x64xbf16>, vector<64x128xbf16>, vector<192x128xf32> -> vector<192x128xf32>
    %35 = arith.addf %34, %3 : vector<192x128xf32>
    %c4_30 = arith.constant 4 : index
    %c0_31 = arith.constant 0 : index
    %c0_32 = arith.constant 0 : index
    %36 = vector.load %arg14[%c4_30, %c0_31, %c0_32] : memref<8x192x128xf32, #tpu.memory_space<vmem>>, vector<1x192x128xf32>
    %37 = vector.shape_cast %36 : vector<1x192x128xf32> to vector<192x128xf32>
    %38 = vector.shape_cast %35 : vector<192x128xf32> to vector<1x192x128xf32>
    tpu.vector_store %arg14[%c4_30, %c0_31, %c0_32], %38 {strides = array<i32>} : memref<8x192x128xf32, #tpu.memory_space<vmem>>, vector<1x192x128xf32>,
    %c5 = arith.constant 5 : index
    %c0_33 = arith.constant 0 : index
    %c0_34 = arith.constant 0 : index
    %39 = vector.load %arg1[%c5, %c0_33, %c0_34] : memref<8x64x128xbf16, #tpu.memory_space<vmem>>, vector<1x64x128xbf16>
    %40 = vector.shape_cast %39 : vector<1x64x128xbf16> to vector<64x128xbf16>
    %cst_35 = arith.constant dense<0.000000e+00> : vector<192x128xf32>
    %41 = tpu.matmul %0, %40, %cst_35 {dimension_numbers = #tpu.dot_dimension_numbers<[1], [0], [0], [1], [0, 0, 1, 1], [], []>} : vector<192x64xbf16>, vector<64x128xbf16>, vector<192x128xf32> -> vector<192x128xf32>
    %42 = arith.addf %41, %3 : vector<192x128xf32>
    %c5_36 = arith.constant 5 : index
    %c0_37 = arith.constant 0 : index
    %c0_38 = arith.constant 0 : index
    %43 = vector.load %arg14[%c5_36, %c0_37, %c0_38] : memref<8x192x128xf32, #tpu.memory_space<vmem>>, vector<1x192x128xf32>
    %44 = vector.shape_cast %43 : vector<1x192x128xf32> to vector<192x128xf32>
    %45 = vector.shape_cast %42 : vector<192x128xf32> to vector<1x192x128xf32>
    tpu.vector_store %arg14[%c5_36, %c0_37, %c0_38], %45 {strides = array<i32>} : memref<8x192x128xf32, #tpu.memory_space<vmem>>, vector<1x192x128xf32>,
    %c6 = arith.constant 6 : index
    %c0_39 = arith.constant 0 : index
    %c0_40 = arith.constant 0 : index
    %46 = vector.load %arg1[%c6, %c0_39, %c0_40] : memref<8x64x128xbf16, #tpu.memory_space<vmem>>, vector<1x64x128xbf16>
    %47 = vector.shape_cast %46 : vector<1x64x128xbf16> to vector<64x128xbf16>
    %cst_41 = arith.constant dense<0.000000e+00> : vector<192x128xf32>
    %48 = tpu.matmul %0, %47, %cst_41 {dimension_numbers = #tpu.dot_dimension_numbers<[1], [0], [0], [1], [0, 0, 1, 1], [], []>} : vector<192x64xbf16>, vector<64x128xbf16>, vector<192x128xf32> -> vector<192x128xf32>
    %49 = arith.addf %48, %3 : vector<192x128xf32>
    %c6_42 = arith.constant 6 : index
    %c0_43 = arith.constant 0 : index
    %c0_44 = arith.constant 0 : index
    %50 = vector.load %arg14[%c6_42, %c0_43, %c0_44] : memref<8x192x128xf32, #tpu.memory_space<vmem>>, vector<1x192x128xf32>
    %51 = vector.shape_cast %50 : vector<1x192x128xf32> to vector<192x128xf32>
    %52 = vector.shape_cast %49 : vector<192x128xf32> to vector<1x192x128xf32>
    tpu.vector_store %arg14[%c6_42, %c0_43, %c0_44], %52 {strides = array<i32>} : memref<8x192x128xf32, #tpu.memory_space<vmem>>, vector<1x192x128xf32>,
    %c7 = arith.constant 7 : index
    %c0_45 = arith.constant 0 : index
    %c0_46 = arith.constant 0 : index
    %53 = vector.load %arg1[%c7, %c0_45, %c0_46] : memref<8x64x128xbf16, #tpu.memory_space<vmem>>, vector<1x64x128xbf16>
    %54 = vector.shape_cast %53 : vector<1x64x128xbf16> to vector<64x128xbf16>
    %cst_47 = arith.constant dense<0.000000e+00> : vector<192x128xf32>
    %55 = tpu.matmul %0, %54, %cst_47 {dimension_numbers = #tpu.dot_dimension_numbers<[1], [0], [0], [1], [0, 0, 1, 1], [], []>} : vector<192x64xbf16>, vector<64x128xbf16>, vector<192x128xf32> -> vector<192x128xf32>
    %56 = arith.addf %55, %3 : vector<192x128xf32>
    %c7_48 = arith.constant 7 : index
    %c0_49 = arith.constant 0 : index
    %c0_50 = arith.constant 0 : index
    %57 = vector.load %arg14[%c7_48, %c0_49, %c0_50] : memref<8x192x128xf32, #tpu.memory_space<vmem>>, vector<1x192x128xf32>
    %58 = vector.shape_cast %57 : vector<1x192x128xf32> to vector<192x128xf32>
    %59 = vector.shape_cast %56 : vector<192x128xf32> to vector<1x192x128xf32>
    tpu.vector_store %arg14[%c7_48, %c0_49, %c0_50], %59 {strides = array<i32>} : memref<8x192x128xf32, #tpu.memory_space<vmem>>, vector<1x192x128xf32>,
    %c0_51 = arith.constant 0 : index
    %c0_52 = arith.constant 0 : index
    %c0_53 = arith.constant 0 : index
    %60 = vector.load %arg4[%c0_51, %c0_52, %c0_53] : memref<2x96x32xf32, #tpu.memory_space<vmem>>, vector<1x96x32xf32>
    %61 = vector.shape_cast %60 : vector<1x96x32xf32> to vector<96x32xf32>
    %c1_54 = arith.constant 1 : index
    %c0_55 = arith.constant 0 : index
    %c0_56 = arith.constant 0 : index
    %62 = vector.load %arg4[%c1_54, %c0_55, %c0_56] : memref<2x96x32xf32, #tpu.memory_space<vmem>>, vector<1x96x32xf32>
    %63 = vector.shape_cast %62 : vector<1x96x32xf32> to vector<96x32xf32>
    %c0_57 = arith.constant 0 : index
    %c0_58 = arith.constant 0 : index
    %c0_59 = arith.constant 0 : index
    %64 = vector.load %arg6[%c0_57, %c0_58, %c0_59] : memref<2x32x1xf32, #tpu.memory_space<vmem>>, vector<1x32x1xf32>
    %65 = vector.shape_cast %64 : vector<1x32x1xf32> to vector<32x1xf32>
    %66 = vector.shape_cast %65 : vector<32x1xf32> to vector<32x1xf32>
    %67 = vector.broadcast %66 : vector<32x1xf32> to vector<32x128xf32>
    %c1_60 = arith.constant 1 : index
    %c0_61 = arith.constant 0 : index
    %c0_62 = arith.constant 0 : index
    %68 = vector.load %arg6[%c1_60, %c0_61, %c0_62] : memref<2x32x1xf32, #tpu.memory_space<vmem>>, vector<1x32x1xf32>
    %69 = vector.shape_cast %68 : vector<1x32x1xf32> to vector<32x1xf32>
    %70 = vector.shape_cast %69 : vector<32x1xf32> to vector<32x1xf32>
    %71 = vector.broadcast %70 : vector<32x1xf32> to vector<32x128xf32>
    %c0_63 = arith.constant 0 : index
    %c0_64 = arith.constant 0 : index
    %c0_65 = arith.constant 0 : index
    %72 = vector.load %arg2[%c0_63, %c0_64, %c0_65] : memref<2x32x128xf32, #tpu.memory_space<vmem>>, vector<1x32x128xf32>
    %73 = vector.shape_cast %72 : vector<1x32x128xf32> to vector<32x128xf32>
    %c1_66 = arith.constant 1 : index
    %c0_67 = arith.constant 0 : index
    %c0_68 = arith.constant 0 : index
    %74 = vector.load %arg2[%c1_66, %c0_67, %c0_68] : memref<2x32x128xf32, #tpu.memory_space<vmem>>, vector<1x32x128xf32>
    %75 = vector.shape_cast %74 : vector<1x32x128xf32> to vector<32x128xf32>
    %c0_69 = arith.constant 0 : index
    %c0_70 = arith.constant 0 : index
    %c0_71 = arith.constant 0 : index
    %76 = vector.load %arg14[%c0_69, %c0_70, %c0_71] : memref<8x192x128xf32, #tpu.memory_space<vmem>>, vector<1x96x128xf32>
    %77 = vector.shape_cast %76 : vector<1x96x128xf32> to vector<96x128xf32>
    %cst_72 = arith.constant dense<0.000000e+00> : vector<96x128xf32>
    %78 = tpu.matmul %61, %73, %cst_72 {dimension_numbers = #tpu.dot_dimension_numbers<[1], [0], [0], [1], [0, 0, 1, 1], [], []>} : vector<96x32xf32>, vector<32x128xf32>, vector<96x128xf32> -> vector<96x128xf32>
    %79 = vector.extract_strided_slice %77 {offsets = [0, 0], sizes = [64, 128], strides = [1, 1]} : vector<96x128xf32> to vector<64x128xf32>
    %80 = vector.extract_strided_slice %78 {offsets = [0, 0], sizes = [64, 128], strides = [1, 1]} : vector<96x128xf32> to vector<64x128xf32>
    %81 = arith.addf %79, %80 : vector<64x128xf32>
    %82 = arith.negf %81 : vector<64x128xf32>
    %83 = math.exp %82 : vector<64x128xf32>
    %cst_73 = arith.constant 1.000000e+00 : f32
    %84 = vector.broadcast %cst_73 : f32 to vector<64x128xf32>
    %85 = arith.addf %84, %83 : vector<64x128xf32>
    %86 = arith.divf %84, %85 : vector<64x128xf32>
    %87 = vector.extract_strided_slice %86 {offsets = [0, 0], sizes = [32, 128], strides = [1, 1]} : vector<64x128xf32> to vector<32x128xf32>
    %88 = vector.extract_strided_slice %86 {offsets = [32, 0], sizes = [32, 128], strides = [1, 1]} : vector<64x128xf32> to vector<32x128xf32>
    %89 = vector.extract_strided_slice %77 {offsets = [64, 0], sizes = [32, 128], strides = [1, 1]} : vector<96x128xf32> to vector<32x128xf32>
    %90 = vector.extract_strided_slice %78 {offsets = [64, 0], sizes = [32, 128], strides = [1, 1]} : vector<96x128xf32> to vector<32x128xf32>
    %91 = arith.addf %90, %67 : vector<32x128xf32>
    %92 = arith.mulf %87, %91 : vector<32x128xf32>
    %93 = arith.addf %89, %92 : vector<32x128xf32>
    %94 = math.tanh %93 : vector<32x128xf32>
    %cst_74 = arith.constant 1.000000e+00 : f32
    %95 = vector.broadcast %cst_74 : f32 to vector<32x128xf32>
    %96 = arith.subf %95, %88 : vector<32x128xf32>
    %97 = arith.mulf %96, %94 : vector<32x128xf32>
    %98 = arith.mulf %88, %73 : vector<32x128xf32>
    %99 = arith.addf %97, %98 : vector<32x128xf32>
    %c7_75 = arith.constant 7 : index
    %c96 = arith.constant 96 : index
    %c0_76 = arith.constant 0 : index
    %100 = vector.load %arg14[%c7_75, %c96, %c0_76] : memref<8x192x128xf32, #tpu.memory_space<vmem>>, vector<1x96x128xf32>
    %101 = vector.shape_cast %100 : vector<1x96x128xf32> to vector<96x128xf32>
    %cst_77 = arith.constant dense<0.000000e+00> : vector<96x128xf32>
    %102 = tpu.matmul %63, %75, %cst_77 {dimension_numbers = #tpu.dot_dimension_numbers<[1], [0], [0], [1], [0, 0, 1, 1], [], []>} : vector<96x32xf32>, vector<32x128xf32>, vector<96x128xf32> -> vector<96x128xf32>
    %103 = vector.extract_strided_slice %101 {offsets = [0, 0], sizes = [64, 128], strides = [1, 1]} : vector<96x128xf32> to vector<64x128xf32>
    %104 = vector.extract_strided_slice %102 {offsets = [0, 0], sizes = [64, 128], strides = [1, 1]} : vector<96x128xf32> to vector<64x128xf32>
    %105 = arith.addf %103, %104 : vector<64x128xf32>
    %106 = arith.negf %105 : vector<64x128xf32>
    %107 = math.exp %106 : vector<64x128xf32>
    %cst_78 = arith.constant 1.000000e+00 : f32
    %108 = vector.broadcast %cst_78 : f32 to vector<64x128xf32>
    %109 = arith.addf %108, %107 : vector<64x128xf32>
    %110 = arith.divf %108, %109 : vector<64x128xf32>
    %111 = vector.extract_strided_slice %110 {offsets = [0, 0], sizes = [32, 128], strides = [1, 1]} : vector<64x128xf32> to vector<32x128xf32>
    %112 = vector.extract_strided_slice %110 {offsets = [32, 0], sizes = [32, 128], strides = [1, 1]} : vector<64x128xf32> to vector<32x128xf32>
    %113 = vector.extract_strided_slice %101 {offsets = [64, 0], sizes = [32, 128], strides = [1, 1]} : vector<96x128xf32> to vector<32x128xf32>
    %114 = vector.extract_strided_slice %102 {offsets = [64, 0], sizes = [32, 128], strides = [1, 1]} : vector<96x128xf32> to vector<32x128xf32>
    %115 = arith.addf %114, %71 : vector<32x128xf32>
    %116 = arith.mulf %111, %115 : vector<32x128xf32>
    %117 = arith.addf %113, %116 : vector<32x128xf32>
    %118 = math.tanh %117 : vector<32x128xf32>
    %cst_79 = arith.constant 1.000000e+00 : f32
    %119 = vector.broadcast %cst_79 : f32 to vector<32x128xf32>
    %120 = arith.subf %119, %112 : vector<32x128xf32>
    %121 = arith.mulf %120, %118 : vector<32x128xf32>
    %122 = arith.mulf %112, %75 : vector<32x128xf32>
    %123 = arith.addf %121, %122 : vector<32x128xf32>
    %c0_80 = arith.constant 0 : index
    %c0_81 = arith.constant 0 : index
    %c0_82 = arith.constant 0 : index
    %124 = vector.load %arg15[%c0_80, %c0_81, %c0_82] : memref<8x64x128xf32, #tpu.memory_space<vmem>>, vector<1x32x128xf32>
    %125 = vector.shape_cast %124 : vector<1x32x128xf32> to vector<32x128xf32>
    %126 = vector.shape_cast %99 : vector<32x128xf32> to vector<1x32x128xf32>
    tpu.vector_store %arg15[%c0_80, %c0_81, %c0_82], %126 {strides = array<i32>} : memref<8x64x128xf32, #tpu.memory_space<vmem>>, vector<1x32x128xf32>,
    %c7_83 = arith.constant 7 : index
    %c32 = arith.constant 32 : index
    %c0_84 = arith.constant 0 : index
    %127 = vector.load %arg15[%c7_83, %c32, %c0_84] : memref<8x64x128xf32, #tpu.memory_space<vmem>>, vector<1x32x128xf32>
    %128 = vector.shape_cast %127 : vector<1x32x128xf32> to vector<32x128xf32>
    %129 = vector.shape_cast %123 : vector<32x128xf32> to vector<1x32x128xf32>
    tpu.vector_store %arg15[%c7_83, %c32, %c0_84], %129 {strides = array<i32>} : memref<8x64x128xf32, #tpu.memory_space<vmem>>, vector<1x32x128xf32>,
    %c1_85 = arith.constant 1 : index
    %c0_86 = arith.constant 0 : index
    %c0_87 = arith.constant 0 : index
    %130 = vector.load %arg14[%c1_85, %c0_86, %c0_87] : memref<8x192x128xf32, #tpu.memory_space<vmem>>, vector<1x96x128xf32>
    %131 = vector.shape_cast %130 : vector<1x96x128xf32> to vector<96x128xf32>
    %cst_88 = arith.constant dense<0.000000e+00> : vector<96x128xf32>
    %132 = tpu.matmul %61, %99, %cst_88 {dimension_numbers = #tpu.dot_dimension_numbers<[1], [0], [0], [1], [0, 0, 1, 1], [], []>} : vector<96x32xf32>, vector<32x128xf32>, vector<96x128xf32> -> vector<96x128xf32>
    %133 = vector.extract_strided_slice %131 {offsets = [0, 0], sizes = [64, 128], strides = [1, 1]} : vector<96x128xf32> to vector<64x128xf32>
    %134 = vector.extract_strided_slice %132 {offsets = [0, 0], sizes = [64, 128], strides = [1, 1]} : vector<96x128xf32> to vector<64x128xf32>
    %135 = arith.addf %133, %134 : vector<64x128xf32>
    %136 = arith.negf %135 : vector<64x128xf32>
    %137 = math.exp %136 : vector<64x128xf32>
    %cst_89 = arith.constant 1.000000e+00 : f32
    %138 = vector.broadcast %cst_89 : f32 to vector<64x128xf32>
    %139 = arith.addf %138, %137 : vector<64x128xf32>
    %140 = arith.divf %138, %139 : vector<64x128xf32>
    %141 = vector.extract_strided_slice %140 {offsets = [0, 0], sizes = [32, 128], strides = [1, 1]} : vector<64x128xf32> to vector<32x128xf32>
    %142 = vector.extract_strided_slice %140 {offsets = [32, 0], sizes = [32, 128], strides = [1, 1]} : vector<64x128xf32> to vector<32x128xf32>
    %143 = vector.extract_strided_slice %131 {offsets = [64, 0], sizes = [32, 128], strides = [1, 1]} : vector<96x128xf32> to vector<32x128xf32>
    %144 = vector.extract_strided_slice %132 {offsets = [64, 0], sizes = [32, 128], strides = [1, 1]} : vector<96x128xf32> to vector<32x128xf32>
    %145 = arith.addf %144, %67 : vector<32x128xf32>
    %146 = arith.mulf %141, %145 : vector<32x128xf32>
    %147 = arith.addf %143, %146 : vector<32x128xf32>
    %148 = math.tanh %147 : vector<32x128xf32>
    %cst_90 = arith.constant 1.000000e+00 : f32
    %149 = vector.broadcast %cst_90 : f32 to vector<32x128xf32>
    %150 = arith.subf %149, %142 : vector<32x128xf32>
    %151 = arith.mulf %150, %148 : vector<32x128xf32>
    %152 = arith.mulf %142, %99 : vector<32x128xf32>
    %153 = arith.addf %151, %152 : vector<32x128xf32>
    %c6_91 = arith.constant 6 : index
    %c96_92 = arith.constant 96 : index
    %c0_93 = arith.constant 0 : index
    %154 = vector.load %arg14[%c6_91, %c96_92, %c0_93] : memref<8x192x128xf32, #tpu.memory_space<vmem>>, vector<1x96x128xf32>
    %155 = vector.shape_cast %154 : vector<1x96x128xf32> to vector<96x128xf32>
    %cst_94 = arith.constant dense<0.000000e+00> : vector<96x128xf32>
    %156 = tpu.matmul %63, %123, %cst_94 {dimension_numbers = #tpu.dot_dimension_numbers<[1], [0], [0], [1], [0, 0, 1, 1], [], []>} : vector<96x32xf32>, vector<32x128xf32>, vector<96x128xf32> -> vector<96x128xf32>
    %157 = vector.extract_strided_slice %155 {offsets = [0, 0], sizes = [64, 128], strides = [1, 1]} : vector<96x128xf32> to vector<64x128xf32>
    %158 = vector.extract_strided_slice %156 {offsets = [0, 0], sizes = [64, 128], strides = [1, 1]} : vector<96x128xf32> to vector<64x128xf32>
    %159 = arith.addf %157, %158 : vector<64x128xf32>
    %160 = arith.negf %159 : vector<64x128xf32>
    %161 = math.exp %160 : vector<64x128xf32>
    %cst_95 = arith.constant 1.000000e+00 : f32
    %162 = vector.broadcast %cst_95 : f32 to vector<64x128xf32>
    %163 = arith.addf %162, %161 : vector<64x128xf32>
    %164 = arith.divf %162, %163 : vector<64x128xf32>
    %165 = vector.extract_strided_slice %164 {offsets = [0, 0], sizes = [32, 128], strides = [1, 1]} : vector<64x128xf32> to vector<32x128xf32>
    %166 = vector.extract_strided_slice %164 {offsets = [32, 0], sizes = [32, 128], strides = [1, 1]} : vector<64x128xf32> to vector<32x128xf32>
    %167 = vector.extract_strided_slice %155 {offsets = [64, 0], sizes = [32, 128], strides = [1, 1]} : vector<96x128xf32> to vector<32x128xf32>
    %168 = vector.extract_strided_slice %156 {offsets = [64, 0], sizes = [32, 128], strides = [1, 1]} : vector<96x128xf32> to vector<32x128xf32>
    %169 = arith.addf %168, %71 : vector<32x128xf32>
    %170 = arith.mulf %165, %169 : vector<32x128xf32>
    %171 = arith.addf %167, %170 : vector<32x128xf32>
    %172 = math.tanh %171 : vector<32x128xf32>
    %cst_96 = arith.constant 1.000000e+00 : f32
    %173 = vector.broadcast %cst_96 : f32 to vector<32x128xf32>
    %174 = arith.subf %173, %166 : vector<32x128xf32>
    %175 = arith.mulf %174, %172 : vector<32x128xf32>
    %176 = arith.mulf %166, %123 : vector<32x128xf32>
    %177 = arith.addf %175, %176 : vector<32x128xf32>
    %c1_97 = arith.constant 1 : index
    %c0_98 = arith.constant 0 : index
    %c0_99 = arith.constant 0 : index
    %178 = vector.load %arg15[%c1_97, %c0_98, %c0_99] : memref<8x64x128xf32, #tpu.memory_space<vmem>>, vector<1x32x128xf32>
    %179 = vector.shape_cast %178 : vector<1x32x128xf32> to vector<32x128xf32>
    %180 = vector.shape_cast %153 : vector<32x128xf32> to vector<1x32x128xf32>
    tpu.vector_store %arg15[%c1_97, %c0_98, %c0_99], %180 {strides = array<i32>} : memref<8x64x128xf32, #tpu.memory_space<vmem>>, vector<1x32x128xf32>,
    %c6_100 = arith.constant 6 : index
    %c32_101 = arith.constant 32 : index
    %c0_102 = arith.constant 0 : index
    %181 = vector.load %arg15[%c6_100, %c32_101, %c0_102] : memref<8x64x128xf32, #tpu.memory_space<vmem>>, vector<1x32x128xf32>
    %182 = vector.shape_cast %181 : vector<1x32x128xf32> to vector<32x128xf32>
    %183 = vector.shape_cast %177 : vector<32x128xf32> to vector<1x32x128xf32>
    tpu.vector_store %arg15[%c6_100, %c32_101, %c0_102], %183 {strides = array<i32>} : memref<8x64x128xf32, #tpu.memory_space<vmem>>, vector<1x32x128xf32>,
    %c2_103 = arith.constant 2 : index
    %c0_104 = arith.constant 0 : index
    %c0_105 = arith.constant 0 : index
    %184 = vector.load %arg14[%c2_103, %c0_104, %c0_105] : memref<8x192x128xf32, #tpu.memory_space<vmem>>, vector<1x96x128xf32>
    %185 = vector.shape_cast %184 : vector<1x96x128xf32> to vector<96x128xf32>
    %cst_106 = arith.constant dense<0.000000e+00> : vector<96x128xf32>
    %186 = tpu.matmul %61, %153, %cst_106 {dimension_numbers = #tpu.dot_dimension_numbers<[1], [0], [0], [1], [0, 0, 1, 1], [], []>} : vector<96x32xf32>, vector<32x128xf32>, vector<96x128xf32> -> vector<96x128xf32>
    %187 = vector.extract_strided_slice %185 {offsets = [0, 0], sizes = [64, 128], strides = [1, 1]} : vector<96x128xf32> to vector<64x128xf32>
    %188 = vector.extract_strided_slice %186 {offsets = [0, 0], sizes = [64, 128], strides = [1, 1]} : vector<96x128xf32> to vector<64x128xf32>
    %189 = arith.addf %187, %188 : vector<64x128xf32>
    %190 = arith.negf %189 : vector<64x128xf32>
    %191 = math.exp %190 : vector<64x128xf32>
    %cst_107 = arith.constant 1.000000e+00 : f32
    %192 = vector.broadcast %cst_107 : f32 to vector<64x128xf32>
    %193 = arith.addf %192, %191 : vector<64x128xf32>
    %194 = arith.divf %192, %193 : vector<64x128xf32>
    %195 = vector.extract_strided_slice %194 {offsets = [0, 0], sizes = [32, 128], strides = [1, 1]} : vector<64x128xf32> to vector<32x128xf32>
    %196 = vector.extract_strided_slice %194 {offsets = [32, 0], sizes = [32, 128], strides = [1, 1]} : vector<64x128xf32> to vector<32x128xf32>
    %197 = vector.extract_strided_slice %185 {offsets = [64, 0], sizes = [32, 128], strides = [1, 1]} : vector<96x128xf32> to vector<32x128xf32>
    %198 = vector.extract_strided_slice %186 {offsets = [64, 0], sizes = [32, 128], strides = [1, 1]} : vector<96x128xf32> to vector<32x128xf32>
    %199 = arith.addf %198, %67 : vector<32x128xf32>
    %200 = arith.mulf %195, %199 : vector<32x128xf32>
    %201 = arith.addf %197, %200 : vector<32x128xf32>
    %202 = math.tanh %201 : vector<32x128xf32>
    %cst_108 = arith.constant 1.000000e+00 : f32
    %203 = vector.broadcast %cst_108 : f32 to vector<32x128xf32>
    %204 = arith.subf %203, %196 : vector<32x128xf32>
    %205 = arith.mulf %204, %202 : vector<32x128xf32>
    %206 = arith.mulf %196, %153 : vector<32x128xf32>
    %207 = arith.addf %205, %206 : vector<32x128xf32>
    %c5_109 = arith.constant 5 : index
    %c96_110 = arith.constant 96 : index
    %c0_111 = arith.constant 0 : index
    %208 = vector.load %arg14[%c5_109, %c96_110, %c0_111] : memref<8x192x128xf32, #tpu.memory_space<vmem>>, vector<1x96x128xf32>
    %209 = vector.shape_cast %208 : vector<1x96x128xf32> to vector<96x128xf32>
    %cst_112 = arith.constant dense<0.000000e+00> : vector<96x128xf32>
    %210 = tpu.matmul %63, %177, %cst_112 {dimension_numbers = #tpu.dot_dimension_numbers<[1], [0], [0], [1], [0, 0, 1, 1], [], []>} : vector<96x32xf32>, vector<32x128xf32>, vector<96x128xf32> -> vector<96x128xf32>
    %211 = vector.extract_strided_slice %209 {offsets = [0, 0], sizes = [64, 128], strides = [1, 1]} : vector<96x128xf32> to vector<64x128xf32>
    %212 = vector.extract_strided_slice %210 {offsets = [0, 0], sizes = [64, 128], strides = [1, 1]} : vector<96x128xf32> to vector<64x128xf32>
    %213 = arith.addf %211, %212 : vector<64x128xf32>
    %214 = arith.negf %213 : vector<64x128xf32>
    %215 = math.exp %214 : vector<64x128xf32>
    %cst_113 = arith.constant 1.000000e+00 : f32
    %216 = vector.broadcast %cst_113 : f32 to vector<64x128xf32>
    %217 = arith.addf %216, %215 : vector<64x128xf32>
    %218 = arith.divf %216, %217 : vector<64x128xf32>
    %219 = vector.extract_strided_slice %218 {offsets = [0, 0], sizes = [32, 128], strides = [1, 1]} : vector<64x128xf32> to vector<32x128xf32>
    %220 = vector.extract_strided_slice %218 {offsets = [32, 0], sizes = [32, 128], strides = [1, 1]} : vector<64x128xf32> to vector<32x128xf32>
    %221 = vector.extract_strided_slice %209 {offsets = [64, 0], sizes = [32, 128], strides = [1, 1]} : vector<96x128xf32> to vector<32x128xf32>
    %222 = vector.extract_strided_slice %210 {offsets = [64, 0], sizes = [32, 128], strides = [1, 1]} : vector<96x128xf32> to vector<32x128xf32>
    %223 = arith.addf %222, %71 : vector<32x128xf32>
    %224 = arith.mulf %219, %223 : vector<32x128xf32>
    %225 = arith.addf %221, %224 : vector<32x128xf32>
    %226 = math.tanh %225 : vector<32x128xf32>
    %cst_114 = arith.constant 1.000000e+00 : f32
    %227 = vector.broadcast %cst_114 : f32 to vector<32x128xf32>
    %228 = arith.subf %227, %220 : vector<32x128xf32>
    %229 = arith.mulf %228, %226 : vector<32x128xf32>
    %230 = arith.mulf %220, %177 : vector<32x128xf32>
    %231 = arith.addf %229, %230 : vector<32x128xf32>
    %c2_115 = arith.constant 2 : index
    %c0_116 = arith.constant 0 : index
    %c0_117 = arith.constant 0 : index
    %232 = vector.load %arg15[%c2_115, %c0_116, %c0_117] : memref<8x64x128xf32, #tpu.memory_space<vmem>>, vector<1x32x128xf32>
    %233 = vector.shape_cast %232 : vector<1x32x128xf32> to vector<32x128xf32>
    %234 = vector.shape_cast %207 : vector<32x128xf32> to vector<1x32x128xf32>
    tpu.vector_store %arg15[%c2_115, %c0_116, %c0_117], %234 {strides = array<i32>} : memref<8x64x128xf32, #tpu.memory_space<vmem>>, vector<1x32x128xf32>,
    %c5_118 = arith.constant 5 : index
    %c32_119 = arith.constant 32 : index
    %c0_120 = arith.constant 0 : index
    %235 = vector.load %arg15[%c5_118, %c32_119, %c0_120] : memref<8x64x128xf32, #tpu.memory_space<vmem>>, vector<1x32x128xf32>
    %236 = vector.shape_cast %235 : vector<1x32x128xf32> to vector<32x128xf32>
    %237 = vector.shape_cast %231 : vector<32x128xf32> to vector<1x32x128xf32>
    tpu.vector_store %arg15[%c5_118, %c32_119, %c0_120], %237 {strides = array<i32>} : memref<8x64x128xf32, #tpu.memory_space<vmem>>, vector<1x32x128xf32>,
    %c3_121 = arith.constant 3 : index
    %c0_122 = arith.constant 0 : index
    %c0_123 = arith.constant 0 : index
    %238 = vector.load %arg14[%c3_121, %c0_122, %c0_123] : memref<8x192x128xf32, #tpu.memory_space<vmem>>, vector<1x96x128xf32>
    %239 = vector.shape_cast %238 : vector<1x96x128xf32> to vector<96x128xf32>
    %cst_124 = arith.constant dense<0.000000e+00> : vector<96x128xf32>
    %240 = tpu.matmul %61, %207, %cst_124 {dimension_numbers = #tpu.dot_dimension_numbers<[1], [0], [0], [1], [0, 0, 1, 1], [], []>} : vector<96x32xf32>, vector<32x128xf32>, vector<96x128xf32> -> vector<96x128xf32>
    %241 = vector.extract_strided_slice %239 {offsets = [0, 0], sizes = [64, 128], strides = [1, 1]} : vector<96x128xf32> to vector<64x128xf32>
    %242 = vector.extract_strided_slice %240 {offsets = [0, 0], sizes = [64, 128], strides = [1, 1]} : vector<96x128xf32> to vector<64x128xf32>
    %243 = arith.addf %241, %242 : vector<64x128xf32>
    %244 = arith.negf %243 : vector<64x128xf32>
    %245 = math.exp %244 : vector<64x128xf32>
    %cst_125 = arith.constant 1.000000e+00 : f32
    %246 = vector.broadcast %cst_125 : f32 to vector<64x128xf32>
    %247 = arith.addf %246, %245 : vector<64x128xf32>
    %248 = arith.divf %246, %247 : vector<64x128xf32>
    %249 = vector.extract_strided_slice %248 {offsets = [0, 0], sizes = [32, 128], strides = [1, 1]} : vector<64x128xf32> to vector<32x128xf32>
    %250 = vector.extract_strided_slice %248 {offsets = [32, 0], sizes = [32, 128], strides = [1, 1]} : vector<64x128xf32> to vector<32x128xf32>
    %251 = vector.extract_strided_slice %239 {offsets = [64, 0], sizes = [32, 128], strides = [1, 1]} : vector<96x128xf32> to vector<32x128xf32>
    %252 = vector.extract_strided_slice %240 {offsets = [64, 0], sizes = [32, 128], strides = [1, 1]} : vector<96x128xf32> to vector<32x128xf32>
    %253 = arith.addf %252, %67 : vector<32x128xf32>
    %254 = arith.mulf %249, %253 : vector<32x128xf32>
    %255 = arith.addf %251, %254 : vector<32x128xf32>
    %256 = math.tanh %255 : vector<32x128xf32>
    %cst_126 = arith.constant 1.000000e+00 : f32
    %257 = vector.broadcast %cst_126 : f32 to vector<32x128xf32>
    %258 = arith.subf %257, %250 : vector<32x128xf32>
    %259 = arith.mulf %258, %256 : vector<32x128xf32>
    %260 = arith.mulf %250, %207 : vector<32x128xf32>
    %261 = arith.addf %259, %260 : vector<32x128xf32>
    %c4_127 = arith.constant 4 : index
    %c96_128 = arith.constant 96 : index
    %c0_129 = arith.constant 0 : index
    %262 = vector.load %arg14[%c4_127, %c96_128, %c0_129] : memref<8x192x128xf32, #tpu.memory_space<vmem>>, vector<1x96x128xf32>
    %263 = vector.shape_cast %262 : vector<1x96x128xf32> to vector<96x128xf32>
    %cst_130 = arith.constant dense<0.000000e+00> : vector<96x128xf32>
    %264 = tpu.matmul %63, %231, %cst_130 {dimension_numbers = #tpu.dot_dimension_numbers<[1], [0], [0], [1], [0, 0, 1, 1], [], []>} : vector<96x32xf32>, vector<32x128xf32>, vector<96x128xf32> -> vector<96x128xf32>
    %265 = vector.extract_strided_slice %263 {offsets = [0, 0], sizes = [64, 128], strides = [1, 1]} : vector<96x128xf32> to vector<64x128xf32>
    %266 = vector.extract_strided_slice %264 {offsets = [0, 0], sizes = [64, 128], strides = [1, 1]} : vector<96x128xf32> to vector<64x128xf32>
    %267 = arith.addf %265, %266 : vector<64x128xf32>
    %268 = arith.negf %267 : vector<64x128xf32>
    %269 = math.exp %268 : vector<64x128xf32>
    %cst_131 = arith.constant 1.000000e+00 : f32
    %270 = vector.broadcast %cst_131 : f32 to vector<64x128xf32>
    %271 = arith.addf %270, %269 : vector<64x128xf32>
    %272 = arith.divf %270, %271 : vector<64x128xf32>
    %273 = vector.extract_strided_slice %272 {offsets = [0, 0], sizes = [32, 128], strides = [1, 1]} : vector<64x128xf32> to vector<32x128xf32>
    %274 = vector.extract_strided_slice %272 {offsets = [32, 0], sizes = [32, 128], strides = [1, 1]} : vector<64x128xf32> to vector<32x128xf32>
    %275 = vector.extract_strided_slice %263 {offsets = [64, 0], sizes = [32, 128], strides = [1, 1]} : vector<96x128xf32> to vector<32x128xf32>
    %276 = vector.extract_strided_slice %264 {offsets = [64, 0], sizes = [32, 128], strides = [1, 1]} : vector<96x128xf32> to vector<32x128xf32>
    %277 = arith.addf %276, %71 : vector<32x128xf32>
    %278 = arith.mulf %273, %277 : vector<32x128xf32>
    %279 = arith.addf %275, %278 : vector<32x128xf32>
    %280 = math.tanh %279 : vector<32x128xf32>
    %cst_132 = arith.constant 1.000000e+00 : f32
    %281 = vector.broadcast %cst_132 : f32 to vector<32x128xf32>
    %282 = arith.subf %281, %274 : vector<32x128xf32>
    %283 = arith.mulf %282, %280 : vector<32x128xf32>
    %284 = arith.mulf %274, %231 : vector<32x128xf32>
    %285 = arith.addf %283, %284 : vector<32x128xf32>
    %c3_133 = arith.constant 3 : index
    %c0_134 = arith.constant 0 : index
    %c0_135 = arith.constant 0 : index
    %286 = vector.load %arg15[%c3_133, %c0_134, %c0_135] : memref<8x64x128xf32, #tpu.memory_space<vmem>>, vector<1x32x128xf32>
    %287 = vector.shape_cast %286 : vector<1x32x128xf32> to vector<32x128xf32>
    %288 = vector.shape_cast %261 : vector<32x128xf32> to vector<1x32x128xf32>
    tpu.vector_store %arg15[%c3_133, %c0_134, %c0_135], %288 {strides = array<i32>} : memref<8x64x128xf32, #tpu.memory_space<vmem>>, vector<1x32x128xf32>,
    %c4_136 = arith.constant 4 : index
    %c32_137 = arith.constant 32 : index
    %c0_138 = arith.constant 0 : index
    %289 = vector.load %arg15[%c4_136, %c32_137, %c0_138] : memref<8x64x128xf32, #tpu.memory_space<vmem>>, vector<1x32x128xf32>
    %290 = vector.shape_cast %289 : vector<1x32x128xf32> to vector<32x128xf32>
    %291 = vector.shape_cast %285 : vector<32x128xf32> to vector<1x32x128xf32>
    tpu.vector_store %arg15[%c4_136, %c32_137, %c0_138], %291 {strides = array<i32>} : memref<8x64x128xf32, #tpu.memory_space<vmem>>, vector<1x32x128xf32>,
    %c4_139 = arith.constant 4 : index
    %c0_140 = arith.constant 0 : index
    %c0_141 = arith.constant 0 : index
    %292 = vector.load %arg14[%c4_139, %c0_140, %c0_141] : memref<8x192x128xf32, #tpu.memory_space<vmem>>, vector<1x96x128xf32>
    %293 = vector.shape_cast %292 : vector<1x96x128xf32> to vector<96x128xf32>
    %cst_142 = arith.constant dense<0.000000e+00> : vector<96x128xf32>
    %294 = tpu.matmul %61, %261, %cst_142 {dimension_numbers = #tpu.dot_dimension_numbers<[1], [0], [0], [1], [0, 0, 1, 1], [], []>} : vector<96x32xf32>, vector<32x128xf32>, vector<96x128xf32> -> vector<96x128xf32>
    %295 = vector.extract_strided_slice %293 {offsets = [0, 0], sizes = [64, 128], strides = [1, 1]} : vector<96x128xf32> to vector<64x128xf32>
    %296 = vector.extract_strided_slice %294 {offsets = [0, 0], sizes = [64, 128], strides = [1, 1]} : vector<96x128xf32> to vector<64x128xf32>
    %297 = arith.addf %295, %296 : vector<64x128xf32>
    %298 = arith.negf %297 : vector<64x128xf32>
    %299 = math.exp %298 : vector<64x128xf32>
    %cst_143 = arith.constant 1.000000e+00 : f32
    %300 = vector.broadcast %cst_143 : f32 to vector<64x128xf32>
    %301 = arith.addf %300, %299 : vector<64x128xf32>
    %302 = arith.divf %300, %301 : vector<64x128xf32>
    %303 = vector.extract_strided_slice %302 {offsets = [0, 0], sizes = [32, 128], strides = [1, 1]} : vector<64x128xf32> to vector<32x128xf32>
    %304 = vector.extract_strided_slice %302 {offsets = [32, 0], sizes = [32, 128], strides = [1, 1]} : vector<64x128xf32> to vector<32x128xf32>
    %305 = vector.extract_strided_slice %293 {offsets = [64, 0], sizes = [32, 128], strides = [1, 1]} : vector<96x128xf32> to vector<32x128xf32>
    %306 = vector.extract_strided_slice %294 {offsets = [64, 0], sizes = [32, 128], strides = [1, 1]} : vector<96x128xf32> to vector<32x128xf32>
    %307 = arith.addf %306, %67 : vector<32x128xf32>
    %308 = arith.mulf %303, %307 : vector<32x128xf32>
    %309 = arith.addf %305, %308 : vector<32x128xf32>
    %310 = math.tanh %309 : vector<32x128xf32>
    %cst_144 = arith.constant 1.000000e+00 : f32
    %311 = vector.broadcast %cst_144 : f32 to vector<32x128xf32>
    %312 = arith.subf %311, %304 : vector<32x128xf32>
    %313 = arith.mulf %312, %310 : vector<32x128xf32>
    %314 = arith.mulf %304, %261 : vector<32x128xf32>
    %315 = arith.addf %313, %314 : vector<32x128xf32>
    %c3_145 = arith.constant 3 : index
    %c96_146 = arith.constant 96 : index
    %c0_147 = arith.constant 0 : index
    %316 = vector.load %arg14[%c3_145, %c96_146, %c0_147] : memref<8x192x128xf32, #tpu.memory_space<vmem>>, vector<1x96x128xf32>
    %317 = vector.shape_cast %316 : vector<1x96x128xf32> to vector<96x128xf32>
    %cst_148 = arith.constant dense<0.000000e+00> : vector<96x128xf32>
    %318 = tpu.matmul %63, %285, %cst_148 {dimension_numbers = #tpu.dot_dimension_numbers<[1], [0], [0], [1], [0, 0, 1, 1], [], []>} : vector<96x32xf32>, vector<32x128xf32>, vector<96x128xf32> -> vector<96x128xf32>
    %319 = vector.extract_strided_slice %317 {offsets = [0, 0], sizes = [64, 128], strides = [1, 1]} : vector<96x128xf32> to vector<64x128xf32>
    %320 = vector.extract_strided_slice %318 {offsets = [0, 0], sizes = [64, 128], strides = [1, 1]} : vector<96x128xf32> to vector<64x128xf32>
    %321 = arith.addf %319, %320 : vector<64x128xf32>
    %322 = arith.negf %321 : vector<64x128xf32>
    %323 = math.exp %322 : vector<64x128xf32>
    %cst_149 = arith.constant 1.000000e+00 : f32
    %324 = vector.broadcast %cst_149 : f32 to vector<64x128xf32>
    %325 = arith.addf %324, %323 : vector<64x128xf32>
    %326 = arith.divf %324, %325 : vector<64x128xf32>
    %327 = vector.extract_strided_slice %326 {offsets = [0, 0], sizes = [32, 128], strides = [1, 1]} : vector<64x128xf32> to vector<32x128xf32>
    %328 = vector.extract_strided_slice %326 {offsets = [32, 0], sizes = [32, 128], strides = [1, 1]} : vector<64x128xf32> to vector<32x128xf32>
    %329 = vector.extract_strided_slice %317 {offsets = [64, 0], sizes = [32, 128], strides = [1, 1]} : vector<96x128xf32> to vector<32x128xf32>
    %330 = vector.extract_strided_slice %318 {offsets = [64, 0], sizes = [32, 128], strides = [1, 1]} : vector<96x128xf32> to vector<32x128xf32>
    %331 = arith.addf %330, %71 : vector<32x128xf32>
    %332 = arith.mulf %327, %331 : vector<32x128xf32>
    %333 = arith.addf %329, %332 : vector<32x128xf32>
    %334 = math.tanh %333 : vector<32x128xf32>
    %cst_150 = arith.constant 1.000000e+00 : f32
    %335 = vector.broadcast %cst_150 : f32 to vector<32x128xf32>
    %336 = arith.subf %335, %328 : vector<32x128xf32>
    %337 = arith.mulf %336, %334 : vector<32x128xf32>
    %338 = arith.mulf %328, %285 : vector<32x128xf32>
    %339 = arith.addf %337, %338 : vector<32x128xf32>
    %c4_151 = arith.constant 4 : index
    %c0_152 = arith.constant 0 : index
    %c0_153 = arith.constant 0 : index
    %340 = vector.load %arg15[%c4_151, %c0_152, %c0_153] : memref<8x64x128xf32, #tpu.memory_space<vmem>>, vector<1x32x128xf32>
    %341 = vector.shape_cast %340 : vector<1x32x128xf32> to vector<32x128xf32>
    %342 = vector.shape_cast %315 : vector<32x128xf32> to vector<1x32x128xf32>
    tpu.vector_store %arg15[%c4_151, %c0_152, %c0_153], %342 {strides = array<i32>} : memref<8x64x128xf32, #tpu.memory_space<vmem>>, vector<1x32x128xf32>,
    %c3_154 = arith.constant 3 : index
    %c32_155 = arith.constant 32 : index
    %c0_156 = arith.constant 0 : index
    %343 = vector.load %arg15[%c3_154, %c32_155, %c0_156] : memref<8x64x128xf32, #tpu.memory_space<vmem>>, vector<1x32x128xf32>
    %344 = vector.shape_cast %343 : vector<1x32x128xf32> to vector<32x128xf32>
    %345 = vector.shape_cast %339 : vector<32x128xf32> to vector<1x32x128xf32>
    tpu.vector_store %arg15[%c3_154, %c32_155, %c0_156], %345 {strides = array<i32>} : memref<8x64x128xf32, #tpu.memory_space<vmem>>, vector<1x32x128xf32>,
    %c5_157 = arith.constant 5 : index
    %c0_158 = arith.constant 0 : index
    %c0_159 = arith.constant 0 : index
    %346 = vector.load %arg14[%c5_157, %c0_158, %c0_159] : memref<8x192x128xf32, #tpu.memory_space<vmem>>, vector<1x96x128xf32>
    %347 = vector.shape_cast %346 : vector<1x96x128xf32> to vector<96x128xf32>
    %cst_160 = arith.constant dense<0.000000e+00> : vector<96x128xf32>
    %348 = tpu.matmul %61, %315, %cst_160 {dimension_numbers = #tpu.dot_dimension_numbers<[1], [0], [0], [1], [0, 0, 1, 1], [], []>} : vector<96x32xf32>, vector<32x128xf32>, vector<96x128xf32> -> vector<96x128xf32>
    %349 = vector.extract_strided_slice %347 {offsets = [0, 0], sizes = [64, 128], strides = [1, 1]} : vector<96x128xf32> to vector<64x128xf32>
    %350 = vector.extract_strided_slice %348 {offsets = [0, 0], sizes = [64, 128], strides = [1, 1]} : vector<96x128xf32> to vector<64x128xf32>
    %351 = arith.addf %349, %350 : vector<64x128xf32>
    %352 = arith.negf %351 : vector<64x128xf32>
    %353 = math.exp %352 : vector<64x128xf32>
    %cst_161 = arith.constant 1.000000e+00 : f32
    %354 = vector.broadcast %cst_161 : f32 to vector<64x128xf32>
    %355 = arith.addf %354, %353 : vector<64x128xf32>
    %356 = arith.divf %354, %355 : vector<64x128xf32>
    %357 = vector.extract_strided_slice %356 {offsets = [0, 0], sizes = [32, 128], strides = [1, 1]} : vector<64x128xf32> to vector<32x128xf32>
    %358 = vector.extract_strided_slice %356 {offsets = [32, 0], sizes = [32, 128], strides = [1, 1]} : vector<64x128xf32> to vector<32x128xf32>
    %359 = vector.extract_strided_slice %347 {offsets = [64, 0], sizes = [32, 128], strides = [1, 1]} : vector<96x128xf32> to vector<32x128xf32>
    %360 = vector.extract_strided_slice %348 {offsets = [64, 0], sizes = [32, 128], strides = [1, 1]} : vector<96x128xf32> to vector<32x128xf32>
    %361 = arith.addf %360, %67 : vector<32x128xf32>
    %362 = arith.mulf %357, %361 : vector<32x128xf32>
    %363 = arith.addf %359, %362 : vector<32x128xf32>
    %364 = math.tanh %363 : vector<32x128xf32>
    %cst_162 = arith.constant 1.000000e+00 : f32
    %365 = vector.broadcast %cst_162 : f32 to vector<32x128xf32>
    %366 = arith.subf %365, %358 : vector<32x128xf32>
    %367 = arith.mulf %366, %364 : vector<32x128xf32>
    %368 = arith.mulf %358, %315 : vector<32x128xf32>
    %369 = arith.addf %367, %368 : vector<32x128xf32>
    %c2_163 = arith.constant 2 : index
    %c96_164 = arith.constant 96 : index
    %c0_165 = arith.constant 0 : index
    %370 = vector.load %arg14[%c2_163, %c96_164, %c0_165] : memref<8x192x128xf32, #tpu.memory_space<vmem>>, vector<1x96x128xf32>
    %371 = vector.shape_cast %370 : vector<1x96x128xf32> to vector<96x128xf32>
    %cst_166 = arith.constant dense<0.000000e+00> : vector<96x128xf32>
    %372 = tpu.matmul %63, %339, %cst_166 {dimension_numbers = #tpu.dot_dimension_numbers<[1], [0], [0], [1], [0, 0, 1, 1], [], []>} : vector<96x32xf32>, vector<32x128xf32>, vector<96x128xf32> -> vector<96x128xf32>
    %373 = vector.extract_strided_slice %371 {offsets = [0, 0], sizes = [64, 128], strides = [1, 1]} : vector<96x128xf32> to vector<64x128xf32>
    %374 = vector.extract_strided_slice %372 {offsets = [0, 0], sizes = [64, 128], strides = [1, 1]} : vector<96x128xf32> to vector<64x128xf32>
    %375 = arith.addf %373, %374 : vector<64x128xf32>
    %376 = arith.negf %375 : vector<64x128xf32>
    %377 = math.exp %376 : vector<64x128xf32>
    %cst_167 = arith.constant 1.000000e+00 : f32
    %378 = vector.broadcast %cst_167 : f32 to vector<64x128xf32>
    %379 = arith.addf %378, %377 : vector<64x128xf32>
    %380 = arith.divf %378, %379 : vector<64x128xf32>
    %381 = vector.extract_strided_slice %380 {offsets = [0, 0], sizes = [32, 128], strides = [1, 1]} : vector<64x128xf32> to vector<32x128xf32>
    %382 = vector.extract_strided_slice %380 {offsets = [32, 0], sizes = [32, 128], strides = [1, 1]} : vector<64x128xf32> to vector<32x128xf32>
    %383 = vector.extract_strided_slice %371 {offsets = [64, 0], sizes = [32, 128], strides = [1, 1]} : vector<96x128xf32> to vector<32x128xf32>
    %384 = vector.extract_strided_slice %372 {offsets = [64, 0], sizes = [32, 128], strides = [1, 1]} : vector<96x128xf32> to vector<32x128xf32>
    %385 = arith.addf %384, %71 : vector<32x128xf32>
    %386 = arith.mulf %381, %385 : vector<32x128xf32>
    %387 = arith.addf %383, %386 : vector<32x128xf32>
    %388 = math.tanh %387 : vector<32x128xf32>
    %cst_168 = arith.constant 1.000000e+00 : f32
    %389 = vector.broadcast %cst_168 : f32 to vector<32x128xf32>
    %390 = arith.subf %389, %382 : vector<32x128xf32>
    %391 = arith.mulf %390, %388 : vector<32x128xf32>
    %392 = arith.mulf %382, %339 : vector<32x128xf32>
    %393 = arith.addf %391, %392 : vector<32x128xf32>
    %c5_169 = arith.constant 5 : index
    %c0_170 = arith.constant 0 : index
    %c0_171 = arith.constant 0 : index
    %394 = vector.load %arg15[%c5_169, %c0_170, %c0_171] : memref<8x64x128xf32, #tpu.memory_space<vmem>>, vector<1x32x128xf32>
    %395 = vector.shape_cast %394 : vector<1x32x128xf32> to vector<32x128xf32>
    %396 = vector.shape_cast %369 : vector<32x128xf32> to vector<1x32x128xf32>
    tpu.vector_store %arg15[%c5_169, %c0_170, %c0_171], %396 {strides = array<i32>} : memref<8x64x128xf32, #tpu.memory_space<vmem>>, vector<1x32x128xf32>,
    %c2_172 = arith.constant 2 : index
    %c32_173 = arith.constant 32 : index
    %c0_174 = arith.constant 0 : index
    %397 = vector.load %arg15[%c2_172, %c32_173, %c0_174] : memref<8x64x128xf32, #tpu.memory_space<vmem>>, vector<1x32x128xf32>
    %398 = vector.shape_cast %397 : vector<1x32x128xf32> to vector<32x128xf32>
    %399 = vector.shape_cast %393 : vector<32x128xf32> to vector<1x32x128xf32>
    tpu.vector_store %arg15[%c2_172, %c32_173, %c0_174], %399 {strides = array<i32>} : memref<8x64x128xf32, #tpu.memory_space<vmem>>, vector<1x32x128xf32>,
    %c6_175 = arith.constant 6 : index
    %c0_176 = arith.constant 0 : index
    %c0_177 = arith.constant 0 : index
    %400 = vector.load %arg14[%c6_175, %c0_176, %c0_177] : memref<8x192x128xf32, #tpu.memory_space<vmem>>, vector<1x96x128xf32>
    %401 = vector.shape_cast %400 : vector<1x96x128xf32> to vector<96x128xf32>
    %cst_178 = arith.constant dense<0.000000e+00> : vector<96x128xf32>
    %402 = tpu.matmul %61, %369, %cst_178 {dimension_numbers = #tpu.dot_dimension_numbers<[1], [0], [0], [1], [0, 0, 1, 1], [], []>} : vector<96x32xf32>, vector<32x128xf32>, vector<96x128xf32> -> vector<96x128xf32>
    %403 = vector.extract_strided_slice %401 {offsets = [0, 0], sizes = [64, 128], strides = [1, 1]} : vector<96x128xf32> to vector<64x128xf32>
    %404 = vector.extract_strided_slice %402 {offsets = [0, 0], sizes = [64, 128], strides = [1, 1]} : vector<96x128xf32> to vector<64x128xf32>
    %405 = arith.addf %403, %404 : vector<64x128xf32>
    %406 = arith.negf %405 : vector<64x128xf32>
    %407 = math.exp %406 : vector<64x128xf32>
    %cst_179 = arith.constant 1.000000e+00 : f32
    %408 = vector.broadcast %cst_179 : f32 to vector<64x128xf32>
    %409 = arith.addf %408, %407 : vector<64x128xf32>
    %410 = arith.divf %408, %409 : vector<64x128xf32>
    %411 = vector.extract_strided_slice %410 {offsets = [0, 0], sizes = [32, 128], strides = [1, 1]} : vector<64x128xf32> to vector<32x128xf32>
    %412 = vector.extract_strided_slice %410 {offsets = [32, 0], sizes = [32, 128], strides = [1, 1]} : vector<64x128xf32> to vector<32x128xf32>
    %413 = vector.extract_strided_slice %401 {offsets = [64, 0], sizes = [32, 128], strides = [1, 1]} : vector<96x128xf32> to vector<32x128xf32>
    %414 = vector.extract_strided_slice %402 {offsets = [64, 0], sizes = [32, 128], strides = [1, 1]} : vector<96x128xf32> to vector<32x128xf32>
    %415 = arith.addf %414, %67 : vector<32x128xf32>
    %416 = arith.mulf %411, %415 : vector<32x128xf32>
    %417 = arith.addf %413, %416 : vector<32x128xf32>
    %418 = math.tanh %417 : vector<32x128xf32>
    %cst_180 = arith.constant 1.000000e+00 : f32
    %419 = vector.broadcast %cst_180 : f32 to vector<32x128xf32>
    %420 = arith.subf %419, %412 : vector<32x128xf32>
    %421 = arith.mulf %420, %418 : vector<32x128xf32>
    %422 = arith.mulf %412, %369 : vector<32x128xf32>
    %423 = arith.addf %421, %422 : vector<32x128xf32>
    %c1_181 = arith.constant 1 : index
    %c96_182 = arith.constant 96 : index
    %c0_183 = arith.constant 0 : index
    %424 = vector.load %arg14[%c1_181, %c96_182, %c0_183] : memref<8x192x128xf32, #tpu.memory_space<vmem>>, vector<1x96x128xf32>
    %425 = vector.shape_cast %424 : vector<1x96x128xf32> to vector<96x128xf32>
    %cst_184 = arith.constant dense<0.000000e+00> : vector<96x128xf32>
    %426 = tpu.matmul %63, %393, %cst_184 {dimension_numbers = #tpu.dot_dimension_numbers<[1], [0], [0], [1], [0, 0, 1, 1], [], []>} : vector<96x32xf32>, vector<32x128xf32>, vector<96x128xf32> -> vector<96x128xf32>
    %427 = vector.extract_strided_slice %425 {offsets = [0, 0], sizes = [64, 128], strides = [1, 1]} : vector<96x128xf32> to vector<64x128xf32>
    %428 = vector.extract_strided_slice %426 {offsets = [0, 0], sizes = [64, 128], strides = [1, 1]} : vector<96x128xf32> to vector<64x128xf32>
    %429 = arith.addf %427, %428 : vector<64x128xf32>
    %430 = arith.negf %429 : vector<64x128xf32>
    %431 = math.exp %430 : vector<64x128xf32>
    %cst_185 = arith.constant 1.000000e+00 : f32
    %432 = vector.broadcast %cst_185 : f32 to vector<64x128xf32>
    %433 = arith.addf %432, %431 : vector<64x128xf32>
    %434 = arith.divf %432, %433 : vector<64x128xf32>
    %435 = vector.extract_strided_slice %434 {offsets = [0, 0], sizes = [32, 128], strides = [1, 1]} : vector<64x128xf32> to vector<32x128xf32>
    %436 = vector.extract_strided_slice %434 {offsets = [32, 0], sizes = [32, 128], strides = [1, 1]} : vector<64x128xf32> to vector<32x128xf32>
    %437 = vector.extract_strided_slice %425 {offsets = [64, 0], sizes = [32, 128], strides = [1, 1]} : vector<96x128xf32> to vector<32x128xf32>
    %438 = vector.extract_strided_slice %426 {offsets = [64, 0], sizes = [32, 128], strides = [1, 1]} : vector<96x128xf32> to vector<32x128xf32>
    %439 = arith.addf %438, %71 : vector<32x128xf32>
    %440 = arith.mulf %435, %439 : vector<32x128xf32>
    %441 = arith.addf %437, %440 : vector<32x128xf32>
    %442 = math.tanh %441 : vector<32x128xf32>
    %cst_186 = arith.constant 1.000000e+00 : f32
    %443 = vector.broadcast %cst_186 : f32 to vector<32x128xf32>
    %444 = arith.subf %443, %436 : vector<32x128xf32>
    %445 = arith.mulf %444, %442 : vector<32x128xf32>
    %446 = arith.mulf %436, %393 : vector<32x128xf32>
    %447 = arith.addf %445, %446 : vector<32x128xf32>
    %c6_187 = arith.constant 6 : index
    %c0_188 = arith.constant 0 : index
    %c0_189 = arith.constant 0 : index
    %448 = vector.load %arg15[%c6_187, %c0_188, %c0_189] : memref<8x64x128xf32, #tpu.memory_space<vmem>>, vector<1x32x128xf32>
    %449 = vector.shape_cast %448 : vector<1x32x128xf32> to vector<32x128xf32>
    %450 = vector.shape_cast %423 : vector<32x128xf32> to vector<1x32x128xf32>
    tpu.vector_store %arg15[%c6_187, %c0_188, %c0_189], %450 {strides = array<i32>} : memref<8x64x128xf32, #tpu.memory_space<vmem>>, vector<1x32x128xf32>,
    %c1_190 = arith.constant 1 : index
    %c32_191 = arith.constant 32 : index
    %c0_192 = arith.constant 0 : index
    %451 = vector.load %arg15[%c1_190, %c32_191, %c0_192] : memref<8x64x128xf32, #tpu.memory_space<vmem>>, vector<1x32x128xf32>
    %452 = vector.shape_cast %451 : vector<1x32x128xf32> to vector<32x128xf32>
    %453 = vector.shape_cast %447 : vector<32x128xf32> to vector<1x32x128xf32>
    tpu.vector_store %arg15[%c1_190, %c32_191, %c0_192], %453 {strides = array<i32>} : memref<8x64x128xf32, #tpu.memory_space<vmem>>, vector<1x32x128xf32>,
    %c7_193 = arith.constant 7 : index
    %c0_194 = arith.constant 0 : index
    %c0_195 = arith.constant 0 : index
    %454 = vector.load %arg14[%c7_193, %c0_194, %c0_195] : memref<8x192x128xf32, #tpu.memory_space<vmem>>, vector<1x96x128xf32>
    %455 = vector.shape_cast %454 : vector<1x96x128xf32> to vector<96x128xf32>
    %cst_196 = arith.constant dense<0.000000e+00> : vector<96x128xf32>
    %456 = tpu.matmul %61, %423, %cst_196 {dimension_numbers = #tpu.dot_dimension_numbers<[1], [0], [0], [1], [0, 0, 1, 1], [], []>} : vector<96x32xf32>, vector<32x128xf32>, vector<96x128xf32> -> vector<96x128xf32>
    %457 = vector.extract_strided_slice %455 {offsets = [0, 0], sizes = [64, 128], strides = [1, 1]} : vector<96x128xf32> to vector<64x128xf32>
    %458 = vector.extract_strided_slice %456 {offsets = [0, 0], sizes = [64, 128], strides = [1, 1]} : vector<96x128xf32> to vector<64x128xf32>
    %459 = arith.addf %457, %458 : vector<64x128xf32>
    %460 = arith.negf %459 : vector<64x128xf32>
    %461 = math.exp %460 : vector<64x128xf32>
    %cst_197 = arith.constant 1.000000e+00 : f32
    %462 = vector.broadcast %cst_197 : f32 to vector<64x128xf32>
    %463 = arith.addf %462, %461 : vector<64x128xf32>
    %464 = arith.divf %462, %463 : vector<64x128xf32>
    %465 = vector.extract_strided_slice %464 {offsets = [0, 0], sizes = [32, 128], strides = [1, 1]} : vector<64x128xf32> to vector<32x128xf32>
    %466 = vector.extract_strided_slice %464 {offsets = [32, 0], sizes = [32, 128], strides = [1, 1]} : vector<64x128xf32> to vector<32x128xf32>
    %467 = vector.extract_strided_slice %455 {offsets = [64, 0], sizes = [32, 128], strides = [1, 1]} : vector<96x128xf32> to vector<32x128xf32>
    %468 = vector.extract_strided_slice %456 {offsets = [64, 0], sizes = [32, 128], strides = [1, 1]} : vector<96x128xf32> to vector<32x128xf32>
    %469 = arith.addf %468, %67 : vector<32x128xf32>
    %470 = arith.mulf %465, %469 : vector<32x128xf32>
    %471 = arith.addf %467, %470 : vector<32x128xf32>
    %472 = math.tanh %471 : vector<32x128xf32>
    %cst_198 = arith.constant 1.000000e+00 : f32
    %473 = vector.broadcast %cst_198 : f32 to vector<32x128xf32>
    %474 = arith.subf %473, %466 : vector<32x128xf32>
    %475 = arith.mulf %474, %472 : vector<32x128xf32>
    %476 = arith.mulf %466, %423 : vector<32x128xf32>
    %477 = arith.addf %475, %476 : vector<32x128xf32>
    %c0_199 = arith.constant 0 : index
    %c96_200 = arith.constant 96 : index
    %c0_201 = arith.constant 0 : index
    %478 = vector.load %arg14[%c0_199, %c96_200, %c0_201] : memref<8x192x128xf32, #tpu.memory_space<vmem>>, vector<1x96x128xf32>
    %479 = vector.shape_cast %478 : vector<1x96x128xf32> to vector<96x128xf32>
    %cst_202 = arith.constant dense<0.000000e+00> : vector<96x128xf32>
    %480 = tpu.matmul %63, %447, %cst_202 {dimension_numbers = #tpu.dot_dimension_numbers<[1], [0], [0], [1], [0, 0, 1, 1], [], []>} : vector<96x32xf32>, vector<32x128xf32>, vector<96x128xf32> -> vector<96x128xf32>
    %481 = vector.extract_strided_slice %479 {offsets = [0, 0], sizes = [64, 128], strides = [1, 1]} : vector<96x128xf32> to vector<64x128xf32>
    %482 = vector.extract_strided_slice %480 {offsets = [0, 0], sizes = [64, 128], strides = [1, 1]} : vector<96x128xf32> to vector<64x128xf32>
    %483 = arith.addf %481, %482 : vector<64x128xf32>
    %484 = arith.negf %483 : vector<64x128xf32>
    %485 = math.exp %484 : vector<64x128xf32>
    %cst_203 = arith.constant 1.000000e+00 : f32
    %486 = vector.broadcast %cst_203 : f32 to vector<64x128xf32>
    %487 = arith.addf %486, %485 : vector<64x128xf32>
    %488 = arith.divf %486, %487 : vector<64x128xf32>
    %489 = vector.extract_strided_slice %488 {offsets = [0, 0], sizes = [32, 128], strides = [1, 1]} : vector<64x128xf32> to vector<32x128xf32>
    %490 = vector.extract_strided_slice %488 {offsets = [32, 0], sizes = [32, 128], strides = [1, 1]} : vector<64x128xf32> to vector<32x128xf32>
    %491 = vector.extract_strided_slice %479 {offsets = [64, 0], sizes = [32, 128], strides = [1, 1]} : vector<96x128xf32> to vector<32x128xf32>
    %492 = vector.extract_strided_slice %480 {offsets = [64, 0], sizes = [32, 128], strides = [1, 1]} : vector<96x128xf32> to vector<32x128xf32>
    %493 = arith.addf %492, %71 : vector<32x128xf32>
    %494 = arith.mulf %489, %493 : vector<32x128xf32>
    %495 = arith.addf %491, %494 : vector<32x128xf32>
    %496 = math.tanh %495 : vector<32x128xf32>
    %cst_204 = arith.constant 1.000000e+00 : f32
    %497 = vector.broadcast %cst_204 : f32 to vector<32x128xf32>
    %498 = arith.subf %497, %490 : vector<32x128xf32>
    %499 = arith.mulf %498, %496 : vector<32x128xf32>
    %500 = arith.mulf %490, %447 : vector<32x128xf32>
    %501 = arith.addf %499, %500 : vector<32x128xf32>
    %c7_205 = arith.constant 7 : index
    %c0_206 = arith.constant 0 : index
    %c0_207 = arith.constant 0 : index
    %502 = vector.load %arg15[%c7_205, %c0_206, %c0_207] : memref<8x64x128xf32, #tpu.memory_space<vmem>>, vector<1x32x128xf32>
    %503 = vector.shape_cast %502 : vector<1x32x128xf32> to vector<32x128xf32>
    %504 = vector.shape_cast %477 : vector<32x128xf32> to vector<1x32x128xf32>
    tpu.vector_store %arg15[%c7_205, %c0_206, %c0_207], %504 {strides = array<i32>} : memref<8x64x128xf32, #tpu.memory_space<vmem>>, vector<1x32x128xf32>,
    %c0_208 = arith.constant 0 : index
    %c32_209 = arith.constant 32 : index
    %c0_210 = arith.constant 0 : index
    %505 = vector.load %arg15[%c0_208, %c32_209, %c0_210] : memref<8x64x128xf32, #tpu.memory_space<vmem>>, vector<1x32x128xf32>
    %506 = vector.shape_cast %505 : vector<1x32x128xf32> to vector<32x128xf32>
    %507 = vector.shape_cast %501 : vector<32x128xf32> to vector<1x32x128xf32>
    tpu.vector_store %arg15[%c0_208, %c32_209, %c0_210], %507 {strides = array<i32>} : memref<8x64x128xf32, #tpu.memory_space<vmem>>, vector<1x32x128xf32>,
    %c0_211 = arith.constant 0 : index
    %c0_212 = arith.constant 0 : index
    %c0_213 = arith.constant 0 : index
    %508 = vector.load %arg13[%c0_211, %c0_212, %c0_213] : memref<2x32x128xf32, #tpu.memory_space<vmem>>, vector<1x32x128xf32>
    %509 = vector.shape_cast %508 : vector<1x32x128xf32> to vector<32x128xf32>
    %510 = vector.shape_cast %477 : vector<32x128xf32> to vector<1x32x128xf32>
    tpu.vector_store %arg13[%c0_211, %c0_212, %c0_213], %510 {strides = array<i32>} : memref<2x32x128xf32, #tpu.memory_space<vmem>>, vector<1x32x128xf32>,
    %c1_214 = arith.constant 1 : index
    %c0_215 = arith.constant 0 : index
    %c0_216 = arith.constant 0 : index
    %511 = vector.load %arg13[%c1_214, %c0_215, %c0_216] : memref<2x32x128xf32, #tpu.memory_space<vmem>>, vector<1x32x128xf32>
    %512 = vector.shape_cast %511 : vector<1x32x128xf32> to vector<32x128xf32>
    %513 = vector.shape_cast %501 : vector<32x128xf32> to vector<1x32x128xf32>
    tpu.vector_store %arg13[%c1_214, %c0_215, %c0_216], %513 {strides = array<i32>} : memref<2x32x128xf32, #tpu.memory_space<vmem>>, vector<1x32x128xf32>,
    %c0_217 = arith.constant 0 : index
    %c0_218 = arith.constant 0 : index
    %514 = vector.load %arg7[%c0_217, %c0_218] : memref<64x64xf32, #tpu.memory_space<vmem>>, vector<64x64xf32>
    %c0_219 = arith.constant 0 : index
    %c0_220 = arith.constant 0 : index
    %515 = vector.load %arg8[%c0_219, %c0_220] : memref<64x1xf32, #tpu.memory_space<vmem>>, vector<64x1xf32>
    %516 = vector.shape_cast %515 : vector<64x1xf32> to vector<64x1xf32>
    %517 = vector.broadcast %516 : vector<64x1xf32> to vector<64x128xf32>
    %c0_221 = arith.constant 0 : index
    %c0_222 = arith.constant 0 : index
    %518 = vector.load %arg9[%c0_221, %c0_222] : memref<64x1xf32, #tpu.memory_space<vmem>>, vector<64x1xf32>
    %519 = vector.shape_cast %518 : vector<64x1xf32> to vector<64x1xf32>
    %520 = vector.broadcast %519 : vector<64x1xf32> to vector<64x128xf32>
    %c0_223 = arith.constant 0 : index
    %c0_224 = arith.constant 0 : index
    %c0_225 = arith.constant 0 : index
    %521 = vector.load %arg15[%c0_223, %c0_224, %c0_225] : memref<8x64x128xf32, #tpu.memory_space<vmem>>, vector<1x64x128xf32>
    %522 = vector.shape_cast %521 : vector<1x64x128xf32> to vector<64x128xf32>
    %cst_226 = arith.constant dense<0.000000e+00> : vector<64x128xf32>
    %523 = tpu.matmul %514, %522, %cst_226 {dimension_numbers = #tpu.dot_dimension_numbers<[1], [0], [0], [1], [0, 0, 1, 1], [], []>} : vector<64x64xf32>, vector<64x128xf32>, vector<64x128xf32> -> vector<64x128xf32>
    %524 = arith.addf %523, %517 : vector<64x128xf32>
    %525 = math.tanh %524 : vector<64x128xf32>
    %526 = arith.mulf %525, %520 : vector<64x128xf32>
    %cst_227 = arith.constant dense<0.000000e+00> : vector<128xf32>
    %527 = vector.multi_reduction <add>, %526, %cst_227 [0] : vector<64x128xf32> to vector<128xf32>
    %528 = vector.shape_cast %527 : vector<128xf32> to vector<1x128xf32>
    %529 = math.tanh %528 : vector<1x128xf32>
    %c1_228 = arith.constant 1 : index
    %c0_229 = arith.constant 0 : index
    %c0_230 = arith.constant 0 : index
    %530 = vector.load %arg15[%c1_228, %c0_229, %c0_230] : memref<8x64x128xf32, #tpu.memory_space<vmem>>, vector<1x64x128xf32>
    %531 = vector.shape_cast %530 : vector<1x64x128xf32> to vector<64x128xf32>
    %cst_231 = arith.constant dense<0.000000e+00> : vector<64x128xf32>
    %532 = tpu.matmul %514, %531, %cst_231 {dimension_numbers = #tpu.dot_dimension_numbers<[1], [0], [0], [1], [0, 0, 1, 1], [], []>} : vector<64x64xf32>, vector<64x128xf32>, vector<64x128xf32> -> vector<64x128xf32>
    %533 = arith.addf %532, %517 : vector<64x128xf32>
    %534 = math.tanh %533 : vector<64x128xf32>
    %535 = arith.mulf %534, %520 : vector<64x128xf32>
    %cst_232 = arith.constant dense<0.000000e+00> : vector<128xf32>
    %536 = vector.multi_reduction <add>, %535, %cst_232 [0] : vector<64x128xf32> to vector<128xf32>
    %537 = vector.shape_cast %536 : vector<128xf32> to vector<1x128xf32>
    %538 = math.tanh %537 : vector<1x128xf32>
    %c2_233 = arith.constant 2 : index
    %c0_234 = arith.constant 0 : index
    %c0_235 = arith.constant 0 : index
    %539 = vector.load %arg15[%c2_233, %c0_234, %c0_235] : memref<8x64x128xf32, #tpu.memory_space<vmem>>, vector<1x64x128xf32>
    %540 = vector.shape_cast %539 : vector<1x64x128xf32> to vector<64x128xf32>
    %cst_236 = arith.constant dense<0.000000e+00> : vector<64x128xf32>
    %541 = tpu.matmul %514, %540, %cst_236 {dimension_numbers = #tpu.dot_dimension_numbers<[1], [0], [0], [1], [0, 0, 1, 1], [], []>} : vector<64x64xf32>, vector<64x128xf32>, vector<64x128xf32> -> vector<64x128xf32>
    %542 = arith.addf %541, %517 : vector<64x128xf32>
    %543 = math.tanh %542 : vector<64x128xf32>
    %544 = arith.mulf %543, %520 : vector<64x128xf32>
    %cst_237 = arith.constant dense<0.000000e+00> : vector<128xf32>
    %545 = vector.multi_reduction <add>, %544, %cst_237 [0] : vector<64x128xf32> to vector<128xf32>
    %546 = vector.shape_cast %545 : vector<128xf32> to vector<1x128xf32>
    %547 = math.tanh %546 : vector<1x128xf32>
    %c3_238 = arith.constant 3 : index
    %c0_239 = arith.constant 0 : index
    %c0_240 = arith.constant 0 : index
    %548 = vector.load %arg15[%c3_238, %c0_239, %c0_240] : memref<8x64x128xf32, #tpu.memory_space<vmem>>, vector<1x64x128xf32>
    %549 = vector.shape_cast %548 : vector<1x64x128xf32> to vector<64x128xf32>
    %cst_241 = arith.constant dense<0.000000e+00> : vector<64x128xf32>
    %550 = tpu.matmul %514, %549, %cst_241 {dimension_numbers = #tpu.dot_dimension_numbers<[1], [0], [0], [1], [0, 0, 1, 1], [], []>} : vector<64x64xf32>, vector<64x128xf32>, vector<64x128xf32> -> vector<64x128xf32>
    %551 = arith.addf %550, %517 : vector<64x128xf32>
    %552 = math.tanh %551 : vector<64x128xf32>
    %553 = arith.mulf %552, %520 : vector<64x128xf32>
    %cst_242 = arith.constant dense<0.000000e+00> : vector<128xf32>
    %554 = vector.multi_reduction <add>, %553, %cst_242 [0] : vector<64x128xf32> to vector<128xf32>
    %555 = vector.shape_cast %554 : vector<128xf32> to vector<1x128xf32>
    %556 = math.tanh %555 : vector<1x128xf32>
    %c4_243 = arith.constant 4 : index
    %c0_244 = arith.constant 0 : index
    %c0_245 = arith.constant 0 : index
    %557 = vector.load %arg15[%c4_243, %c0_244, %c0_245] : memref<8x64x128xf32, #tpu.memory_space<vmem>>, vector<1x64x128xf32>
    %558 = vector.shape_cast %557 : vector<1x64x128xf32> to vector<64x128xf32>
    %cst_246 = arith.constant dense<0.000000e+00> : vector<64x128xf32>
    %559 = tpu.matmul %514, %558, %cst_246 {dimension_numbers = #tpu.dot_dimension_numbers<[1], [0], [0], [1], [0, 0, 1, 1], [], []>} : vector<64x64xf32>, vector<64x128xf32>, vector<64x128xf32> -> vector<64x128xf32>
    %560 = arith.addf %559, %517 : vector<64x128xf32>
    %561 = math.tanh %560 : vector<64x128xf32>
    %562 = arith.mulf %561, %520 : vector<64x128xf32>
    %cst_247 = arith.constant dense<0.000000e+00> : vector<128xf32>
    %563 = vector.multi_reduction <add>, %562, %cst_247 [0] : vector<64x128xf32> to vector<128xf32>
    %564 = vector.shape_cast %563 : vector<128xf32> to vector<1x128xf32>
    %565 = math.tanh %564 : vector<1x128xf32>
    %c5_248 = arith.constant 5 : index
    %c0_249 = arith.constant 0 : index
    %c0_250 = arith.constant 0 : index
    %566 = vector.load %arg15[%c5_248, %c0_249, %c0_250] : memref<8x64x128xf32, #tpu.memory_space<vmem>>, vector<1x64x128xf32>
    %567 = vector.shape_cast %566 : vector<1x64x128xf32> to vector<64x128xf32>
    %cst_251 = arith.constant dense<0.000000e+00> : vector<64x128xf32>
    %568 = tpu.matmul %514, %567, %cst_251 {dimension_numbers = #tpu.dot_dimension_numbers<[1], [0], [0], [1], [0, 0, 1, 1], [], []>} : vector<64x64xf32>, vector<64x128xf32>, vector<64x128xf32> -> vector<64x128xf32>
    %569 = arith.addf %568, %517 : vector<64x128xf32>
    %570 = math.tanh %569 : vector<64x128xf32>
    %571 = arith.mulf %570, %520 : vector<64x128xf32>
    %cst_252 = arith.constant dense<0.000000e+00> : vector<128xf32>
    %572 = vector.multi_reduction <add>, %571, %cst_252 [0] : vector<64x128xf32> to vector<128xf32>
    %573 = vector.shape_cast %572 : vector<128xf32> to vector<1x128xf32>
    %574 = math.tanh %573 : vector<1x128xf32>
    %c6_253 = arith.constant 6 : index
    %c0_254 = arith.constant 0 : index
    %c0_255 = arith.constant 0 : index
    %575 = vector.load %arg15[%c6_253, %c0_254, %c0_255] : memref<8x64x128xf32, #tpu.memory_space<vmem>>, vector<1x64x128xf32>
    %576 = vector.shape_cast %575 : vector<1x64x128xf32> to vector<64x128xf32>
    %cst_256 = arith.constant dense<0.000000e+00> : vector<64x128xf32>
    %577 = tpu.matmul %514, %576, %cst_256 {dimension_numbers = #tpu.dot_dimension_numbers<[1], [0], [0], [1], [0, 0, 1, 1], [], []>} : vector<64x64xf32>, vector<64x128xf32>, vector<64x128xf32> -> vector<64x128xf32>
    %578 = arith.addf %577, %517 : vector<64x128xf32>
    %579 = math.tanh %578 : vector<64x128xf32>
    %580 = arith.mulf %579, %520 : vector<64x128xf32>
    %cst_257 = arith.constant dense<0.000000e+00> : vector<128xf32>
    %581 = vector.multi_reduction <add>, %580, %cst_257 [0] : vector<64x128xf32> to vector<128xf32>
    %582 = vector.shape_cast %581 : vector<128xf32> to vector<1x128xf32>
    %583 = math.tanh %582 : vector<1x128xf32>
    %c7_258 = arith.constant 7 : index
    %c0_259 = arith.constant 0 : index
    %c0_260 = arith.constant 0 : index
    %584 = vector.load %arg15[%c7_258, %c0_259, %c0_260] : memref<8x64x128xf32, #tpu.memory_space<vmem>>, vector<1x64x128xf32>
    %585 = vector.shape_cast %584 : vector<1x64x128xf32> to vector<64x128xf32>
    %cst_261 = arith.constant dense<0.000000e+00> : vector<64x128xf32>
    %586 = tpu.matmul %514, %585, %cst_261 {dimension_numbers = #tpu.dot_dimension_numbers<[1], [0], [0], [1], [0, 0, 1, 1], [], []>} : vector<64x64xf32>, vector<64x128xf32>, vector<64x128xf32> -> vector<64x128xf32>
    %587 = arith.addf %586, %517 : vector<64x128xf32>
    %588 = math.tanh %587 : vector<64x128xf32>
    %589 = arith.mulf %588, %520 : vector<64x128xf32>
    %cst_262 = arith.constant dense<0.000000e+00> : vector<128xf32>
    %590 = vector.multi_reduction <add>, %589, %cst_262 [0] : vector<64x128xf32> to vector<128xf32>
    %591 = vector.shape_cast %590 : vector<128xf32> to vector<1x128xf32>
    %592 = math.tanh %591 : vector<1x128xf32>
    %593 = arith.maximumf %529, %538 : vector<1x128xf32>
    %594 = arith.maximumf %593, %547 : vector<1x128xf32>
    %595 = arith.maximumf %594, %556 : vector<1x128xf32>
    %596 = arith.maximumf %595, %565 : vector<1x128xf32>
    %597 = arith.maximumf %596, %574 : vector<1x128xf32>
    %598 = arith.maximumf %597, %583 : vector<1x128xf32>
    %599 = arith.maximumf %598, %592 : vector<1x128xf32>
    %600 = arith.subf %529, %599 : vector<1x128xf32>
    %601 = math.exp %600 : vector<1x128xf32>
    %602 = arith.subf %538, %599 : vector<1x128xf32>
    %603 = math.exp %602 : vector<1x128xf32>
    %604 = arith.subf %547, %599 : vector<1x128xf32>
    %605 = math.exp %604 : vector<1x128xf32>
    %606 = arith.subf %556, %599 : vector<1x128xf32>
    %607 = math.exp %606 : vector<1x128xf32>
    %608 = arith.subf %565, %599 : vector<1x128xf32>
    %609 = math.exp %608 : vector<1x128xf32>
    %610 = arith.subf %574, %599 : vector<1x128xf32>
    %611 = math.exp %610 : vector<1x128xf32>
    %612 = arith.subf %583, %599 : vector<1x128xf32>
    %613 = math.exp %612 : vector<1x128xf32>
    %614 = arith.subf %592, %599 : vector<1x128xf32>
    %615 = math.exp %614 : vector<1x128xf32>
    %616 = arith.addf %601, %603 : vector<1x128xf32>
    %617 = arith.addf %616, %605 : vector<1x128xf32>
    %618 = arith.addf %617, %607 : vector<1x128xf32>
    %619 = arith.addf %618, %609 : vector<1x128xf32>
    %620 = arith.addf %619, %611 : vector<1x128xf32>
    %621 = arith.addf %620, %613 : vector<1x128xf32>
    %622 = arith.addf %621, %615 : vector<1x128xf32>
    %623 = tpu.reciprocal %622 : vector<1x128xf32> -> vector<1x128xf32>
    %cst_263 = arith.constant 0.000000e+00 : f32
    %624 = vector.broadcast %cst_263 : f32 to vector<64x128xf32>
    %c0_264 = arith.constant 0 : index
    %c0_265 = arith.constant 0 : index
    %c0_266 = arith.constant 0 : index
    %625 = vector.load %arg15[%c0_264, %c0_265, %c0_266] : memref<8x64x128xf32, #tpu.memory_space<vmem>>, vector<1x64x128xf32>
    %626 = vector.shape_cast %625 : vector<1x64x128xf32> to vector<64x128xf32>
    %627 = arith.mulf %601, %623 : vector<1x128xf32>
    %628 = vector.broadcast %627 : vector<1x128xf32> to vector<64x128xf32>
    %629 = arith.mulf %626, %628 : vector<64x128xf32>
    %630 = arith.addf %624, %629 : vector<64x128xf32>
    %c1_267 = arith.constant 1 : index
    %c0_268 = arith.constant 0 : index
    %c0_269 = arith.constant 0 : index
    %631 = vector.load %arg15[%c1_267, %c0_268, %c0_269] : memref<8x64x128xf32, #tpu.memory_space<vmem>>, vector<1x64x128xf32>
    %632 = vector.shape_cast %631 : vector<1x64x128xf32> to vector<64x128xf32>
    %633 = arith.mulf %603, %623 : vector<1x128xf32>
    %634 = vector.broadcast %633 : vector<1x128xf32> to vector<64x128xf32>
    %635 = arith.mulf %632, %634 : vector<64x128xf32>
    %636 = arith.addf %630, %635 : vector<64x128xf32>
    %c2_270 = arith.constant 2 : index
    %c0_271 = arith.constant 0 : index
    %c0_272 = arith.constant 0 : index
    %637 = vector.load %arg15[%c2_270, %c0_271, %c0_272] : memref<8x64x128xf32, #tpu.memory_space<vmem>>, vector<1x64x128xf32>
    %638 = vector.shape_cast %637 : vector<1x64x128xf32> to vector<64x128xf32>
    %639 = arith.mulf %605, %623 : vector<1x128xf32>
    %640 = vector.broadcast %639 : vector<1x128xf32> to vector<64x128xf32>
    %641 = arith.mulf %638, %640 : vector<64x128xf32>
    %642 = arith.addf %636, %641 : vector<64x128xf32>
    %c3_273 = arith.constant 3 : index
    %c0_274 = arith.constant 0 : index
    %c0_275 = arith.constant 0 : index
    %643 = vector.load %arg15[%c3_273, %c0_274, %c0_275] : memref<8x64x128xf32, #tpu.memory_space<vmem>>, vector<1x64x128xf32>
    %644 = vector.shape_cast %643 : vector<1x64x128xf32> to vector<64x128xf32>
    %645 = arith.mulf %607, %623 : vector<1x128xf32>
    %646 = vector.broadcast %645 : vector<1x128xf32> to vector<64x128xf32>
    %647 = arith.mulf %644, %646 : vector<64x128xf32>
    %648 = arith.addf %642, %647 : vector<64x128xf32>
    %c4_276 = arith.constant 4 : index
    %c0_277 = arith.constant 0 : index
    %c0_278 = arith.constant 0 : index
    %649 = vector.load %arg15[%c4_276, %c0_277, %c0_278] : memref<8x64x128xf32, #tpu.memory_space<vmem>>, vector<1x64x128xf32>
    %650 = vector.shape_cast %649 : vector<1x64x128xf32> to vector<64x128xf32>
    %651 = arith.mulf %609, %623 : vector<1x128xf32>
    %652 = vector.broadcast %651 : vector<1x128xf32> to vector<64x128xf32>
    %653 = arith.mulf %650, %652 : vector<64x128xf32>
    %654 = arith.addf %648, %653 : vector<64x128xf32>
    %c5_279 = arith.constant 5 : index
    %c0_280 = arith.constant 0 : index
    %c0_281 = arith.constant 0 : index
    %655 = vector.load %arg15[%c5_279, %c0_280, %c0_281] : memref<8x64x128xf32, #tpu.memory_space<vmem>>, vector<1x64x128xf32>
    %656 = vector.shape_cast %655 : vector<1x64x128xf32> to vector<64x128xf32>
    %657 = arith.mulf %611, %623 : vector<1x128xf32>
    %658 = vector.broadcast %657 : vector<1x128xf32> to vector<64x128xf32>
    %659 = arith.mulf %656, %658 : vector<64x128xf32>
    %660 = arith.addf %654, %659 : vector<64x128xf32>
    %c6_282 = arith.constant 6 : index
    %c0_283 = arith.constant 0 : index
    %c0_284 = arith.constant 0 : index
    %661 = vector.load %arg15[%c6_282, %c0_283, %c0_284] : memref<8x64x128xf32, #tpu.memory_space<vmem>>, vector<1x64x128xf32>
    %662 = vector.shape_cast %661 : vector<1x64x128xf32> to vector<64x128xf32>
    %663 = arith.mulf %613, %623 : vector<1x128xf32>
    %664 = vector.broadcast %663 : vector<1x128xf32> to vector<64x128xf32>
    %665 = arith.mulf %662, %664 : vector<64x128xf32>
    %666 = arith.addf %660, %665 : vector<64x128xf32>
    %c7_285 = arith.constant 7 : index
    %c0_286 = arith.constant 0 : index
    %c0_287 = arith.constant 0 : index
    %667 = vector.load %arg15[%c7_285, %c0_286, %c0_287] : memref<8x64x128xf32, #tpu.memory_space<vmem>>, vector<1x64x128xf32>
    %668 = vector.shape_cast %667 : vector<1x64x128xf32> to vector<64x128xf32>
    %669 = arith.mulf %615, %623 : vector<1x128xf32>
    %670 = vector.broadcast %669 : vector<1x128xf32> to vector<64x128xf32>
    %671 = arith.mulf %668, %670 : vector<64x128xf32>
    %672 = arith.addf %666, %671 : vector<64x128xf32>
    %c0_288 = arith.constant 0 : index
    %c0_289 = arith.constant 0 : index
    %673 = vector.load %arg10[%c0_288, %c0_289] : memref<64x1xf32, #tpu.memory_space<vmem>>, vector<64x1xf32>
    %674 = vector.broadcast %673 : vector<64x1xf32> to vector<64x128xf32>
    %675 = arith.mulf %672, %674 : vector<64x128xf32>
    %cst_290 = arith.constant dense<0.000000e+00> : vector<128xf32>
    %676 = vector.multi_reduction <add>, %675, %cst_290 [0] : vector<64x128xf32> to vector<128xf32>
    %677 = vector.shape_cast %676 : vector<128xf32> to vector<1x128xf32>
    %c0_291 = arith.constant 0 : index
    %c0_292 = arith.constant 0 : index
    %678 = vector.load %arg11[%c0_291, %c0_292] : memref<1x1xf32, #tpu.memory_space<vmem>>, vector<1x1xf32>
    %679 = vector.broadcast %678 : vector<1x1xf32> to vector<1x128xf32>
    %680 = arith.addf %677, %679 : vector<1x128xf32>
    %c0_293 = arith.constant 0 : index
    %c0_294 = arith.constant 0 : index
    %681 = vector.load %arg12[%c0_293, %c0_294] : memref<1x128xf32, #tpu.memory_space<vmem>>, vector<1x128xf32>
    tpu.vector_store %arg12[%c0_293, %c0_294], %680 {strides = array<i32>} : memref<1x128xf32, #tpu.memory_space<vmem>>, vector<1x128xf32>,
    return
  }
  func.func @transform_0(%arg0: i32) -> (i32, i32, i32) {
    %c0_i32 = arith.constant 0 : i32
    %c0_i32_0 = arith.constant 0 : i32
    %c0_i32_1 = arith.constant 0 : i32
    return %c0_i32, %c0_i32_0, %arg0 : i32, i32, i32
  }
  func.func @transform_1(%arg0: i32) -> (i32, i32, i32) {
    %c0_i32 = arith.constant 0 : i32
    %c0_i32_0 = arith.constant 0 : i32
    %c0_i32_1 = arith.constant 0 : i32
    return %c0_i32, %c0_i32_0, %arg0 : i32, i32, i32
  }
  func.func @transform_2(%arg0: i32) -> (i32, i32) {
    %c0_i32 = arith.constant 0 : i32
    %c0_i32_0 = arith.constant 0 : i32
    %c0_i32_1 = arith.constant 0 : i32
    return %c0_i32, %c0_i32_0 : i32, i32
  }
  func.func @transform_3(%arg0: i32) -> (i32, i32, i32) {
    %c0_i32 = arith.constant 0 : i32
    %c0_i32_0 = arith.constant 0 : i32
    %c0_i32_1 = arith.constant 0 : i32
    %c0_i32_2 = arith.constant 0 : i32
    return %c0_i32, %c0_i32_0, %c0_i32_1 : i32, i32, i32
  }
  func.func @transform_4(%arg0: i32) -> (i32, i32) {
    %c0_i32 = arith.constant 0 : i32
    %c0_i32_0 = arith.constant 0 : i32
    %c0_i32_1 = arith.constant 0 : i32
    return %c0_i32, %c0_i32_0 : i32, i32
  }
  func.func @transform_5(%arg0: i32) -> (i32, i32, i32) {
    %c0_i32 = arith.constant 0 : i32
    %c0_i32_0 = arith.constant 0 : i32
    %c0_i32_1 = arith.constant 0 : i32
    %c0_i32_2 = arith.constant 0 : i32
    return %c0_i32, %c0_i32_0, %c0_i32_1 : i32, i32, i32
  }
  func.func @transform_6(%arg0: i32) -> (i32, i32) {
    %c0_i32 = arith.constant 0 : i32
    %c0_i32_0 = arith.constant 0 : i32
    %c0_i32_1 = arith.constant 0 : i32
    return %c0_i32, %c0_i32_0 : i32, i32
  }
  func.func @transform_7(%arg0: i32) -> (i32, i32) {
    %c0_i32 = arith.constant 0 : i32
    %c0_i32_0 = arith.constant 0 : i32
    %c0_i32_1 = arith.constant 0 : i32
    return %c0_i32, %c0_i32_0 : i32, i32
  }
  func.func @transform_8(%arg0: i32) -> (i32, i32) {
    %c0_i32 = arith.constant 0 : i32
    %c0_i32_0 = arith.constant 0 : i32
    %c0_i32_1 = arith.constant 0 : i32
    return %c0_i32, %c0_i32_0 : i32, i32
  }
  func.func @transform_9(%arg0: i32) -> (i32, i32) {
    %c0_i32 = arith.constant 0 : i32
    %c0_i32_0 = arith.constant 0 : i32
    %c0_i32_1 = arith.constant 0 : i32
    return %c0_i32, %c0_i32_0 : i32, i32
  }
  func.func @transform_10(%arg0: i32) -> (i32, i32) {
    %c0_i32 = arith.constant 0 : i32
    %c0_i32_0 = arith.constant 0 : i32
    %c0_i32_1 = arith.constant 0 : i32
    return %c0_i32, %c0_i32_0 : i32, i32
  }
  func.func @transform_11(%arg0: i32) -> (i32, i32) {
    %c0_i32 = arith.constant 0 : i32
    %c0_i32_0 = arith.constant 0 : i32
    return %c0_i32, %arg0 : i32, i32
  }
  func.func @transform_12(%arg0: i32) -> (i32, i32, i32) {
    %c0_i32 = arith.constant 0 : i32
    %c0_i32_0 = arith.constant 0 : i32
    %c0_i32_1 = arith.constant 0 : i32
    return %c0_i32, %c0_i32_0, %arg0 : i32, i32, i32
  }
}

</mosaic_0001>

<llo_original>
// kernel: _lambda_.1
$region0: #{_lambda_.1}
  #allocation0 [shape = 'u32[]', space=smem, size = 0x4, offset = 0x4, fixed_abs, tag = 'smem constant byte address 0x4 - core index']
  #allocation1 [shape = 'u32[72,128]{1,0:T(1,128)}', space=vmem, size = 0x9000, scoped, tag = 'internal scratch']
  #allocation2 [shape = 'f32[8,192,128]{2,1,0:T(8,128)}', space=vmem, size = 0xc0000, scoped, tag = 'scratch operand']
  #allocation3 [shape = 'f32[8,64,128]{2,1,0:T(8,128)}', space=vmem, size = 0x40000, scoped, tag = 'scratch operand']
  #allocation4 [shape = 'f32[1,1]{1,0:T(1,128)S(1)}', space=vmem, size = 0x200, scoped, tag = 'scoped memory for _lambda_.1']
  %s0 = inlined_call_operand.vmem [shape: bf16[8,64,128], index: 0, kind: input, shape index: {}]
  %s1 = inlined_call_operand.vmem [shape: f32[2,32,128], index: 1, kind: input, shape index: {}]
  %s2 = inlined_call_operand.vmem [shape: bf16[192,64], index: 2, kind: input, shape index: {}]
  %s3 = inlined_call_operand.vmem [shape: f32[2,96,32], index: 3, kind: input, shape index: {}]
  %s4 = inlined_call_operand.vmem [shape: f32[192,1], index: 4, kind: input, shape index: {}]
  %s5 = inlined_call_operand.vmem [shape: f32[2,32,1], index: 5, kind: input, shape index: {}]
  %s6 = inlined_call_operand.vmem [shape: f32[64,64], index: 6, kind: input, shape index: {}]
  %s7 = inlined_call_operand.vmem [shape: f32[64,1], index: 7, kind: input, shape index: {}]
  %s8 = inlined_call_operand.vmem [shape: f32[64,1], index: 8, kind: input, shape index: {}]
  %s9 = inlined_call_operand.vmem [shape: f32[64,1], index: 9, kind: input, shape index: {}]
  %s10 = inlined_call_operand.<no memory space> [shape: f32[1,1], index: 10, kind: input, shape index: {}]
  %s11 = inlined_call_operand.vmem [shape: f32[1,128], index: 11, kind: output, shape index: {0}]
  %s12 = inlined_call_operand.vmem [shape: f32[2,32,128], index: 12, kind: output, shape index: {1}]
  %13 = xla_tuple %s11, %s12
  %s14 = sld [smem:[#allocation0]]
  $region62: #{_lambda_.1} parent=0
    _
  %s16 = ssub.s32 1, %s14
  %s17 = scalar_select 0, %s16, %s14
  %v18 = vstv %s10
  %19 = vst [vmem:[#allocation4] sm:$0x1] %v18
  // Predicated region
  $region2: #{_lambda_.1} parent=0 // pred_check
    _
  $region3: #{_lambda_.1} parent=0 // pred_check_branch
    %21 = sbr.rel (0) target = $region5
  $region4: #{_lambda_.1} parent=0 // pred_region
    _
  $region5: #{_lambda_.1} parent=0 // pred_fallthru
    _
  // Predicated region
  $region6: #{_lambda_.1} parent=0 // pred_check
    _
  $region7: #{_lambda_.1} parent=0 // pred_check_branch
    %23 = sbr.rel (0) target = $region9
  $region8: #{_lambda_.1} parent=0 // pred_region
    _
  $region9: #{_lambda_.1} parent=0 // pred_fallthru
    _
  // Predicated region
  $region10: #{_lambda_.1} parent=0 // pred_check
    _
  $region11: #{_lambda_.1} parent=0 // pred_check_branch
    %25 = sbr.rel (0) target = $region13
  $region12: #{_lambda_.1} parent=0 // pred_region
    _
  $region13: #{_lambda_.1} parent=0 // pred_fallthru
    _
  // Predicated region
  $region14: #{_lambda_.1} parent=0 // pred_check
    _
  $region15: #{_lambda_.1} parent=0 // pred_check_branch
    %27 = sbr.rel (0) target = $region17
  $region16: #{_lambda_.1} parent=0 // pred_region
    _
  $region17: #{_lambda_.1} parent=0 // pred_fallthru
    _
  // Predicated region
  $region18: #{_lambda_.1} parent=0 // pred_check
    _
  $region19: #{_lambda_.1} parent=0 // pred_check_branch
    %29 = sbr.rel (0) target = $region21
  $region20: #{_lambda_.1} parent=0 // pred_region
    _
  $region21: #{_lambda_.1} parent=0 // pred_fallthru
    _
  // Predicated region
  $region22: #{_lambda_.1} parent=0 // pred_check
    _
  $region23: #{_lambda_.1} parent=0 // pred_check_branch
    %31 = sbr.rel (0) target = $region25
  $region24: #{_lambda_.1} parent=0 // pred_region
    _
  $region25: #{_lambda_.1} parent=0 // pred_fallthru
    _
  // Predicated region
  $region26: #{_lambda_.1} parent=0 // pred_check
    _
  $region27: #{_lambda_.1} parent=0 // pred_check_branch
    %33 = sbr.rel (0) target = $region29
  $region28: #{_lambda_.1} parent=0 // pred_region
    _
  $region29: #{_lambda_.1} parent=0 // pred_fallthru
    _
  // Predicated region
  $region30: #{_lambda_.1} parent=0 // pred_check
    _
  $region31: #{_lambda_.1} parent=0 // pred_check_branch
    %35 = sbr.rel (0) target = $region33
  $region32: #{_lambda_.1} parent=0 // pred_region
    _
  $region33: #{_lambda_.1} parent=0 // pred_fallthru
    _
  // Predicated region
  $region34: #{_lambda_.1} parent=0 // pred_check
    _
  $region35: #{_lambda_.1} parent=0 // pred_check_branch
    %37 = sbr.rel (0) target = $region37
  $region36: #{_lambda_.1} parent=0 // pred_region
    _
  $region37: #{_lambda_.1} parent=0 // pred_fallthru
    _
  // Predicated region
  $region38: #{_lambda_.1} parent=0 // pred_check
    _
  $region39: #{_lambda_.1} parent=0 // pred_check_branch
    %39 = sbr.rel (0) target = $region41
  $region40: #{_lambda_.1} parent=0 // pred_region
    _
  $region41: #{_lambda_.1} parent=0 // pred_fallthru
    _
  // Predicated region
  $region42: #{_lambda_.1} parent=0 // pred_check
    _
  $region43: #{_lambda_.1} parent=0 // pred_check_branch
    %41 = sbr.rel (0) target = $region45
  $region44: #{_lambda_.1} parent=0 // pred_region
    _
  $region45: #{_lambda_.1} parent=0 // pred_fallthru
    _
  %v43 = vld [vmem:[%s2] sm:$0xf]
  %v44 = vld [vmem:[%s2 + $0x4] sm:$0xf]
  %v45 = vld [vmem:[%s2 + $0x8] sm:$0xf]
  %v46 = vld [vmem:[%s2 + $0xc] sm:$0xf]
  %v47 = vld [vmem:[%s2 + $0x10] sm:$0xf]
  %v48 = vld [vmem:[%s2 + $0x14] sm:$0xf]
  %v49 = vld [vmem:[%s2 + $0x18] sm:$0xf]
  %v50 = vld [vmem:[%s2 + $0x1c] sm:$0xf]
  %v51 = vld [vmem:[%s2 + $0x20] sm:$0xf]
  %v52 = vld [vmem:[%s2 + $0x24] sm:$0xf]
  %v53 = vld [vmem:[%s2 + $0x28] sm:$0xf]
  %v54 = vld [vmem:[%s2 + $0x2c] sm:$0xf]
  %v55 = vld [vmem:[%s2 + $0x30] sm:$0xf]
  %v56 = vld [vmem:[%s2 + $0x34] sm:$0xf]
  %v57 = vld [vmem:[%s2 + $0x38] sm:$0xf]
  %v58 = vld [vmem:[%s2 + $0x3c] sm:$0xf]
  %v59 = vld [vmem:[%s2 + $0x40] sm:$0xf]
  %v60 = vld [vmem:[%s2 + $0x44] sm:$0xf]
  %v61 = vld [vmem:[%s2 + $0x48] sm:$0xf]
  %v62 = vld [vmem:[%s2 + $0x4c] sm:$0xf]
  %v63 = vld [vmem:[%s2 + $0x50] sm:$0xf]
  %v64 = vld [vmem:[%s2 + $0x54] sm:$0xf]
  %v65 = vld [vmem:[%s2 + $0x58] sm:$0xf]
  %v66 = vld [vmem:[%s2 + $0x5c] sm:$0xf]
  %v67 = vld [vmem:[%s4] sm:$0xff]
  %v68 = vld [vmem:[%s4 + $0x8] sm:$0xff]
  %v69 = vld [vmem:[%s4 + $0x10] sm:$0xff]
  %v70 = vld [vmem:[%s4 + $0x18] sm:$0xff]
  %v71 = vld [vmem:[%s4 + $0x20] sm:$0xff]
  %v72 = vld [vmem:[%s4 + $0x28] sm:$0xff]
  %v73 = vld [vmem:[%s4 + $0x30] sm:$0xff]
  %v74 = vld [vmem:[%s4 + $0x38] sm:$0xff]
  %v75 = vld [vmem:[%s4 + $0x40] sm:$0xff]
  %v76 = vld [vmem:[%s4 + $0x48] sm:$0xff]
  %v77 = vld [vmem:[%s4 + $0x50] sm:$0xff]
  %v78 = vld [vmem:[%s4 + $0x58] sm:$0xff]
  %v79 = vld [vmem:[%s4 + $0x60] sm:$0xff]
  %v80 = vld [vmem:[%s4 + $0x68] sm:$0xff]
  %v81 = vld [vmem:[%s4 + $0x70] sm:$0xff]
  %v82 = vld [vmem:[%s4 + $0x78] sm:$0xff]
  %v83 = vld [vmem:[%s4 + $0x80] sm:$0xff]
  %v84 = vld [vmem:[%s4 + $0x88] sm:$0xff]
  %v85 = vld [vmem:[%s4 + $0x90] sm:$0xff]
  %v86 = vld [vmem:[%s4 + $0x98] sm:$0xff]
  %v87 = vld [vmem:[%s4 + $0xa0] sm:$0xff]
  %v88 = vld [vmem:[%s4 + $0xa8] sm:$0xff]
  %v89 = vld [vmem:[%s4 + $0xb0] sm:$0xff]
  %v90 = vld [vmem:[%s4 + $0xb8] sm:$0xff]
  %92 = vset.pattern.permute.xlu0 0
  %93 = vperm.xlu0 %92, %v67
  %v94 = vpop.permute.xlu0 %93
  %97 = vset.pattern.permute.xlu0 0
  %98 = vperm.xlu0 %97, %v68
  %v99 = vpop.permute.xlu0 %98
  %102 = vset.pattern.permute.xlu0 0
  %103 = vperm.xlu0 %102, %v69
  %v104 = vpop.permute.xlu0 %103
  %107 = vset.pattern.permute.xlu0 0
  %108 = vperm.xlu0 %107, %v70
  %v109 = vpop.permute.xlu0 %108
  %112 = vset.pattern.permute.xlu0 0
  %113 = vperm.xlu0 %112, %v71
  %v114 = vpop.permute.xlu0 %113
  %117 = vset.pattern.permute.xlu0 0
  %118 = vperm.xlu0 %117, %v72
  %v119 = vpop.permute.xlu0 %118
  %122 = vset.pattern.permute.xlu0 0
  %123 = vperm.xlu0 %122, %v73
  %v124 = vpop.permute.xlu0 %123
  %127 = vset.pattern.permute.xlu0 0
  %128 = vperm.xlu0 %127, %v74
  %v129 = vpop.permute.xlu0 %128
  %132 = vset.pattern.permute.xlu0 0
  %133 = vperm.xlu0 %132, %v75
  %v134 = vpop.permute.xlu0 %133
  %137 = vset.pattern.permute.xlu0 0
  %138 = vperm.xlu0 %137, %v76
  %v139 = vpop.permute.xlu0 %138
  %142 = vset.pattern.permute.xlu0 0
  %143 = vperm.xlu0 %142, %v77
  %v144 = vpop.permute.xlu0 %143
  %147 = vset.pattern.permute.xlu0 0
  %148 = vperm.xlu0 %147, %v78
  %v149 = vpop.permute.xlu0 %148
  %152 = vset.pattern.permute.xlu0 0
  %153 = vperm.xlu0 %152, %v79
  %v154 = vpop.permute.xlu0 %153
  %157 = vset.pattern.permute.xlu0 0
  %158 = vperm.xlu0 %157, %v80
  %v159 = vpop.permute.xlu0 %158
  %162 = vset.pattern.permute.xlu0 0
  %163 = vperm.xlu0 %162, %v81
  %v164 = vpop.permute.xlu0 %163
  %167 = vset.pattern.permute.xlu0 0
  %168 = vperm.xlu0 %167, %v82
  %v169 = vpop.permute.xlu0 %168
  %172 = vset.pattern.permute.xlu0 0
  %173 = vperm.xlu0 %172, %v83
  %v174 = vpop.permute.xlu0 %173
  %177 = vset.pattern.permute.xlu0 0
  %178 = vperm.xlu0 %177, %v84
  %v179 = vpop.permute.xlu0 %178
  %182 = vset.pattern.permute.xlu0 0
  %183 = vperm.xlu0 %182, %v85
  %v184 = vpop.permute.xlu0 %183
  %187 = vset.pattern.permute.xlu0 0
  %188 = vperm.xlu0 %187, %v86
  %v189 = vpop.permute.xlu0 %188
  %192 = vset.pattern.permute.xlu0 0
  %193 = vperm.xlu0 %192, %v87
  %v194 = vpop.permute.xlu0 %193
  %197 = vset.pattern.permute.xlu0 0
  %198 = vperm.xlu0 %197, %v88
  %v199 = vpop.permute.xlu0 %198
  %202 = vset.pattern.permute.xlu0 0
  %203 = vperm.xlu0 %202, %v89
  %v204 = vpop.permute.xlu0 %203
  %207 = vset.pattern.permute.xlu0 0
  %208 = vperm.xlu0 %207, %v90
  %v209 = vpop.permute.xlu0 %208
  %v211 = vld [vmem:[%s0] sm:$0xf]
  %v212 = vld [vmem:[%s0 + $0x4] sm:$0xf]
  %v213 = vld [vmem:[%s0 + $0x8] sm:$0xf]
  %v214 = vld [vmem:[%s0 + $0xc] sm:$0xf]
  %v215 = vld [vmem:[%s0 + $0x10] sm:$0xf]
  %v216 = vld [vmem:[%s0 + $0x14] sm:$0xf]
  %v217 = vld [vmem:[%s0 + $0x18] sm:$0xf]
  %v218 = vld [vmem:[%s0 + $0x1c] sm:$0xf]
  %v243 = vunpack.c.l.b16 %v43
  %v244 = vunpack.c.l.b16 %v44
  %v245 = vunpack.c.l.b16 %v45
  %v246 = vunpack.c.l.b16 %v46
  %v247 = vunpack.c.l.b16 %v47
  %v248 = vunpack.c.l.b16 %v48
  %v249 = vunpack.c.l.b16 %v49
  %v250 = vunpack.c.l.b16 %v50
  %v251 = vunpack.c.l.b16 %v51
  %v252 = vunpack.c.l.b16 %v52
  %v253 = vunpack.c.l.b16 %v53
  %v254 = vunpack.c.l.b16 %v54
  %v255 = vunpack.c.l.b16 %v55
  %v256 = vunpack.c.l.b16 %v56
  %v257 = vunpack.c.l.b16 %v57
  %v258 = vunpack.c.l.b16 %v58
  %v259 = vunpack.c.l.b16 %v59
  %v260 = vunpack.c.l.b16 %v60
  %v261 = vunpack.c.l.b16 %v61
  %v262 = vunpack.c.l.b16 %v62
  %v263 = vunpack.c.l.b16 %v63
  %v264 = vunpack.c.l.b16 %v64
  %v265 = vunpack.c.l.b16 %v65
  %v266 = vunpack.c.l.b16 %v66
  %v267 = vpack.c.b16 %v244, %v243
  %v268 = vpack.c.b16 %v246, %v245
  %v269 = vpack.c.b16 %v248, %v247
  %v270 = vpack.c.b16 %v250, %v249
  %v271 = vpack.c.b16 %v252, %v251
  %v272 = vpack.c.b16 %v254, %v253
  %v273 = vpack.c.b16 %v256, %v255
  %v274 = vpack.c.b16 %v258, %v257
  %v275 = vpack.c.b16 %v260, %v259
  %v276 = vpack.c.b16 %v262, %v261
  %v277 = vpack.c.b16 %v264, %v263
  %v278 = vpack.c.b16 %v266, %v265
  %v287 = vunpack.c.l.b16 %v211
  %v288 = vunpack.c.l.b16 %v212
  %v289 = vunpack.c.l.b16 %v213
  %v290 = vunpack.c.l.b16 %v214
  %v291 = vunpack.c.l.b16 %v215
  %v292 = vunpack.c.l.b16 %v216
  %v293 = vunpack.c.l.b16 %v217
  %v294 = vunpack.c.l.b16 %v218
  %v295 = vpack.c.b16 %v288, %v287
  %v296 = vpack.c.b16 %v290, %v289
  %v297 = vpack.c.b16 %v292, %v291
  %v298 = vpack.c.b16 %v294, %v293
  %vm303 = vcmask 523264
  %v305 = vsel %vm303, %v267, 0
  %v308 = vsel %vm303, %v268, 0
  %v311 = vsel %vm303, %v269, 0
  %v314 = vsel %vm303, %v270, 0
  %v317 = vsel %vm303, %v271, 0
  %v320 = vsel %vm303, %v272, 0
  %v323 = vsel %vm303, %v273, 0
  %v326 = vsel %vm303, %v274, 0
  %v329 = vsel %vm303, %v275, 0
  %v332 = vsel %vm303, %v276, 0
  %v335 = vsel %vm303, %v277, 0
  %v338 = vsel %vm303, %v278, 0
  %340 = vmatpush.bf16.msra.mxu0 0
  %341 = vmatpush.bf16.msra.mxu0 0
  %342 = vmatpush.bf16.msra.mxu0 0
  %343 = vmatpush.bf16.msra.mxu0 0
  %344 = vmatpush.bf16.msra.mxu0 %v298
  %345 = vmatpush.bf16.msra.mxu0 %v297
  %346 = vmatpush.bf16.msra.mxu0 %v296
  %347 = vmatpush.bf16.msra.mxu0 %v295
  %348 = vmatmul.bf16.gmra.mxu0 %v305
  %v349 = vpop.f32.mrf.mxu0
  %v350 = vadd.f32 %v94, %v349
  %v351 = vpop.f32.mrf.mxu0
  %v352 = vadd.f32 %v99, %v351
  %353 = vmatmul.bf16.gmra.mxu0 %v308
  %v354 = vpop.f32.mrf.mxu0
  %v355 = vadd.f32 %v104, %v354
  %v356 = vpop.f32.mrf.mxu0
  %v357 = vadd.f32 %v109, %v356
  %358 = vmatmul.bf16.gmra.mxu0 %v311
  %v359 = vpop.f32.mrf.mxu0
  %v360 = vadd.f32 %v114, %v359
  %v361 = vpop.f32.mrf.mxu0
  %v362 = vadd.f32 %v119, %v361
  %363 = vmatmul.bf16.gmra.mxu0 %v314
  %v364 = vpop.f32.mrf.mxu0
  %v365 = vadd.f32 %v124, %v364
  %v366 = vpop.f32.mrf.mxu0
  %v367 = vadd.f32 %v129, %v366
  %368 = vmatmul.bf16.gmra.mxu0 %v317
  %v369 = vpop.f32.mrf.mxu0
  %v370 = vadd.f32 %v134, %v369
  %v371 = vpop.f32.mrf.mxu0
  %v372 = vadd.f32 %v139, %v371
  %373 = vmatmul.bf16.gmra.mxu0 %v320
  %v374 = vpop.f32.mrf.mxu0
  %v375 = vadd.f32 %v144, %v374
  %v376 = vpop.f32.mrf.mxu0
  %v377 = vadd.f32 %v149, %v376
  %378 = vmatmul.bf16.gmra.mxu0 %v323
  %v379 = vpop.f32.mrf.mxu0
  %v380 = vadd.f32 %v154, %v379
  %v381 = vpop.f32.mrf.mxu0
  %v382 = vadd.f32 %v159, %v381
  %383 = vmatmul.bf16.gmra.mxu0 %v326
  %v384 = vpop.f32.mrf.mxu0
  %v385 = vadd.f32 %v164, %v384
  %v386 = vpop.f32.mrf.mxu0
  %v387 = vadd.f32 %v169, %v386
  %388 = vmatmul.bf16.gmra.mxu0 %v329
  %v389 = vpop.f32.mrf.mxu0
  %v390 = vadd.f32 %v174, %v389
  %v391 = vpop.f32.mrf.mxu0
  %v392 = vadd.f32 %v179, %v391
  %393 = vmatmul.bf16.gmra.mxu0 %v332
  %v394 = vpop.f32.mrf.mxu0
  %v395 = vadd.f32 %v184, %v394
  %v396 = vpop.f32.mrf.mxu0
  %v397 = vadd.f32 %v189, %v396
  %398 = vmatmul.bf16.gmra.mxu0 %v335
  %v399 = vpop.f32.mrf.mxu0
  %v400 = vadd.f32 %v194, %v399
  %v401 = vpop.f32.mrf.mxu0
  %v402 = vadd.f32 %v199, %v401
  %403 = vmatmul.bf16.gmra.mxu0 %v338
  %v404 = vpop.f32.mrf.mxu0
  %v405 = vadd.f32 %v204, %v404
  %v406 = vpop.f32.mrf.mxu0
  %v407 = vadd.f32 %v209, %v406
  %408 = vdwg.mxu0
  %409 = vst [vmem:[#allocation2] sm:$0xff] %v350
  %410 = vst [vmem:[#allocation2 + $0x8] sm:$0xff] %v352
  %411 = vst [vmem:[#allocation2 + $0x10] sm:$0xff] %v355
  %412 = vst [vmem:[#allocation2 + $0x18] sm:$0xff] %v357
  %413 = vst [vmem:[#allocation2 + $0x20] sm:$0xff] %v360
  %414 = vst [vmem:[#allocation2 + $0x28] sm:$0xff] %v362
  %415 = vst [vmem:[#allocation2 + $0x30] sm:$0xff] %v365
  %416 = vst [vmem:[#allocation2 + $0x38] sm:$0xff] %v367
  %417 = vst [vmem:[#allocation2 + $0x40] sm:$0xff] %v370
  %418 = vst [vmem:[#allocation2 + $0x48] sm:$0xff] %v372
  %419 = vst [vmem:[#allocation2 + $0x50] sm:$0xff] %v375
  %420 = vst [vmem:[#allocation2 + $0x58] sm:$0xff] %v377
  %421 = vst [vmem:[#allocation2 + $0x60] sm:$0xff] %v380
  %422 = vst [vmem:[#allocation2 + $0x68] sm:$0xff] %v382
  %423 = vst [vmem:[#allocation2 + $0x70] sm:$0xff] %v385
  %424 = vst [vmem:[#allocation2 + $0x78] sm:$0xff] %v387
  %425 = vst [vmem:[#allocation2 + $0x80] sm:$0xff] %v390
  %426 = vst [vmem:[#allocation2 + $0x88] sm:$0xff] %v392
  %427 = vst [vmem:[#allocation2 + $0x90] sm:$0xff] %v395
  %428 = vst [vmem:[#allocation2 + $0x98] sm:$0xff] %v397
  %429 = vst [vmem:[#allocation2 + $0xa0] sm:$0xff] %v400
  %430 = vst [vmem:[#allocation2 + $0xa8] sm:$0xff] %v402
  %431 = vst [vmem:[#allocation2 + $0xb0] sm:$0xff] %v405
  %432 = vst [vmem:[#allocation2 + $0xb8] sm:$0xff] %v407
  %s433 = scalar_lea.vmem %s0, 32
  %v434 = vld [vmem:[%s433] sm:$0xf]
  %v435 = vld [vmem:[%s433 + $0x4] sm:$0xf]
  %v436 = vld [vmem:[%s433 + $0x8] sm:$0xf]
  %v437 = vld [vmem:[%s433 + $0xc] sm:$0xf]
  %v438 = vld [vmem:[%s433 + $0x10] sm:$0xf]
  %v439 = vld [vmem:[%s433 + $0x14] sm:$0xf]
  %v440 = vld [vmem:[%s433 + $0x18] sm:$0xf]
  %v441 = vld [vmem:[%s433 + $0x1c] sm:$0xf]
  %v450 = vunpack.c.l.b16 %v434
  %v451 = vunpack.c.l.b16 %v435
  %v452 = vunpack.c.l.b16 %v436
  %v453 = vunpack.c.l.b16 %v437
  %v454 = vunpack.c.l.b16 %v438
  %v455 = vunpack.c.l.b16 %v439
  %v456 = vunpack.c.l.b16 %v440
  %v457 = vunpack.c.l.b16 %v441
  %v458 = vpack.c.b16 %v451, %v450
  %v459 = vpack.c.b16 %v453, %v452
  %v460 = vpack.c.b16 %v455, %v454
  %v461 = vpack.c.b16 %v457, %v456
  %466 = vmatpush.bf16.msra.mxu0 0
  %467 = vmatpush.bf16.msra.mxu0 0
  %468 = vmatpush.bf16.msra.mxu0 0
  %469 = vmatpush.bf16.msra.mxu0 0
  %470 = vmatpush.bf16.msra.mxu0 %v461
  %471 = vmatpush.bf16.msra.mxu0 %v460
  %472 = vmatpush.bf16.msra.mxu0 %v459
  %473 = vmatpush.bf16.msra.mxu0 %v458
  %474 = vmatmul.bf16.gmra.mxu0 %v305
  %v475 = vpop.f32.mrf.mxu0
  %v476 = vadd.f32 %v94, %v475
  %v477 = vpop.f32.mrf.mxu0
  %v478 = vadd.f32 %v99, %v477
  %479 = vmatmul.bf16.gmra.mxu0 %v308
  %v480 = vpop.f32.mrf.mxu0
  %v481 = vadd.f32 %v104, %v480
  %v482 = vpop.f32.mrf.mxu0
  %v483 = vadd.f32 %v109, %v482
  %484 = vmatmul.bf16.gmra.mxu0 %v311
  %v485 = vpop.f32.mrf.mxu0
  %v486 = vadd.f32 %v114, %v485
  %v487 = vpop.f32.mrf.mxu0
  %v488 = vadd.f32 %v119, %v487
  %489 = vmatmul.bf16.gmra.mxu0 %v314
  %v490 = vpop.f32.mrf.mxu0
  %v491 = vadd.f32 %v124, %v490
  %v492 = vpop.f32.mrf.mxu0
  %v493 = vadd.f32 %v129, %v492
  %494 = vmatmul.bf16.gmra.mxu0 %v317
  %v495 = vpop.f32.mrf.mxu0
  %v496 = vadd.f32 %v134, %v495
  %v497 = vpop.f32.mrf.mxu0
  %v498 = vadd.f32 %v139, %v497
  %499 = vmatmul.bf16.gmra.mxu0 %v320
  %v500 = vpop.f32.mrf.mxu0
  %v501 = vadd.f32 %v144, %v500
  %v502 = vpop.f32.mrf.mxu0
  %v503 = vadd.f32 %v149, %v502
  %504 = vmatmul.bf16.gmra.mxu0 %v323
  %v505 = vpop.f32.mrf.mxu0
  %v506 = vadd.f32 %v154, %v505
  %v507 = vpop.f32.mrf.mxu0
  %v508 = vadd.f32 %v159, %v507
  %509 = vmatmul.bf16.gmra.mxu0 %v326
  %v510 = vpop.f32.mrf.mxu0
  %v511 = vadd.f32 %v164, %v510
  %v512 = vpop.f32.mrf.mxu0
  %v513 = vadd.f32 %v169, %v512
  %514 = vmatmul.bf16.gmra.mxu0 %v329
  %v515 = vpop.f32.mrf.mxu0
  %v516 = vadd.f32 %v174, %v515
  %v517 = vpop.f32.mrf.mxu0
  %v518 = vadd.f32 %v179, %v517
  %519 = vmatmul.bf16.gmra.mxu0 %v332
  %v520 = vpop.f32.mrf.mxu0
  %v521 = vadd.f32 %v184, %v520
  %v522 = vpop.f32.mrf.mxu0
  %v523 = vadd.f32 %v189, %v522
  %524 = vmatmul.bf16.gmra.mxu0 %v335
  %v525 = vpop.f32.mrf.mxu0
  %v526 = vadd.f32 %v194, %v525
  %v527 = vpop.f32.mrf.mxu0
  %v528 = vadd.f32 %v199, %v527
  %529 = vmatmul.bf16.gmra.mxu0 %v338
  %v530 = vpop.f32.mrf.mxu0
  %v531 = vadd.f32 %v204, %v530
  %v532 = vpop.f32.mrf.mxu0
  %v533 = vadd.f32 %v209, %v532
  %534 = vdwg.mxu0
  %s535 = scalar_lea.vmem [#allocation2], 192
  %536 = vst [vmem:[%s535] sm:$0xff] %v476
  %537 = vst [vmem:[%s535 + $0x8] sm:$0xff] %v478
  %538 = vst [vmem:[%s535 + $0x10] sm:$0xff] %v481
  %539 = vst [vmem:[%s535 + $0x18] sm:$0xff] %v483
  %540 = vst [vmem:[%s535 + $0x20] sm:$0xff] %v486
  %541 = vst [vmem:[%s535 + $0x28] sm:$0xff] %v488
  %542 = vst [vmem:[%s535 + $0x30] sm:$0xff] %v491
  %543 = vst [vmem:[%s535 + $0x38] sm:$0xff] %v493
  %544 = vst [vmem:[%s535 + $0x40] sm:$0xff] %v496
  %545 = vst [vmem:[%s535 + $0x48] sm:$0xff] %v498
  %546 = vst [vmem:[%s535 + $0x50] sm:$0xff] %v501
  %547 = vst [vmem:[%s535 + $0x58] sm:$0xff] %v503
  %548 = vst [vmem:[%s535 + $0x60] sm:$0xff] %v506
  %549 = vst [vmem:[%s535 + $0x68] sm:$0xff] %v508
  %550 = vst [vmem:[%s535 + $0x70] sm:$0xff] %v511
  %551 = vst [vmem:[%s535 + $0x78] sm:$0xff] %v513
  %552 = vst [vmem:[%s535 + $0x80] sm:$0xff] %v516
  %553 = vst [vmem:[%s535 + $0x88] sm:$0xff] %v518
  %554 = vst [vmem:[%s535 + $0x90] sm:$0xff] %v521
  %555 = vst [vmem:[%s535 + $0x98] sm:$0xff] %v523
  %556 = vst [vmem:[%s535 + $0xa0] sm:$0xff] %v526
  %557 = vst [vmem:[%s535 + $0xa8] sm:$0xff] %v528
  %558 = vst [vmem:[%s535 + $0xb0] sm:$0xff] %v531
  %559 = vst [vmem:[%s535 + $0xb8] sm:$0xff] %v533
  %s560 = scalar_lea.vmem %s0, 64
  %v561 = vld [vmem:[%s560] sm:$0xf]
  %v562 = vld [vmem:[%s560 + $0x4] sm:$0xf]
  %v563 = vld [vmem:[%s560 + $0x8] sm:$0xf]
  %v564 = vld [vmem:[%s560 + $0xc] sm:$0xf]
  %v565 = vld [vmem:[%s560 + $0x10] sm:$0xf]
  %v566 = vld [vmem:[%s560 + $0x14] sm:$0xf]
  %v567 = vld [vmem:[%s560 + $0x18] sm:$0xf]
  %v568 = vld [vmem:[%s560 + $0x1c] sm:$0xf]
  %v577 = vunpack.c.l.b16 %v561
  %v578 = vunpack.c.l.b16 %v562
  %v579 = vunpack.c.l.b16 %v563
  %v580 = vunpack.c.l.b16 %v564
  %v581 = vunpack.c.l.b16 %v565
  %v582 = vunpack.c.l.b16 %v566
  %v583 = vunpack.c.l.b16 %v567
  %v584 = vunpack.c.l.b16 %v568
  %v585 = vpack.c.b16 %v578, %v577
  %v586 = vpack.c.b16 %v580, %v579
  %v587 = vpack.c.b16 %v582, %v581
  %v588 = vpack.c.b16 %v584, %v583
  %593 = vmatpush.bf16.msra.mxu0 0
  %594 = vmatpush.bf16.msra.mxu0 0
  %595 = vmatpush.bf16.msra.mxu0 0
  %596 = vmatpush.bf16.msra.mxu0 0
  %597 = vmatpush.bf16.msra.mxu0 %v588
  %598 = vmatpush.bf16.msra.mxu0 %v587
  %599 = vmatpush.bf16.msra.mxu0 %v586
  %600 = vmatpush.bf16.msra.mxu0 %v585
  %601 = vmatmul.bf16.gmra.mxu0 %v305
  %v602 = vpop.f32.mrf.mxu0
  %v603 = vadd.f32 %v94, %v602
  %v604 = vpop.f32.mrf.mxu0
  %v605 = vadd.f32 %v99, %v604
  %606 = vmatmul.bf16.gmra.mxu0 %v308
  %v607 = vpop.f32.mrf.mxu0
  %v608 = vadd.f32 %v104, %v607
  %v609 = vpop.f32.mrf.mxu0
  %v610 = vadd.f32 %v109, %v609
  %611 = vmatmul.bf16.gmra.mxu0 %v311
  %v612 = vpop.f32.mrf.mxu0
  %v613 = vadd.f32 %v114, %v612
  %v614 = vpop.f32.mrf.mxu0
  %v615 = vadd.f32 %v119, %v614
  %616 = vmatmul.bf16.gmra.mxu0 %v314
  %v617 = vpop.f32.mrf.mxu0
  %v618 = vadd.f32 %v124, %v617
  %v619 = vpop.f32.mrf.mxu0
  %v620 = vadd.f32 %v129, %v619
  %621 = vmatmul.bf16.gmra.mxu0 %v317
  %v622 = vpop.f32.mrf.mxu0
  %v623 = vadd.f32 %v134, %v622
  %v624 = vpop.f32.mrf.mxu0
  %v625 = vadd.f32 %v139, %v624
  %626 = vmatmul.bf16.gmra.mxu0 %v320
  %v627 = vpop.f32.mrf.mxu0
  %v628 = vadd.f32 %v144, %v627
  %v629 = vpop.f32.mrf.mxu0
  %v630 = vadd.f32 %v149, %v629
  %631 = vmatmul.bf16.gmra.mxu0 %v323
  %v632 = vpop.f32.mrf.mxu0
  %v633 = vadd.f32 %v154, %v632
  %v634 = vpop.f32.mrf.mxu0
  %v635 = vadd.f32 %v159, %v634
  %636 = vmatmul.bf16.gmra.mxu0 %v326
  %v637 = vpop.f32.mrf.mxu0
  %v638 = vadd.f32 %v164, %v637
  %v639 = vpop.f32.mrf.mxu0
  %v640 = vadd.f32 %v169, %v639
  %641 = vmatmul.bf16.gmra.mxu0 %v329
  %v642 = vpop.f32.mrf.mxu0
  %v643 = vadd.f32 %v174, %v642
  %v644 = vpop.f32.mrf.mxu0
  %v645 = vadd.f32 %v179, %v644
  %646 = vmatmul.bf16.gmra.mxu0 %v332
  %v647 = vpop.f32.mrf.mxu0
  %v648 = vadd.f32 %v184, %v647
  %v649 = vpop.f32.mrf.mxu0
  %v650 = vadd.f32 %v189, %v649
  %651 = vmatmul.bf16.gmra.mxu0 %v335
  %v652 = vpop.f32.mrf.mxu0
  %v653 = vadd.f32 %v194, %v652
  %v654 = vpop.f32.mrf.mxu0
  %v655 = vadd.f32 %v199, %v654
  %656 = vmatmul.bf16.gmra.mxu0 %v338
  %v657 = vpop.f32.mrf.mxu0
  %v658 = vadd.f32 %v204, %v657
  %v659 = vpop.f32.mrf.mxu0
  %v660 = vadd.f32 %v209, %v659
  %661 = vdwg.mxu0
  %s662 = scalar_lea.vmem [#allocation2], 384
  %663 = vst [vmem:[%s662] sm:$0xff] %v603
  %664 = vst [vmem:[%s662 + $0x8] sm:$0xff] %v605
  %665 = vst [vmem:[%s662 + $0x10] sm:$0xff] %v608
  %666 = vst [vmem:[%s662 + $0x18] sm:$0xff] %v610
  %667 = vst [vmem:[%s662 + $0x20] sm:$0xff] %v613
  %668 = vst [vmem:[%s662 + $0x28] sm:$0xff] %v615
  %669 = vst [vmem:[%s662 + $0x30] sm:$0xff] %v618
  %670 = vst [vmem:[%s662 + $0x38] sm:$0xff] %v620
  %671 = vst [vmem:[%s662 + $0x40] sm:$0xff] %v623
  %672 = vst [vmem:[%s662 + $0x48] sm:$0xff] %v625
  %673 = vst [vmem:[%s662 + $0x50] sm:$0xff] %v628
  %674 = vst [vmem:[%s662 + $0x58] sm:$0xff] %v630
  %675 = vst [vmem:[%s662 + $0x60] sm:$0xff] %v633
  %676 = vst [vmem:[%s662 + $0x68] sm:$0xff] %v635
  %677 = vst [vmem:[%s662 + $0x70] sm:$0xff] %v638
  %678 = vst [vmem:[%s662 + $0x78] sm:$0xff] %v640
  %679 = vst [vmem:[%s662 + $0x80] sm:$0xff] %v643
  %680 = vst [vmem:[%s662 + $0x88] sm:$0xff] %v645
  %681 = vst [vmem:[%s662 + $0x90] sm:$0xff] %v648
  %682 = vst [vmem:[%s662 + $0x98] sm:$0xff] %v650
  %683 = vst [vmem:[%s662 + $0xa0] sm:$0xff] %v653
  %684 = vst [vmem:[%s662 + $0xa8] sm:$0xff] %v655
  %685 = vst [vmem:[%s662 + $0xb0] sm:$0xff] %v658
  %686 = vst [vmem:[%s662 + $0xb8] sm:$0xff] %v660
  %s687 = scalar_lea.vmem %s0, 96
  %v688 = vld [vmem:[%s687] sm:$0xf]
  %v689 = vld [vmem:[%s687 + $0x4] sm:$0xf]
  %v690 = vld [vmem:[%s687 + $0x8] sm:$0xf]
  %v691 = vld [vmem:[%s687 + $0xc] sm:$0xf]
  %v692 = vld [vmem:[%s687 + $0x10] sm:$0xf]
  %v693 = vld [vmem:[%s687 + $0x14] sm:$0xf]
  %v694 = vld [vmem:[%s687 + $0x18] sm:$0xf]
  %v695 = vld [vmem:[%s687 + $0x1c] sm:$0xf]
  %v704 = vunpack.c.l.b16 %v688
  %v705 = vunpack.c.l.b16 %v689
  %v706 = vunpack.c.l.b16 %v690
  %v707 = vunpack.c.l.b16 %v691
  %v708 = vunpack.c.l.b16 %v692
  %v709 = vunpack.c.l.b16 %v693
  %v710 = vunpack.c.l.b16 %v694
  %v711 = vunpack.c.l.b16 %v695
  %v712 = vpack.c.b16 %v705, %v704
  %v713 = vpack.c.b16 %v707, %v706
  %v714 = vpack.c.b16 %v709, %v708
  %v715 = vpack.c.b16 %v711, %v710
  %720 = vmatpush.bf16.msra.mxu0 0
  %721 = vmatpush.bf16.msra.mxu0 0
  %722 = vmatpush.bf16.msra.mxu0 0
  %723 = vmatpush.bf16.msra.mxu0 0
  %724 = vmatpush.bf16.msra.mxu0 %v715
  %725 = vmatpush.bf16.msra.mxu0 %v714
  %726 = vmatpush.bf16.msra.mxu0 %v713
  %727 = vmatpush.bf16.msra.mxu0 %v712
  %728 = vmatmul.bf16.gmra.mxu0 %v305
  %v729 = vpop.f32.mrf.mxu0
  %v730 = vadd.f32 %v94, %v729
  %v731 = vpop.f32.mrf.mxu0
  %v732 = vadd.f32 %v99, %v731
  %733 = vmatmul.bf16.gmra.mxu0 %v308
  %v734 = vpop.f32.mrf.mxu0
  %v735 = vadd.f32 %v104, %v734
  %v736 = vpop.f32.mrf.mxu0
  %v737 = vadd.f32 %v109, %v736
  %738 = vmatmul.bf16.gmra.mxu0 %v311
  %v739 = vpop.f32.mrf.mxu0
  %v740 = vadd.f32 %v114, %v739
  %v741 = vpop.f32.mrf.mxu0
  %v742 = vadd.f32 %v119, %v741
  %743 = vmatmul.bf16.gmra.mxu0 %v314
  %v744 = vpop.f32.mrf.mxu0
  %v745 = vadd.f32 %v124, %v744
  %v746 = vpop.f32.mrf.mxu0
  %v747 = vadd.f32 %v129, %v746
  %748 = vmatmul.bf16.gmra.mxu0 %v317
  %v749 = vpop.f32.mrf.mxu0
  %v750 = vadd.f32 %v134, %v749
  %v751 = vpop.f32.mrf.mxu0
  %v752 = vadd.f32 %v139, %v751
  %753 = vmatmul.bf16.gmra.mxu0 %v320
  %v754 = vpop.f32.mrf.mxu0
  %v755 = vadd.f32 %v144, %v754
  %v756 = vpop.f32.mrf.mxu0
  %v757 = vadd.f32 %v149, %v756
  %758 = vmatmul.bf16.gmra.mxu0 %v323
  %v759 = vpop.f32.mrf.mxu0
  %v760 = vadd.f32 %v154, %v759
  %v761 = vpop.f32.mrf.mxu0
  %v762 = vadd.f32 %v159, %v761
  %763 = vmatmul.bf16.gmra.mxu0 %v326
  %v764 = vpop.f32.mrf.mxu0
  %v765 = vadd.f32 %v164, %v764
  %v766 = vpop.f32.mrf.mxu0
  %v767 = vadd.f32 %v169, %v766
  %768 = vmatmul.bf16.gmra.mxu0 %v329
  %v769 = vpop.f32.mrf.mxu0
  %v770 = vadd.f32 %v174, %v769
  %v771 = vpop.f32.mrf.mxu0
  %v772 = vadd.f32 %v179, %v771
  %773 = vmatmul.bf16.gmra.mxu0 %v332
  %v774 = vpop.f32.mrf.mxu0
  %v775 = vadd.f32 %v184, %v774
  %v776 = vpop.f32.mrf.mxu0
  %v777 = vadd.f32 %v189, %v776
  %778 = vmatmul.bf16.gmra.mxu0 %v335
  %v779 = vpop.f32.mrf.mxu0
  %v780 = vadd.f32 %v194, %v779
  %v781 = vpop.f32.mrf.mxu0
  %v782 = vadd.f32 %v199, %v781
  %783 = vmatmul.bf16.gmra.mxu0 %v338
  %v784 = vpop.f32.mrf.mxu0
  %v785 = vadd.f32 %v204, %v784
  %v786 = vpop.f32.mrf.mxu0
  %v787 = vadd.f32 %v209, %v786
  %788 = vdwg.mxu0
  %s789 = scalar_lea.vmem [#allocation2], 576
  %790 = vst [vmem:[%s789] sm:$0xff] %v730
  %791 = vst [vmem:[%s789 + $0x8] sm:$0xff] %v732
  %792 = vst [vmem:[%s789 + $0x10] sm:$0xff] %v735
  %793 = vst [vmem:[%s789 + $0x18] sm:$0xff] %v737
  %794 = vst [vmem:[%s789 + $0x20] sm:$0xff] %v740
  %795 = vst [vmem:[%s789 + $0x28] sm:$0xff] %v742
  %796 = vst [vmem:[%s789 + $0x30] sm:$0xff] %v745
  %797 = vst [vmem:[%s789 + $0x38] sm:$0xff] %v747
  %798 = vst [vmem:[%s789 + $0x40] sm:$0xff] %v750
  %799 = vst [vmem:[%s789 + $0x48] sm:$0xff] %v752
  %800 = vst [vmem:[%s789 + $0x50] sm:$0xff] %v755
  %801 = vst [vmem:[%s789 + $0x58] sm:$0xff] %v757
  %802 = vst [vmem:[%s789 + $0x60] sm:$0xff] %v760
  %803 = vst [vmem:[%s789 + $0x68] sm:$0xff] %v762
  %804 = vst [vmem:[%s789 + $0x70] sm:$0xff] %v765
  %805 = vst [vmem:[%s789 + $0x78] sm:$0xff] %v767
  %806 = vst [vmem:[%s789 + $0x80] sm:$0xff] %v770
  %807 = vst [vmem:[%s789 + $0x88] sm:$0xff] %v772
  %808 = vst [vmem:[%s789 + $0x90] sm:$0xff] %v775
  %809 = vst [vmem:[%s789 + $0x98] sm:$0xff] %v777
  %810 = vst [vmem:[%s789 + $0xa0] sm:$0xff] %v780
  %811 = vst [vmem:[%s789 + $0xa8] sm:$0xff] %v782
  %812 = vst [vmem:[%s789 + $0xb0] sm:$0xff] %v785
  %813 = vst [vmem:[%s789 + $0xb8] sm:$0xff] %v787
  %s814 = scalar_lea.vmem %s0, 128
  %v815 = vld [vmem:[%s814] sm:$0xf]
  %v816 = vld [vmem:[%s814 + $0x4] sm:$0xf]
  %v817 = vld [vmem:[%s814 + $0x8] sm:$0xf]
  %v818 = vld [vmem:[%s814 + $0xc] sm:$0xf]
  %v819 = vld [vmem:[%s814 + $0x10] sm:$0xf]
  %v820 = vld [vmem:[%s814 + $0x14] sm:$0xf]
  %v821 = vld [vmem:[%s814 + $0x18] sm:$0xf]
  %v822 = vld [vmem:[%s814 + $0x1c] sm:$0xf]
  %v831 = vunpack.c.l.b16 %v815
  %v832 = vunpack.c.l.b16 %v816
  %v833 = vunpack.c.l.b16 %v817
  %v834 = vunpack.c.l.b16 %v818
  %v835 = vunpack.c.l.b16 %v819
  %v836 = vunpack.c.l.b16 %v820
  %v837 = vunpack.c.l.b16 %v821
  %v838 = vunpack.c.l.b16 %v822
  %v839 = vpack.c.b16 %v832, %v831
  %v840 = vpack.c.b16 %v834, %v833
  %v841 = vpack.c.b16 %v836, %v835
  %v842 = vpack.c.b16 %v838, %v837
  %847 = vmatpush.bf16.msra.mxu0 0
  %848 = vmatpush.bf16.msra.mxu0 0
  %849 = vmatpush.bf16.msra.mxu0 0
  %850 = vmatpush.bf16.msra.mxu0 0
  %851 = vmatpush.bf16.msra.mxu0 %v842
  %852 = vmatpush.bf16.msra.mxu0 %v841
  %853 = vmatpush.bf16.msra.mxu0 %v840
  %854 = vmatpush.bf16.msra.mxu0 %v839
  %855 = vmatmul.bf16.gmra.mxu0 %v305
  %v856 = vpop.f32.mrf.mxu0
  %v857 = vadd.f32 %v94, %v856
  %v858 = vpop.f32.mrf.mxu0
  %v859 = vadd.f32 %v99, %v858
  %860 = vmatmul.bf16.gmra.mxu0 %v308
  %v861 = vpop.f32.mrf.mxu0
  %v862 = vadd.f32 %v104, %v861
  %v863 = vpop.f32.mrf.mxu0
  %v864 = vadd.f32 %v109, %v863
  %865 = vmatmul.bf16.gmra.mxu0 %v311
  %v866 = vpop.f32.mrf.mxu0
  %v867 = vadd.f32 %v114, %v866
  %v868 = vpop.f32.mrf.mxu0
  %v869 = vadd.f32 %v119, %v868
  %870 = vmatmul.bf16.gmra.mxu0 %v314
  %v871 = vpop.f32.mrf.mxu0
  %v872 = vadd.f32 %v124, %v871
  %v873 = vpop.f32.mrf.mxu0
  %v874 = vadd.f32 %v129, %v873
  %875 = vmatmul.bf16.gmra.mxu0 %v317
  %v876 = vpop.f32.mrf.mxu0
  %v877 = vadd.f32 %v134, %v876
  %v878 = vpop.f32.mrf.mxu0
  %v879 = vadd.f32 %v139, %v878
  %880 = vmatmul.bf16.gmra.mxu0 %v320
  %v881 = vpop.f32.mrf.mxu0
  %v882 = vadd.f32 %v144, %v881
  %v883 = vpop.f32.mrf.mxu0
  %v884 = vadd.f32 %v149, %v883
  %885 = vmatmul.bf16.gmra.mxu0 %v323
  %v886 = vpop.f32.mrf.mxu0
  %v887 = vadd.f32 %v154, %v886
  %v888 = vpop.f32.mrf.mxu0
  %v889 = vadd.f32 %v159, %v888
  %890 = vmatmul.bf16.gmra.mxu0 %v326
  %v891 = vpop.f32.mrf.mxu0
  %v892 = vadd.f32 %v164, %v891
  %v893 = vpop.f32.mrf.mxu0
  %v894 = vadd.f32 %v169, %v893
  %895 = vmatmul.bf16.gmra.mxu0 %v329
  %v896 = vpop.f32.mrf.mxu0
  %v897 = vadd.f32 %v174, %v896
  %v898 = vpop.f32.mrf.mxu0
  %v899 = vadd.f32 %v179, %v898
  %900 = vmatmul.bf16.gmra.mxu0 %v332
  %v901 = vpop.f32.mrf.mxu0
  %v902 = vadd.f32 %v184, %v901
  %v903 = vpop.f32.mrf.mxu0
  %v904 = vadd.f32 %v189, %v903
  %905 = vmatmul.bf16.gmra.mxu0 %v335
  %v906 = vpop.f32.mrf.mxu0
  %v907 = vadd.f32 %v194, %v906
  %v908 = vpop.f32.mrf.mxu0
  %v909 = vadd.f32 %v199, %v908
  %910 = vmatmul.bf16.gmra.mxu0 %v338
  %v911 = vpop.f32.mrf.mxu0
  %v912 = vadd.f32 %v204, %v911
  %v913 = vpop.f32.mrf.mxu0
  %v914 = vadd.f32 %v209, %v913
  %915 = vdwg.mxu0
  %s916 = scalar_lea.vmem [#allocation2], 768
  %917 = vst [vmem:[%s916] sm:$0xff] %v857
  %918 = vst [vmem:[%s916 + $0x8] sm:$0xff] %v859
  %919 = vst [vmem:[%s916 + $0x10] sm:$0xff] %v862
  %920 = vst [vmem:[%s916 + $0x18] sm:$0xff] %v864
  %921 = vst [vmem:[%s916 + $0x20] sm:$0xff] %v867
  %922 = vst [vmem:[%s916 + $0x28] sm:$0xff] %v869
  %923 = vst [vmem:[%s916 + $0x30] sm:$0xff] %v872
  %924 = vst [vmem:[%s916 + $0x38] sm:$0xff] %v874
  %925 = vst [vmem:[%s916 + $0x40] sm:$0xff] %v877
  %926 = vst [vmem:[%s916 + $0x48] sm:$0xff] %v879
  %927 = vst [vmem:[%s916 + $0x50] sm:$0xff] %v882
  %928 = vst [vmem:[%s916 + $0x58] sm:$0xff] %v884
  %929 = vst [vmem:[%s916 + $0x60] sm:$0xff] %v887
  %930 = vst [vmem:[%s916 + $0x68] sm:$0xff] %v889
  %931 = vst [vmem:[%s916 + $0x70] sm:$0xff] %v892
  %932 = vst [vmem:[%s916 + $0x78] sm:$0xff] %v894
  %933 = vst [vmem:[%s916 + $0x80] sm:$0xff] %v897
  %934 = vst [vmem:[%s916 + $0x88] sm:$0xff] %v899
  %935 = vst [vmem:[%s916 + $0x90] sm:$0xff] %v902
  %936 = vst [vmem:[%s916 + $0x98] sm:$0xff] %v904
  %937 = vst [vmem:[%s916 + $0xa0] sm:$0xff] %v907
  %938 = vst [vmem:[%s916 + $0xa8] sm:$0xff] %v909
  %939 = vst [vmem:[%s916 + $0xb0] sm:$0xff] %v912
  %940 = vst [vmem:[%s916 + $0xb8] sm:$0xff] %v914
  %s941 = scalar_lea.vmem %s0, 160
  %v942 = vld [vmem:[%s941] sm:$0xf]
  %v943 = vld [vmem:[%s941 + $0x4] sm:$0xf]
  %v944 = vld [vmem:[%s941 + $0x8] sm:$0xf]
  %v945 = vld [vmem:[%s941 + $0xc] sm:$0xf]
  %v946 = vld [vmem:[%s941 + $0x10] sm:$0xf]
  %v947 = vld [vmem:[%s941 + $0x14] sm:$0xf]
  %v948 = vld [vmem:[%s941 + $0x18] sm:$0xf]
  %v949 = vld [vmem:[%s941 + $0x1c] sm:$0xf]
  %v958 = vunpack.c.l.b16 %v942
  %v959 = vunpack.c.l.b16 %v943
  %v960 = vunpack.c.l.b16 %v944
  %v961 = vunpack.c.l.b16 %v945
  %v962 = vunpack.c.l.b16 %v946
  %v963 = vunpack.c.l.b16 %v947
  %v964 = vunpack.c.l.b16 %v948
  %v965 = vunpack.c.l.b16 %v949
  %v966 = vpack.c.b16 %v959, %v958
  %v967 = vpack.c.b16 %v961, %v960
  %v968 = vpack.c.b16 %v963, %v962
  %v969 = vpack.c.b16 %v965, %v964
  %974 = vmatpush.bf16.msra.mxu0 0
  %975 = vmatpush.bf16.msra.mxu0 0
  %976 = vmatpush.bf16.msra.mxu0 0
  %977 = vmatpush.bf16.msra.mxu0 0
  %978 = vmatpush.bf16.msra.mxu0 %v969
  %979 = vmatpush.bf16.msra.mxu0 %v968
  %980 = vmatpush.bf16.msra.mxu0 %v967
  %981 = vmatpush.bf16.msra.mxu0 %v966
  %982 = vmatmul.bf16.gmra.mxu0 %v305
  %v983 = vpop.f32.mrf.mxu0
  %v984 = vadd.f32 %v94, %v983
  %v985 = vpop.f32.mrf.mxu0
  %v986 = vadd.f32 %v99, %v985
  %987 = vmatmul.bf16.gmra.mxu0 %v308
  %v988 = vpop.f32.mrf.mxu0
  %v989 = vadd.f32 %v104, %v988
  %v990 = vpop.f32.mrf.mxu0
  %v991 = vadd.f32 %v109, %v990
  %992 = vmatmul.bf16.gmra.mxu0 %v311
  %v993 = vpop.f32.mrf.mxu0
  %v994 = vadd.f32 %v114, %v993
  %v995 = vpop.f32.mrf.mxu0
  %v996 = vadd.f32 %v119, %v995
  %997 = vmatmul.bf16.gmra.mxu0 %v314
  %v998 = vpop.f32.mrf.mxu0
  %v999 = vadd.f32 %v124, %v998
  %v1000 = vpop.f32.mrf.mxu0
  %v1001 = vadd.f32 %v129, %v1000
  %1002 = vmatmul.bf16.gmra.mxu0 %v317
  %v1003 = vpop.f32.mrf.mxu0
  %v1004 = vadd.f32 %v134, %v1003
  %v1005 = vpop.f32.mrf.mxu0
  %v1006 = vadd.f32 %v139, %v1005
  %1007 = vmatmul.bf16.gmra.mxu0 %v320
  %v1008 = vpop.f32.mrf.mxu0
  %v1009 = vadd.f32 %v144, %v1008
  %v1010 = vpop.f32.mrf.mxu0
  %v1011 = vadd.f32 %v149, %v1010
  %1012 = vmatmul.bf16.gmra.mxu0 %v323
  %v1013 = vpop.f32.mrf.mxu0
  %v1014 = vadd.f32 %v154, %v1013
  %v1015 = vpop.f32.mrf.mxu0
  %v1016 = vadd.f32 %v159, %v1015
  %1017 = vmatmul.bf16.gmra.mxu0 %v326
  %v1018 = vpop.f32.mrf.mxu0
  %v1019 = vadd.f32 %v164, %v1018
  %v1020 = vpop.f32.mrf.mxu0
  %v1021 = vadd.f32 %v169, %v1020
  %1022 = vmatmul.bf16.gmra.mxu0 %v329
  %v1023 = vpop.f32.mrf.mxu0
  %v1024 = vadd.f32 %v174, %v1023
  %v1025 = vpop.f32.mrf.mxu0
  %v1026 = vadd.f32 %v179, %v1025
  %1027 = vmatmul.bf16.gmra.mxu0 %v332
  %v1028 = vpop.f32.mrf.mxu0
  %v1029 = vadd.f32 %v184, %v1028
  %v1030 = vpop.f32.mrf.mxu0
  %v1031 = vadd.f32 %v189, %v1030
  %1032 = vmatmul.bf16.gmra.mxu0 %v335
  %v1033 = vpop.f32.mrf.mxu0
  %v1034 = vadd.f32 %v194, %v1033
  %v1035 = vpop.f32.mrf.mxu0
  %v1036 = vadd.f32 %v199, %v1035
  %1037 = vmatmul.bf16.gmra.mxu0 %v338
  %v1038 = vpop.f32.mrf.mxu0
  %v1039 = vadd.f32 %v204, %v1038
  %v1040 = vpop.f32.mrf.mxu0
  %v1041 = vadd.f32 %v209, %v1040
  %1042 = vdwg.mxu0
  %s1043 = scalar_lea.vmem [#allocation2], 960
  %1044 = vst [vmem:[%s1043] sm:$0xff] %v984
  %1045 = vst [vmem:[%s1043 + $0x8] sm:$0xff] %v986
  %1046 = vst [vmem:[%s1043 + $0x10] sm:$0xff] %v989
  %1047 = vst [vmem:[%s1043 + $0x18] sm:$0xff] %v991
  %1048 = vst [vmem:[%s1043 + $0x20] sm:$0xff] %v994
  %1049 = vst [vmem:[%s1043 + $0x28] sm:$0xff] %v996
  %1050 = vst [vmem:[%s1043 + $0x30] sm:$0xff] %v999
  %1051 = vst [vmem:[%s1043 + $0x38] sm:$0xff] %v1001
  %1052 = vst [vmem:[%s1043 + $0x40] sm:$0xff] %v1004
  %1053 = vst [vmem:[%s1043 + $0x48] sm:$0xff] %v1006
  %1054 = vst [vmem:[%s1043 + $0x50] sm:$0xff] %v1009
  %1055 = vst [vmem:[%s1043 + $0x58] sm:$0xff] %v1011
  %1056 = vst [vmem:[%s1043 + $0x60] sm:$0xff] %v1014
  %1057 = vst [vmem:[%s1043 + $0x68] sm:$0xff] %v1016
  %1058 = vst [vmem:[%s1043 + $0x70] sm:$0xff] %v1019
  %1059 = vst [vmem:[%s1043 + $0x78] sm:$0xff] %v1021
  %1060 = vst [vmem:[%s1043 + $0x80] sm:$0xff] %v1024
  %1061 = vst [vmem:[%s1043 + $0x88] sm:$0xff] %v1026
  %1062 = vst [vmem:[%s1043 + $0x90] sm:$0xff] %v1029
  %1063 = vst [vmem:[%s1043 + $0x98] sm:$0xff] %v1031
  %1064 = vst [vmem:[%s1043 + $0xa0] sm:$0xff] %v1034
  %1065 = vst [vmem:[%s1043 + $0xa8] sm:$0xff] %v1036
  %1066 = vst [vmem:[%s1043 + $0xb0] sm:$0xff] %v1039
  %1067 = vst [vmem:[%s1043 + $0xb8] sm:$0xff] %v1041
  %s1068 = scalar_lea.vmem %s0, 192
  %v1069 = vld [vmem:[%s1068] sm:$0xf]
  %v1070 = vld [vmem:[%s1068 + $0x4] sm:$0xf]
  %v1071 = vld [vmem:[%s1068 + $0x8] sm:$0xf]
  %v1072 = vld [vmem:[%s1068 + $0xc] sm:$0xf]
  %v1073 = vld [vmem:[%s1068 + $0x10] sm:$0xf]
  %v1074 = vld [vmem:[%s1068 + $0x14] sm:$0xf]
  %v1075 = vld [vmem:[%s1068 + $0x18] sm:$0xf]
  %v1076 = vld [vmem:[%s1068 + $0x1c] sm:$0xf]
  %v1085 = vunpack.c.l.b16 %v1069
  %v1086 = vunpack.c.l.b16 %v1070
  %v1087 = vunpack.c.l.b16 %v1071
  %v1088 = vunpack.c.l.b16 %v1072
  %v1089 = vunpack.c.l.b16 %v1073
  %v1090 = vunpack.c.l.b16 %v1074
  %v1091 = vunpack.c.l.b16 %v1075
  %v1092 = vunpack.c.l.b16 %v1076
  %v1093 = vpack.c.b16 %v1086, %v1085
  %v1094 = vpack.c.b16 %v1088, %v1087
  %v1095 = vpack.c.b16 %v1090, %v1089
  %v1096 = vpack.c.b16 %v1092, %v1091
  %1101 = vmatpush.bf16.msra.mxu0 0
  %1102 = vmatpush.bf16.msra.mxu0 0
  %1103 = vmatpush.bf16.msra.mxu0 0
  %1104 = vmatpush.bf16.msra.mxu0 0
  %1105 = vmatpush.bf16.msra.mxu0 %v1096
  %1106 = vmatpush.bf16.msra.mxu0 %v1095
  %1107 = vmatpush.bf16.msra.mxu0 %v1094
  %1108 = vmatpush.bf16.msra.mxu0 %v1093
  %1109 = vmatmul.bf16.gmra.mxu0 %v305
  %v1110 = vpop.f32.mrf.mxu0
  %v1111 = vadd.f32 %v94, %v1110
  %v1112 = vpop.f32.mrf.mxu0
  %v1113 = vadd.f32 %v99, %v1112
  %1114 = vmatmul.bf16.gmra.mxu0 %v308
  %v1115 = vpop.f32.mrf.mxu0
  %v1116 = vadd.f32 %v104, %v1115
  %v1117 = vpop.f32.mrf.mxu0
  %v1118 = vadd.f32 %v109, %v1117
  %1119 = vmatmul.bf16.gmra.mxu0 %v311
  %v1120 = vpop.f32.mrf.mxu0
  %v1121 = vadd.f32 %v114, %v1120
  %v1122 = vpop.f32.mrf.mxu0
  %v1123 = vadd.f32 %v119, %v1122
  %1124 = vmatmul.bf16.gmra.mxu0 %v314
  %v1125 = vpop.f32.mrf.mxu0
  %v1126 = vadd.f32 %v124, %v1125
  %v1127 = vpop.f32.mrf.mxu0
  %v1128 = vadd.f32 %v129, %v1127
  %1129 = vmatmul.bf16.gmra.mxu0 %v317
  %v1130 = vpop.f32.mrf.mxu0
  %v1131 = vadd.f32 %v134, %v1130
  %v1132 = vpop.f32.mrf.mxu0
  %v1133 = vadd.f32 %v139, %v1132
  %1134 = vmatmul.bf16.gmra.mxu0 %v320
  %v1135 = vpop.f32.mrf.mxu0
  %v1136 = vadd.f32 %v144, %v1135
  %v1137 = vpop.f32.mrf.mxu0
  %v1138 = vadd.f32 %v149, %v1137
  %1139 = vmatmul.bf16.gmra.mxu0 %v323
  %v1140 = vpop.f32.mrf.mxu0
  %v1141 = vadd.f32 %v154, %v1140
  %v1142 = vpop.f32.mrf.mxu0
  %v1143 = vadd.f32 %v159, %v1142
  %1144 = vmatmul.bf16.gmra.mxu0 %v326
  %v1145 = vpop.f32.mrf.mxu0
  %v1146 = vadd.f32 %v164, %v1145
  %v1147 = vpop.f32.mrf.mxu0
  %v1148 = vadd.f32 %v169, %v1147
  %1149 = vmatmul.bf16.gmra.mxu0 %v329
  %v1150 = vpop.f32.mrf.mxu0
  %v1151 = vadd.f32 %v174, %v1150
  %v1152 = vpop.f32.mrf.mxu0
  %v1153 = vadd.f32 %v179, %v1152
  %1154 = vmatmul.bf16.gmra.mxu0 %v332
  %v1155 = vpop.f32.mrf.mxu0
  %v1156 = vadd.f32 %v184, %v1155
  %v1157 = vpop.f32.mrf.mxu0
  %v1158 = vadd.f32 %v189, %v1157
  %1159 = vmatmul.bf16.gmra.mxu0 %v335
  %v1160 = vpop.f32.mrf.mxu0
  %v1161 = vadd.f32 %v194, %v1160
  %v1162 = vpop.f32.mrf.mxu0
  %v1163 = vadd.f32 %v199, %v1162
  %1164 = vmatmul.bf16.gmra.mxu0 %v338
  %v1165 = vpop.f32.mrf.mxu0
  %v1166 = vadd.f32 %v204, %v1165
  %v1167 = vpop.f32.mrf.mxu0
  %v1168 = vadd.f32 %v209, %v1167
  %1169 = vdwg.mxu0
  %s1170 = scalar_lea.vmem [#allocation2], 1152
  %1171 = vst [vmem:[%s1170] sm:$0xff] %v1111
  %1172 = vst [vmem:[%s1170 + $0x8] sm:$0xff] %v1113
  %1173 = vst [vmem:[%s1170 + $0x10] sm:$0xff] %v1116
  %1174 = vst [vmem:[%s1170 + $0x18] sm:$0xff] %v1118
  %1175 = vst [vmem:[%s1170 + $0x20] sm:$0xff] %v1121
  %1176 = vst [vmem:[%s1170 + $0x28] sm:$0xff] %v1123
  %1177 = vst [vmem:[%s1170 + $0x30] sm:$0xff] %v1126
  %1178 = vst [vmem:[%s1170 + $0x38] sm:$0xff] %v1128
  %1179 = vst [vmem:[%s1170 + $0x40] sm:$0xff] %v1131
  %1180 = vst [vmem:[%s1170 + $0x48] sm:$0xff] %v1133
  %1181 = vst [vmem:[%s1170 + $0x50] sm:$0xff] %v1136
  %1182 = vst [vmem:[%s1170 + $0x58] sm:$0xff] %v1138
  %1183 = vst [vmem:[%s1170 + $0x60] sm:$0xff] %v1141
  %1184 = vst [vmem:[%s1170 + $0x68] sm:$0xff] %v1143
  %1185 = vst [vmem:[%s1170 + $0x70] sm:$0xff] %v1146
  %1186 = vst [vmem:[%s1170 + $0x78] sm:$0xff] %v1148
  %1187 = vst [vmem:[%s1170 + $0x80] sm:$0xff] %v1151
  %1188 = vst [vmem:[%s1170 + $0x88] sm:$0xff] %v1153
  %1189 = vst [vmem:[%s1170 + $0x90] sm:$0xff] %v1156
  %1190 = vst [vmem:[%s1170 + $0x98] sm:$0xff] %v1158
  %1191 = vst [vmem:[%s1170 + $0xa0] sm:$0xff] %v1161
  %1192 = vst [vmem:[%s1170 + $0xa8] sm:$0xff] %v1163
  %1193 = vst [vmem:[%s1170 + $0xb0] sm:$0xff] %v1166
  %1194 = vst [vmem:[%s1170 + $0xb8] sm:$0xff] %v1168
  %s1195 = scalar_lea.vmem %s0, 224
  %v1196 = vld [vmem:[%s1195] sm:$0xf]
  %v1197 = vld [vmem:[%s1195 + $0x4] sm:$0xf]
  %v1198 = vld [vmem:[%s1195 + $0x8] sm:$0xf]
  %v1199 = vld [vmem:[%s1195 + $0xc] sm:$0xf]
  %v1200 = vld [vmem:[%s1195 + $0x10] sm:$0xf]
  %v1201 = vld [vmem:[%s1195 + $0x14] sm:$0xf]
  %v1202 = vld [vmem:[%s1195 + $0x18] sm:$0xf]
  %v1203 = vld [vmem:[%s1195 + $0x1c] sm:$0xf]
  %v1212 = vunpack.c.l.b16 %v1196
  %v1213 = vunpack.c.l.b16 %v1197
  %v1214 = vunpack.c.l.b16 %v1198
  %v1215 = vunpack.c.l.b16 %v1199
  %v1216 = vunpack.c.l.b16 %v1200
  %v1217 = vunpack.c.l.b16 %v1201
  %v1218 = vunpack.c.l.b16 %v1202
  %v1219 = vunpack.c.l.b16 %v1203
  %v1220 = vpack.c.b16 %v1213, %v1212
  %v1221 = vpack.c.b16 %v1215, %v1214
  %v1222 = vpack.c.b16 %v1217, %v1216
  %v1223 = vpack.c.b16 %v1219, %v1218
  %1228 = vmatpush.bf16.msra.mxu0 0
  %1229 = vmatpush.bf16.msra.mxu0 0
  %1230 = vmatpush.bf16.msra.mxu0 0
  %1231 = vmatpush.bf16.msra.mxu0 0
  %1232 = vmatpush.bf16.msra.mxu0 %v1223
  %1233 = vmatpush.bf16.msra.mxu0 %v1222
  %1234 = vmatpush.bf16.msra.mxu0 %v1221
  %1235 = vmatpush.bf16.msra.mxu0 %v1220
  %1236 = vmatmul.bf16.gmra.mxu0 %v305
  %v1237 = vpop.f32.mrf.mxu0
  %v1238 = vadd.f32 %v94, %v1237
  %v1239 = vpop.f32.mrf.mxu0
  %v1240 = vadd.f32 %v99, %v1239
  %1241 = vmatmul.bf16.gmra.mxu0 %v308
  %v1242 = vpop.f32.mrf.mxu0
  %v1243 = vadd.f32 %v104, %v1242
  %v1244 = vpop.f32.mrf.mxu0
  %v1245 = vadd.f32 %v109, %v1244
  %1246 = vmatmul.bf16.gmra.mxu0 %v311
  %v1247 = vpop.f32.mrf.mxu0
  %v1248 = vadd.f32 %v114, %v1247
  %v1249 = vpop.f32.mrf.mxu0
  %v1250 = vadd.f32 %v119, %v1249
  %1251 = vmatmul.bf16.gmra.mxu0 %v314
  %v1252 = vpop.f32.mrf.mxu0
  %v1253 = vadd.f32 %v124, %v1252
  %v1254 = vpop.f32.mrf.mxu0
  %v1255 = vadd.f32 %v129, %v1254
  %1256 = vmatmul.bf16.gmra.mxu0 %v317
  %v1257 = vpop.f32.mrf.mxu0
  %v1258 = vadd.f32 %v134, %v1257
  %v1259 = vpop.f32.mrf.mxu0
  %v1260 = vadd.f32 %v139, %v1259
  %1261 = vmatmul.bf16.gmra.mxu0 %v320
  %v1262 = vpop.f32.mrf.mxu0
  %v1263 = vadd.f32 %v144, %v1262
  %v1264 = vpop.f32.mrf.mxu0
  %v1265 = vadd.f32 %v149, %v1264
  %1266 = vmatmul.bf16.gmra.mxu0 %v323
  %v1267 = vpop.f32.mrf.mxu0
  %v1268 = vadd.f32 %v154, %v1267
  %v1269 = vpop.f32.mrf.mxu0
  %v1270 = vadd.f32 %v159, %v1269
  %1271 = vmatmul.bf16.gmra.mxu0 %v326
  %v1272 = vpop.f32.mrf.mxu0
  %v1273 = vadd.f32 %v164, %v1272
  %v1274 = vpop.f32.mrf.mxu0
  %v1275 = vadd.f32 %v169, %v1274
  %1276 = vmatmul.bf16.gmra.mxu0 %v329
  %v1277 = vpop.f32.mrf.mxu0
  %v1278 = vadd.f32 %v174, %v1277
  %v1279 = vpop.f32.mrf.mxu0
  %v1280 = vadd.f32 %v179, %v1279
  %1281 = vmatmul.bf16.gmra.mxu0 %v332
  %v1282 = vpop.f32.mrf.mxu0
  %v1283 = vadd.f32 %v184, %v1282
  %v1284 = vpop.f32.mrf.mxu0
  %v1285 = vadd.f32 %v189, %v1284
  %1286 = vmatmul.bf16.gmra.mxu0 %v335
  %v1287 = vpop.f32.mrf.mxu0
  %v1288 = vadd.f32 %v194, %v1287
  %v1289 = vpop.f32.mrf.mxu0
  %v1290 = vadd.f32 %v199, %v1289
  %1291 = vmatmul.bf16.gmra.mxu0 %v338
  %v1292 = vpop.f32.mrf.mxu0
  %v1293 = vadd.f32 %v204, %v1292
  %v1294 = vpop.f32.mrf.mxu0
  %v1295 = vadd.f32 %v209, %v1294
  %1296 = vdwg.mxu0
  %s1297 = scalar_lea.vmem [#allocation2], 1344
  %1298 = vst [vmem:[%s1297] sm:$0xff] %v1238
  %1299 = vst [vmem:[%s1297 + $0x8] sm:$0xff] %v1240
  %1300 = vst [vmem:[%s1297 + $0x10] sm:$0xff] %v1243
  %1301 = vst [vmem:[%s1297 + $0x18] sm:$0xff] %v1245
  %1302 = vst [vmem:[%s1297 + $0x20] sm:$0xff] %v1248
  %1303 = vst [vmem:[%s1297 + $0x28] sm:$0xff] %v1250
  %1304 = vst [vmem:[%s1297 + $0x30] sm:$0xff] %v1253
  %1305 = vst [vmem:[%s1297 + $0x38] sm:$0xff] %v1255
  %1306 = vst [vmem:[%s1297 + $0x40] sm:$0xff] %v1258
  %1307 = vst [vmem:[%s1297 + $0x48] sm:$0xff] %v1260
  %1308 = vst [vmem:[%s1297 + $0x50] sm:$0xff] %v1263
  %1309 = vst [vmem:[%s1297 + $0x58] sm:$0xff] %v1265
  %1310 = vst [vmem:[%s1297 + $0x60] sm:$0xff] %v1268
  %1311 = vst [vmem:[%s1297 + $0x68] sm:$0xff] %v1270
  %1312 = vst [vmem:[%s1297 + $0x70] sm:$0xff] %v1273
  %1313 = vst [vmem:[%s1297 + $0x78] sm:$0xff] %v1275
  %1314 = vst [vmem:[%s1297 + $0x80] sm:$0xff] %v1278
  %1315 = vst [vmem:[%s1297 + $0x88] sm:$0xff] %v1280
  %1316 = vst [vmem:[%s1297 + $0x90] sm:$0xff] %v1283
  %1317 = vst [vmem:[%s1297 + $0x98] sm:$0xff] %v1285
  %1318 = vst [vmem:[%s1297 + $0xa0] sm:$0xff] %v1288
  %1319 = vst [vmem:[%s1297 + $0xa8] sm:$0xff] %v1290
  %1320 = vst [vmem:[%s1297 + $0xb0] sm:$0xff] %v1293
  %1321 = vst [vmem:[%s1297 + $0xb8] sm:$0xff] %v1295
  %v1322 = vld [vmem:[%s3] sm:$0xff]
  %v1323 = vld [vmem:[%s3 + $0x8] sm:$0xff]
  %v1324 = vld [vmem:[%s3 + $0x10] sm:$0xff]
  %v1325 = vld [vmem:[%s3 + $0x18] sm:$0xff]
  %v1326 = vld [vmem:[%s3 + $0x20] sm:$0xff]
  %v1327 = vld [vmem:[%s3 + $0x28] sm:$0xff]
  %v1328 = vld [vmem:[%s3 + $0x30] sm:$0xff]
  %v1329 = vld [vmem:[%s3 + $0x38] sm:$0xff]
  %v1330 = vld [vmem:[%s3 + $0x40] sm:$0xff]
  %v1331 = vld [vmem:[%s3 + $0x48] sm:$0xff]
  %v1332 = vld [vmem:[%s3 + $0x50] sm:$0xff]
  %v1333 = vld [vmem:[%s3 + $0x58] sm:$0xff]
  %s1334 = scalar_lea.vmem %s3, 96
  %v1335 = vld [vmem:[%s1334] sm:$0xff]
  %v1336 = vld [vmem:[%s1334 + $0x8] sm:$0xff]
  %v1337 = vld [vmem:[%s1334 + $0x10] sm:$0xff]
  %v1338 = vld [vmem:[%s1334 + $0x18] sm:$0xff]
  %v1339 = vld [vmem:[%s1334 + $0x20] sm:$0xff]
  %v1340 = vld [vmem:[%s1334 + $0x28] sm:$0xff]
  %v1341 = vld [vmem:[%s1334 + $0x30] sm:$0xff]
  %v1342 = vld [vmem:[%s1334 + $0x38] sm:$0xff]
  %v1343 = vld [vmem:[%s1334 + $0x40] sm:$0xff]
  %v1344 = vld [vmem:[%s1334 + $0x48] sm:$0xff]
  %v1345 = vld [vmem:[%s1334 + $0x50] sm:$0xff]
  %v1346 = vld [vmem:[%s1334 + $0x58] sm:$0xff]
  %v1347 = vld [vmem:[%s5] sm:$0xff]
  %v1348 = vld [vmem:[%s5 + $0x8] sm:$0xff]
  %v1349 = vld [vmem:[%s5 + $0x10] sm:$0xff]
  %v1350 = vld [vmem:[%s5 + $0x18] sm:$0xff]
  %1352 = vset.pattern.permute.xlu0 0
  %1353 = vperm.xlu0 %1352, %v1347
  %v1354 = vpop.permute.xlu0 %1353
  %1357 = vset.pattern.permute.xlu0 0
  %1358 = vperm.xlu0 %1357, %v1348
  %v1359 = vpop.permute.xlu0 %1358
  %1362 = vset.pattern.permute.xlu0 0
  %1363 = vperm.xlu0 %1362, %v1349
  %v1364 = vpop.permute.xlu0 %1363
  %1367 = vset.pattern.permute.xlu0 0
  %1368 = vperm.xlu0 %1367, %v1350
  %v1369 = vpop.permute.xlu0 %1368
  %s1371 = scalar_lea.vmem %s5, 32
  %v1372 = vld [vmem:[%s1371] sm:$0xff]
  %v1373 = vld [vmem:[%s1371 + $0x8] sm:$0xff]
  %v1374 = vld [vmem:[%s1371 + $0x10] sm:$0xff]
  %v1375 = vld [vmem:[%s1371 + $0x18] sm:$0xff]
  %1377 = vset.pattern.permute.xlu0 0
  %1378 = vperm.xlu0 %1377, %v1372
  %v1379 = vpop.permute.xlu0 %1378
  %1382 = vset.pattern.permute.xlu0 0
  %1383 = vperm.xlu0 %1382, %v1373
  %v1384 = vpop.permute.xlu0 %1383
  %1387 = vset.pattern.permute.xlu0 0
  %1388 = vperm.xlu0 %1387, %v1374
  %v1389 = vpop.permute.xlu0 %1388
  %1392 = vset.pattern.permute.xlu0 0
  %1393 = vperm.xlu0 %1392, %v1375
  %v1394 = vpop.permute.xlu0 %1393
  %v1396 = vld [vmem:[%s1] sm:$0xff]
  %v1397 = vld [vmem:[%s1 + $0x8] sm:$0xff]
  %v1398 = vld [vmem:[%s1 + $0x10] sm:$0xff]
  %v1399 = vld [vmem:[%s1 + $0x18] sm:$0xff]
  %s1400 = scalar_lea.vmem %s1, 32
  %v1401 = vld [vmem:[%s1400] sm:$0xff]
  %v1402 = vld [vmem:[%s1400 + $0x8] sm:$0xff]
  %v1403 = vld [vmem:[%s1400 + $0x10] sm:$0xff]
  %v1404 = vld [vmem:[%s1400 + $0x18] sm:$0xff]
  %v1405 = vld [vmem:[#allocation2] sm:$0xff]
  %v1406 = vld [vmem:[#allocation2 + $0x8] sm:$0xff]
  %v1407 = vld [vmem:[#allocation2 + $0x10] sm:$0xff]
  %v1408 = vld [vmem:[#allocation2 + $0x18] sm:$0xff]
  %v1409 = vld [vmem:[#allocation2 + $0x20] sm:$0xff]
  %v1410 = vld [vmem:[#allocation2 + $0x28] sm:$0xff]
  %v1411 = vld [vmem:[#allocation2 + $0x30] sm:$0xff]
  %v1412 = vld [vmem:[#allocation2 + $0x38] sm:$0xff]
  %v1413 = vld [vmem:[#allocation2 + $0x40] sm:$0xff]
  %v1414 = vld [vmem:[#allocation2 + $0x48] sm:$0xff]
  %v1415 = vld [vmem:[#allocation2 + $0x50] sm:$0xff]
  %v1416 = vld [vmem:[#allocation2 + $0x58] sm:$0xff]
  %vm1417 = vcmask 261120
  %v1419 = vsel %vm1417, %v1322, 0
  %v1422 = vsel %vm1417, %v1323, 0
  %v1425 = vsel %vm1417, %v1324, 0
  %v1428 = vsel %vm1417, %v1325, 0
  %v1431 = vsel %vm1417, %v1326, 0
  %v1434 = vsel %vm1417, %v1327, 0
  %v1437 = vsel %vm1417, %v1328, 0
  %v1440 = vsel %vm1417, %v1329, 0
  %v1443 = vsel %vm1417, %v1330, 0
  %v1446 = vsel %vm1417, %v1331, 0
  %v1449 = vsel %vm1417, %v1332, 0
  %v1452 = vsel %vm1417, %v1333, 0
  %1454 = vmatpush.msra.mxu0 0.0
  %1455 = vmatpush.msra.mxu0 0.0
  %1456 = vmatpush.msra.mxu0 0.0
  %1457 = vmatpush.msra.mxu0 0.0
  %1458 = vmatpush.msra.mxu0 0.0
  %1459 = vmatpush.msra.mxu0 0.0
  %1460 = vmatpush.msra.mxu0 0.0
  %1461 = vmatpush.msra.mxu0 0.0
  %1462 = vmatpush.msra.mxu0 0.0
  %1463 = vmatpush.msra.mxu0 0.0
  %1464 = vmatpush.msra.mxu0 0.0
  %1465 = vmatpush.msra.mxu0 0.0
  %1466 = vmatpush.msra.mxu0 %v1399
  %1467 = vmatpush.msra.mxu0 %v1398
  %1468 = vmatpush.msra.mxu0 %v1397
  %1469 = vmatpush.msra.mxu0 %v1396
  %1470 = vmatmul.f32.gmra.mxu0 %v1419
  %v1471 = vpop.f32.mrf.mxu0
  %v1472 = vadd.f32 0.0, %v1471
  %1473 = vmatmul.f32.gmra.mxu0 %v1422
  %v1474 = vpop.f32.mrf.mxu0
  %v1475 = vadd.f32 0.0, %v1474
  %1476 = vmatmul.f32.gmra.mxu0 %v1425
  %v1477 = vpop.f32.mrf.mxu0
  %v1478 = vadd.f32 0.0, %v1477
  %1479 = vmatmul.f32.gmra.mxu0 %v1428
  %v1480 = vpop.f32.mrf.mxu0
  %v1481 = vadd.f32 0.0, %v1480
  %1482 = vmatmul.f32.gmra.mxu0 %v1431
  %v1483 = vpop.f32.mrf.mxu0
  %v1484 = vadd.f32 0.0, %v1483
  %1485 = vmatmul.f32.gmra.mxu0 %v1434
  %v1486 = vpop.f32.mrf.mxu0
  %v1487 = vadd.f32 0.0, %v1486
  %1488 = vmatmul.f32.gmra.mxu0 %v1437
  %v1489 = vpop.f32.mrf.mxu0
  %v1490 = vadd.f32 0.0, %v1489
  %1491 = vmatmul.f32.gmra.mxu0 %v1440
  %v1492 = vpop.f32.mrf.mxu0
  %v1493 = vadd.f32 0.0, %v1492
  %1494 = vmatmul.f32.gmra.mxu0 %v1443
  %v1495 = vpop.f32.mrf.mxu0
  %v1496 = vadd.f32 0.0, %v1495
  %1497 = vmatmul.f32.gmra.mxu0 %v1446
  %v1498 = vpop.f32.mrf.mxu0
  %v1499 = vadd.f32 0.0, %v1498
  %1500 = vmatmul.f32.gmra.mxu0 %v1449
  %v1501 = vpop.f32.mrf.mxu0
  %v1502 = vadd.f32 0.0, %v1501
  %1503 = vmatmul.f32.gmra.mxu0 %v1452
  %v1504 = vpop.f32.mrf.mxu0
  %v1505 = vadd.f32 0.0, %v1504
  %1506 = vdwg.mxu0
  %v1507 = vadd.f32 %v1405, %v1472
  %v1508 = vadd.f32 %v1406, %v1475
  %v1509 = vadd.f32 %v1407, %v1478
  %v1510 = vadd.f32 %v1408, %v1481
  %v1511 = vadd.f32 %v1409, %v1484
  %v1512 = vadd.f32 %v1410, %v1487
  %v1513 = vadd.f32 %v1411, %v1490
  %v1514 = vadd.f32 %v1412, %v1493
  %v1515 = vxor.u32 %v1507, 2147483648
  %v1516 = vxor.u32 %v1508, 2147483648
  %v1517 = vxor.u32 %v1509, 2147483648
  %v1518 = vxor.u32 %v1510, 2147483648
  %v1519 = vxor.u32 %v1511, 2147483648
  %v1520 = vxor.u32 %v1512, 2147483648
  %v1521 = vxor.u32 %v1513, 2147483648
  %v1522 = vxor.u32 %v1514, 2147483648
  %v1523 = vmul.f32 %v1515, 1.442695
  %v1524 = vpow.pop %v1523
  %v1525 = vmul.f32 %v1516, 1.442695
  %v1526 = vpow.pop %v1525
  %v1527 = vmul.f32 %v1517, 1.442695
  %v1528 = vpow.pop %v1527
  %v1529 = vmul.f32 %v1518, 1.442695
  %v1530 = vpow.pop %v1529
  %v1531 = vmul.f32 %v1519, 1.442695
  %v1532 = vpow.pop %v1531
  %v1533 = vmul.f32 %v1520, 1.442695
  %v1534 = vpow.pop %v1533
  %v1535 = vmul.f32 %v1521, 1.442695
  %v1536 = vpow.pop %v1535
  %v1537 = vmul.f32 %v1522, 1.442695
  %v1538 = vpow.pop %v1537
  %v1539 = vadd.f32 %v1524, 1.0
  %v1540 = vadd.f32 %v1526, 1.0
  %v1541 = vadd.f32 %v1528, 1.0
  %v1542 = vadd.f32 %v1530, 1.0
  %v1543 = vadd.f32 %v1532, 1.0
  %v1544 = vadd.f32 %v1534, 1.0
  %v1545 = vadd.f32 %v1536, 1.0
  %v1546 = vadd.f32 %v1538, 1.0
  %v1547 = vrcp.pop %v1539
  %v1548 = vmul.f32 %v1539, %v1547
  %v1549 = vsub.f32 1.0, %v1548
  %v1550 = vmul.f32 %v1547, %v1549
  %v1551 = vadd.f32 %v1547, %v1550
  %vm1552 = vweird.f32 %v1539
  %vm1553 = vweird.f32 %v1547
  %vm1554 = vmor %vm1552, %vm1553
  %v1555 = vsel %vm1554, %v1547, %v1551
  %v1556 = vand.u32 2147483647, %v1539
  %vm1557 = vcmp.eq.f32.partialorder %v1556, 8.507059e+37
  %v1558 = vand.u32 %v1539, 2147483648
  %v1559 = vor.u32 1.1754944e-38, %v1558
  %v1560 = vsel %vm1557, %v1559, %v1555
  %v1561 = vmul.f32 1.0, %v1560
  %v1562 = vrcp.pop %v1540
  %v1563 = vmul.f32 %v1540, %v1562
  %v1564 = vsub.f32 1.0, %v1563
  %v1565 = vmul.f32 %v1562, %v1564
  %v1566 = vadd.f32 %v1562, %v1565
  %vm1567 = vweird.f32 %v1540
  %vm1568 = vweird.f32 %v1562
  %vm1569 = vmor %vm1567, %vm1568
  %v1570 = vsel %vm1569, %v1562, %v1566
  %v1571 = vand.u32 2147483647, %v1540
  %vm1572 = vcmp.eq.f32.partialorder %v1571, 8.507059e+37
  %v1573 = vand.u32 %v1540, 2147483648
  %v1574 = vor.u32 1.1754944e-38, %v1573
  %v1575 = vsel %vm1572, %v1574, %v1570
  %v1576 = vmul.f32 1.0, %v1575
  %v1577 = vrcp.pop %v1541
  %v1578 = vmul.f32 %v1541, %v1577
  %v1579 = vsub.f32 1.0, %v1578
  %v1580 = vmul.f32 %v1577, %v1579
  %v1581 = vadd.f32 %v1577, %v1580
  %vm1582 = vweird.f32 %v1541
  %vm1583 = vweird.f32 %v1577
  %vm1584 = vmor %vm1582, %vm1583
  %v1585 = vsel %vm1584, %v1577, %v1581
  %v1586 = vand.u32 2147483647, %v1541
  %vm1587 = vcmp.eq.f32.partialorder %v1586, 8.507059e+37
  %v1588 = vand.u32 %v1541, 2147483648
  %v1589 = vor.u32 1.1754944e-38, %v1588
  %v1590 = vsel %vm1587, %v1589, %v1585
  %v1591 = vmul.f32 1.0, %v1590
  %v1592 = vrcp.pop %v1542
  %v1593 = vmul.f32 %v1542, %v1592
  %v1594 = vsub.f32 1.0, %v1593
  %v1595 = vmul.f32 %v1592, %v1594
  %v1596 = vadd.f32 %v1592, %v1595
  %vm1597 = vweird.f32 %v1542
  %vm1598 = vweird.f32 %v1592
  %vm1599 = vmor %vm1597, %vm1598
  %v1600 = vsel %vm1599, %v1592, %v1596
  %v1601 = vand.u32 2147483647, %v1542
  %vm1602 = vcmp.eq.f32.partialorder %v1601, 8.507059e+37
  %v1603 = vand.u32 %v1542, 2147483648
  %v1604 = vor.u32 1.1754944e-38, %v1603
  %v1605 = vsel %vm1602, %v1604, %v1600
  %v1606 = vmul.f32 1.0, %v1605
  %v1607 = vrcp.pop %v1543
  %v1608 = vmul.f32 %v1543, %v1607
  %v1609 = vsub.f32 1.0, %v1608
  %v1610 = vmul.f32 %v1607, %v1609
  %v1611 = vadd.f32 %v1607, %v1610
  %vm1612 = vweird.f32 %v1543
  %vm1613 = vweird.f32 %v1607
  %vm1614 = vmor %vm1612, %vm1613
  %v1615 = vsel %vm1614, %v1607, %v1611
  %v1616 = vand.u32 2147483647, %v1543
  %vm1617 = vcmp.eq.f32.partialorder %v1616, 8.507059e+37
  %v1618 = vand.u32 %v1543, 2147483648
  %v1619 = vor.u32 1.1754944e-38, %v1618
  %v1620 = vsel %vm1617, %v1619, %v1615
  %v1621 = vmul.f32 1.0, %v1620
  %v1622 = vrcp.pop %v1544
  %v1623 = vmul.f32 %v1544, %v1622
  %v1624 = vsub.f32 1.0, %v1623
  %v1625 = vmul.f32 %v1622, %v1624
  %v1626 = vadd.f32 %v1622, %v1625
  %vm1627 = vweird.f32 %v1544
  %vm1628 = vweird.f32 %v1622
  %vm1629 = vmor %vm1627, %vm1628
  %v1630 = vsel %vm1629, %v1622, %v1626
  %v1631 = vand.u32 2147483647, %v1544
  %vm1632 = vcmp.eq.f32.partialorder %v1631, 8.507059e+37
  %v1633 = vand.u32 %v1544, 2147483648
  %v1634 = vor.u32 1.1754944e-38, %v1633
  %v1635 = vsel %vm1632, %v1634, %v1630
  %v1636 = vmul.f32 1.0, %v1635
  %v1637 = vrcp.pop %v1545
  %v1638 = vmul.f32 %v1545, %v1637
  %v1639 = vsub.f32 1.0, %v1638
  %v1640 = vmul.f32 %v1637, %v1639
  %v1641 = vadd.f32 %v1637, %v1640
  %vm1642 = vweird.f32 %v1545
  %vm1643 = vweird.f32 %v1637
  %vm1644 = vmor %vm1642, %vm1643
  %v1645 = vsel %vm1644, %v1637, %v1641
  %v1646 = vand.u32 2147483647, %v1545
  %vm1647 = vcmp.eq.f32.partialorder %v1646, 8.507059e+37
  %v1648 = vand.u32 %v1545, 2147483648
  %v1649 = vor.u32 1.1754944e-38, %v1648
  %v1650 = vsel %vm1647, %v1649, %v1645
  %v1651 = vmul.f32 1.0, %v1650
  %v1652 = vrcp.pop %v1546
  %v1653 = vmul.f32 %v1546, %v1652
  %v1654 = vsub.f32 1.0, %v1653
  %v1655 = vmul.f32 %v1652, %v1654
  %v1656 = vadd.f32 %v1652, %v1655
  %vm1657 = vweird.f32 %v1546
  %vm1658 = vweird.f32 %v1652
  %vm1659 = vmor %vm1657, %vm1658
  %v1660 = vsel %vm1659, %v1652, %v1656
  %v1661 = vand.u32 2147483647, %v1546
  %vm1662 = vcmp.eq.f32.partialorder %v1661, 8.507059e+37
  %v1663 = vand.u32 %v1546, 2147483648
  %v1664 = vor.u32 1.1754944e-38, %v1663
  %v1665 = vsel %vm1662, %v1664, %v1660
  %v1666 = vmul.f32 1.0, %v1665
  %v1667 = vadd.f32 %v1496, %v1354
  %v1668 = vadd.f32 %v1499, %v1359
  %v1669 = vadd.f32 %v1502, %v1364
  %v1670 = vadd.f32 %v1505, %v1369
  %v1671 = vmul.f32 %v1561, %v1667
  %v1672 = vmul.f32 %v1576, %v1668
  %v1673 = vmul.f32 %v1591, %v1669
  %v1674 = vmul.f32 %v1606, %v1670
  %v1675 = vadd.f32 %v1413, %v1671
  %v1676 = vadd.f32 %v1414, %v1672
  %v1677 = vadd.f32 %v1415, %v1673
  %v1678 = vadd.f32 %v1416, %v1674
  %v1679 = vtanh.pop %v1675
  %v1680 = vtanh.pop %v1676
  %v1681 = vtanh.pop %v1677
  %v1682 = vtanh.pop %v1678
  %v1683 = vsub.f32 1.0, %v1621
  %v1684 = vsub.f32 1.0, %v1636
  %v1685 = vsub.f32 1.0, %v1651
  %v1686 = vsub.f32 1.0, %v1666
  %v1687 = vmul.f32 %v1683, %v1679
  %v1688 = vmul.f32 %v1684, %v1680
  %v1689 = vmul.f32 %v1685, %v1681
  %v1690 = vmul.f32 %v1686, %v1682
  %v1691 = vmul.f32 %v1621, %v1396
  %v1692 = vmul.f32 %v1636, %v1397
  %v1693 = vmul.f32 %v1651, %v1398
  %v1694 = vmul.f32 %v1666, %v1399
  %v1695 = vadd.f32 %v1687, %v1691
  %v1696 = vadd.f32 %v1688, %v1692
  %v1697 = vadd.f32 %v1689, %v1693
  %v1698 = vadd.f32 %v1690, %v1694
  %v1699 = vld [vmem:[%s1297 + $0x60] sm:$0xff]
  %v1700 = vld [vmem:[%s1297 + $0x68] sm:$0xff]
  %v1701 = vld [vmem:[%s1297 + $0x70] sm:$0xff]
  %v1702 = vld [vmem:[%s1297 + $0x78] sm:$0xff]
  %v1703 = vld [vmem:[%s1297 + $0x80] sm:$0xff]
  %v1704 = vld [vmem:[%s1297 + $0x88] sm:$0xff]
  %v1705 = vld [vmem:[%s1297 + $0x90] sm:$0xff]
  %v1706 = vld [vmem:[%s1297 + $0x98] sm:$0xff]
  %v1707 = vld [vmem:[%s1297 + $0xa0] sm:$0xff]
  %v1708 = vld [vmem:[%s1297 + $0xa8] sm:$0xff]
  %v1709 = vld [vmem:[%s1297 + $0xb0] sm:$0xff]
  %v1710 = vld [vmem:[%s1297 + $0xb8] sm:$0xff]
  %v1712 = vsel %vm1417, %v1335, 0
  %v1715 = vsel %vm1417, %v1336, 0
  %v1718 = vsel %vm1417, %v1337, 0
  %v1721 = vsel %vm1417, %v1338, 0
  %v1724 = vsel %vm1417, %v1339, 0
  %v1727 = vsel %vm1417, %v1340, 0
  %v1730 = vsel %vm1417, %v1341, 0
  %v1733 = vsel %vm1417, %v1342, 0
  %v1736 = vsel %vm1417, %v1343, 0
  %v1739 = vsel %vm1417, %v1344, 0
  %v1742 = vsel %vm1417, %v1345, 0
  %v1745 = vsel %vm1417, %v1346, 0
  %1747 = vmatpush.msra.mxu0 0.0
  %1748 = vmatpush.msra.mxu0 0.0
  %1749 = vmatpush.msra.mxu0 0.0
  %1750 = vmatpush.msra.mxu0 0.0
  %1751 = vmatpush.msra.mxu0 0.0
  %1752 = vmatpush.msra.mxu0 0.0
  %1753 = vmatpush.msra.mxu0 0.0
  %1754 = vmatpush.msra.mxu0 0.0
  %1755 = vmatpush.msra.mxu0 0.0
  %1756 = vmatpush.msra.mxu0 0.0
  %1757 = vmatpush.msra.mxu0 0.0
  %1758 = vmatpush.msra.mxu0 0.0
  %1759 = vmatpush.msra.mxu0 %v1404
  %1760 = vmatpush.msra.mxu0 %v1403
  %1761 = vmatpush.msra.mxu0 %v1402
  %1762 = vmatpush.msra.mxu0 %v1401
  %1763 = vmatmul.f32.gmra.mxu0 %v1712
  %v1764 = vpop.f32.mrf.mxu0
  %v1765 = vadd.f32 0.0, %v1764
  %1766 = vmatmul.f32.gmra.mxu0 %v1715
  %v1767 = vpop.f32.mrf.mxu0
  %v1768 = vadd.f32 0.0, %v1767
  %1769 = vmatmul.f32.gmra.mxu0 %v1718
  %v1770 = vpop.f32.mrf.mxu0
  %v1771 = vadd.f32 0.0, %v1770
  %1772 = vmatmul.f32.gmra.mxu0 %v1721
  %v1773 = vpop.f32.mrf.mxu0
  %v1774 = vadd.f32 0.0, %v1773
  %1775 = vmatmul.f32.gmra.mxu0 %v1724
  %v1776 = vpop.f32.mrf.mxu0
  %v1777 = vadd.f32 0.0, %v1776
  %1778 = vmatmul.f32.gmra.mxu0 %v1727
  %v1779 = vpop.f32.mrf.mxu0
  %v1780 = vadd.f32 0.0, %v1779
  %1781 = vmatmul.f32.gmra.mxu0 %v1730
  %v1782 = vpop.f32.mrf.mxu0
  %v1783 = vadd.f32 0.0, %v1782
  %1784 = vmatmul.f32.gmra.mxu0 %v1733
  %v1785 = vpop.f32.mrf.mxu0
  %v1786 = vadd.f32 0.0, %v1785
  %1787 = vmatmul.f32.gmra.mxu0 %v1736
  %v1788 = vpop.f32.mrf.mxu0
  %v1789 = vadd.f32 0.0, %v1788
  %1790 = vmatmul.f32.gmra.mxu0 %v1739
  %v1791 = vpop.f32.mrf.mxu0
  %v1792 = vadd.f32 0.0, %v1791
  %1793 = vmatmul.f32.gmra.mxu0 %v1742
  %v1794 = vpop.f32.mrf.mxu0
  %v1795 = vadd.f32 0.0, %v1794
  %1796 = vmatmul.f32.gmra.mxu0 %v1745
  %v1797 = vpop.f32.mrf.mxu0
  %v1798 = vadd.f32 0.0, %v1797
  %1799 = vdwg.mxu0
  %v1800 = vadd.f32 %v1699, %v1765
  %v1801 = vadd.f32 %v1700, %v1768
  %v1802 = vadd.f32 %v1701, %v1771
  %v1803 = vadd.f32 %v1702, %v1774
  %v1804 = vadd.f32 %v1703, %v1777
  %v1805 = vadd.f32 %v1704, %v1780
  %v1806 = vadd.f32 %v1705, %v1783
  %v1807 = vadd.f32 %v1706, %v1786
  %v1808 = vxor.u32 %v1800, 2147483648
  %v1809 = vxor.u32 %v1801, 2147483648
  %v1810 = vxor.u32 %v1802, 2147483648
  %v1811 = vxor.u32 %v1803, 2147483648
  %v1812 = vxor.u32 %v1804, 2147483648
  %v1813 = vxor.u32 %v1805, 2147483648
  %v1814 = vxor.u32 %v1806, 2147483648
  %v1815 = vxor.u32 %v1807, 2147483648
  %v1816 = vmul.f32 %v1808, 1.442695
  %v1817 = vpow.pop %v1816
  %v1818 = vmul.f32 %v1809, 1.442695
  %v1819 = vpow.pop %v1818
  %v1820 = vmul.f32 %v1810, 1.442695
  %v1821 = vpow.pop %v1820
  %v1822 = vmul.f32 %v1811, 1.442695
  %v1823 = vpow.pop %v1822
  %v1824 = vmul.f32 %v1812, 1.442695
  %v1825 = vpow.pop %v1824
  %v1826 = vmul.f32 %v1813, 1.442695
  %v1827 = vpow.pop %v1826
  %v1828 = vmul.f32 %v1814, 1.442695
  %v1829 = vpow.pop %v1828
  %v1830 = vmul.f32 %v1815, 1.442695
  %v1831 = vpow.pop %v1830
  %v1832 = vadd.f32 %v1817, 1.0
  %v1833 = vadd.f32 %v1819, 1.0
  %v1834 = vadd.f32 %v1821, 1.0
  %v1835 = vadd.f32 %v1823, 1.0
  %v1836 = vadd.f32 %v1825, 1.0
  %v1837 = vadd.f32 %v1827, 1.0
  %v1838 = vadd.f32 %v1829, 1.0
  %v1839 = vadd.f32 %v1831, 1.0
  %v1840 = vrcp.pop %v1832
  %v1841 = vmul.f32 %v1832, %v1840
  %v1842 = vsub.f32 1.0, %v1841
  %v1843 = vmul.f32 %v1840, %v1842
  %v1844 = vadd.f32 %v1840, %v1843
  %vm1845 = vweird.f32 %v1832
  %vm1846 = vweird.f32 %v1840
  %vm1847 = vmor %vm1845, %vm1846
  %v1848 = vsel %vm1847, %v1840, %v1844
  %v1849 = vand.u32 2147483647, %v1832
  %vm1850 = vcmp.eq.f32.partialorder %v1849, 8.507059e+37
  %v1851 = vand.u32 %v1832, 2147483648
  %v1852 = vor.u32 1.1754944e-38, %v1851
  %v1853 = vsel %vm1850, %v1852, %v1848
  %v1854 = vmul.f32 1.0, %v1853
  %v1855 = vrcp.pop %v1833
  %v1856 = vmul.f32 %v1833, %v1855
  %v1857 = vsub.f32 1.0, %v1856
  %v1858 = vmul.f32 %v1855, %v1857
  %v1859 = vadd.f32 %v1855, %v1858
  %vm1860 = vweird.f32 %v1833
  %vm1861 = vweird.f32 %v1855
  %vm1862 = vmor %vm1860, %vm1861
  %v1863 = vsel %vm1862, %v1855, %v1859
  %v1864 = vand.u32 2147483647, %v1833
  %vm1865 = vcmp.eq.f32.partialorder %v1864, 8.507059e+37
  %v1866 = vand.u32 %v1833, 2147483648
  %v1867 = vor.u32 1.1754944e-38, %v1866
  %v1868 = vsel %vm1865, %v1867, %v1863
  %v1869 = vmul.f32 1.0, %v1868
  %v1870 = vrcp.pop %v1834
  %v1871 = vmul.f32 %v1834, %v1870
  %v1872 = vsub.f32 1.0, %v1871
  %v1873 = vmul.f32 %v1870, %v1872
  %v1874 = vadd.f32 %v1870, %v1873
  %vm1875 = vweird.f32 %v1834
  %vm1876 = vweird.f32 %v1870
  %vm1877 = vmor %vm1875, %vm1876
  %v1878 = vsel %vm1877, %v1870, %v1874
  %v1879 = vand.u32 2147483647, %v1834
  %vm1880 = vcmp.eq.f32.partialorder %v1879, 8.507059e+37
  %v1881 = vand.u32 %v1834, 2147483648
  %v1882 = vor.u32 1.1754944e-38, %v1881
  %v1883 = vsel %vm1880, %v1882, %v1878
  %v1884 = vmul.f32 1.0, %v1883
  %v1885 = vrcp.pop %v1835
  %v1886 = vmul.f32 %v1835, %v1885
  %v1887 = vsub.f32 1.0, %v1886
  %v1888 = vmul.f32 %v1885, %v1887
  %v1889 = vadd.f32 %v1885, %v1888
  %vm1890 = vweird.f32 %v1835
  %vm1891 = vweird.f32 %v1885
  %vm1892 = vmor %vm1890, %vm1891
  %v1893 = vsel %vm1892, %v1885, %v1889
  %v1894 = vand.u32 2147483647, %v1835
  %vm1895 = vcmp.eq.f32.partialorder %v1894, 8.507059e+37
  %v1896 = vand.u32 %v1835, 2147483648
  %v1897 = vor.u32 1.1754944e-38, %v1896
  %v1898 = vsel %vm1895, %v1897, %v1893
  %v1899 = vmul.f32 1.0, %v1898
  %v1900 = vrcp.pop %v1836
  %v1901 = vmul.f32 %v1836, %v1900
  %v1902 = vsub.f32 1.0, %v1901
  %v1903 = vmul.f32 %v1900, %v1902
  %v1904 = vadd.f32 %v1900, %v1903
  %vm1905 = vweird.f32 %v1836
  %vm1906 = vweird.f32 %v1900
  %vm1907 = vmor %vm1905, %vm1906
  %v1908 = vsel %vm1907, %v1900, %v1904
  %v1909 = vand.u32 2147483647, %v1836
  %vm1910 = vcmp.eq.f32.partialorder %v1909, 8.507059e+37
  %v1911 = vand.u32 %v1836, 2147483648
  %v1912 = vor.u32 1.1754944e-38, %v1911
  %v1913 = vsel %vm1910, %v1912, %v1908
  %v1914 = vmul.f32 1.0, %v1913
  %v1915 = vrcp.pop %v1837
  %v1916 = vmul.f32 %v1837, %v1915
  %v1917 = vsub.f32 1.0, %v1916
  %v1918 = vmul.f32 %v1915, %v1917
  %v1919 = vadd.f32 %v1915, %v1918
  %vm1920 = vweird.f32 %v1837
  %vm1921 = vweird.f32 %v1915
  %vm1922 = vmor %vm1920, %vm1921
  %v1923 = vsel %vm1922, %v1915, %v1919
  %v1924 = vand.u32 2147483647, %v1837
  %vm1925 = vcmp.eq.f32.partialorder %v1924, 8.507059e+37
  %v1926 = vand.u32 %v1837, 2147483648
  %v1927 = vor.u32 1.1754944e-38, %v1926
  %v1928 = vsel %vm1925, %v1927, %v1923
  %v1929 = vmul.f32 1.0, %v1928
  %v1930 = vrcp.pop %v1838
  %v1931 = vmul.f32 %v1838, %v1930
  %v1932 = vsub.f32 1.0, %v1931
  %v1933 = vmul.f32 %v1930, %v1932
  %v1934 = vadd.f32 %v1930, %v1933
  %vm1935 = vweird.f32 %v1838
  %vm1936 = vweird.f32 %v1930
  %vm1937 = vmor %vm1935, %vm1936
  %v1938 = vsel %vm1937, %v1930, %v1934
  %v1939 = vand.u32 2147483647, %v1838
  %vm1940 = vcmp.eq.f32.partialorder %v1939, 8.507059e+37
  %v1941 = vand.u32 %v1838, 2147483648
  %v1942 = vor.u32 1.1754944e-38, %v1941
  %v1943 = vsel %vm1940, %v1942, %v1938
  %v1944 = vmul.f32 1.0, %v1943
  %v1945 = vrcp.pop %v1839
  %v1946 = vmul.f32 %v1839, %v1945
  %v1947 = vsub.f32 1.0, %v1946
  %v1948 = vmul.f32 %v1945, %v1947
  %v1949 = vadd.f32 %v1945, %v1948
  %vm1950 = vweird.f32 %v1839
  %vm1951 = vweird.f32 %v1945
  %vm1952 = vmor %vm1950, %vm1951
  %v1953 = vsel %vm1952, %v1945, %v1949
  %v1954 = vand.u32 2147483647, %v1839
  %vm1955 = vcmp.eq.f32.partialorder %v1954, 8.507059e+37
  %v1956 = vand.u32 %v1839, 2147483648
  %v1957 = vor.u32 1.1754944e-38, %v1956
  %v1958 = vsel %vm1955, %v1957, %v1953
  %v1959 = vmul.f32 1.0, %v1958
  %v1960 = vadd.f32 %v1789, %v1379
  %v1961 = vadd.f32 %v1792, %v1384
  %v1962 = vadd.f32 %v1795, %v1389
  %v1963 = vadd.f32 %v1798, %v1394
  %v1964 = vmul.f32 %v1854, %v1960
  %v1965 = vmul.f32 %v1869, %v1961
  %v1966 = vmul.f32 %v1884, %v1962
  %v1967 = vmul.f32 %v1899, %v1963
  %v1968 = vadd.f32 %v1707, %v1964
  %v1969 = vadd.f32 %v1708, %v1965
  %v1970 = vadd.f32 %v1709, %v1966
  %v1971 = vadd.f32 %v1710, %v1967
  %v1972 = vtanh.pop %v1968
  %v1973 = vtanh.pop %v1969
  %v1974 = vtanh.pop %v1970
  %v1975 = vtanh.pop %v1971
  %v1976 = vsub.f32 1.0, %v1914
  %v1977 = vsub.f32 1.0, %v1929
  %v1978 = vsub.f32 1.0, %v1944
  %v1979 = vsub.f32 1.0, %v1959
  %v1980 = vmul.f32 %v1976, %v1972
  %v1981 = vmul.f32 %v1977, %v1973
  %v1982 = vmul.f32 %v1978, %v1974
  %v1983 = vmul.f32 %v1979, %v1975
  %v1984 = vmul.f32 %v1914, %v1401
  %v1985 = vmul.f32 %v1929, %v1402
  %v1986 = vmul.f32 %v1944, %v1403
  %v1987 = vmul.f32 %v1959, %v1404
  %v1988 = vadd.f32 %v1980, %v1984
  %v1989 = vadd.f32 %v1981, %v1985
  %v1990 = vadd.f32 %v1982, %v1986
  %v1991 = vadd.f32 %v1983, %v1987
  %1992 = vst [vmem:[#allocation3] sm:$0xff] %v1695
  %1993 = vst [vmem:[#allocation3 + $0x8] sm:$0xff] %v1696
  %1994 = vst [vmem:[#allocation3 + $0x10] sm:$0xff] %v1697
  %1995 = vst [vmem:[#allocation3 + $0x18] sm:$0xff] %v1698
  %s1996 = scalar_lea.vmem [#allocation3], 448
  %1997 = vst [vmem:[%s1996 + $0x20] sm:$0xff] %v1988
  %1998 = vst [vmem:[%s1996 + $0x28] sm:$0xff] %v1989
  %1999 = vst [vmem:[%s1996 + $0x30] sm:$0xff] %v1990
  %2000 = vst [vmem:[%s1996 + $0x38] sm:$0xff] %v1991
  %v2001 = vld [vmem:[%s535] sm:$0xff]
  %v2002 = vld [vmem:[%s535 + $0x8] sm:$0xff]
  %v2003 = vld [vmem:[%s535 + $0x10] sm:$0xff]
  %v2004 = vld [vmem:[%s535 + $0x18] sm:$0xff]
  %v2005 = vld [vmem:[%s535 + $0x20] sm:$0xff]
  %v2006 = vld [vmem:[%s535 + $0x28] sm:$0xff]
  %v2007 = vld [vmem:[%s535 + $0x30] sm:$0xff]
  %v2008 = vld [vmem:[%s535 + $0x38] sm:$0xff]
  %v2009 = vld [vmem:[%s535 + $0x40] sm:$0xff]
  %v2010 = vld [vmem:[%s535 + $0x48] sm:$0xff]
  %v2011 = vld [vmem:[%s535 + $0x50] sm:$0xff]
  %v2012 = vld [vmem:[%s535 + $0x58] sm:$0xff]
  %2013 = vmatpush.msra.mxu0 0.0
  %2014 = vmatpush.msra.mxu0 0.0
  %2015 = vmatpush.msra.mxu0 0.0
  %2016 = vmatpush.msra.mxu0 0.0
  %2017 = vmatpush.msra.mxu0 0.0
  %2018 = vmatpush.msra.mxu0 0.0
  %2019 = vmatpush.msra.mxu0 0.0
  %2020 = vmatpush.msra.mxu0 0.0
  %2021 = vmatpush.msra.mxu0 0.0
  %2022 = vmatpush.msra.mxu0 0.0
  %2023 = vmatpush.msra.mxu0 0.0
  %2024 = vmatpush.msra.mxu0 0.0
  %2025 = vmatpush.msra.mxu0 %v1698
  %2026 = vmatpush.msra.mxu0 %v1697
  %2027 = vmatpush.msra.mxu0 %v1696
  %2028 = vmatpush.msra.mxu0 %v1695
  %2029 = vmatmul.f32.gmra.mxu0 %v1419
  %v2030 = vpop.f32.mrf.mxu0
  %v2031 = vadd.f32 0.0, %v2030
  %2032 = vmatmul.f32.gmra.mxu0 %v1422
  %v2033 = vpop.f32.mrf.mxu0
  %v2034 = vadd.f32 0.0, %v2033
  %2035 = vmatmul.f32.gmra.mxu0 %v1425
  %v2036 = vpop.f32.mrf.mxu0
  %v2037 = vadd.f32 0.0, %v2036
  %2038 = vmatmul.f32.gmra.mxu0 %v1428
  %v2039 = vpop.f32.mrf.mxu0
  %v2040 = vadd.f32 0.0, %v2039
  %2041 = vmatmul.f32.gmra.mxu0 %v1431
  %v2042 = vpop.f32.mrf.mxu0
  %v2043 = vadd.f32 0.0, %v2042
  %2044 = vmatmul.f32.gmra.mxu0 %v1434
  %v2045 = vpop.f32.mrf.mxu0
  %v2046 = vadd.f32 0.0, %v2045
  %2047 = vmatmul.f32.gmra.mxu0 %v1437
  %v2048 = vpop.f32.mrf.mxu0
  %v2049 = vadd.f32 0.0, %v2048
  %2050 = vmatmul.f32.gmra.mxu0 %v1440
  %v2051 = vpop.f32.mrf.mxu0
  %v2052 = vadd.f32 0.0, %v2051
  %2053 = vmatmul.f32.gmra.mxu0 %v1443
  %v2054 = vpop.f32.mrf.mxu0
  %v2055 = vadd.f32 0.0, %v2054
  %2056 = vmatmul.f32.gmra.mxu0 %v1446
  %v2057 = vpop.f32.mrf.mxu0
  %v2058 = vadd.f32 0.0, %v2057
  %2059 = vmatmul.f32.gmra.mxu0 %v1449
  %v2060 = vpop.f32.mrf.mxu0
  %v2061 = vadd.f32 0.0, %v2060
  %2062 = vmatmul.f32.gmra.mxu0 %v1452
  %v2063 = vpop.f32.mrf.mxu0
  %v2064 = vadd.f32 0.0, %v2063
  %2065 = vdwg.mxu0
  %v2066 = vadd.f32 %v2001, %v2031
  %v2067 = vadd.f32 %v2002, %v2034
  %v2068 = vadd.f32 %v2003, %v2037
  %v2069 = vadd.f32 %v2004, %v2040
  %v2070 = vadd.f32 %v2005, %v2043
  %v2071 = vadd.f32 %v2006, %v2046
  %v2072 = vadd.f32 %v2007, %v2049
  %v2073 = vadd.f32 %v2008, %v2052
  %v2074 = vxor.u32 %v2066, 2147483648
  %v2075 = vxor.u32 %v2067, 2147483648
  %v2076 = vxor.u32 %v2068, 2147483648
  %v2077 = vxor.u32 %v2069, 2147483648
  %v2078 = vxor.u32 %v2070, 2147483648
  %v2079 = vxor.u32 %v2071, 2147483648
  %v2080 = vxor.u32 %v2072, 2147483648
  %v2081 = vxor.u32 %v2073, 2147483648
  %v2082 = vmul.f32 %v2074, 1.442695
  %v2083 = vpow.pop %v2082
  %v2084 = vmul.f32 %v2075, 1.442695
  %v2085 = vpow.pop %v2084
  %v2086 = vmul.f32 %v2076, 1.442695
  %v2087 = vpow.pop %v2086
  %v2088 = vmul.f32 %v2077, 1.442695
  %v2089 = vpow.pop %v2088
  %v2090 = vmul.f32 %v2078, 1.442695
  %v2091 = vpow.pop %v2090
  %v2092 = vmul.f32 %v2079, 1.442695
  %v2093 = vpow.pop %v2092
  %v2094 = vmul.f32 %v2080, 1.442695
  %v2095 = vpow.pop %v2094
  %v2096 = vmul.f32 %v2081, 1.442695
  %v2097 = vpow.pop %v2096
  %v2098 = vadd.f32 %v2083, 1.0
  %v2099 = vadd.f32 %v2085, 1.0
  %v2100 = vadd.f32 %v2087, 1.0
  %v2101 = vadd.f32 %v2089, 1.0
  %v2102 = vadd.f32 %v2091, 1.0
  %v2103 = vadd.f32 %v2093, 1.0
  %v2104 = vadd.f32 %v2095, 1.0
  %v2105 = vadd.f32 %v2097, 1.0
  %v2106 = vrcp.pop %v2098
  %v2107 = vmul.f32 %v2098, %v2106
  %v2108 = vsub.f32 1.0, %v2107
  %v2109 = vmul.f32 %v2106, %v2108
  %v2110 = vadd.f32 %v2106, %v2109
  %vm2111 = vweird.f32 %v2098
  %vm2112 = vweird.f32 %v2106
  %vm2113 = vmor %vm2111, %vm2112
  %v2114 = vsel %vm2113, %v2106, %v2110
  %v2115 = vand.u32 2147483647, %v2098
  %vm2116 = vcmp.eq.f32.partialorder %v2115, 8.507059e+37
  %v2117 = vand.u32 %v2098, 2147483648
  %v2118 = vor.u32 1.1754944e-38, %v2117
  %v2119 = vsel %vm2116, %v2118, %v2114
  %v2120 = vmul.f32 1.0, %v2119
  %v2121 = vrcp.pop %v2099
  %v2122 = vmul.f32 %v2099, %v2121
  %v2123 = vsub.f32 1.0, %v2122
  %v2124 = vmul.f32 %v2121, %v2123
  %v2125 = vadd.f32 %v2121, %v2124
  %vm2126 = vweird.f32 %v2099
  %vm2127 = vweird.f32 %v2121
  %vm2128 = vmor %vm2126, %vm2127
  %v2129 = vsel %vm2128, %v2121, %v2125
  %v2130 = vand.u32 2147483647, %v2099
  %vm2131 = vcmp.eq.f32.partialorder %v2130, 8.507059e+37
  %v2132 = vand.u32 %v2099, 2147483648
  %v2133 = vor.u32 1.1754944e-38, %v2132
  %v2134 = vsel %vm2131, %v2133, %v2129
  %v2135 = vmul.f32 1.0, %v2134
  %v2136 = vrcp.pop %v2100
  %v2137 = vmul.f32 %v2100, %v2136
  %v2138 = vsub.f32 1.0, %v2137
  %v2139 = vmul.f32 %v2136, %v2138
  %v2140 = vadd.f32 %v2136, %v2139
  %vm2141 = vweird.f32 %v2100
  %vm2142 = vweird.f32 %v2136
  %vm2143 = vmor %vm2141, %vm2142
  %v2144 = vsel %vm2143, %v2136, %v2140
  %v2145 = vand.u32 2147483647, %v2100
  %vm2146 = vcmp.eq.f32.partialorder %v2145, 8.507059e+37
  %v2147 = vand.u32 %v2100, 2147483648
  %v2148 = vor.u32 1.1754944e-38, %v2147
  %v2149 = vsel %vm2146, %v2148, %v2144
  %v2150 = vmul.f32 1.0, %v2149
  %v2151 = vrcp.pop %v2101
  %v2152 = vmul.f32 %v2101, %v2151
  %v2153 = vsub.f32 1.0, %v2152
  %v2154 = vmul.f32 %v2151, %v2153
  %v2155 = vadd.f32 %v2151, %v2154
  %vm2156 = vweird.f32 %v2101
  %vm2157 = vweird.f32 %v2151
  %vm2158 = vmor %vm2156, %vm2157
  %v2159 = vsel %vm2158, %v2151, %v2155
  %v2160 = vand.u32 2147483647, %v2101
  %vm2161 = vcmp.eq.f32.partialorder %v2160, 8.507059e+37
  %v2162 = vand.u32 %v2101, 2147483648
  %v2163 = vor.u32 1.1754944e-38, %v2162
  %v2164 = vsel %vm2161, %v2163, %v2159
  %v2165 = vmul.f32 1.0, %v2164
  %v2166 = vrcp.pop %v2102
  %v2167 = vmul.f32 %v2102, %v2166
  %v2168 = vsub.f32 1.0, %v2167
  %v2169 = vmul.f32 %v2166, %v2168
  %v2170 = vadd.f32 %v2166, %v2169
  %vm2171 = vweird.f32 %v2102
  %vm2172 = vweird.f32 %v2166
  %vm2173 = vmor %vm2171, %vm2172
  %v2174 = vsel %vm2173, %v2166, %v2170
  %v2175 = vand.u32 2147483647, %v2102
  %vm2176 = vcmp.eq.f32.partialorder %v2175, 8.507059e+37
  %v2177 = vand.u32 %v2102, 2147483648
  %v2178 = vor.u32 1.1754944e-38, %v2177
  %v2179 = vsel %vm2176, %v2178, %v2174
  %v2180 = vmul.f32 1.0, %v2179
  %v2181 = vrcp.pop %v2103
  %v2182 = vmul.f32 %v2103, %v2181
  %v2183 = vsub.f32 1.0, %v2182
  %v2184 = vmul.f32 %v2181, %v2183
  %v2185 = vadd.f32 %v2181, %v2184
  %vm2186 = vweird.f32 %v2103
  %vm2187 = vweird.f32 %v2181
  %vm2188 = vmor %vm2186, %vm2187
  %v2189 = vsel %vm2188, %v2181, %v2185
  %v2190 = vand.u32 2147483647, %v2103
  %vm2191 = vcmp.eq.f32.partialorder %v2190, 8.507059e+37
  %v2192 = vand.u32 %v2103, 2147483648
  %v2193 = vor.u32 1.1754944e-38, %v2192
  %v2194 = vsel %vm2191, %v2193, %v2189
  %v2195 = vmul.f32 1.0, %v2194
  %v2196 = vrcp.pop %v2104
  %v2197 = vmul.f32 %v2104, %v2196
  %v2198 = vsub.f32 1.0, %v2197
  %v2199 = vmul.f32 %v2196, %v2198
  %v2200 = vadd.f32 %v2196, %v2199
  %vm2201 = vweird.f32 %v2104
  %vm2202 = vweird.f32 %v2196
  %vm2203 = vmor %vm2201, %vm2202
  %v2204 = vsel %vm2203, %v2196, %v2200
  %v2205 = vand.u32 2147483647, %v2104
  %vm2206 = vcmp.eq.f32.partialorder %v2205, 8.507059e+37
  %v2207 = vand.u32 %v2104, 2147483648
  %v2208 = vor.u32 1.1754944e-38, %v2207
  %v2209 = vsel %vm2206, %v2208, %v2204
  %v2210 = vmul.f32 1.0, %v2209
  %v2211 = vrcp.pop %v2105
  %v2212 = vmul.f32 %v2105, %v2211
  %v2213 = vsub.f32 1.0, %v2212
  %v2214 = vmul.f32 %v2211, %v2213
  %v2215 = vadd.f32 %v2211, %v2214
  %vm2216 = vweird.f32 %v2105
  %vm2217 = vweird.f32 %v2211
  %vm2218 = vmor %vm2216, %vm2217
  %v2219 = vsel %vm2218, %v2211, %v2215
  %v2220 = vand.u32 2147483647, %v2105
  %vm2221 = vcmp.eq.f32.partialorder %v2220, 8.507059e+37
  %v2222 = vand.u32 %v2105, 2147483648
  %v2223 = vor.u32 1.1754944e-38, %v2222
  %v2224 = vsel %vm2221, %v2223, %v2219
  %v2225 = vmul.f32 1.0, %v2224
  %v2226 = vadd.f32 %v2055, %v1354
  %v2227 = vadd.f32 %v2058, %v1359
  %v2228 = vadd.f32 %v2061, %v1364
  %v2229 = vadd.f32 %v2064, %v1369
  %v2230 = vmul.f32 %v2120, %v2226
  %v2231 = vmul.f32 %v2135, %v2227
  %v2232 = vmul.f32 %v2150, %v2228
  %v2233 = vmul.f32 %v2165, %v2229
  %v2234 = vadd.f32 %v2009, %v2230
  %v2235 = vadd.f32 %v2010, %v2231
  %v2236 = vadd.f32 %v2011, %v2232
  %v2237 = vadd.f32 %v2012, %v2233
  %v2238 = vtanh.pop %v2234
  %v2239 = vtanh.pop %v2235
  %v2240 = vtanh.pop %v2236
  %v2241 = vtanh.pop %v2237
  %v2242 = vsub.f32 1.0, %v2180
  %v2243 = vsub.f32 1.0, %v2195
  %v2244 = vsub.f32 1.0, %v2210
  %v2245 = vsub.f32 1.0, %v2225
  %v2246 = vmul.f32 %v2242, %v2238
  %v2247 = vmul.f32 %v2243, %v2239
  %v2248 = vmul.f32 %v2244, %v2240
  %v2249 = vmul.f32 %v2245, %v2241
  %v2250 = vmul.f32 %v2180, %v1695
  %v2251 = vmul.f32 %v2195, %v1696
  %v2252 = vmul.f32 %v2210, %v1697
  %v2253 = vmul.f32 %v2225, %v1698
  %v2254 = vadd.f32 %v2246, %v2250
  %v2255 = vadd.f32 %v2247, %v2251
  %v2256 = vadd.f32 %v2248, %v2252
  %v2257 = vadd.f32 %v2249, %v2253
  %v2258 = vld [vmem:[%s1170 + $0x60] sm:$0xff]
  %v2259 = vld [vmem:[%s1170 + $0x68] sm:$0xff]
  %v2260 = vld [vmem:[%s1170 + $0x70] sm:$0xff]
  %v2261 = vld [vmem:[%s1170 + $0x78] sm:$0xff]
  %v2262 = vld [vmem:[%s1170 + $0x80] sm:$0xff]
  %v2263 = vld [vmem:[%s1170 + $0x88] sm:$0xff]
  %v2264 = vld [vmem:[%s1170 + $0x90] sm:$0xff]
  %v2265 = vld [vmem:[%s1170 + $0x98] sm:$0xff]
  %v2266 = vld [vmem:[%s1170 + $0xa0] sm:$0xff]
  %v2267 = vld [vmem:[%s1170 + $0xa8] sm:$0xff]
  %v2268 = vld [vmem:[%s1170 + $0xb0] sm:$0xff]
  %v2269 = vld [vmem:[%s1170 + $0xb8] sm:$0xff]
  %2270 = vmatpush.msra.mxu0 0.0
  %2271 = vmatpush.msra.mxu0 0.0
  %2272 = vmatpush.msra.mxu0 0.0
  %2273 = vmatpush.msra.mxu0 0.0
  %2274 = vmatpush.msra.mxu0 0.0
  %2275 = vmatpush.msra.mxu0 0.0
  %2276 = vmatpush.msra.mxu0 0.0
  %2277 = vmatpush.msra.mxu0 0.0
  %2278 = vmatpush.msra.mxu0 0.0
  %2279 = vmatpush.msra.mxu0 0.0
  %2280 = vmatpush.msra.mxu0 0.0
  %2281 = vmatpush.msra.mxu0 0.0
  %2282 = vmatpush.msra.mxu0 %v1991
  %2283 = vmatpush.msra.mxu0 %v1990
  %2284 = vmatpush.msra.mxu0 %v1989
  %2285 = vmatpush.msra.mxu0 %v1988
  %2286 = vmatmul.f32.gmra.mxu0 %v1712
  %v2287 = vpop.f32.mrf.mxu0
  %v2288 = vadd.f32 0.0, %v2287
  %2289 = vmatmul.f32.gmra.mxu0 %v1715
  %v2290 = vpop.f32.mrf.mxu0
  %v2291 = vadd.f32 0.0, %v2290
  %2292 = vmatmul.f32.gmra.mxu0 %v1718
  %v2293 = vpop.f32.mrf.mxu0
  %v2294 = vadd.f32 0.0, %v2293
  %2295 = vmatmul.f32.gmra.mxu0 %v1721
  %v2296 = vpop.f32.mrf.mxu0
  %v2297 = vadd.f32 0.0, %v2296
  %2298 = vmatmul.f32.gmra.mxu0 %v1724
  %v2299 = vpop.f32.mrf.mxu0
  %v2300 = vadd.f32 0.0, %v2299
  %2301 = vmatmul.f32.gmra.mxu0 %v1727
  %v2302 = vpop.f32.mrf.mxu0
  %v2303 = vadd.f32 0.0, %v2302
  %2304 = vmatmul.f32.gmra.mxu0 %v1730
  %v2305 = vpop.f32.mrf.mxu0
  %v2306 = vadd.f32 0.0, %v2305
  %2307 = vmatmul.f32.gmra.mxu0 %v1733
  %v2308 = vpop.f32.mrf.mxu0
  %v2309 = vadd.f32 0.0, %v2308
  %2310 = vmatmul.f32.gmra.mxu0 %v1736
  %v2311 = vpop.f32.mrf.mxu0
  %v2312 = vadd.f32 0.0, %v2311
  %2313 = vmatmul.f32.gmra.mxu0 %v1739
  %v2314 = vpop.f32.mrf.mxu0
  %v2315 = vadd.f32 0.0, %v2314
  %2316 = vmatmul.f32.gmra.mxu0 %v1742
  %v2317 = vpop.f32.mrf.mxu0
  %v2318 = vadd.f32 0.0, %v2317
  %2319 = vmatmul.f32.gmra.mxu0 %v1745
  %v2320 = vpop.f32.mrf.mxu0
  %v2321 = vadd.f32 0.0, %v2320
  %2322 = vdwg.mxu0
  %v2323 = vadd.f32 %v2258, %v2288
  %v2324 = vadd.f32 %v2259, %v2291
  %v2325 = vadd.f32 %v2260, %v2294
  %v2326 = vadd.f32 %v2261, %v2297
  %v2327 = vadd.f32 %v2262, %v2300
  %v2328 = vadd.f32 %v2263, %v2303
  %v2329 = vadd.f32 %v2264, %v2306
  %v2330 = vadd.f32 %v2265, %v2309
  %v2331 = vxor.u32 %v2323, 2147483648
  %v2332 = vxor.u32 %v2324, 2147483648
  %v2333 = vxor.u32 %v2325, 2147483648
  %v2334 = vxor.u32 %v2326, 2147483648
  %v2335 = vxor.u32 %v2327, 2147483648
  %v2336 = vxor.u32 %v2328, 2147483648
  %v2337 = vxor.u32 %v2329, 2147483648
  %v2338 = vxor.u32 %v2330, 2147483648
  %v2339 = vmul.f32 %v2331, 1.442695
  %v2340 = vpow.pop %v2339
  %v2341 = vmul.f32 %v2332, 1.442695
  %v2342 = vpow.pop %v2341
  %v2343 = vmul.f32 %v2333, 1.442695
  %v2344 = vpow.pop %v2343
  %v2345 = vmul.f32 %v2334, 1.442695
  %v2346 = vpow.pop %v2345
  %v2347 = vmul.f32 %v2335, 1.442695
  %v2348 = vpow.pop %v2347
  %v2349 = vmul.f32 %v2336, 1.442695
  %v2350 = vpow.pop %v2349
  %v2351 = vmul.f32 %v2337, 1.442695
  %v2352 = vpow.pop %v2351
  %v2353 = vmul.f32 %v2338, 1.442695
  %v2354 = vpow.pop %v2353
  %v2355 = vadd.f32 %v2340, 1.0
  %v2356 = vadd.f32 %v2342, 1.0
  %v2357 = vadd.f32 %v2344, 1.0
  %v2358 = vadd.f32 %v2346, 1.0
  %v2359 = vadd.f32 %v2348, 1.0
  %v2360 = vadd.f32 %v2350, 1.0
  %v2361 = vadd.f32 %v2352, 1.0
  %v2362 = vadd.f32 %v2354, 1.0
  %v2363 = vrcp.pop %v2355
  %v2364 = vmul.f32 %v2355, %v2363
  %v2365 = vsub.f32 1.0, %v2364
  %v2366 = vmul.f32 %v2363, %v2365
  %v2367 = vadd.f32 %v2363, %v2366
  %vm2368 = vweird.f32 %v2355
  %vm2369 = vweird.f32 %v2363
  %vm2370 = vmor %vm2368, %vm2369
  %v2371 = vsel %vm2370, %v2363, %v2367
  %v2372 = vand.u32 2147483647, %v2355
  %vm2373 = vcmp.eq.f32.partialorder %v2372, 8.507059e+37
  %v2374 = vand.u32 %v2355, 2147483648
  %v2375 = vor.u32 1.1754944e-38, %v2374
  %v2376 = vsel %vm2373, %v2375, %v2371
  %v2377 = vmul.f32 1.0, %v2376
  %v2378 = vrcp.pop %v2356
  %v2379 = vmul.f32 %v2356, %v2378
  %v2380 = vsub.f32 1.0, %v2379
  %v2381 = vmul.f32 %v2378, %v2380
  %v2382 = vadd.f32 %v2378, %v2381
  %vm2383 = vweird.f32 %v2356
  %vm2384 = vweird.f32 %v2378
  %vm2385 = vmor %vm2383, %vm2384
  %v2386 = vsel %vm2385, %v2378, %v2382
  %v2387 = vand.u32 2147483647, %v2356
  %vm2388 = vcmp.eq.f32.partialorder %v2387, 8.507059e+37
  %v2389 = vand.u32 %v2356, 2147483648
  %v2390 = vor.u32 1.1754944e-38, %v2389
  %v2391 = vsel %vm2388, %v2390, %v2386
  %v2392 = vmul.f32 1.0, %v2391
  %v2393 = vrcp.pop %v2357
  %v2394 = vmul.f32 %v2357, %v2393
  %v2395 = vsub.f32 1.0, %v2394
  %v2396 = vmul.f32 %v2393, %v2395
  %v2397 = vadd.f32 %v2393, %v2396
  %vm2398 = vweird.f32 %v2357
  %vm2399 = vweird.f32 %v2393
  %vm2400 = vmor %vm2398, %vm2399
  %v2401 = vsel %vm2400, %v2393, %v2397
  %v2402 = vand.u32 2147483647, %v2357
  %vm2403 = vcmp.eq.f32.partialorder %v2402, 8.507059e+37
  %v2404 = vand.u32 %v2357, 2147483648
  %v2405 = vor.u32 1.1754944e-38, %v2404
  %v2406 = vsel %vm2403, %v2405, %v2401
  %v2407 = vmul.f32 1.0, %v2406
  %v2408 = vrcp.pop %v2358
  %v2409 = vmul.f32 %v2358, %v2408
  %v2410 = vsub.f32 1.0, %v2409
  %v2411 = vmul.f32 %v2408, %v2410
  %v2412 = vadd.f32 %v2408, %v2411
  %vm2413 = vweird.f32 %v2358
  %vm2414 = vweird.f32 %v2408
  %vm2415 = vmor %vm2413, %vm2414
  %v2416 = vsel %vm2415, %v2408, %v2412
  %v2417 = vand.u32 2147483647, %v2358
  %vm2418 = vcmp.eq.f32.partialorder %v2417, 8.507059e+37
  %v2419 = vand.u32 %v2358, 2147483648
  %v2420 = vor.u32 1.1754944e-38, %v2419
  %v2421 = vsel %vm2418, %v2420, %v2416
  %v2422 = vmul.f32 1.0, %v2421
  %v2423 = vrcp.pop %v2359
  %v2424 = vmul.f32 %v2359, %v2423
  %v2425 = vsub.f32 1.0, %v2424
  %v2426 = vmul.f32 %v2423, %v2425
  %v2427 = vadd.f32 %v2423, %v2426
  %vm2428 = vweird.f32 %v2359
  %vm2429 = vweird.f32 %v2423
  %vm2430 = vmor %vm2428, %vm2429
  %v2431 = vsel %vm2430, %v2423, %v2427
  %v2432 = vand.u32 2147483647, %v2359
  %vm2433 = vcmp.eq.f32.partialorder %v2432, 8.507059e+37
  %v2434 = vand.u32 %v2359, 2147483648
  %v2435 = vor.u32 1.1754944e-38, %v2434
  %v2436 = vsel %vm2433, %v2435, %v2431
  %v2437 = vmul.f32 1.0, %v2436
  %v2438 = vrcp.pop %v2360
  %v2439 = vmul.f32 %v2360, %v2438
  %v2440 = vsub.f32 1.0, %v2439
  %v2441 = vmul.f32 %v2438, %v2440
  %v2442 = vadd.f32 %v2438, %v2441
  %vm2443 = vweird.f32 %v2360
  %vm2444 = vweird.f32 %v2438
  %vm2445 = vmor %vm2443, %vm2444
  %v2446 = vsel %vm2445, %v2438, %v2442
  %v2447 = vand.u32 2147483647, %v2360
  %vm2448 = vcmp.eq.f32.partialorder %v2447, 8.507059e+37
  %v2449 = vand.u32 %v2360, 2147483648
  %v2450 = vor.u32 1.1754944e-38, %v2449
  %v2451 = vsel %vm2448, %v2450, %v2446
  %v2452 = vmul.f32 1.0, %v2451
  %v2453 = vrcp.pop %v2361
  %v2454 = vmul.f32 %v2361, %v2453
  %v2455 = vsub.f32 1.0, %v2454
  %v2456 = vmul.f32 %v2453, %v2455
  %v2457 = vadd.f32 %v2453, %v2456
  %vm2458 = vweird.f32 %v2361
  %vm2459 = vweird.f32 %v2453
  %vm2460 = vmor %vm2458, %vm2459
  %v2461 = vsel %vm2460, %v2453, %v2457
  %v2462 = vand.u32 2147483647, %v2361
  %vm2463 = vcmp.eq.f32.partialorder %v2462, 8.507059e+37
  %v2464 = vand.u32 %v2361, 2147483648
  %v2465 = vor.u32 1.1754944e-38, %v2464
  %v2466 = vsel %vm2463, %v2465, %v2461
  %v2467 = vmul.f32 1.0, %v2466
  %v2468 = vrcp.pop %v2362
  %v2469 = vmul.f32 %v2362, %v2468
  %v2470 = vsub.f32 1.0, %v2469
  %v2471 = vmul.f32 %v2468, %v2470
  %v2472 = vadd.f32 %v2468, %v2471
  %vm2473 = vweird.f32 %v2362
  %vm2474 = vweird.f32 %v2468
  %vm2475 = vmor %vm2473, %vm2474
  %v2476 = vsel %vm2475, %v2468, %v2472
  %v2477 = vand.u32 2147483647, %v2362
  %vm2478 = vcmp.eq.f32.partialorder %v2477, 8.507059e+37
  %v2479 = vand.u32 %v2362, 2147483648
  %v2480 = vor.u32 1.1754944e-38, %v2479
  %v2481 = vsel %vm2478, %v2480, %v2476
  %v2482 = vmul.f32 1.0, %v2481
  %v2483 = vadd.f32 %v2312, %v1379
  %v2484 = vadd.f32 %v2315, %v1384
  %v2485 = vadd.f32 %v2318, %v1389
  %v2486 = vadd.f32 %v2321, %v1394
  %v2487 = vmul.f32 %v2377, %v2483
  %v2488 = vmul.f32 %v2392, %v2484
  %v2489 = vmul.f32 %v2407, %v2485
  %v2490 = vmul.f32 %v2422, %v2486
  %v2491 = vadd.f32 %v2266, %v2487
  %v2492 = vadd.f32 %v2267, %v2488
  %v2493 = vadd.f32 %v2268, %v2489
  %v2494 = vadd.f32 %v2269, %v2490
  %v2495 = vtanh.pop %v2491
  %v2496 = vtanh.pop %v2492
  %v2497 = vtanh.pop %v2493
  %v2498 = vtanh.pop %v2494
  %v2499 = vsub.f32 1.0, %v2437
  %v2500 = vsub.f32 1.0, %v2452
  %v2501 = vsub.f32 1.0, %v2467
  %v2502 = vsub.f32 1.0, %v2482
  %v2503 = vmul.f32 %v2499, %v2495
  %v2504 = vmul.f32 %v2500, %v2496
  %v2505 = vmul.f32 %v2501, %v2497
  %v2506 = vmul.f32 %v2502, %v2498
  %v2507 = vmul.f32 %v2437, %v1988
  %v2508 = vmul.f32 %v2452, %v1989
  %v2509 = vmul.f32 %v2467, %v1990
  %v2510 = vmul.f32 %v2482, %v1991
  %v2511 = vadd.f32 %v2503, %v2507
  %v2512 = vadd.f32 %v2504, %v2508
  %v2513 = vadd.f32 %v2505, %v2509
  %v2514 = vadd.f32 %v2506, %v2510
  %s2515 = scalar_lea.vmem [#allocation3], 64
  %2516 = vst [vmem:[%s2515] sm:$0xff] %v2254
  %2517 = vst [vmem:[%s2515 + $0x8] sm:$0xff] %v2255
  %2518 = vst [vmem:[%s2515 + $0x10] sm:$0xff] %v2256
  %2519 = vst [vmem:[%s2515 + $0x18] sm:$0xff] %v2257
  %s2520 = scalar_lea.vmem [#allocation3], 384
  %2521 = vst [vmem:[%s2520 + $0x20] sm:$0xff] %v2511
  %2522 = vst [vmem:[%s2520 + $0x28] sm:$0xff] %v2512
  %2523 = vst [vmem:[%s2520 + $0x30] sm:$0xff] %v2513
  %2524 = vst [vmem:[%s2520 + $0x38] sm:$0xff] %v2514
  %v2525 = vld [vmem:[%s662] sm:$0xff]
  %v2526 = vld [vmem:[%s662 + $0x8] sm:$0xff]
  %v2527 = vld [vmem:[%s662 + $0x10] sm:$0xff]
  %v2528 = vld [vmem:[%s662 + $0x18] sm:$0xff]
  %v2529 = vld [vmem:[%s662 + $0x20] sm:$0xff]
  %v2530 = vld [vmem:[%s662 + $0x28] sm:$0xff]
  %v2531 = vld [vmem:[%s662 + $0x30] sm:$0xff]
  %v2532 = vld [vmem:[%s662 + $0x38] sm:$0xff]
  %v2533 = vld [vmem:[%s662 + $0x40] sm:$0xff]
  %v2534 = vld [vmem:[%s662 + $0x48] sm:$0xff]
  %v2535 = vld [vmem:[%s662 + $0x50] sm:$0xff]
  %v2536 = vld [vmem:[%s662 + $0x58] sm:$0xff]
  %2537 = vmatpush.msra.mxu0 0.0
  %2538 = vmatpush.msra.mxu0 0.0
  %2539 = vmatpush.msra.mxu0 0.0
  %2540 = vmatpush.msra.mxu0 0.0
  %2541 = vmatpush.msra.mxu0 0.0
  %2542 = vmatpush.msra.mxu0 0.0
  %2543 = vmatpush.msra.mxu0 0.0
  %2544 = vmatpush.msra.mxu0 0.0
  %2545 = vmatpush.msra.mxu0 0.0
  %2546 = vmatpush.msra.mxu0 0.0
  %2547 = vmatpush.msra.mxu0 0.0
  %2548 = vmatpush.msra.mxu0 0.0
  %2549 = vmatpush.msra.mxu0 %v2257
  %2550 = vmatpush.msra.mxu0 %v2256
  %2551 = vmatpush.msra.mxu0 %v2255
  %2552 = vmatpush.msra.mxu0 %v2254
  %2553 = vmatmul.f32.gmra.mxu0 %v1419
  %v2554 = vpop.f32.mrf.mxu0
  %v2555 = vadd.f32 0.0, %v2554
  %2556 = vmatmul.f32.gmra.mxu0 %v1422
  %v2557 = vpop.f32.mrf.mxu0
  %v2558 = vadd.f32 0.0, %v2557
  %2559 = vmatmul.f32.gmra.mxu0 %v1425
  %v2560 = vpop.f32.mrf.mxu0
  %v2561 = vadd.f32 0.0, %v2560
  %2562 = vmatmul.f32.gmra.mxu0 %v1428
  %v2563 = vpop.f32.mrf.mxu0
  %v2564 = vadd.f32 0.0, %v2563
  %2565 = vmatmul.f32.gmra.mxu0 %v1431
  %v2566 = vpop.f32.mrf.mxu0
  %v2567 = vadd.f32 0.0, %v2566
  %2568 = vmatmul.f32.gmra.mxu0 %v1434
  %v2569 = vpop.f32.mrf.mxu0
  %v2570 = vadd.f32 0.0, %v2569
  %2571 = vmatmul.f32.gmra.mxu0 %v1437
  %v2572 = vpop.f32.mrf.mxu0
  %v2573 = vadd.f32 0.0, %v2572
  %2574 = vmatmul.f32.gmra.mxu0 %v1440
  %v2575 = vpop.f32.mrf.mxu0
  %v2576 = vadd.f32 0.0, %v2575
  %2577 = vmatmul.f32.gmra.mxu0 %v1443
  %v2578 = vpop.f32.mrf.mxu0
  %v2579 = vadd.f32 0.0, %v2578
  %2580 = vmatmul.f32.gmra.mxu0 %v1446
  %v2581 = vpop.f32.mrf.mxu0
  %v2582 = vadd.f32 0.0, %v2581
  %2583 = vmatmul.f32.gmra.mxu0 %v1449
  %v2584 = vpop.f32.mrf.mxu0
  %v2585 = vadd.f32 0.0, %v2584
  %2586 = vmatmul.f32.gmra.mxu0 %v1452
  %v2587 = vpop.f32.mrf.mxu0
  %v2588 = vadd.f32 0.0, %v2587
  %2589 = vdwg.mxu0
  %v2590 = vadd.f32 %v2525, %v2555
  %v2591 = vadd.f32 %v2526, %v2558
  %v2592 = vadd.f32 %v2527, %v2561
  %v2593 = vadd.f32 %v2528, %v2564
  %v2594 = vadd.f32 %v2529, %v2567
  %v2595 = vadd.f32 %v2530, %v2570
  %v2596 = vadd.f32 %v2531, %v2573
  %v2597 = vadd.f32 %v2532, %v2576
  %v2598 = vxor.u32 %v2590, 2147483648
  %v2599 = vxor.u32 %v2591, 2147483648
  %v2600 = vxor.u32 %v2592, 2147483648
  %v2601 = vxor.u32 %v2593, 2147483648
  %v2602 = vxor.u32 %v2594, 2147483648
  %v2603 = vxor.u32 %v2595, 2147483648
  %v2604 = vxor.u32 %v2596, 2147483648
  %v2605 = vxor.u32 %v2597, 2147483648
  %v2606 = vmul.f32 %v2598, 1.442695
  %v2607 = vpow.pop %v2606
  %v2608 = vmul.f32 %v2599, 1.442695
  %v2609 = vpow.pop %v2608
  %v2610 = vmul.f32 %v2600, 1.442695
  %v2611 = vpow.pop %v2610
  %v2612 = vmul.f32 %v2601, 1.442695
  %v2613 = vpow.pop %v2612
  %v2614 = vmul.f32 %v2602, 1.442695
  %v2615 = vpow.pop %v2614
  %v2616 = vmul.f32 %v2603, 1.442695
  %v2617 = vpow.pop %v2616
  %v2618 = vmul.f32 %v2604, 1.442695
  %v2619 = vpow.pop %v2618
  %v2620 = vmul.f32 %v2605, 1.442695
  %v2621 = vpow.pop %v2620
  %v2622 = vadd.f32 %v2607, 1.0
  %v2623 = vadd.f32 %v2609, 1.0
  %v2624 = vadd.f32 %v2611, 1.0
  %v2625 = vadd.f32 %v2613, 1.0
  %v2626 = vadd.f32 %v2615, 1.0
  %v2627 = vadd.f32 %v2617, 1.0
  %v2628 = vadd.f32 %v2619, 1.0
  %v2629 = vadd.f32 %v2621, 1.0
  %v2630 = vrcp.pop %v2622
  %v2631 = vmul.f32 %v2622, %v2630
  %v2632 = vsub.f32 1.0, %v2631
  %v2633 = vmul.f32 %v2630, %v2632
  %v2634 = vadd.f32 %v2630, %v2633
  %vm2635 = vweird.f32 %v2622
  %vm2636 = vweird.f32 %v2630
  %vm2637 = vmor %vm2635, %vm2636
  %v2638 = vsel %vm2637, %v2630, %v2634
  %v2639 = vand.u32 2147483647, %v2622
  %vm2640 = vcmp.eq.f32.partialorder %v2639, 8.507059e+37
  %v2641 = vand.u32 %v2622, 2147483648
  %v2642 = vor.u32 1.1754944e-38, %v2641
  %v2643 = vsel %vm2640, %v2642, %v2638
  %v2644 = vmul.f32 1.0, %v2643
  %v2645 = vrcp.pop %v2623
  %v2646 = vmul.f32 %v2623, %v2645
  %v2647 = vsub.f32 1.0, %v2646
  %v2648 = vmul.f32 %v2645, %v2647
  %v2649 = vadd.f32 %v2645, %v2648
  %vm2650 = vweird.f32 %v2623
  %vm2651 = vweird.f32 %v2645
  %vm2652 = vmor %vm2650, %vm2651
  %v2653 = vsel %vm2652, %v2645, %v2649
  %v2654 = vand.u32 2147483647, %v2623
  %vm2655 = vcmp.eq.f32.partialorder %v2654, 8.507059e+37
  %v2656 = vand.u32 %v2623, 2147483648
  %v2657 = vor.u32 1.1754944e-38, %v2656
  %v2658 = vsel %vm2655, %v2657, %v2653
  %v2659 = vmul.f32 1.0, %v2658
  %v2660 = vrcp.pop %v2624
  %v2661 = vmul.f32 %v2624, %v2660
  %v2662 = vsub.f32 1.0, %v2661
  %v2663 = vmul.f32 %v2660, %v2662
  %v2664 = vadd.f32 %v2660, %v2663
  %vm2665 = vweird.f32 %v2624
  %vm2666 = vweird.f32 %v2660
  %vm2667 = vmor %vm2665, %vm2666
  %v2668 = vsel %vm2667, %v2660, %v2664
  %v2669 = vand.u32 2147483647, %v2624
  %vm2670 = vcmp.eq.f32.partialorder %v2669, 8.507059e+37
  %v2671 = vand.u32 %v2624, 2147483648
  %v2672 = vor.u32 1.1754944e-38, %v2671
  %v2673 = vsel %vm2670, %v2672, %v2668
  %v2674 = vmul.f32 1.0, %v2673
  %v2675 = vrcp.pop %v2625
  %v2676 = vmul.f32 %v2625, %v2675
  %v2677 = vsub.f32 1.0, %v2676
  %v2678 = vmul.f32 %v2675, %v2677
  %v2679 = vadd.f32 %v2675, %v2678
  %vm2680 = vweird.f32 %v2625
  %vm2681 = vweird.f32 %v2675
  %vm2682 = vmor %vm2680, %vm2681
  %v2683 = vsel %vm2682, %v2675, %v2679
  %v2684 = vand.u32 2147483647, %v2625
  %vm2685 = vcmp.eq.f32.partialorder %v2684, 8.507059e+37
  %v2686 = vand.u32 %v2625, 2147483648
  %v2687 = vor.u32 1.1754944e-38, %v2686
  %v2688 = vsel %vm2685, %v2687, %v2683
  %v2689 = vmul.f32 1.0, %v2688
  %v2690 = vrcp.pop %v2626
  %v2691 = vmul.f32 %v2626, %v2690
  %v2692 = vsub.f32 1.0, %v2691
  %v2693 = vmul.f32 %v2690, %v2692
  %v2694 = vadd.f32 %v2690, %v2693
  %vm2695 = vweird.f32 %v2626
  %vm2696 = vweird.f32 %v2690
  %vm2697 = vmor %vm2695, %vm2696
  %v2698 = vsel %vm2697, %v2690, %v2694
  %v2699 = vand.u32 2147483647, %v2626
  %vm2700 = vcmp.eq.f32.partialorder %v2699, 8.507059e+37
  %v2701 = vand.u32 %v2626, 2147483648
  %v2702 = vor.u32 1.1754944e-38, %v2701
  %v2703 = vsel %vm2700, %v2702, %v2698
  %v2704 = vmul.f32 1.0, %v2703
  %v2705 = vrcp.pop %v2627
  %v2706 = vmul.f32 %v2627, %v2705
  %v2707 = vsub.f32 1.0, %v2706
  %v2708 = vmul.f32 %v2705, %v2707
  %v2709 = vadd.f32 %v2705, %v2708
  %vm2710 = vweird.f32 %v2627
  %vm2711 = vweird.f32 %v2705
  %vm2712 = vmor %vm2710, %vm2711
  %v2713 = vsel %vm2712, %v2705, %v2709
  %v2714 = vand.u32 2147483647, %v2627
  %vm2715 = vcmp.eq.f32.partialorder %v2714, 8.507059e+37
  %v2716 = vand.u32 %v2627, 2147483648
  %v2717 = vor.u32 1.1754944e-38, %v2716
  %v2718 = vsel %vm2715, %v2717, %v2713
  %v2719 = vmul.f32 1.0, %v2718
  %v2720 = vrcp.pop %v2628
  %v2721 = vmul.f32 %v2628, %v2720
  %v2722 = vsub.f32 1.0, %v2721
  %v2723 = vmul.f32 %v2720, %v2722
  %v2724 = vadd.f32 %v2720, %v2723
  %vm2725 = vweird.f32 %v2628
  %vm2726 = vweird.f32 %v2720
  %vm2727 = vmor %vm2725, %vm2726
  %v2728 = vsel %vm2727, %v2720, %v2724
  %v2729 = vand.u32 2147483647, %v2628
  %vm2730 = vcmp.eq.f32.partialorder %v2729, 8.507059e+37
  %v2731 = vand.u32 %v2628, 2147483648
  %v2732 = vor.u32 1.1754944e-38, %v2731
  %v2733 = vsel %vm2730, %v2732, %v2728
  %v2734 = vmul.f32 1.0, %v2733
  %v2735 = vrcp.pop %v2629
  %v2736 = vmul.f32 %v2629, %v2735
  %v2737 = vsub.f32 1.0, %v2736
  %v2738 = vmul.f32 %v2735, %v2737
  %v2739 = vadd.f32 %v2735, %v2738
  %vm2740 = vweird.f32 %v2629
  %vm2741 = vweird.f32 %v2735
  %vm2742 = vmor %vm2740, %vm2741
  %v2743 = vsel %vm2742, %v2735, %v2739
  %v2744 = vand.u32 2147483647, %v2629
  %vm2745 = vcmp.eq.f32.partialorder %v2744, 8.507059e+37
  %v2746 = vand.u32 %v2629, 2147483648
  %v2747 = vor.u32 1.1754944e-38, %v2746
  %v2748 = vsel %vm2745, %v2747, %v2743
  %v2749 = vmul.f32 1.0, %v2748
  %v2750 = vadd.f32 %v2579, %v1354
  %v2751 = vadd.f32 %v2582, %v1359
  %v2752 = vadd.f32 %v2585, %v1364
  %v2753 = vadd.f32 %v2588, %v1369
  %v2754 = vmul.f32 %v2644, %v2750
  %v2755 = vmul.f32 %v2659, %v2751
  %v2756 = vmul.f32 %v2674, %v2752
  %v2757 = vmul.f32 %v2689, %v2753
  %v2758 = vadd.f32 %v2533, %v2754
  %v2759 = vadd.f32 %v2534, %v2755
  %v2760 = vadd.f32 %v2535, %v2756
  %v2761 = vadd.f32 %v2536, %v2757
  %v2762 = vtanh.pop %v2758
  %v2763 = vtanh.pop %v2759
  %v2764 = vtanh.pop %v2760
  %v2765 = vtanh.pop %v2761
  %v2766 = vsub.f32 1.0, %v2704
  %v2767 = vsub.f32 1.0, %v2719
  %v2768 = vsub.f32 1.0, %v2734
  %v2769 = vsub.f32 1.0, %v2749
  %v2770 = vmul.f32 %v2766, %v2762
  %v2771 = vmul.f32 %v2767, %v2763
  %v2772 = vmul.f32 %v2768, %v2764
  %v2773 = vmul.f32 %v2769, %v2765
  %v2774 = vmul.f32 %v2704, %v2254
  %v2775 = vmul.f32 %v2719, %v2255
  %v2776 = vmul.f32 %v2734, %v2256
  %v2777 = vmul.f32 %v2749, %v2257
  %v2778 = vadd.f32 %v2770, %v2774
  %v2779 = vadd.f32 %v2771, %v2775
  %v2780 = vadd.f32 %v2772, %v2776
  %v2781 = vadd.f32 %v2773, %v2777
  %v2782 = vld [vmem:[%s1043 + $0x60] sm:$0xff]
  %v2783 = vld [vmem:[%s1043 + $0x68] sm:$0xff]
  %v2784 = vld [vmem:[%s1043 + $0x70] sm:$0xff]
  %v2785 = vld [vmem:[%s1043 + $0x78] sm:$0xff]
  %v2786 = vld [vmem:[%s1043 + $0x80] sm:$0xff]
  %v2787 = vld [vmem:[%s1043 + $0x88] sm:$0xff]
  %v2788 = vld [vmem:[%s1043 + $0x90] sm:$0xff]
  %v2789 = vld [vmem:[%s1043 + $0x98] sm:$0xff]
  %v2790 = vld [vmem:[%s1043 + $0xa0] sm:$0xff]
  %v2791 = vld [vmem:[%s1043 + $0xa8] sm:$0xff]
  %v2792 = vld [vmem:[%s1043 + $0xb0] sm:$0xff]
  %v2793 = vld [vmem:[%s1043 + $0xb8] sm:$0xff]
  %2794 = vmatpush.msra.mxu0 0.0
  %2795 = vmatpush.msra.mxu0 0.0
  %2796 = vmatpush.msra.mxu0 0.0
  %2797 = vmatpush.msra.mxu0 0.0
  %2798 = vmatpush.msra.mxu0 0.0
  %2799 = vmatpush.msra.mxu0 0.0
  %2800 = vmatpush.msra.mxu0 0.0
  %2801 = vmatpush.msra.mxu0 0.0
  %2802 = vmatpush.msra.mxu0 0.0
  %2803 = vmatpush.msra.mxu0 0.0
  %2804 = vmatpush.msra.mxu0 0.0
  %2805 = vmatpush.msra.mxu0 0.0
  %2806 = vmatpush.msra.mxu0 %v2514
  %2807 = vmatpush.msra.mxu0 %v2513
  %2808 = vmatpush.msra.mxu0 %v2512
  %2809 = vmatpush.msra.mxu0 %v2511
  %2810 = vmatmul.f32.gmra.mxu0 %v1712
  %v2811 = vpop.f32.mrf.mxu0
  %v2812 = vadd.f32 0.0, %v2811
  %2813 = vmatmul.f32.gmra.mxu0 %v1715
  %v2814 = vpop.f32.mrf.mxu0
  %v2815 = vadd.f32 0.0, %v2814
  %2816 = vmatmul.f32.gmra.mxu0 %v1718
  %v2817 = vpop.f32.mrf.mxu0
  %v2818 = vadd.f32 0.0, %v2817
  %2819 = vmatmul.f32.gmra.mxu0 %v1721
  %v2820 = vpop.f32.mrf.mxu0
  %v2821 = vadd.f32 0.0, %v2820
  %2822 = vmatmul.f32.gmra.mxu0 %v1724
  %v2823 = vpop.f32.mrf.mxu0
  %v2824 = vadd.f32 0.0, %v2823
  %2825 = vmatmul.f32.gmra.mxu0 %v1727
  %v2826 = vpop.f32.mrf.mxu0
  %v2827 = vadd.f32 0.0, %v2826
  %2828 = vmatmul.f32.gmra.mxu0 %v1730
  %v2829 = vpop.f32.mrf.mxu0
  %v2830 = vadd.f32 0.0, %v2829
  %2831 = vmatmul.f32.gmra.mxu0 %v1733
  %v2832 = vpop.f32.mrf.mxu0
  %v2833 = vadd.f32 0.0, %v2832
  %2834 = vmatmul.f32.gmra.mxu0 %v1736
  %v2835 = vpop.f32.mrf.mxu0
  %v2836 = vadd.f32 0.0, %v2835
  %2837 = vmatmul.f32.gmra.mxu0 %v1739
  %v2838 = vpop.f32.mrf.mxu0
  %v2839 = vadd.f32 0.0, %v2838
  %2840 = vmatmul.f32.gmra.mxu0 %v1742
  %v2841 = vpop.f32.mrf.mxu0
  %v2842 = vadd.f32 0.0, %v2841
  %2843 = vmatmul.f32.gmra.mxu0 %v1745
  %v2844 = vpop.f32.mrf.mxu0
  %v2845 = vadd.f32 0.0, %v2844
  %2846 = vdwg.mxu0
  %v2847 = vadd.f32 %v2782, %v2812
  %v2848 = vadd.f32 %v2783, %v2815
  %v2849 = vadd.f32 %v2784, %v2818
  %v2850 = vadd.f32 %v2785, %v2821
  %v2851 = vadd.f32 %v2786, %v2824
  %v2852 = vadd.f32 %v2787, %v2827
  %v2853 = vadd.f32 %v2788, %v2830
  %v2854 = vadd.f32 %v2789, %v2833
  %v2855 = vxor.u32 %v2847, 2147483648
  %v2856 = vxor.u32 %v2848, 2147483648
  %v2857 = vxor.u32 %v2849, 2147483648
  %v2858 = vxor.u32 %v2850, 2147483648
  %v2859 = vxor.u32 %v2851, 2147483648
  %v2860 = vxor.u32 %v2852, 2147483648
  %v2861 = vxor.u32 %v2853, 2147483648
  %v2862 = vxor.u32 %v2854, 2147483648
  %v2863 = vmul.f32 %v2855, 1.442695
  %v2864 = vpow.pop %v2863
  %v2865 = vmul.f32 %v2856, 1.442695
  %v2866 = vpow.pop %v2865
  %v2867 = vmul.f32 %v2857, 1.442695
  %v2868 = vpow.pop %v2867
  %v2869 = vmul.f32 %v2858, 1.442695
  %v2870 = vpow.pop %v2869
  %v2871 = vmul.f32 %v2859, 1.442695
  %v2872 = vpow.pop %v2871
  %v2873 = vmul.f32 %v2860, 1.442695
  %v2874 = vpow.pop %v2873
  %v2875 = vmul.f32 %v2861, 1.442695
  %v2876 = vpow.pop %v2875
  %v2877 = vmul.f32 %v2862, 1.442695
  %v2878 = vpow.pop %v2877
  %v2879 = vadd.f32 %v2864, 1.0
  %v2880 = vadd.f32 %v2866, 1.0
  %v2881 = vadd.f32 %v2868, 1.0
  %v2882 = vadd.f32 %v2870, 1.0
  %v2883 = vadd.f32 %v2872, 1.0
  %v2884 = vadd.f32 %v2874, 1.0
  %v2885 = vadd.f32 %v2876, 1.0
  %v2886 = vadd.f32 %v2878, 1.0
  %v2887 = vrcp.pop %v2879
  %v2888 = vmul.f32 %v2879, %v2887
  %v2889 = vsub.f32 1.0, %v2888
  %v2890 = vmul.f32 %v2887, %v2889
  %v2891 = vadd.f32 %v2887, %v2890
  %vm2892 = vweird.f32 %v2879
  %vm2893 = vweird.f32 %v2887
  %vm2894 = vmor %vm2892, %vm2893
  %v2895 = vsel %vm2894, %v2887, %v2891
  %v2896 = vand.u32 2147483647, %v2879
  %vm2897 = vcmp.eq.f32.partialorder %v2896, 8.507059e+37
  %v2898 = vand.u32 %v2879, 2147483648
  %v2899 = vor.u32 1.1754944e-38, %v2898
  %v2900 = vsel %vm2897, %v2899, %v2895
  %v2901 = vmul.f32 1.0, %v2900
  %v2902 = vrcp.pop %v2880
  %v2903 = vmul.f32 %v2880, %v2902
  %v2904 = vsub.f32 1.0, %v2903
  %v2905 = vmul.f32 %v2902, %v2904
  %v2906 = vadd.f32 %v2902, %v2905
  %vm2907 = vweird.f32 %v2880
  %vm2908 = vweird.f32 %v2902
  %vm2909 = vmor %vm2907, %vm2908
  %v2910 = vsel %vm2909, %v2902, %v2906
  %v2911 = vand.u32 2147483647, %v2880
  %vm2912 = vcmp.eq.f32.partialorder %v2911, 8.507059e+37
  %v2913 = vand.u32 %v2880, 2147483648
  %v2914 = vor.u32 1.1754944e-38, %v2913
  %v2915 = vsel %vm2912, %v2914, %v2910
  %v2916 = vmul.f32 1.0, %v2915
  %v2917 = vrcp.pop %v2881
  %v2918 = vmul.f32 %v2881, %v2917
  %v2919 = vsub.f32 1.0, %v2918
  %v2920 = vmul.f32 %v2917, %v2919
  %v2921 = vadd.f32 %v2917, %v2920
  %vm2922 = vweird.f32 %v2881
  %vm2923 = vweird.f32 %v2917
  %vm2924 = vmor %vm2922, %vm2923
  %v2925 = vsel %vm2924, %v2917, %v2921
  %v2926 = vand.u32 2147483647, %v2881
  %vm2927 = vcmp.eq.f32.partialorder %v2926, 8.507059e+37
  %v2928 = vand.u32 %v2881, 2147483648
  %v2929 = vor.u32 1.1754944e-38, %v2928
  %v2930 = vsel %vm2927, %v2929, %v2925
  %v2931 = vmul.f32 1.0, %v2930
  %v2932 = vrcp.pop %v2882
  %v2933 = vmul.f32 %v2882, %v2932
  %v2934 = vsub.f32 1.0, %v2933
  %v2935 = vmul.f32 %v2932, %v2934
  %v2936 = vadd.f32 %v2932, %v2935
  %vm2937 = vweird.f32 %v2882
  %vm2938 = vweird.f32 %v2932
  %vm2939 = vmor %vm2937, %vm2938
  %v2940 = vsel %vm2939, %v2932, %v2936
  %v2941 = vand.u32 2147483647, %v2882
  %vm2942 = vcmp.eq.f32.partialorder %v2941, 8.507059e+37
  %v2943 = vand.u32 %v2882, 2147483648
  %v2944 = vor.u32 1.1754944e-38, %v2943
  %v2945 = vsel %vm2942, %v2944, %v2940
  %v2946 = vmul.f32 1.0, %v2945
  %v2947 = vrcp.pop %v2883
  %v2948 = vmul.f32 %v2883, %v2947
  %v2949 = vsub.f32 1.0, %v2948
  %v2950 = vmul.f32 %v2947, %v2949
  %v2951 = vadd.f32 %v2947, %v2950
  %vm2952 = vweird.f32 %v2883
  %vm2953 = vweird.f32 %v2947
  %vm2954 = vmor %vm2952, %vm2953
  %v2955 = vsel %vm2954, %v2947, %v2951
  %v2956 = vand.u32 2147483647, %v2883
  %vm2957 = vcmp.eq.f32.partialorder %v2956, 8.507059e+37
  %v2958 = vand.u32 %v2883, 2147483648
  %v2959 = vor.u32 1.1754944e-38, %v2958
  %v2960 = vsel %vm2957, %v2959, %v2955
  %v2961 = vmul.f32 1.0, %v2960
  %v2962 = vrcp.pop %v2884
  %v2963 = vmul.f32 %v2884, %v2962
  %v2964 = vsub.f32 1.0, %v2963
  %v2965 = vmul.f32 %v2962, %v2964
  %v2966 = vadd.f32 %v2962, %v2965
  %vm2967 = vweird.f32 %v2884
  %vm2968 = vweird.f32 %v2962
  %vm2969 = vmor %vm2967, %vm2968
  %v2970 = vsel %vm2969, %v2962, %v2966
  %v2971 = vand.u32 2147483647, %v2884
  %vm2972 = vcmp.eq.f32.partialorder %v2971, 8.507059e+37
  %v2973 = vand.u32 %v2884, 2147483648
  %v2974 = vor.u32 1.1754944e-38, %v2973
  %v2975 = vsel %vm2972, %v2974, %v2970
  %v2976 = vmul.f32 1.0, %v2975
  %v2977 = vrcp.pop %v2885
  %v2978 = vmul.f32 %v2885, %v2977
  %v2979 = vsub.f32 1.0, %v2978
  %v2980 = vmul.f32 %v2977, %v2979
  %v2981 = vadd.f32 %v2977, %v2980
  %vm2982 = vweird.f32 %v2885
  %vm2983 = vweird.f32 %v2977
  %vm2984 = vmor %vm2982, %vm2983
  %v2985 = vsel %vm2984, %v2977, %v2981
  %v2986 = vand.u32 2147483647, %v2885
  %vm2987 = vcmp.eq.f32.partialorder %v2986, 8.507059e+37
  %v2988 = vand.u32 %v2885, 2147483648
  %v2989 = vor.u32 1.1754944e-38, %v2988
  %v2990 = vsel %vm2987, %v2989, %v2985
  %v2991 = vmul.f32 1.0, %v2990
  %v2992 = vrcp.pop %v2886
  %v2993 = vmul.f32 %v2886, %v2992
  %v2994 = vsub.f32 1.0, %v2993
  %v2995 = vmul.f32 %v2992, %v2994
  %v2996 = vadd.f32 %v2992, %v2995
  %vm2997 = vweird.f32 %v2886
  %vm2998 = vweird.f32 %v2992
  %vm2999 = vmor %vm2997, %vm2998
  %v3000 = vsel %vm2999, %v2992, %v2996
  %v3001 = vand.u32 2147483647, %v2886
  %vm3002 = vcmp.eq.f32.partialorder %v3001, 8.507059e+37
  %v3003 = vand.u32 %v2886, 2147483648
  %v3004 = vor.u32 1.1754944e-38, %v3003
  %v3005 = vsel %vm3002, %v3004, %v3000
  %v3006 = vmul.f32 1.0, %v3005
  %v3007 = vadd.f32 %v2836, %v1379
  %v3008 = vadd.f32 %v2839, %v1384
  %v3009 = vadd.f32 %v2842, %v1389
  %v3010 = vadd.f32 %v2845, %v1394
  %v3011 = vmul.f32 %v2901, %v3007
  %v3012 = vmul.f32 %v2916, %v3008
  %v3013 = vmul.f32 %v2931, %v3009
  %v3014 = vmul.f32 %v2946, %v3010
  %v3015 = vadd.f32 %v2790, %v3011
  %v3016 = vadd.f32 %v2791, %v3012
  %v3017 = vadd.f32 %v2792, %v3013
  %v3018 = vadd.f32 %v2793, %v3014
  %v3019 = vtanh.pop %v3015
  %v3020 = vtanh.pop %v3016
  %v3021 = vtanh.pop %v3017
  %v3022 = vtanh.pop %v3018
  %v3023 = vsub.f32 1.0, %v2961
  %v3024 = vsub.f32 1.0, %v2976
  %v3025 = vsub.f32 1.0, %v2991
  %v3026 = vsub.f32 1.0, %v3006
  %v3027 = vmul.f32 %v3023, %v3019
  %v3028 = vmul.f32 %v3024, %v3020
  %v3029 = vmul.f32 %v3025, %v3021
  %v3030 = vmul.f32 %v3026, %v3022
  %v3031 = vmul.f32 %v2961, %v2511
  %v3032 = vmul.f32 %v2976, %v2512
  %v3033 = vmul.f32 %v2991, %v2513
  %v3034 = vmul.f32 %v3006, %v2514
  %v3035 = vadd.f32 %v3027, %v3031
  %v3036 = vadd.f32 %v3028, %v3032
  %v3037 = vadd.f32 %v3029, %v3033
  %v3038 = vadd.f32 %v3030, %v3034
  %s3039 = scalar_lea.vmem [#allocation3], 128
  %3040 = vst [vmem:[%s3039] sm:$0xff] %v2778
  %3041 = vst [vmem:[%s3039 + $0x8] sm:$0xff] %v2779
  %3042 = vst [vmem:[%s3039 + $0x10] sm:$0xff] %v2780
  %3043 = vst [vmem:[%s3039 + $0x18] sm:$0xff] %v2781
  %s3044 = scalar_lea.vmem [#allocation3], 320
  %3045 = vst [vmem:[%s3044 + $0x20] sm:$0xff] %v3035
  %3046 = vst [vmem:[%s3044 + $0x28] sm:$0xff] %v3036
  %3047 = vst [vmem:[%s3044 + $0x30] sm:$0xff] %v3037
  %3048 = vst [vmem:[%s3044 + $0x38] sm:$0xff] %v3038
  %v3049 = vld [vmem:[%s789] sm:$0xff]
  %v3050 = vld [vmem:[%s789 + $0x8] sm:$0xff]
  %v3051 = vld [vmem:[%s789 + $0x10] sm:$0xff]
  %v3052 = vld [vmem:[%s789 + $0x18] sm:$0xff]
  %v3053 = vld [vmem:[%s789 + $0x20] sm:$0xff]
  %v3054 = vld [vmem:[%s789 + $0x28] sm:$0xff]
  %v3055 = vld [vmem:[%s789 + $0x30] sm:$0xff]
  %v3056 = vld [vmem:[%s789 + $0x38] sm:$0xff]
  %v3057 = vld [vmem:[%s789 + $0x40] sm:$0xff]
  %v3058 = vld [vmem:[%s789 + $0x48] sm:$0xff]
  %v3059 = vld [vmem:[%s789 + $0x50] sm:$0xff]
  %v3060 = vld [vmem:[%s789 + $0x58] sm:$0xff]
  %3061 = vmatpush.msra.mxu0 0.0
  %3062 = vmatpush.msra.mxu0 0.0
  %3063 = vmatpush.msra.mxu0 0.0
  %3064 = vmatpush.msra.mxu0 0.0
  %3065 = vmatpush.msra.mxu0 0.0
  %3066 = vmatpush.msra.mxu0 0.0
  %3067 = vmatpush.msra.mxu0 0.0
  %3068 = vmatpush.msra.mxu0 0.0
  %3069 = vmatpush.msra.mxu0 0.0
  %3070 = vmatpush.msra.mxu0 0.0
  %3071 = vmatpush.msra.mxu0 0.0
  %3072 = vmatpush.msra.mxu0 0.0
  %3073 = vmatpush.msra.mxu0 %v2781
  %3074 = vmatpush.msra.mxu0 %v2780
  %3075 = vmatpush.msra.mxu0 %v2779
  %3076 = vmatpush.msra.mxu0 %v2778
  %3077 = vmatmul.f32.gmra.mxu0 %v1419
  %v3078 = vpop.f32.mrf.mxu0
  %v3079 = vadd.f32 0.0, %v3078
  %3080 = vmatmul.f32.gmra.mxu0 %v1422
  %v3081 = vpop.f32.mrf.mxu0
  %v3082 = vadd.f32 0.0, %v3081
  %3083 = vmatmul.f32.gmra.mxu0 %v1425
  %v3084 = vpop.f32.mrf.mxu0
  %v3085 = vadd.f32 0.0, %v3084
  %3086 = vmatmul.f32.gmra.mxu0 %v1428
  %v3087 = vpop.f32.mrf.mxu0
  %v3088 = vadd.f32 0.0, %v3087
  %3089 = vmatmul.f32.gmra.mxu0 %v1431
  %v3090 = vpop.f32.mrf.mxu0
  %v3091 = vadd.f32 0.0, %v3090
  %3092 = vmatmul.f32.gmra.mxu0 %v1434
  %v3093 = vpop.f32.mrf.mxu0
  %v3094 = vadd.f32 0.0, %v3093
  %3095 = vmatmul.f32.gmra.mxu0 %v1437
  %v3096 = vpop.f32.mrf.mxu0
  %v3097 = vadd.f32 0.0, %v3096
  %3098 = vmatmul.f32.gmra.mxu0 %v1440
  %v3099 = vpop.f32.mrf.mxu0
  %v3100 = vadd.f32 0.0, %v3099
  %3101 = vmatmul.f32.gmra.mxu0 %v1443
  %v3102 = vpop.f32.mrf.mxu0
  %v3103 = vadd.f32 0.0, %v3102
  %3104 = vmatmul.f32.gmra.mxu0 %v1446
  %v3105 = vpop.f32.mrf.mxu0
  %v3106 = vadd.f32 0.0, %v3105
  %3107 = vmatmul.f32.gmra.mxu0 %v1449
  %v3108 = vpop.f32.mrf.mxu0
  %v3109 = vadd.f32 0.0, %v3108
  %3110 = vmatmul.f32.gmra.mxu0 %v1452
  %v3111 = vpop.f32.mrf.mxu0
  %v3112 = vadd.f32 0.0, %v3111
  %3113 = vdwg.mxu0
  %v3114 = vadd.f32 %v3049, %v3079
  %v3115 = vadd.f32 %v3050, %v3082
  %v3116 = vadd.f32 %v3051, %v3085
  %v3117 = vadd.f32 %v3052, %v3088
  %v3118 = vadd.f32 %v3053, %v3091
  %v3119 = vadd.f32 %v3054, %v3094
  %v3120 = vadd.f32 %v3055, %v3097
  %v3121 = vadd.f32 %v3056, %v3100
  %v3122 = vxor.u32 %v3114, 2147483648
  %v3123 = vxor.u32 %v3115, 2147483648
  %v3124 = vxor.u32 %v3116, 2147483648
  %v3125 = vxor.u32 %v3117, 2147483648
  %v3126 = vxor.u32 %v3118, 2147483648
  %v3127 = vxor.u32 %v3119, 2147483648
  %v3128 = vxor.u32 %v3120, 2147483648
  %v3129 = vxor.u32 %v3121, 2147483648
  %v3130 = vmul.f32 %v3122, 1.442695
  %v3131 = vpow.pop %v3130
  %v3132 = vmul.f32 %v3123, 1.442695
  %v3133 = vpow.pop %v3132
  %v3134 = vmul.f32 %v3124, 1.442695
  %v3135 = vpow.pop %v3134
  %v3136 = vmul.f32 %v3125, 1.442695
  %v3137 = vpow.pop %v3136
  %v3138 = vmul.f32 %v3126, 1.442695
  %v3139 = vpow.pop %v3138
  %v3140 = vmul.f32 %v3127, 1.442695
  %v3141 = vpow.pop %v3140
  %v3142 = vmul.f32 %v3128, 1.442695
  %v3143 = vpow.pop %v3142
  %v3144 = vmul.f32 %v3129, 1.442695
  %v3145 = vpow.pop %v3144
  %v3146 = vadd.f32 %v3131, 1.0
  %v3147 = vadd.f32 %v3133, 1.0
  %v3148 = vadd.f32 %v3135, 1.0
  %v3149 = vadd.f32 %v3137, 1.0
  %v3150 = vadd.f32 %v3139, 1.0
  %v3151 = vadd.f32 %v3141, 1.0
  %v3152 = vadd.f32 %v3143, 1.0
  %v3153 = vadd.f32 %v3145, 1.0
  %v3154 = vrcp.pop %v3146
  %v3155 = vmul.f32 %v3146, %v3154
  %v3156 = vsub.f32 1.0, %v3155
  %v3157 = vmul.f32 %v3154, %v3156
  %v3158 = vadd.f32 %v3154, %v3157
  %vm3159 = vweird.f32 %v3146
  %vm3160 = vweird.f32 %v3154
  %vm3161 = vmor %vm3159, %vm3160
  %v3162 = vsel %vm3161, %v3154, %v3158
  %v3163 = vand.u32 2147483647, %v3146
  %vm3164 = vcmp.eq.f32.partialorder %v3163, 8.507059e+37
  %v3165 = vand.u32 %v3146, 2147483648
  %v3166 = vor.u32 1.1754944e-38, %v3165
  %v3167 = vsel %vm3164, %v3166, %v3162
  %v3168 = vmul.f32 1.0, %v3167
  %v3169 = vrcp.pop %v3147
  %v3170 = vmul.f32 %v3147, %v3169
  %v3171 = vsub.f32 1.0, %v3170
  %v3172 = vmul.f32 %v3169, %v3171
  %v3173 = vadd.f32 %v3169, %v3172
  %vm3174 = vweird.f32 %v3147
  %vm3175 = vweird.f32 %v3169
  %vm3176 = vmor %vm3174, %vm3175
  %v3177 = vsel %vm3176, %v3169, %v3173
  %v3178 = vand.u32 2147483647, %v3147
  %vm3179 = vcmp.eq.f32.partialorder %v3178, 8.507059e+37
  %v3180 = vand.u32 %v3147, 2147483648
  %v3181 = vor.u32 1.1754944e-38, %v3180
  %v3182 = vsel %vm3179, %v3181, %v3177
  %v3183 = vmul.f32 1.0, %v3182
  %v3184 = vrcp.pop %v3148
  %v3185 = vmul.f32 %v3148, %v3184
  %v3186 = vsub.f32 1.0, %v3185
  %v3187 = vmul.f32 %v3184, %v3186
  %v3188 = vadd.f32 %v3184, %v3187
  %vm3189 = vweird.f32 %v3148
  %vm3190 = vweird.f32 %v3184
  %vm3191 = vmor %vm3189, %vm3190
  %v3192 = vsel %vm3191, %v3184, %v3188
  %v3193 = vand.u32 2147483647, %v3148
  %vm3194 = vcmp.eq.f32.partialorder %v3193, 8.507059e+37
  %v3195 = vand.u32 %v3148, 2147483648
  %v3196 = vor.u32 1.1754944e-38, %v3195
  %v3197 = vsel %vm3194, %v3196, %v3192
  %v3198 = vmul.f32 1.0, %v3197
  %v3199 = vrcp.pop %v3149
  %v3200 = vmul.f32 %v3149, %v3199
  %v3201 = vsub.f32 1.0, %v3200
  %v3202 = vmul.f32 %v3199, %v3201
  %v3203 = vadd.f32 %v3199, %v3202
  %vm3204 = vweird.f32 %v3149
  %vm3205 = vweird.f32 %v3199
  %vm3206 = vmor %vm3204, %vm3205
  %v3207 = vsel %vm3206, %v3199, %v3203
  %v3208 = vand.u32 2147483647, %v3149
  %vm3209 = vcmp.eq.f32.partialorder %v3208, 8.507059e+37
  %v3210 = vand.u32 %v3149, 2147483648
  %v3211 = vor.u32 1.1754944e-38, %v3210
  %v3212 = vsel %vm3209, %v3211, %v3207
  %v3213 = vmul.f32 1.0, %v3212
  %v3214 = vrcp.pop %v3150
  %v3215 = vmul.f32 %v3150, %v3214
  %v3216 = vsub.f32 1.0, %v3215
  %v3217 = vmul.f32 %v3214, %v3216
  %v3218 = vadd.f32 %v3214, %v3217
  %vm3219 = vweird.f32 %v3150
  %vm3220 = vweird.f32 %v3214
  %vm3221 = vmor %vm3219, %vm3220
  %v3222 = vsel %vm3221, %v3214, %v3218
  %v3223 = vand.u32 2147483647, %v3150
  %vm3224 = vcmp.eq.f32.partialorder %v3223, 8.507059e+37
  %v3225 = vand.u32 %v3150, 2147483648
  %v3226 = vor.u32 1.1754944e-38, %v3225
  %v3227 = vsel %vm3224, %v3226, %v3222
  %v3228 = vmul.f32 1.0, %v3227
  %v3229 = vrcp.pop %v3151
  %v3230 = vmul.f32 %v3151, %v3229
  %v3231 = vsub.f32 1.0, %v3230
  %v3232 = vmul.f32 %v3229, %v3231
  %v3233 = vadd.f32 %v3229, %v3232
  %vm3234 = vweird.f32 %v3151
  %vm3235 = vweird.f32 %v3229
  %vm3236 = vmor %vm3234, %vm3235
  %v3237 = vsel %vm3236, %v3229, %v3233
  %v3238 = vand.u32 2147483647, %v3151
  %vm3239 = vcmp.eq.f32.partialorder %v3238, 8.507059e+37
  %v3240 = vand.u32 %v3151, 2147483648
  %v3241 = vor.u32 1.1754944e-38, %v3240
  %v3242 = vsel %vm3239, %v3241, %v3237
  %v3243 = vmul.f32 1.0, %v3242
  %v3244 = vrcp.pop %v3152
  %v3245 = vmul.f32 %v3152, %v3244
  %v3246 = vsub.f32 1.0, %v3245
  %v3247 = vmul.f32 %v3244, %v3246
  %v3248 = vadd.f32 %v3244, %v3247
  %vm3249 = vweird.f32 %v3152
  %vm3250 = vweird.f32 %v3244
  %vm3251 = vmor %vm3249, %vm3250
  %v3252 = vsel %vm3251, %v3244, %v3248
  %v3253 = vand.u32 2147483647, %v3152
  %vm3254 = vcmp.eq.f32.partialorder %v3253, 8.507059e+37
  %v3255 = vand.u32 %v3152, 2147483648
  %v3256 = vor.u32 1.1754944e-38, %v3255
  %v3257 = vsel %vm3254, %v3256, %v3252
  %v3258 = vmul.f32 1.0, %v3257
  %v3259 = vrcp.pop %v3153
  %v3260 = vmul.f32 %v3153, %v3259
  %v3261 = vsub.f32 1.0, %v3260
  %v3262 = vmul.f32 %v3259, %v3261
  %v3263 = vadd.f32 %v3259, %v3262
  %vm3264 = vweird.f32 %v3153
  %vm3265 = vweird.f32 %v3259
  %vm3266 = vmor %vm3264, %vm3265
  %v3267 = vsel %vm3266, %v3259, %v3263
  %v3268 = vand.u32 2147483647, %v3153
  %vm3269 = vcmp.eq.f32.partialorder %v3268, 8.507059e+37
  %v3270 = vand.u32 %v3153, 2147483648
  %v3271 = vor.u32 1.1754944e-38, %v3270
  %v3272 = vsel %vm3269, %v3271, %v3267
  %v3273 = vmul.f32 1.0, %v3272
  %v3274 = vadd.f32 %v3103, %v1354
  %v3275 = vadd.f32 %v3106, %v1359
  %v3276 = vadd.f32 %v3109, %v1364
  %v3277 = vadd.f32 %v3112, %v1369
  %v3278 = vmul.f32 %v3168, %v3274
  %v3279 = vmul.f32 %v3183, %v3275
  %v3280 = vmul.f32 %v3198, %v3276
  %v3281 = vmul.f32 %v3213, %v3277
  %v3282 = vadd.f32 %v3057, %v3278
  %v3283 = vadd.f32 %v3058, %v3279
  %v3284 = vadd.f32 %v3059, %v3280
  %v3285 = vadd.f32 %v3060, %v3281
  %v3286 = vtanh.pop %v3282
  %v3287 = vtanh.pop %v3283
  %v3288 = vtanh.pop %v3284
  %v3289 = vtanh.pop %v3285
  %v3290 = vsub.f32 1.0, %v3228
  %v3291 = vsub.f32 1.0, %v3243
  %v3292 = vsub.f32 1.0, %v3258
  %v3293 = vsub.f32 1.0, %v3273
  %v3294 = vmul.f32 %v3290, %v3286
  %v3295 = vmul.f32 %v3291, %v3287
  %v3296 = vmul.f32 %v3292, %v3288
  %v3297 = vmul.f32 %v3293, %v3289
  %v3298 = vmul.f32 %v3228, %v2778
  %v3299 = vmul.f32 %v3243, %v2779
  %v3300 = vmul.f32 %v3258, %v2780
  %v3301 = vmul.f32 %v3273, %v2781
  %v3302 = vadd.f32 %v3294, %v3298
  %v3303 = vadd.f32 %v3295, %v3299
  %v3304 = vadd.f32 %v3296, %v3300
  %v3305 = vadd.f32 %v3297, %v3301
  %v3306 = vld [vmem:[%s916 + $0x60] sm:$0xff]
  %v3307 = vld [vmem:[%s916 + $0x68] sm:$0xff]
  %v3308 = vld [vmem:[%s916 + $0x70] sm:$0xff]
  %v3309 = vld [vmem:[%s916 + $0x78] sm:$0xff]
  %v3310 = vld [vmem:[%s916 + $0x80] sm:$0xff]
  %v3311 = vld [vmem:[%s916 + $0x88] sm:$0xff]
  %v3312 = vld [vmem:[%s916 + $0x90] sm:$0xff]
  %v3313 = vld [vmem:[%s916 + $0x98] sm:$0xff]
  %v3314 = vld [vmem:[%s916 + $0xa0] sm:$0xff]
  %v3315 = vld [vmem:[%s916 + $0xa8] sm:$0xff]
  %v3316 = vld [vmem:[%s916 + $0xb0] sm:$0xff]
  %v3317 = vld [vmem:[%s916 + $0xb8] sm:$0xff]
  %3318 = vmatpush.msra.mxu0 0.0
  %3319 = vmatpush.msra.mxu0 0.0
  %3320 = vmatpush.msra.mxu0 0.0
  %3321 = vmatpush.msra.mxu0 0.0
  %3322 = vmatpush.msra.mxu0 0.0
  %3323 = vmatpush.msra.mxu0 0.0
  %3324 = vmatpush.msra.mxu0 0.0
  %3325 = vmatpush.msra.mxu0 0.0
  %3326 = vmatpush.msra.mxu0 0.0
  %3327 = vmatpush.msra.mxu0 0.0
  %3328 = vmatpush.msra.mxu0 0.0
  %3329 = vmatpush.msra.mxu0 0.0
  %3330 = vmatpush.msra.mxu0 %v3038
  %3331 = vmatpush.msra.mxu0 %v3037
  %3332 = vmatpush.msra.mxu0 %v3036
  %3333 = vmatpush.msra.mxu0 %v3035
  %3334 = vmatmul.f32.gmra.mxu0 %v1712
  %v3335 = vpop.f32.mrf.mxu0
  %v3336 = vadd.f32 0.0, %v3335
  %3337 = vmatmul.f32.gmra.mxu0 %v1715
  %v3338 = vpop.f32.mrf.mxu0
  %v3339 = vadd.f32 0.0, %v3338
  %3340 = vmatmul.f32.gmra.mxu0 %v1718
  %v3341 = vpop.f32.mrf.mxu0
  %v3342 = vadd.f32 0.0, %v3341
  %3343 = vmatmul.f32.gmra.mxu0 %v1721
  %v3344 = vpop.f32.mrf.mxu0
  %v3345 = vadd.f32 0.0, %v3344
  %3346 = vmatmul.f32.gmra.mxu0 %v1724
  %v3347 = vpop.f32.mrf.mxu0
  %v3348 = vadd.f32 0.0, %v3347
  %3349 = vmatmul.f32.gmra.mxu0 %v1727
  %v3350 = vpop.f32.mrf.mxu0
  %v3351 = vadd.f32 0.0, %v3350
  %3352 = vmatmul.f32.gmra.mxu0 %v1730
  %v3353 = vpop.f32.mrf.mxu0
  %v3354 = vadd.f32 0.0, %v3353
  %3355 = vmatmul.f32.gmra.mxu0 %v1733
  %v3356 = vpop.f32.mrf.mxu0
  %v3357 = vadd.f32 0.0, %v3356
  %3358 = vmatmul.f32.gmra.mxu0 %v1736
  %v3359 = vpop.f32.mrf.mxu0
  %v3360 = vadd.f32 0.0, %v3359
  %3361 = vmatmul.f32.gmra.mxu0 %v1739
  %v3362 = vpop.f32.mrf.mxu0
  %v3363 = vadd.f32 0.0, %v3362
  %3364 = vmatmul.f32.gmra.mxu0 %v1742
  %v3365 = vpop.f32.mrf.mxu0
  %v3366 = vadd.f32 0.0, %v3365
  %3367 = vmatmul.f32.gmra.mxu0 %v1745
  %v3368 = vpop.f32.mrf.mxu0
  %v3369 = vadd.f32 0.0, %v3368
  %3370 = vdwg.mxu0
  %v3371 = vadd.f32 %v3306, %v3336
  %v3372 = vadd.f32 %v3307, %v3339
  %v3373 = vadd.f32 %v3308, %v3342
  %v3374 = vadd.f32 %v3309, %v3345
  %v3375 = vadd.f32 %v3310, %v3348
  %v3376 = vadd.f32 %v3311, %v3351
  %v3377 = vadd.f32 %v3312, %v3354
  %v3378 = vadd.f32 %v3313, %v3357
  %v3379 = vxor.u32 %v3371, 2147483648
  %v3380 = vxor.u32 %v3372, 2147483648
  %v3381 = vxor.u32 %v3373, 2147483648
  %v3382 = vxor.u32 %v3374, 2147483648
  %v3383 = vxor.u32 %v3375, 2147483648
  %v3384 = vxor.u32 %v3376, 2147483648
  %v3385 = vxor.u32 %v3377, 2147483648
  %v3386 = vxor.u32 %v3378, 2147483648
  %v3387 = vmul.f32 %v3379, 1.442695
  %v3388 = vpow.pop %v3387
  %v3389 = vmul.f32 %v3380, 1.442695
  %v3390 = vpow.pop %v3389
  %v3391 = vmul.f32 %v3381, 1.442695
  %v3392 = vpow.pop %v3391
  %v3393 = vmul.f32 %v3382, 1.442695
  %v3394 = vpow.pop %v3393
  %v3395 = vmul.f32 %v3383, 1.442695
  %v3396 = vpow.pop %v3395
  %v3397 = vmul.f32 %v3384, 1.442695
  %v3398 = vpow.pop %v3397
  %v3399 = vmul.f32 %v3385, 1.442695
  %v3400 = vpow.pop %v3399
  %v3401 = vmul.f32 %v3386, 1.442695
  %v3402 = vpow.pop %v3401
  %v3403 = vadd.f32 %v3388, 1.0
  %v3404 = vadd.f32 %v3390, 1.0
  %v3405 = vadd.f32 %v3392, 1.0
  %v3406 = vadd.f32 %v3394, 1.0
  %v3407 = vadd.f32 %v3396, 1.0
  %v3408 = vadd.f32 %v3398, 1.0
  %v3409 = vadd.f32 %v3400, 1.0
  %v3410 = vadd.f32 %v3402, 1.0
  %v3411 = vrcp.pop %v3403
  %v3412 = vmul.f32 %v3403, %v3411
  %v3413 = vsub.f32 1.0, %v3412
  %v3414 = vmul.f32 %v3411, %v3413
  %v3415 = vadd.f32 %v3411, %v3414
  %vm3416 = vweird.f32 %v3403
  %vm3417 = vweird.f32 %v3411
  %vm3418 = vmor %vm3416, %vm3417
  %v3419 = vsel %vm3418, %v3411, %v3415
  %v3420 = vand.u32 2147483647, %v3403
  %vm3421 = vcmp.eq.f32.partialorder %v3420, 8.507059e+37
  %v3422 = vand.u32 %v3403, 2147483648
  %v3423 = vor.u32 1.1754944e-38, %v3422
  %v3424 = vsel %vm3421, %v3423, %v3419
  %v3425 = vmul.f32 1.0, %v3424
  %v3426 = vrcp.pop %v3404
  %v3427 = vmul.f32 %v3404, %v3426
  %v3428 = vsub.f32 1.0, %v3427
  %v3429 = vmul.f32 %v3426, %v3428
  %v3430 = vadd.f32 %v3426, %v3429
  %vm3431 = vweird.f32 %v3404
  %vm3432 = vweird.f32 %v3426
  %vm3433 = vmor %vm3431, %vm3432
  %v3434 = vsel %vm3433, %v3426, %v3430
  %v3435 = vand.u32 2147483647, %v3404
  %vm3436 = vcmp.eq.f32.partialorder %v3435, 8.507059e+37
  %v3437 = vand.u32 %v3404, 2147483648
  %v3438 = vor.u32 1.1754944e-38, %v3437
  %v3439 = vsel %vm3436, %v3438, %v3434
  %v3440 = vmul.f32 1.0, %v3439
  %v3441 = vrcp.pop %v3405
  %v3442 = vmul.f32 %v3405, %v3441
  %v3443 = vsub.f32 1.0, %v3442
  %v3444 = vmul.f32 %v3441, %v3443
  %v3445 = vadd.f32 %v3441, %v3444
  %vm3446 = vweird.f32 %v3405
  %vm3447 = vweird.f32 %v3441
  %vm3448 = vmor %vm3446, %vm3447
  %v3449 = vsel %vm3448, %v3441, %v3445
  %v3450 = vand.u32 2147483647, %v3405
  %vm3451 = vcmp.eq.f32.partialorder %v3450, 8.507059e+37
  %v3452 = vand.u32 %v3405, 2147483648
  %v3453 = vor.u32 1.1754944e-38, %v3452
  %v3454 = vsel %vm3451, %v3453, %v3449
  %v3455 = vmul.f32 1.0, %v3454
  %v3456 = vrcp.pop %v3406
  %v3457 = vmul.f32 %v3406, %v3456
  %v3458 = vsub.f32 1.0, %v3457
  %v3459 = vmul.f32 %v3456, %v3458
  %v3460 = vadd.f32 %v3456, %v3459
  %vm3461 = vweird.f32 %v3406
  %vm3462 = vweird.f32 %v3456
  %vm3463 = vmor %vm3461, %vm3462
  %v3464 = vsel %vm3463, %v3456, %v3460
  %v3465 = vand.u32 2147483647, %v3406
  %vm3466 = vcmp.eq.f32.partialorder %v3465, 8.507059e+37
  %v3467 = vand.u32 %v3406, 2147483648
  %v3468 = vor.u32 1.1754944e-38, %v3467
  %v3469 = vsel %vm3466, %v3468, %v3464
  %v3470 = vmul.f32 1.0, %v3469
  %v3471 = vrcp.pop %v3407
  %v3472 = vmul.f32 %v3407, %v3471
  %v3473 = vsub.f32 1.0, %v3472
  %v3474 = vmul.f32 %v3471, %v3473
  %v3475 = vadd.f32 %v3471, %v3474
  %vm3476 = vweird.f32 %v3407
  %vm3477 = vweird.f32 %v3471
  %vm3478 = vmor %vm3476, %vm3477
  %v3479 = vsel %vm3478, %v3471, %v3475
  %v3480 = vand.u32 2147483647, %v3407
  %vm3481 = vcmp.eq.f32.partialorder %v3480, 8.507059e+37
  %v3482 = vand.u32 %v3407, 2147483648
  %v3483 = vor.u32 1.1754944e-38, %v3482
  %v3484 = vsel %vm3481, %v3483, %v3479
  %v3485 = vmul.f32 1.0, %v3484
  %v3486 = vrcp.pop %v3408
  %v3487 = vmul.f32 %v3408, %v3486
  %v3488 = vsub.f32 1.0, %v3487
  %v3489 = vmul.f32 %v3486, %v3488
  %v3490 = vadd.f32 %v3486, %v3489
  %vm3491 = vweird.f32 %v3408
  %vm3492 = vweird.f32 %v3486
  %vm3493 = vmor %vm3491, %vm3492
  %v3494 = vsel %vm3493, %v3486, %v3490
  %v3495 = vand.u32 2147483647, %v3408
  %vm3496 = vcmp.eq.f32.partialorder %v3495, 8.507059e+37
  %v3497 = vand.u32 %v3408, 2147483648
  %v3498 = vor.u32 1.1754944e-38, %v3497
  %v3499 = vsel %vm3496, %v3498, %v3494
  %v3500 = vmul.f32 1.0, %v3499
  %v3501 = vrcp.pop %v3409
  %v3502 = vmul.f32 %v3409, %v3501
  %v3503 = vsub.f32 1.0, %v3502
  %v3504 = vmul.f32 %v3501, %v3503
  %v3505 = vadd.f32 %v3501, %v3504
  %vm3506 = vweird.f32 %v3409
  %vm3507 = vweird.f32 %v3501
  %vm3508 = vmor %vm3506, %vm3507
  %v3509 = vsel %vm3508, %v3501, %v3505
  %v3510 = vand.u32 2147483647, %v3409
  %vm3511 = vcmp.eq.f32.partialorder %v3510, 8.507059e+37
  %v3512 = vand.u32 %v3409, 2147483648
  %v3513 = vor.u32 1.1754944e-38, %v3512
  %v3514 = vsel %vm3511, %v3513, %v3509
  %v3515 = vmul.f32 1.0, %v3514
  %v3516 = vrcp.pop %v3410
  %v3517 = vmul.f32 %v3410, %v3516
  %v3518 = vsub.f32 1.0, %v3517
  %v3519 = vmul.f32 %v3516, %v3518
  %v3520 = vadd.f32 %v3516, %v3519
  %vm3521 = vweird.f32 %v3410
  %vm3522 = vweird.f32 %v3516
  %vm3523 = vmor %vm3521, %vm3522
  %v3524 = vsel %vm3523, %v3516, %v3520
  %v3525 = vand.u32 2147483647, %v3410
  %vm3526 = vcmp.eq.f32.partialorder %v3525, 8.507059e+37
  %v3527 = vand.u32 %v3410, 2147483648
  %v3528 = vor.u32 1.1754944e-38, %v3527
  %v3529 = vsel %vm3526, %v3528, %v3524
  %v3530 = vmul.f32 1.0, %v3529
  %v3531 = vadd.f32 %v3360, %v1379
  %v3532 = vadd.f32 %v3363, %v1384
  %v3533 = vadd.f32 %v3366, %v1389
  %v3534 = vadd.f32 %v3369, %v1394
  %v3535 = vmul.f32 %v3425, %v3531
  %v3536 = vmul.f32 %v3440, %v3532
  %v3537 = vmul.f32 %v3455, %v3533
  %v3538 = vmul.f32 %v3470, %v3534
  %v3539 = vadd.f32 %v3314, %v3535
  %v3540 = vadd.f32 %v3315, %v3536
  %v3541 = vadd.f32 %v3316, %v3537
  %v3542 = vadd.f32 %v3317, %v3538
  %v3543 = vtanh.pop %v3539
  %v3544 = vtanh.pop %v3540
  %v3545 = vtanh.pop %v3541
  %v3546 = vtanh.pop %v3542
  %v3547 = vsub.f32 1.0, %v3485
  %v3548 = vsub.f32 1.0, %v3500
  %v3549 = vsub.f32 1.0, %v3515
  %v3550 = vsub.f32 1.0, %v3530
  %v3551 = vmul.f32 %v3547, %v3543
  %v3552 = vmul.f32 %v3548, %v3544
  %v3553 = vmul.f32 %v3549, %v3545
  %v3554 = vmul.f32 %v3550, %v3546
  %v3555 = vmul.f32 %v3485, %v3035
  %v3556 = vmul.f32 %v3500, %v3036
  %v3557 = vmul.f32 %v3515, %v3037
  %v3558 = vmul.f32 %v3530, %v3038
  %v3559 = vadd.f32 %v3551, %v3555
  %v3560 = vadd.f32 %v3552, %v3556
  %v3561 = vadd.f32 %v3553, %v3557
  %v3562 = vadd.f32 %v3554, %v3558
  %s3563 = scalar_lea.vmem [#allocation3], 192
  %3564 = vst [vmem:[%s3563] sm:$0xff] %v3302
  %3565 = vst [vmem:[%s3563 + $0x8] sm:$0xff] %v3303
  %3566 = vst [vmem:[%s3563 + $0x10] sm:$0xff] %v3304
  %3567 = vst [vmem:[%s3563 + $0x18] sm:$0xff] %v3305
  %s3568 = scalar_lea.vmem [#allocation3], 256
  %3569 = vst [vmem:[%s3568 + $0x20] sm:$0xff] %v3559
  %3570 = vst [vmem:[%s3568 + $0x28] sm:$0xff] %v3560
  %3571 = vst [vmem:[%s3568 + $0x30] sm:$0xff] %v3561
  %3572 = vst [vmem:[%s3568 + $0x38] sm:$0xff] %v3562
  %v3573 = vld [vmem:[%s916] sm:$0xff]
  %v3574 = vld [vmem:[%s916 + $0x8] sm:$0xff]
  %v3575 = vld [vmem:[%s916 + $0x10] sm:$0xff]
  %v3576 = vld [vmem:[%s916 + $0x18] sm:$0xff]
  %v3577 = vld [vmem:[%s916 + $0x20] sm:$0xff]
  %v3578 = vld [vmem:[%s916 + $0x28] sm:$0xff]
  %v3579 = vld [vmem:[%s916 + $0x30] sm:$0xff]
  %v3580 = vld [vmem:[%s916 + $0x38] sm:$0xff]
  %v3581 = vld [vmem:[%s916 + $0x40] sm:$0xff]
  %v3582 = vld [vmem:[%s916 + $0x48] sm:$0xff]
  %v3583 = vld [vmem:[%s916 + $0x50] sm:$0xff]
  %v3584 = vld [vmem:[%s916 + $0x58] sm:$0xff]
  %3585 = vmatpush.msra.mxu0 0.0
  %3586 = vmatpush.msra.mxu0 0.0
  %3587 = vmatpush.msra.mxu0 0.0
  %3588 = vmatpush.msra.mxu0 0.0
  %3589 = vmatpush.msra.mxu0 0.0
  %3590 = vmatpush.msra.mxu0 0.0
  %3591 = vmatpush.msra.mxu0 0.0
  %3592 = vmatpush.msra.mxu0 0.0
  %3593 = vmatpush.msra.mxu0 0.0
  %3594 = vmatpush.msra.mxu0 0.0
  %3595 = vmatpush.msra.mxu0 0.0
  %3596 = vmatpush.msra.mxu0 0.0
  %3597 = vmatpush.msra.mxu0 %v3305
  %3598 = vmatpush.msra.mxu0 %v3304
  %3599 = vmatpush.msra.mxu0 %v3303
  %3600 = vmatpush.msra.mxu0 %v3302
  %3601 = vmatmul.f32.gmra.mxu0 %v1419
  %v3602 = vpop.f32.mrf.mxu0
  %v3603 = vadd.f32 0.0, %v3602
  %3604 = vmatmul.f32.gmra.mxu0 %v1422
  %v3605 = vpop.f32.mrf.mxu0
  %v3606 = vadd.f32 0.0, %v3605
  %3607 = vmatmul.f32.gmra.mxu0 %v1425
  %v3608 = vpop.f32.mrf.mxu0
  %v3609 = vadd.f32 0.0, %v3608
  %3610 = vmatmul.f32.gmra.mxu0 %v1428
  %v3611 = vpop.f32.mrf.mxu0
  %v3612 = vadd.f32 0.0, %v3611
  %3613 = vmatmul.f32.gmra.mxu0 %v1431
  %v3614 = vpop.f32.mrf.mxu0
  %v3615 = vadd.f32 0.0, %v3614
  %3616 = vmatmul.f32.gmra.mxu0 %v1434
  %v3617 = vpop.f32.mrf.mxu0
  %v3618 = vadd.f32 0.0, %v3617
  %3619 = vmatmul.f32.gmra.mxu0 %v1437
  %v3620 = vpop.f32.mrf.mxu0
  %v3621 = vadd.f32 0.0, %v3620
  %3622 = vmatmul.f32.gmra.mxu0 %v1440
  %v3623 = vpop.f32.mrf.mxu0
  %v3624 = vadd.f32 0.0, %v3623
  %3625 = vmatmul.f32.gmra.mxu0 %v1443
  %v3626 = vpop.f32.mrf.mxu0
  %v3627 = vadd.f32 0.0, %v3626
  %3628 = vmatmul.f32.gmra.mxu0 %v1446
  %v3629 = vpop.f32.mrf.mxu0
  %v3630 = vadd.f32 0.0, %v3629
  %3631 = vmatmul.f32.gmra.mxu0 %v1449
  %v3632 = vpop.f32.mrf.mxu0
  %v3633 = vadd.f32 0.0, %v3632
  %3634 = vmatmul.f32.gmra.mxu0 %v1452
  %v3635 = vpop.f32.mrf.mxu0
  %v3636 = vadd.f32 0.0, %v3635
  %3637 = vdwg.mxu0
  %v3638 = vadd.f32 %v3573, %v3603
  %v3639 = vadd.f32 %v3574, %v3606
  %v3640 = vadd.f32 %v3575, %v3609
  %v3641 = vadd.f32 %v3576, %v3612
  %v3642 = vadd.f32 %v3577, %v3615
  %v3643 = vadd.f32 %v3578, %v3618
  %v3644 = vadd.f32 %v3579, %v3621
  %v3645 = vadd.f32 %v3580, %v3624
  %v3646 = vxor.u32 %v3638, 2147483648
  %v3647 = vxor.u32 %v3639, 2147483648
  %v3648 = vxor.u32 %v3640, 2147483648
  %v3649 = vxor.u32 %v3641, 2147483648
  %v3650 = vxor.u32 %v3642, 2147483648
  %v3651 = vxor.u32 %v3643, 2147483648
  %v3652 = vxor.u32 %v3644, 2147483648
  %v3653 = vxor.u32 %v3645, 2147483648
  %v3654 = vmul.f32 %v3646, 1.442695
  %v3655 = vpow.pop %v3654
  %v3656 = vmul.f32 %v3647, 1.442695
  %v3657 = vpow.pop %v3656
  %v3658 = vmul.f32 %v3648, 1.442695
  %v3659 = vpow.pop %v3658
  %v3660 = vmul.f32 %v3649, 1.442695
  %v3661 = vpow.pop %v3660
  %v3662 = vmul.f32 %v3650, 1.442695
  %v3663 = vpow.pop %v3662
  %v3664 = vmul.f32 %v3651, 1.442695
  %v3665 = vpow.pop %v3664
  %v3666 = vmul.f32 %v3652, 1.442695
  %v3667 = vpow.pop %v3666
  %v3668 = vmul.f32 %v3653, 1.442695
  %v3669 = vpow.pop %v3668
  %v3670 = vadd.f32 %v3655, 1.0
  %v3671 = vadd.f32 %v3657, 1.0
  %v3672 = vadd.f32 %v3659, 1.0
  %v3673 = vadd.f32 %v3661, 1.0
  %v3674 = vadd.f32 %v3663, 1.0
  %v3675 = vadd.f32 %v3665, 1.0
  %v3676 = vadd.f32 %v3667, 1.0
  %v3677 = vadd.f32 %v3669, 1.0
  %v3678 = vrcp.pop %v3670
  %v3679 = vmul.f32 %v3670, %v3678
  %v3680 = vsub.f32 1.0, %v3679
  %v3681 = vmul.f32 %v3678, %v3680
  %v3682 = vadd.f32 %v3678, %v3681
  %vm3683 = vweird.f32 %v3670
  %vm3684 = vweird.f32 %v3678
  %vm3685 = vmor %vm3683, %vm3684
  %v3686 = vsel %vm3685, %v3678, %v3682
  %v3687 = vand.u32 2147483647, %v3670
  %vm3688 = vcmp.eq.f32.partialorder %v3687, 8.507059e+37
  %v3689 = vand.u32 %v3670, 2147483648
  %v3690 = vor.u32 1.1754944e-38, %v3689
  %v3691 = vsel %vm3688, %v3690, %v3686
  %v3692 = vmul.f32 1.0, %v3691
  %v3693 = vrcp.pop %v3671
  %v3694 = vmul.f32 %v3671, %v3693
  %v3695 = vsub.f32 1.0, %v3694
  %v3696 = vmul.f32 %v3693, %v3695
  %v3697 = vadd.f32 %v3693, %v3696
  %vm3698 = vweird.f32 %v3671
  %vm3699 = vweird.f32 %v3693
  %vm3700 = vmor %vm3698, %vm3699
  %v3701 = vsel %vm3700, %v3693, %v3697
  %v3702 = vand.u32 2147483647, %v3671
  %vm3703 = vcmp.eq.f32.partialorder %v3702, 8.507059e+37
  %v3704 = vand.u32 %v3671, 2147483648
  %v3705 = vor.u32 1.1754944e-38, %v3704
  %v3706 = vsel %vm3703, %v3705, %v3701
  %v3707 = vmul.f32 1.0, %v3706
  %v3708 = vrcp.pop %v3672
  %v3709 = vmul.f32 %v3672, %v3708
  %v3710 = vsub.f32 1.0, %v3709
  %v3711 = vmul.f32 %v3708, %v3710
  %v3712 = vadd.f32 %v3708, %v3711
  %vm3713 = vweird.f32 %v3672
  %vm3714 = vweird.f32 %v3708
  %vm3715 = vmor %vm3713, %vm3714
  %v3716 = vsel %vm3715, %v3708, %v3712
  %v3717 = vand.u32 2147483647, %v3672
  %vm3718 = vcmp.eq.f32.partialorder %v3717, 8.507059e+37
  %v3719 = vand.u32 %v3672, 2147483648
  %v3720 = vor.u32 1.1754944e-38, %v3719
  %v3721 = vsel %vm3718, %v3720, %v3716
  %v3722 = vmul.f32 1.0, %v3721
  %v3723 = vrcp.pop %v3673
  %v3724 = vmul.f32 %v3673, %v3723
  %v3725 = vsub.f32 1.0, %v3724
  %v3726 = vmul.f32 %v3723, %v3725
  %v3727 = vadd.f32 %v3723, %v3726
  %vm3728 = vweird.f32 %v3673
  %vm3729 = vweird.f32 %v3723
  %vm3730 = vmor %vm3728, %vm3729
  %v3731 = vsel %vm3730, %v3723, %v3727
  %v3732 = vand.u32 2147483647, %v3673
  %vm3733 = vcmp.eq.f32.partialorder %v3732, 8.507059e+37
  %v3734 = vand.u32 %v3673, 2147483648
  %v3735 = vor.u32 1.1754944e-38, %v3734
  %v3736 = vsel %vm3733, %v3735, %v3731
  %v3737 = vmul.f32 1.0, %v3736
  %v3738 = vrcp.pop %v3674
  %v3739 = vmul.f32 %v3674, %v3738
  %v3740 = vsub.f32 1.0, %v3739
  %v3741 = vmul.f32 %v3738, %v3740
  %v3742 = vadd.f32 %v3738, %v3741
  %vm3743 = vweird.f32 %v3674
  %vm3744 = vweird.f32 %v3738
  %vm3745 = vmor %vm3743, %vm3744
  %v3746 = vsel %vm3745, %v3738, %v3742
  %v3747 = vand.u32 2147483647, %v3674
  %vm3748 = vcmp.eq.f32.partialorder %v3747, 8.507059e+37
  %v3749 = vand.u32 %v3674, 2147483648
  %v3750 = vor.u32 1.1754944e-38, %v3749
  %v3751 = vsel %vm3748, %v3750, %v3746
  %v3752 = vmul.f32 1.0, %v3751
  %v3753 = vrcp.pop %v3675
  %v3754 = vmul.f32 %v3675, %v3753
  %v3755 = vsub.f32 1.0, %v3754
  %v3756 = vmul.f32 %v3753, %v3755
  %v3757 = vadd.f32 %v3753, %v3756
  %vm3758 = vweird.f32 %v3675
  %vm3759 = vweird.f32 %v3753
  %vm3760 = vmor %vm3758, %vm3759
  %v3761 = vsel %vm3760, %v3753, %v3757
  %v3762 = vand.u32 2147483647, %v3675
  %vm3763 = vcmp.eq.f32.partialorder %v3762, 8.507059e+37
  %v3764 = vand.u32 %v3675, 2147483648
  %v3765 = vor.u32 1.1754944e-38, %v3764
  %v3766 = vsel %vm3763, %v3765, %v3761
  %v3767 = vmul.f32 1.0, %v3766
  %v3768 = vrcp.pop %v3676
  %v3769 = vmul.f32 %v3676, %v3768
  %v3770 = vsub.f32 1.0, %v3769
  %v3771 = vmul.f32 %v3768, %v3770
  %v3772 = vadd.f32 %v3768, %v3771
  %vm3773 = vweird.f32 %v3676
  %vm3774 = vweird.f32 %v3768
  %vm3775 = vmor %vm3773, %vm3774
  %v3776 = vsel %vm3775, %v3768, %v3772
  %v3777 = vand.u32 2147483647, %v3676
  %vm3778 = vcmp.eq.f32.partialorder %v3777, 8.507059e+37
  %v3779 = vand.u32 %v3676, 2147483648
  %v3780 = vor.u32 1.1754944e-38, %v3779
  %v3781 = vsel %vm3778, %v3780, %v3776
  %v3782 = vmul.f32 1.0, %v3781
  %v3783 = vrcp.pop %v3677
  %v3784 = vmul.f32 %v3677, %v3783
  %v3785 = vsub.f32 1.0, %v3784
  %v3786 = vmul.f32 %v3783, %v3785
  %v3787 = vadd.f32 %v3783, %v3786
  %vm3788 = vweird.f32 %v3677
  %vm3789 = vweird.f32 %v3783
  %vm3790 = vmor %vm3788, %vm3789
  %v3791 = vsel %vm3790, %v3783, %v3787
  %v3792 = vand.u32 2147483647, %v3677
  %vm3793 = vcmp.eq.f32.partialorder %v3792, 8.507059e+37
  %v3794 = vand.u32 %v3677, 2147483648
  %v3795 = vor.u32 1.1754944e-38, %v3794
  %v3796 = vsel %vm3793, %v3795, %v3791
  %v3797 = vmul.f32 1.0, %v3796
  %v3798 = vadd.f32 %v3627, %v1354
  %v3799 = vadd.f32 %v3630, %v1359
  %v3800 = vadd.f32 %v3633, %v1364
  %v3801 = vadd.f32 %v3636, %v1369
  %v3802 = vmul.f32 %v3692, %v3798
  %v3803 = vmul.f32 %v3707, %v3799
  %v3804 = vmul.f32 %v3722, %v3800
  %v3805 = vmul.f32 %v3737, %v3801
  %v3806 = vadd.f32 %v3581, %v3802
  %v3807 = vadd.f32 %v3582, %v3803
  %v3808 = vadd.f32 %v3583, %v3804
  %v3809 = vadd.f32 %v3584, %v3805
  %v3810 = vtanh.pop %v3806
  %v3811 = vtanh.pop %v3807
  %v3812 = vtanh.pop %v3808
  %v3813 = vtanh.pop %v3809
  %v3814 = vsub.f32 1.0, %v3752
  %v3815 = vsub.f32 1.0, %v3767
  %v3816 = vsub.f32 1.0, %v3782
  %v3817 = vsub.f32 1.0, %v3797
  %v3818 = vmul.f32 %v3814, %v3810
  %v3819 = vmul.f32 %v3815, %v3811
  %v3820 = vmul.f32 %v3816, %v3812
  %v3821 = vmul.f32 %v3817, %v3813
  %v3822 = vmul.f32 %v3752, %v3302
  %v3823 = vmul.f32 %v3767, %v3303
  %v3824 = vmul.f32 %v3782, %v3304
  %v3825 = vmul.f32 %v3797, %v3305
  %v3826 = vadd.f32 %v3818, %v3822
  %v3827 = vadd.f32 %v3819, %v3823
  %v3828 = vadd.f32 %v3820, %v3824
  %v3829 = vadd.f32 %v3821, %v3825
  %v3830 = vld [vmem:[%s789 + $0x60] sm:$0xff]
  %v3831 = vld [vmem:[%s789 + $0x68] sm:$0xff]
  %v3832 = vld [vmem:[%s789 + $0x70] sm:$0xff]
  %v3833 = vld [vmem:[%s789 + $0x78] sm:$0xff]
  %v3834 = vld [vmem:[%s789 + $0x80] sm:$0xff]
  %v3835 = vld [vmem:[%s789 + $0x88] sm:$0xff]
  %v3836 = vld [vmem:[%s789 + $0x90] sm:$0xff]
  %v3837 = vld [vmem:[%s789 + $0x98] sm:$0xff]
  %v3838 = vld [vmem:[%s789 + $0xa0] sm:$0xff]
  %v3839 = vld [vmem:[%s789 + $0xa8] sm:$0xff]
  %v3840 = vld [vmem:[%s789 + $0xb0] sm:$0xff]
  %v3841 = vld [vmem:[%s789 + $0xb8] sm:$0xff]
  %3842 = vmatpush.msra.mxu0 0.0
  %3843 = vmatpush.msra.mxu0 0.0
  %3844 = vmatpush.msra.mxu0 0.0
  %3845 = vmatpush.msra.mxu0 0.0
  %3846 = vmatpush.msra.mxu0 0.0
  %3847 = vmatpush.msra.mxu0 0.0
  %3848 = vmatpush.msra.mxu0 0.0
  %3849 = vmatpush.msra.mxu0 0.0
  %3850 = vmatpush.msra.mxu0 0.0
  %3851 = vmatpush.msra.mxu0 0.0
  %3852 = vmatpush.msra.mxu0 0.0
  %3853 = vmatpush.msra.mxu0 0.0
  %3854 = vmatpush.msra.mxu0 %v3562
  %3855 = vmatpush.msra.mxu0 %v3561
  %3856 = vmatpush.msra.mxu0 %v3560
  %3857 = vmatpush.msra.mxu0 %v3559
  %3858 = vmatmul.f32.gmra.mxu0 %v1712
  %v3859 = vpop.f32.mrf.mxu0
  %v3860 = vadd.f32 0.0, %v3859
  %3861 = vmatmul.f32.gmra.mxu0 %v1715
  %v3862 = vpop.f32.mrf.mxu0
  %v3863 = vadd.f32 0.0, %v3862
  %3864 = vmatmul.f32.gmra.mxu0 %v1718
  %v3865 = vpop.f32.mrf.mxu0
  %v3866 = vadd.f32 0.0, %v3865
  %3867 = vmatmul.f32.gmra.mxu0 %v1721
  %v3868 = vpop.f32.mrf.mxu0
  %v3869 = vadd.f32 0.0, %v3868
  %3870 = vmatmul.f32.gmra.mxu0 %v1724
  %v3871 = vpop.f32.mrf.mxu0
  %v3872 = vadd.f32 0.0, %v3871
  %3873 = vmatmul.f32.gmra.mxu0 %v1727
  %v3874 = vpop.f32.mrf.mxu0
  %v3875 = vadd.f32 0.0, %v3874
  %3876 = vmatmul.f32.gmra.mxu0 %v1730
  %v3877 = vpop.f32.mrf.mxu0
  %v3878 = vadd.f32 0.0, %v3877
  %3879 = vmatmul.f32.gmra.mxu0 %v1733
  %v3880 = vpop.f32.mrf.mxu0
  %v3881 = vadd.f32 0.0, %v3880
  %3882 = vmatmul.f32.gmra.mxu0 %v1736
  %v3883 = vpop.f32.mrf.mxu0
  %v3884 = vadd.f32 0.0, %v3883
  %3885 = vmatmul.f32.gmra.mxu0 %v1739
  %v3886 = vpop.f32.mrf.mxu0
  %v3887 = vadd.f32 0.0, %v3886
  %3888 = vmatmul.f32.gmra.mxu0 %v1742
  %v3889 = vpop.f32.mrf.mxu0
  %v3890 = vadd.f32 0.0, %v3889
  %3891 = vmatmul.f32.gmra.mxu0 %v1745
  %v3892 = vpop.f32.mrf.mxu0
  %v3893 = vadd.f32 0.0, %v3892
  %3894 = vdwg.mxu0
  %v3895 = vadd.f32 %v3830, %v3860
  %v3896 = vadd.f32 %v3831, %v3863
  %v3897 = vadd.f32 %v3832, %v3866
  %v3898 = vadd.f32 %v3833, %v3869
  %v3899 = vadd.f32 %v3834, %v3872
  %v3900 = vadd.f32 %v3835, %v3875
  %v3901 = vadd.f32 %v3836, %v3878
  %v3902 = vadd.f32 %v3837, %v3881
  %v3903 = vxor.u32 %v3895, 2147483648
  %v3904 = vxor.u32 %v3896, 2147483648
  %v3905 = vxor.u32 %v3897, 2147483648
  %v3906 = vxor.u32 %v3898, 2147483648
  %v3907 = vxor.u32 %v3899, 2147483648
  %v3908 = vxor.u32 %v3900, 2147483648
  %v3909 = vxor.u32 %v3901, 2147483648
  %v3910 = vxor.u32 %v3902, 2147483648
  %v3911 = vmul.f32 %v3903, 1.442695
  %v3912 = vpow.pop %v3911
  %v3913 = vmul.f32 %v3904, 1.442695
  %v3914 = vpow.pop %v3913
  %v3915 = vmul.f32 %v3905, 1.442695
  %v3916 = vpow.pop %v3915
  %v3917 = vmul.f32 %v3906, 1.442695
  %v3918 = vpow.pop %v3917
  %v3919 = vmul.f32 %v3907, 1.442695
  %v3920 = vpow.pop %v3919
  %v3921 = vmul.f32 %v3908, 1.442695
  %v3922 = vpow.pop %v3921
  %v3923 = vmul.f32 %v3909, 1.442695
  %v3924 = vpow.pop %v3923
  %v3925 = vmul.f32 %v3910, 1.442695
  %v3926 = vpow.pop %v3925
  %v3927 = vadd.f32 %v3912, 1.0
  %v3928 = vadd.f32 %v3914, 1.0
  %v3929 = vadd.f32 %v3916, 1.0
  %v3930 = vadd.f32 %v3918, 1.0
  %v3931 = vadd.f32 %v3920, 1.0
  %v3932 = vadd.f32 %v3922, 1.0
  %v3933 = vadd.f32 %v3924, 1.0
  %v3934 = vadd.f32 %v3926, 1.0
  %v3935 = vrcp.pop %v3927
  %v3936 = vmul.f32 %v3927, %v3935
  %v3937 = vsub.f32 1.0, %v3936
  %v3938 = vmul.f32 %v3935, %v3937
  %v3939 = vadd.f32 %v3935, %v3938
  %vm3940 = vweird.f32 %v3927
  %vm3941 = vweird.f32 %v3935
  %vm3942 = vmor %vm3940, %vm3941
  %v3943 = vsel %vm3942, %v3935, %v3939
  %v3944 = vand.u32 2147483647, %v3927
  %vm3945 = vcmp.eq.f32.partialorder %v3944, 8.507059e+37
  %v3946 = vand.u32 %v3927, 2147483648
  %v3947 = vor.u32 1.1754944e-38, %v3946
  %v3948 = vsel %vm3945, %v3947, %v3943
  %v3949 = vmul.f32 1.0, %v3948
  %v3950 = vrcp.pop %v3928
  %v3951 = vmul.f32 %v3928, %v3950
  %v3952 = vsub.f32 1.0, %v3951
  %v3953 = vmul.f32 %v3950, %v3952
  %v3954 = vadd.f32 %v3950, %v3953
  %vm3955 = vweird.f32 %v3928
  %vm3956 = vweird.f32 %v3950
  %vm3957 = vmor %vm3955, %vm3956
  %v3958 = vsel %vm3957, %v3950, %v3954
  %v3959 = vand.u32 2147483647, %v3928
  %vm3960 = vcmp.eq.f32.partialorder %v3959, 8.507059e+37
  %v3961 = vand.u32 %v3928, 2147483648
  %v3962 = vor.u32 1.1754944e-38, %v3961
  %v3963 = vsel %vm3960, %v3962, %v3958
  %v3964 = vmul.f32 1.0, %v3963
  %v3965 = vrcp.pop %v3929
  %v3966 = vmul.f32 %v3929, %v3965
  %v3967 = vsub.f32 1.0, %v3966
  %v3968 = vmul.f32 %v3965, %v3967
  %v3969 = vadd.f32 %v3965, %v3968
  %vm3970 = vweird.f32 %v3929
  %vm3971 = vweird.f32 %v3965
  %vm3972 = vmor %vm3970, %vm3971
  %v3973 = vsel %vm3972, %v3965, %v3969
  %v3974 = vand.u32 2147483647, %v3929
  %vm3975 = vcmp.eq.f32.partialorder %v3974, 8.507059e+37
  %v3976 = vand.u32 %v3929, 2147483648
  %v3977 = vor.u32 1.1754944e-38, %v3976
  %v3978 = vsel %vm3975, %v3977, %v3973
  %v3979 = vmul.f32 1.0, %v3978
  %v3980 = vrcp.pop %v3930
  %v3981 = vmul.f32 %v3930, %v3980
  %v3982 = vsub.f32 1.0, %v3981
  %v3983 = vmul.f32 %v3980, %v3982
  %v3984 = vadd.f32 %v3980, %v3983
  %vm3985 = vweird.f32 %v3930
  %vm3986 = vweird.f32 %v3980
  %vm3987 = vmor %vm3985, %vm3986
  %v3988 = vsel %vm3987, %v3980, %v3984
  %v3989 = vand.u32 2147483647, %v3930
  %vm3990 = vcmp.eq.f32.partialorder %v3989, 8.507059e+37
  %v3991 = vand.u32 %v3930, 2147483648
  %v3992 = vor.u32 1.1754944e-38, %v3991
  %v3993 = vsel %vm3990, %v3992, %v3988
  %v3994 = vmul.f32 1.0, %v3993
  %v3995 = vrcp.pop %v3931
  %v3996 = vmul.f32 %v3931, %v3995
  %v3997 = vsub.f32 1.0, %v3996
  %v3998 = vmul.f32 %v3995, %v3997
  %v3999 = vadd.f32 %v3995, %v3998
  %vm4000 = vweird.f32 %v3931
  %vm4001 = vweird.f32 %v3995
  %vm4002 = vmor %vm4000, %vm4001
  %v4003 = vsel %vm4002, %v3995, %v3999
  %v4004 = vand.u32 2147483647, %v3931
  %vm4005 = vcmp.eq.f32.partialorder %v4004, 8.507059e+37
  %v4006 = vand.u32 %v3931, 2147483648
  %v4007 = vor.u32 1.1754944e-38, %v4006
  %v4008 = vsel %vm4005, %v4007, %v4003
  %v4009 = vmul.f32 1.0, %v4008
  %v4010 = vrcp.pop %v3932
  %v4011 = vmul.f32 %v3932, %v4010
  %v4012 = vsub.f32 1.0, %v4011
  %v4013 = vmul.f32 %v4010, %v4012
  %v4014 = vadd.f32 %v4010, %v4013
  %vm4015 = vweird.f32 %v3932
  %vm4016 = vweird.f32 %v4010
  %vm4017 = vmor %vm4015, %vm4016
  %v4018 = vsel %vm4017, %v4010, %v4014
  %v4019 = vand.u32 2147483647, %v3932
  %vm4020 = vcmp.eq.f32.partialorder %v4019, 8.507059e+37
  %v4021 = vand.u32 %v3932, 2147483648
  %v4022 = vor.u32 1.1754944e-38, %v4021
  %v4023 = vsel %vm4020, %v4022, %v4018
  %v4024 = vmul.f32 1.0, %v4023
  %v4025 = vrcp.pop %v3933
  %v4026 = vmul.f32 %v3933, %v4025
  %v4027 = vsub.f32 1.0, %v4026
  %v4028 = vmul.f32 %v4025, %v4027
  %v4029 = vadd.f32 %v4025, %v4028
  %vm4030 = vweird.f32 %v3933
  %vm4031 = vweird.f32 %v4025
  %vm4032 = vmor %vm4030, %vm4031
  %v4033 = vsel %vm4032, %v4025, %v4029
  %v4034 = vand.u32 2147483647, %v3933
  %vm4035 = vcmp.eq.f32.partialorder %v4034, 8.507059e+37
  %v4036 = vand.u32 %v3933, 2147483648
  %v4037 = vor.u32 1.1754944e-38, %v4036
  %v4038 = vsel %vm4035, %v4037, %v4033
  %v4039 = vmul.f32 1.0, %v4038
  %v4040 = vrcp.pop %v3934
  %v4041 = vmul.f32 %v3934, %v4040
  %v4042 = vsub.f32 1.0, %v4041
  %v4043 = vmul.f32 %v4040, %v4042
  %v4044 = vadd.f32 %v4040, %v4043
  %vm4045 = vweird.f32 %v3934
  %vm4046 = vweird.f32 %v4040
  %vm4047 = vmor %vm4045, %vm4046
  %v4048 = vsel %vm4047, %v4040, %v4044
  %v4049 = vand.u32 2147483647, %v3934
  %vm4050 = vcmp.eq.f32.partialorder %v4049, 8.507059e+37
  %v4051 = vand.u32 %v3934, 2147483648
  %v4052 = vor.u32 1.1754944e-38, %v4051
  %v4053 = vsel %vm4050, %v4052, %v4048
  %v4054 = vmul.f32 1.0, %v4053
  %v4055 = vadd.f32 %v3884, %v1379
  %v4056 = vadd.f32 %v3887, %v1384
  %v4057 = vadd.f32 %v3890, %v1389
  %v4058 = vadd.f32 %v3893, %v1394
  %v4059 = vmul.f32 %v3949, %v4055
  %v4060 = vmul.f32 %v3964, %v4056
  %v4061 = vmul.f32 %v3979, %v4057
  %v4062 = vmul.f32 %v3994, %v4058
  %v4063 = vadd.f32 %v3838, %v4059
  %v4064 = vadd.f32 %v3839, %v4060
  %v4065 = vadd.f32 %v3840, %v4061
  %v4066 = vadd.f32 %v3841, %v4062
  %v4067 = vtanh.pop %v4063
  %v4068 = vtanh.pop %v4064
  %v4069 = vtanh.pop %v4065
  %v4070 = vtanh.pop %v4066
  %v4071 = vsub.f32 1.0, %v4009
  %v4072 = vsub.f32 1.0, %v4024
  %v4073 = vsub.f32 1.0, %v4039
  %v4074 = vsub.f32 1.0, %v4054
  %v4075 = vmul.f32 %v4071, %v4067
  %v4076 = vmul.f32 %v4072, %v4068
  %v4077 = vmul.f32 %v4073, %v4069
  %v4078 = vmul.f32 %v4074, %v4070
  %v4079 = vmul.f32 %v4009, %v3559
  %v4080 = vmul.f32 %v4024, %v3560
  %v4081 = vmul.f32 %v4039, %v3561
  %v4082 = vmul.f32 %v4054, %v3562
  %v4083 = vadd.f32 %v4075, %v4079
  %v4084 = vadd.f32 %v4076, %v4080
  %v4085 = vadd.f32 %v4077, %v4081
  %v4086 = vadd.f32 %v4078, %v4082
  %4087 = vst [vmem:[%s3568] sm:$0xff] %v3826
  %4088 = vst [vmem:[%s3568 + $0x8] sm:$0xff] %v3827
  %4089 = vst [vmem:[%s3568 + $0x10] sm:$0xff] %v3828
  %4090 = vst [vmem:[%s3568 + $0x18] sm:$0xff] %v3829
  %4091 = vst [vmem:[%s3563 + $0x20] sm:$0xff] %v4083
  %4092 = vst [vmem:[%s3563 + $0x28] sm:$0xff] %v4084
  %4093 = vst [vmem:[%s3563 + $0x30] sm:$0xff] %v4085
  %4094 = vst [vmem:[%s3563 + $0x38] sm:$0xff] %v4086
  %v4095 = vld [vmem:[%s1043] sm:$0xff]
  %v4096 = vld [vmem:[%s1043 + $0x8] sm:$0xff]
  %v4097 = vld [vmem:[%s1043 + $0x10] sm:$0xff]
  %v4098 = vld [vmem:[%s1043 + $0x18] sm:$0xff]
  %v4099 = vld [vmem:[%s1043 + $0x20] sm:$0xff]
  %v4100 = vld [vmem:[%s1043 + $0x28] sm:$0xff]
  %v4101 = vld [vmem:[%s1043 + $0x30] sm:$0xff]
  %v4102 = vld [vmem:[%s1043 + $0x38] sm:$0xff]
  %v4103 = vld [vmem:[%s1043 + $0x40] sm:$0xff]
  %v4104 = vld [vmem:[%s1043 + $0x48] sm:$0xff]
  %v4105 = vld [vmem:[%s1043 + $0x50] sm:$0xff]
  %v4106 = vld [vmem:[%s1043 + $0x58] sm:$0xff]
  %4107 = vmatpush.msra.mxu0 0.0
  %4108 = vmatpush.msra.mxu0 0.0
  %4109 = vmatpush.msra.mxu0 0.0
  %4110 = vmatpush.msra.mxu0 0.0
  %4111 = vmatpush.msra.mxu0 0.0
  %4112 = vmatpush.msra.mxu0 0.0
  %4113 = vmatpush.msra.mxu0 0.0
  %4114 = vmatpush.msra.mxu0 0.0
  %4115 = vmatpush.msra.mxu0 0.0
  %4116 = vmatpush.msra.mxu0 0.0
  %4117 = vmatpush.msra.mxu0 0.0
  %4118 = vmatpush.msra.mxu0 0.0
  %4119 = vmatpush.msra.mxu0 %v3829
  %4120 = vmatpush.msra.mxu0 %v3828
  %4121 = vmatpush.msra.mxu0 %v3827
  %4122 = vmatpush.msra.mxu0 %v3826
  %4123 = vmatmul.f32.gmra.mxu0 %v1419
  %v4124 = vpop.f32.mrf.mxu0
  %v4125 = vadd.f32 0.0, %v4124
  %4126 = vmatmul.f32.gmra.mxu0 %v1422
  %v4127 = vpop.f32.mrf.mxu0
  %v4128 = vadd.f32 0.0, %v4127
  %4129 = vmatmul.f32.gmra.mxu0 %v1425
  %v4130 = vpop.f32.mrf.mxu0
  %v4131 = vadd.f32 0.0, %v4130
  %4132 = vmatmul.f32.gmra.mxu0 %v1428
  %v4133 = vpop.f32.mrf.mxu0
  %v4134 = vadd.f32 0.0, %v4133
  %4135 = vmatmul.f32.gmra.mxu0 %v1431
  %v4136 = vpop.f32.mrf.mxu0
  %v4137 = vadd.f32 0.0, %v4136
  %4138 = vmatmul.f32.gmra.mxu0 %v1434
  %v4139 = vpop.f32.mrf.mxu0
  %v4140 = vadd.f32 0.0, %v4139
  %4141 = vmatmul.f32.gmra.mxu0 %v1437
  %v4142 = vpop.f32.mrf.mxu0
  %v4143 = vadd.f32 0.0, %v4142
  %4144 = vmatmul.f32.gmra.mxu0 %v1440
  %v4145 = vpop.f32.mrf.mxu0
  %v4146 = vadd.f32 0.0, %v4145
  %4147 = vmatmul.f32.gmra.mxu0 %v1443
  %v4148 = vpop.f32.mrf.mxu0
  %v4149 = vadd.f32 0.0, %v4148
  %4150 = vmatmul.f32.gmra.mxu0 %v1446
  %v4151 = vpop.f32.mrf.mxu0
  %v4152 = vadd.f32 0.0, %v4151
  %4153 = vmatmul.f32.gmra.mxu0 %v1449
  %v4154 = vpop.f32.mrf.mxu0
  %v4155 = vadd.f32 0.0, %v4154
  %4156 = vmatmul.f32.gmra.mxu0 %v1452
  %v4157 = vpop.f32.mrf.mxu0
  %v4158 = vadd.f32 0.0, %v4157
  %4159 = vdwg.mxu0
  %v4160 = vadd.f32 %v4095, %v4125
  %v4161 = vadd.f32 %v4096, %v4128
  %v4162 = vadd.f32 %v4097, %v4131
  %v4163 = vadd.f32 %v4098, %v4134
  %v4164 = vadd.f32 %v4099, %v4137
  %v4165 = vadd.f32 %v4100, %v4140
  %v4166 = vadd.f32 %v4101, %v4143
  %v4167 = vadd.f32 %v4102, %v4146
  %v4168 = vxor.u32 %v4160, 2147483648
  %v4169 = vxor.u32 %v4161, 2147483648
  %v4170 = vxor.u32 %v4162, 2147483648
  %v4171 = vxor.u32 %v4163, 2147483648
  %v4172 = vxor.u32 %v4164, 2147483648
  %v4173 = vxor.u32 %v4165, 2147483648
  %v4174 = vxor.u32 %v4166, 2147483648
  %v4175 = vxor.u32 %v4167, 2147483648
  %v4176 = vmul.f32 %v4168, 1.442695
  %v4177 = vpow.pop %v4176
  %v4178 = vmul.f32 %v4169, 1.442695
  %v4179 = vpow.pop %v4178
  %v4180 = vmul.f32 %v4170, 1.442695
  %v4181 = vpow.pop %v4180
  %v4182 = vmul.f32 %v4171, 1.442695
  %v4183 = vpow.pop %v4182
  %v4184 = vmul.f32 %v4172, 1.442695
  %v4185 = vpow.pop %v4184
  %v4186 = vmul.f32 %v4173, 1.442695
  %v4187 = vpow.pop %v4186
  %v4188 = vmul.f32 %v4174, 1.442695
  %v4189 = vpow.pop %v4188
  %v4190 = vmul.f32 %v4175, 1.442695
  %v4191 = vpow.pop %v4190
  %v4192 = vadd.f32 %v4177, 1.0
  %v4193 = vadd.f32 %v4179, 1.0
  %v4194 = vadd.f32 %v4181, 1.0
  %v4195 = vadd.f32 %v4183, 1.0
  %v4196 = vadd.f32 %v4185, 1.0
  %v4197 = vadd.f32 %v4187, 1.0
  %v4198 = vadd.f32 %v4189, 1.0
  %v4199 = vadd.f32 %v4191, 1.0
  %v4200 = vrcp.pop %v4192
  %v4201 = vmul.f32 %v4192, %v4200
  %v4202 = vsub.f32 1.0, %v4201
  %v4203 = vmul.f32 %v4200, %v4202
  %v4204 = vadd.f32 %v4200, %v4203
  %vm4205 = vweird.f32 %v4192
  %vm4206 = vweird.f32 %v4200
  %vm4207 = vmor %vm4205, %vm4206
  %v4208 = vsel %vm4207, %v4200, %v4204
  %v4209 = vand.u32 2147483647, %v4192
  %vm4210 = vcmp.eq.f32.partialorder %v4209, 8.507059e+37
  %v4211 = vand.u32 %v4192, 2147483648
  %v4212 = vor.u32 1.1754944e-38, %v4211
  %v4213 = vsel %vm4210, %v4212, %v4208
  %v4214 = vmul.f32 1.0, %v4213
  %v4215 = vrcp.pop %v4193
  %v4216 = vmul.f32 %v4193, %v4215
  %v4217 = vsub.f32 1.0, %v4216
  %v4218 = vmul.f32 %v4215, %v4217
  %v4219 = vadd.f32 %v4215, %v4218
  %vm4220 = vweird.f32 %v4193
  %vm4221 = vweird.f32 %v4215
  %vm4222 = vmor %vm4220, %vm4221
  %v4223 = vsel %vm4222, %v4215, %v4219
  %v4224 = vand.u32 2147483647, %v4193
  %vm4225 = vcmp.eq.f32.partialorder %v4224, 8.507059e+37
  %v4226 = vand.u32 %v4193, 2147483648
  %v4227 = vor.u32 1.1754944e-38, %v4226
  %v4228 = vsel %vm4225, %v4227, %v4223
  %v4229 = vmul.f32 1.0, %v4228
  %v4230 = vrcp.pop %v4194
  %v4231 = vmul.f32 %v4194, %v4230
  %v4232 = vsub.f32 1.0, %v4231
  %v4233 = vmul.f32 %v4230, %v4232
  %v4234 = vadd.f32 %v4230, %v4233
  %vm4235 = vweird.f32 %v4194
  %vm4236 = vweird.f32 %v4230
  %vm4237 = vmor %vm4235, %vm4236
  %v4238 = vsel %vm4237, %v4230, %v4234
  %v4239 = vand.u32 2147483647, %v4194
  %vm4240 = vcmp.eq.f32.partialorder %v4239, 8.507059e+37
  %v4241 = vand.u32 %v4194, 2147483648
  %v4242 = vor.u32 1.1754944e-38, %v4241
  %v4243 = vsel %vm4240, %v4242, %v4238
  %v4244 = vmul.f32 1.0, %v4243
  %v4245 = vrcp.pop %v4195
  %v4246 = vmul.f32 %v4195, %v4245
  %v4247 = vsub.f32 1.0, %v4246
  %v4248 = vmul.f32 %v4245, %v4247
  %v4249 = vadd.f32 %v4245, %v4248
  %vm4250 = vweird.f32 %v4195
  %vm4251 = vweird.f32 %v4245
  %vm4252 = vmor %vm4250, %vm4251
  %v4253 = vsel %vm4252, %v4245, %v4249
  %v4254 = vand.u32 2147483647, %v4195
  %vm4255 = vcmp.eq.f32.partialorder %v4254, 8.507059e+37
  %v4256 = vand.u32 %v4195, 2147483648
  %v4257 = vor.u32 1.1754944e-38, %v4256
  %v4258 = vsel %vm4255, %v4257, %v4253
  %v4259 = vmul.f32 1.0, %v4258
  %v4260 = vrcp.pop %v4196
  %v4261 = vmul.f32 %v4196, %v4260
  %v4262 = vsub.f32 1.0, %v4261
  %v4263 = vmul.f32 %v4260, %v4262
  %v4264 = vadd.f32 %v4260, %v4263
  %vm4265 = vweird.f32 %v4196
  %vm4266 = vweird.f32 %v4260
  %vm4267 = vmor %vm4265, %vm4266
  %v4268 = vsel %vm4267, %v4260, %v4264
  %v4269 = vand.u32 2147483647, %v4196
  %vm4270 = vcmp.eq.f32.partialorder %v4269, 8.507059e+37
  %v4271 = vand.u32 %v4196, 2147483648
  %v4272 = vor.u32 1.1754944e-38, %v4271
  %v4273 = vsel %vm4270, %v4272, %v4268
  %v4274 = vmul.f32 1.0, %v4273
  %v4275 = vrcp.pop %v4197
  %v4276 = vmul.f32 %v4197, %v4275
  %v4277 = vsub.f32 1.0, %v4276
  %v4278 = vmul.f32 %v4275, %v4277
  %v4279 = vadd.f32 %v4275, %v4278
  %vm4280 = vweird.f32 %v4197
  %vm4281 = vweird.f32 %v4275
  %vm4282 = vmor %vm4280, %vm4281
  %v4283 = vsel %vm4282, %v4275, %v4279
  %v4284 = vand.u32 2147483647, %v4197
  %vm4285 = vcmp.eq.f32.partialorder %v4284, 8.507059e+37
  %v4286 = vand.u32 %v4197, 2147483648
  %v4287 = vor.u32 1.1754944e-38, %v4286
  %v4288 = vsel %vm4285, %v4287, %v4283
  %v4289 = vmul.f32 1.0, %v4288
  %v4290 = vrcp.pop %v4198
  %v4291 = vmul.f32 %v4198, %v4290
  %v4292 = vsub.f32 1.0, %v4291
  %v4293 = vmul.f32 %v4290, %v4292
  %v4294 = vadd.f32 %v4290, %v4293
  %vm4295 = vweird.f32 %v4198
  %vm4296 = vweird.f32 %v4290
  %vm4297 = vmor %vm4295, %vm4296
  %v4298 = vsel %vm4297, %v4290, %v4294
  %v4299 = vand.u32 2147483647, %v4198
  %vm4300 = vcmp.eq.f32.partialorder %v4299, 8.507059e+37
  %v4301 = vand.u32 %v4198, 2147483648
  %v4302 = vor.u32 1.1754944e-38, %v4301
  %v4303 = vsel %vm4300, %v4302, %v4298
  %v4304 = vmul.f32 1.0, %v4303
  %v4305 = vrcp.pop %v4199
  %v4306 = vmul.f32 %v4199, %v4305
  %v4307 = vsub.f32 1.0, %v4306
  %v4308 = vmul.f32 %v4305, %v4307
  %v4309 = vadd.f32 %v4305, %v4308
  %vm4310 = vweird.f32 %v4199
  %vm4311 = vweird.f32 %v4305
  %vm4312 = vmor %vm4310, %vm4311
  %v4313 = vsel %vm4312, %v4305, %v4309
  %v4314 = vand.u32 2147483647, %v4199
  %vm4315 = vcmp.eq.f32.partialorder %v4314, 8.507059e+37
  %v4316 = vand.u32 %v4199, 2147483648
  %v4317 = vor.u32 1.1754944e-38, %v4316
  %v4318 = vsel %vm4315, %v4317, %v4313
  %v4319 = vmul.f32 1.0, %v4318
  %v4320 = vadd.f32 %v4149, %v1354
  %v4321 = vadd.f32 %v4152, %v1359
  %v4322 = vadd.f32 %v4155, %v1364
  %v4323 = vadd.f32 %v4158, %v1369
  %v4324 = vmul.f32 %v4214, %v4320
  %v4325 = vmul.f32 %v4229, %v4321
  %v4326 = vmul.f32 %v4244, %v4322
  %v4327 = vmul.f32 %v4259, %v4323
  %v4328 = vadd.f32 %v4103, %v4324
  %v4329 = vadd.f32 %v4104, %v4325
  %v4330 = vadd.f32 %v4105, %v4326
  %v4331 = vadd.f32 %v4106, %v4327
  %v4332 = vtanh.pop %v4328
  %v4333 = vtanh.pop %v4329
  %v4334 = vtanh.pop %v4330
  %v4335 = vtanh.pop %v4331
  %v4336 = vsub.f32 1.0, %v4274
  %v4337 = vsub.f32 1.0, %v4289
  %v4338 = vsub.f32 1.0, %v4304
  %v4339 = vsub.f32 1.0, %v4319
  %v4340 = vmul.f32 %v4336, %v4332
  %v4341 = vmul.f32 %v4337, %v4333
  %v4342 = vmul.f32 %v4338, %v4334
  %v4343 = vmul.f32 %v4339, %v4335
  %v4344 = vmul.f32 %v4274, %v3826
  %v4345 = vmul.f32 %v4289, %v3827
  %v4346 = vmul.f32 %v4304, %v3828
  %v4347 = vmul.f32 %v4319, %v3829
  %v4348 = vadd.f32 %v4340, %v4344
  %v4349 = vadd.f32 %v4341, %v4345
  %v4350 = vadd.f32 %v4342, %v4346
  %v4351 = vadd.f32 %v4343, %v4347
  %v4352 = vld [vmem:[%s662 + $0x60] sm:$0xff]
  %v4353 = vld [vmem:[%s662 + $0x68] sm:$0xff]
  %v4354 = vld [vmem:[%s662 + $0x70] sm:$0xff]
  %v4355 = vld [vmem:[%s662 + $0x78] sm:$0xff]
  %v4356 = vld [vmem:[%s662 + $0x80] sm:$0xff]
  %v4357 = vld [vmem:[%s662 + $0x88] sm:$0xff]
  %v4358 = vld [vmem:[%s662 + $0x90] sm:$0xff]
  %v4359 = vld [vmem:[%s662 + $0x98] sm:$0xff]
  %v4360 = vld [vmem:[%s662 + $0xa0] sm:$0xff]
  %v4361 = vld [vmem:[%s662 + $0xa8] sm:$0xff]
  %v4362 = vld [vmem:[%s662 + $0xb0] sm:$0xff]
  %v4363 = vld [vmem:[%s662 + $0xb8] sm:$0xff]
  %4364 = vmatpush.msra.mxu0 0.0
  %4365 = vmatpush.msra.mxu0 0.0
  %4366 = vmatpush.msra.mxu0 0.0
  %4367 = vmatpush.msra.mxu0 0.0
  %4368 = vmatpush.msra.mxu0 0.0
  %4369 = vmatpush.msra.mxu0 0.0
  %4370 = vmatpush.msra.mxu0 0.0
  %4371 = vmatpush.msra.mxu0 0.0
  %4372 = vmatpush.msra.mxu0 0.0
  %4373 = vmatpush.msra.mxu0 0.0
  %4374 = vmatpush.msra.mxu0 0.0
  %4375 = vmatpush.msra.mxu0 0.0
  %4376 = vmatpush.msra.mxu0 %v4086
  %4377 = vmatpush.msra.mxu0 %v4085
  %4378 = vmatpush.msra.mxu0 %v4084
  %4379 = vmatpush.msra.mxu0 %v4083
  %4380 = vmatmul.f32.gmra.mxu0 %v1712
  %v4381 = vpop.f32.mrf.mxu0
  %v4382 = vadd.f32 0.0, %v4381
  %4383 = vmatmul.f32.gmra.mxu0 %v1715
  %v4384 = vpop.f32.mrf.mxu0
  %v4385 = vadd.f32 0.0, %v4384
  %4386 = vmatmul.f32.gmra.mxu0 %v1718
  %v4387 = vpop.f32.mrf.mxu0
  %v4388 = vadd.f32 0.0, %v4387
  %4389 = vmatmul.f32.gmra.mxu0 %v1721
  %v4390 = vpop.f32.mrf.mxu0
  %v4391 = vadd.f32 0.0, %v4390
  %4392 = vmatmul.f32.gmra.mxu0 %v1724
  %v4393 = vpop.f32.mrf.mxu0
  %v4394 = vadd.f32 0.0, %v4393
  %4395 = vmatmul.f32.gmra.mxu0 %v1727
  %v4396 = vpop.f32.mrf.mxu0
  %v4397 = vadd.f32 0.0, %v4396
  %4398 = vmatmul.f32.gmra.mxu0 %v1730
  %v4399 = vpop.f32.mrf.mxu0
  %v4400 = vadd.f32 0.0, %v4399
  %4401 = vmatmul.f32.gmra.mxu0 %v1733
  %v4402 = vpop.f32.mrf.mxu0
  %v4403 = vadd.f32 0.0, %v4402
  %4404 = vmatmul.f32.gmra.mxu0 %v1736
  %v4405 = vpop.f32.mrf.mxu0
  %v4406 = vadd.f32 0.0, %v4405
  %4407 = vmatmul.f32.gmra.mxu0 %v1739
  %v4408 = vpop.f32.mrf.mxu0
  %v4409 = vadd.f32 0.0, %v4408
  %4410 = vmatmul.f32.gmra.mxu0 %v1742
  %v4411 = vpop.f32.mrf.mxu0
  %v4412 = vadd.f32 0.0, %v4411
  %4413 = vmatmul.f32.gmra.mxu0 %v1745
  %v4414 = vpop.f32.mrf.mxu0
  %v4415 = vadd.f32 0.0, %v4414
  %4416 = vdwg.mxu0
  %v4417 = vadd.f32 %v4352, %v4382
  %v4418 = vadd.f32 %v4353, %v4385
  %v4419 = vadd.f32 %v4354, %v4388
  %v4420 = vadd.f32 %v4355, %v4391
  %v4421 = vadd.f32 %v4356, %v4394
  %v4422 = vadd.f32 %v4357, %v4397
  %v4423 = vadd.f32 %v4358, %v4400
  %v4424 = vadd.f32 %v4359, %v4403
  %v4425 = vxor.u32 %v4417, 2147483648
  %v4426 = vxor.u32 %v4418, 2147483648
  %v4427 = vxor.u32 %v4419, 2147483648
  %v4428 = vxor.u32 %v4420, 2147483648
  %v4429 = vxor.u32 %v4421, 2147483648
  %v4430 = vxor.u32 %v4422, 2147483648
  %v4431 = vxor.u32 %v4423, 2147483648
  %v4432 = vxor.u32 %v4424, 2147483648
  %v4433 = vmul.f32 %v4425, 1.442695
  %v4434 = vpow.pop %v4433
  %v4435 = vmul.f32 %v4426, 1.442695
  %v4436 = vpow.pop %v4435
  %v4437 = vmul.f32 %v4427, 1.442695
  %v4438 = vpow.pop %v4437
  %v4439 = vmul.f32 %v4428, 1.442695
  %v4440 = vpow.pop %v4439
  %v4441 = vmul.f32 %v4429, 1.442695
  %v4442 = vpow.pop %v4441
  %v4443 = vmul.f32 %v4430, 1.442695
  %v4444 = vpow.pop %v4443
  %v4445 = vmul.f32 %v4431, 1.442695
  %v4446 = vpow.pop %v4445
  %v4447 = vmul.f32 %v4432, 1.442695
  %v4448 = vpow.pop %v4447
  %v4449 = vadd.f32 %v4434, 1.0
  %v4450 = vadd.f32 %v4436, 1.0
  %v4451 = vadd.f32 %v4438, 1.0
  %v4452 = vadd.f32 %v4440, 1.0
  %v4453 = vadd.f32 %v4442, 1.0
  %v4454 = vadd.f32 %v4444, 1.0
  %v4455 = vadd.f32 %v4446, 1.0
  %v4456 = vadd.f32 %v4448, 1.0
  %v4457 = vrcp.pop %v4449
  %v4458 = vmul.f32 %v4449, %v4457
  %v4459 = vsub.f32 1.0, %v4458
  %v4460 = vmul.f32 %v4457, %v4459
  %v4461 = vadd.f32 %v4457, %v4460
  %vm4462 = vweird.f32 %v4449
  %vm4463 = vweird.f32 %v4457
  %vm4464 = vmor %vm4462, %vm4463
  %v4465 = vsel %vm4464, %v4457, %v4461
  %v4466 = vand.u32 2147483647, %v4449
  %vm4467 = vcmp.eq.f32.partialorder %v4466, 8.507059e+37
  %v4468 = vand.u32 %v4449, 2147483648
  %v4469 = vor.u32 1.1754944e-38, %v4468
  %v4470 = vsel %vm4467, %v4469, %v4465
  %v4471 = vmul.f32 1.0, %v4470
  %v4472 = vrcp.pop %v4450
  %v4473 = vmul.f32 %v4450, %v4472
  %v4474 = vsub.f32 1.0, %v4473
  %v4475 = vmul.f32 %v4472, %v4474
  %v4476 = vadd.f32 %v4472, %v4475
  %vm4477 = vweird.f32 %v4450
  %vm4478 = vweird.f32 %v4472
  %vm4479 = vmor %vm4477, %vm4478
  %v4480 = vsel %vm4479, %v4472, %v4476
  %v4481 = vand.u32 2147483647, %v4450
  %vm4482 = vcmp.eq.f32.partialorder %v4481, 8.507059e+37
  %v4483 = vand.u32 %v4450, 2147483648
  %v4484 = vor.u32 1.1754944e-38, %v4483
  %v4485 = vsel %vm4482, %v4484, %v4480
  %v4486 = vmul.f32 1.0, %v4485
  %v4487 = vrcp.pop %v4451
  %v4488 = vmul.f32 %v4451, %v4487
  %v4489 = vsub.f32 1.0, %v4488
  %v4490 = vmul.f32 %v4487, %v4489
  %v4491 = vadd.f32 %v4487, %v4490
  %vm4492 = vweird.f32 %v4451
  %vm4493 = vweird.f32 %v4487
  %vm4494 = vmor %vm4492, %vm4493
  %v4495 = vsel %vm4494, %v4487, %v4491
  %v4496 = vand.u32 2147483647, %v4451
  %vm4497 = vcmp.eq.f32.partialorder %v4496, 8.507059e+37
  %v4498 = vand.u32 %v4451, 2147483648
  %v4499 = vor.u32 1.1754944e-38, %v4498
  %v4500 = vsel %vm4497, %v4499, %v4495
  %v4501 = vmul.f32 1.0, %v4500
  %v4502 = vrcp.pop %v4452
  %v4503 = vmul.f32 %v4452, %v4502
  %v4504 = vsub.f32 1.0, %v4503
  %v4505 = vmul.f32 %v4502, %v4504
  %v4506 = vadd.f32 %v4502, %v4505
  %vm4507 = vweird.f32 %v4452
  %vm4508 = vweird.f32 %v4502
  %vm4509 = vmor %vm4507, %vm4508
  %v4510 = vsel %vm4509, %v4502, %v4506
  %v4511 = vand.u32 2147483647, %v4452
  %vm4512 = vcmp.eq.f32.partialorder %v4511, 8.507059e+37
  %v4513 = vand.u32 %v4452, 2147483648
  %v4514 = vor.u32 1.1754944e-38, %v4513
  %v4515 = vsel %vm4512, %v4514, %v4510
  %v4516 = vmul.f32 1.0, %v4515
  %v4517 = vrcp.pop %v4453
  %v4518 = vmul.f32 %v4453, %v4517
  %v4519 = vsub.f32 1.0, %v4518
  %v4520 = vmul.f32 %v4517, %v4519
  %v4521 = vadd.f32 %v4517, %v4520
  %vm4522 = vweird.f32 %v4453
  %vm4523 = vweird.f32 %v4517
  %vm4524 = vmor %vm4522, %vm4523
  %v4525 = vsel %vm4524, %v4517, %v4521
  %v4526 = vand.u32 2147483647, %v4453
  %vm4527 = vcmp.eq.f32.partialorder %v4526, 8.507059e+37
  %v4528 = vand.u32 %v4453, 2147483648
  %v4529 = vor.u32 1.1754944e-38, %v4528
  %v4530 = vsel %vm4527, %v4529, %v4525
  %v4531 = vmul.f32 1.0, %v4530
  %v4532 = vrcp.pop %v4454
  %v4533 = vmul.f32 %v4454, %v4532
  %v4534 = vsub.f32 1.0, %v4533
  %v4535 = vmul.f32 %v4532, %v4534
  %v4536 = vadd.f32 %v4532, %v4535
  %vm4537 = vweird.f32 %v4454
  %vm4538 = vweird.f32 %v4532
  %vm4539 = vmor %vm4537, %vm4538
  %v4540 = vsel %vm4539, %v4532, %v4536
  %v4541 = vand.u32 2147483647, %v4454
  %vm4542 = vcmp.eq.f32.partialorder %v4541, 8.507059e+37
  %v4543 = vand.u32 %v4454, 2147483648
  %v4544 = vor.u32 1.1754944e-38, %v4543
  %v4545 = vsel %vm4542, %v4544, %v4540
  %v4546 = vmul.f32 1.0, %v4545
  %v4547 = vrcp.pop %v4455
  %v4548 = vmul.f32 %v4455, %v4547
  %v4549 = vsub.f32 1.0, %v4548
  %v4550 = vmul.f32 %v4547, %v4549
  %v4551 = vadd.f32 %v4547, %v4550
  %vm4552 = vweird.f32 %v4455
  %vm4553 = vweird.f32 %v4547
  %vm4554 = vmor %vm4552, %vm4553
  %v4555 = vsel %vm4554, %v4547, %v4551
  %v4556 = vand.u32 2147483647, %v4455
  %vm4557 = vcmp.eq.f32.partialorder %v4556, 8.507059e+37
  %v4558 = vand.u32 %v4455, 2147483648
  %v4559 = vor.u32 1.1754944e-38, %v4558
  %v4560 = vsel %vm4557, %v4559, %v4555
  %v4561 = vmul.f32 1.0, %v4560
  %v4562 = vrcp.pop %v4456
  %v4563 = vmul.f32 %v4456, %v4562
  %v4564 = vsub.f32 1.0, %v4563
  %v4565 = vmul.f32 %v4562, %v4564
  %v4566 = vadd.f32 %v4562, %v4565
  %vm4567 = vweird.f32 %v4456
  %vm4568 = vweird.f32 %v4562
  %vm4569 = vmor %vm4567, %vm4568
  %v4570 = vsel %vm4569, %v4562, %v4566
  %v4571 = vand.u32 2147483647, %v4456
  %vm4572 = vcmp.eq.f32.partialorder %v4571, 8.507059e+37
  %v4573 = vand.u32 %v4456, 2147483648
  %v4574 = vor.u32 1.1754944e-38, %v4573
  %v4575 = vsel %vm4572, %v4574, %v4570
  %v4576 = vmul.f32 1.0, %v4575
  %v4577 = vadd.f32 %v4406, %v1379
  %v4578 = vadd.f32 %v4409, %v1384
  %v4579 = vadd.f32 %v4412, %v1389
  %v4580 = vadd.f32 %v4415, %v1394
  %v4581 = vmul.f32 %v4471, %v4577
  %v4582 = vmul.f32 %v4486, %v4578
  %v4583 = vmul.f32 %v4501, %v4579
  %v4584 = vmul.f32 %v4516, %v4580
  %v4585 = vadd.f32 %v4360, %v4581
  %v4586 = vadd.f32 %v4361, %v4582
  %v4587 = vadd.f32 %v4362, %v4583
  %v4588 = vadd.f32 %v4363, %v4584
  %v4589 = vtanh.pop %v4585
  %v4590 = vtanh.pop %v4586
  %v4591 = vtanh.pop %v4587
  %v4592 = vtanh.pop %v4588
  %v4593 = vsub.f32 1.0, %v4531
  %v4594 = vsub.f32 1.0, %v4546
  %v4595 = vsub.f32 1.0, %v4561
  %v4596 = vsub.f32 1.0, %v4576
  %v4597 = vmul.f32 %v4593, %v4589
  %v4598 = vmul.f32 %v4594, %v4590
  %v4599 = vmul.f32 %v4595, %v4591
  %v4600 = vmul.f32 %v4596, %v4592
  %v4601 = vmul.f32 %v4531, %v4083
  %v4602 = vmul.f32 %v4546, %v4084
  %v4603 = vmul.f32 %v4561, %v4085
  %v4604 = vmul.f32 %v4576, %v4086
  %v4605 = vadd.f32 %v4597, %v4601
  %v4606 = vadd.f32 %v4598, %v4602
  %v4607 = vadd.f32 %v4599, %v4603
  %v4608 = vadd.f32 %v4600, %v4604
  %4609 = vst [vmem:[%s3044] sm:$0xff] %v4348
  %4610 = vst [vmem:[%s3044 + $0x8] sm:$0xff] %v4349
  %4611 = vst [vmem:[%s3044 + $0x10] sm:$0xff] %v4350
  %4612 = vst [vmem:[%s3044 + $0x18] sm:$0xff] %v4351
  %4613 = vst [vmem:[%s3039 + $0x20] sm:$0xff] %v4605
  %4614 = vst [vmem:[%s3039 + $0x28] sm:$0xff] %v4606
  %4615 = vst [vmem:[%s3039 + $0x30] sm:$0xff] %v4607
  %4616 = vst [vmem:[%s3039 + $0x38] sm:$0xff] %v4608
  %v4617 = vld [vmem:[%s1170] sm:$0xff]
  %v4618 = vld [vmem:[%s1170 + $0x8] sm:$0xff]
  %v4619 = vld [vmem:[%s1170 + $0x10] sm:$0xff]
  %v4620 = vld [vmem:[%s1170 + $0x18] sm:$0xff]
  %v4621 = vld [vmem:[%s1170 + $0x20] sm:$0xff]
  %v4622 = vld [vmem:[%s1170 + $0x28] sm:$0xff]
  %v4623 = vld [vmem:[%s1170 + $0x30] sm:$0xff]
  %v4624 = vld [vmem:[%s1170 + $0x38] sm:$0xff]
  %v4625 = vld [vmem:[%s1170 + $0x40] sm:$0xff]
  %v4626 = vld [vmem:[%s1170 + $0x48] sm:$0xff]
  %v4627 = vld [vmem:[%s1170 + $0x50] sm:$0xff]
  %v4628 = vld [vmem:[%s1170 + $0x58] sm:$0xff]
  %4629 = vmatpush.msra.mxu0 0.0
  %4630 = vmatpush.msra.mxu0 0.0
  %4631 = vmatpush.msra.mxu0 0.0
  %4632 = vmatpush.msra.mxu0 0.0
  %4633 = vmatpush.msra.mxu0 0.0
  %4634 = vmatpush.msra.mxu0 0.0
  %4635 = vmatpush.msra.mxu0 0.0
  %4636 = vmatpush.msra.mxu0 0.0
  %4637 = vmatpush.msra.mxu0 0.0
  %4638 = vmatpush.msra.mxu0 0.0
  %4639 = vmatpush.msra.mxu0 0.0
  %4640 = vmatpush.msra.mxu0 0.0
  %4641 = vmatpush.msra.mxu0 %v4351
  %4642 = vmatpush.msra.mxu0 %v4350
  %4643 = vmatpush.msra.mxu0 %v4349
  %4644 = vmatpush.msra.mxu0 %v4348
  %4645 = vmatmul.f32.gmra.mxu0 %v1419
  %v4646 = vpop.f32.mrf.mxu0
  %v4647 = vadd.f32 0.0, %v4646
  %4648 = vmatmul.f32.gmra.mxu0 %v1422
  %v4649 = vpop.f32.mrf.mxu0
  %v4650 = vadd.f32 0.0, %v4649
  %4651 = vmatmul.f32.gmra.mxu0 %v1425
  %v4652 = vpop.f32.mrf.mxu0
  %v4653 = vadd.f32 0.0, %v4652
  %4654 = vmatmul.f32.gmra.mxu0 %v1428
  %v4655 = vpop.f32.mrf.mxu0
  %v4656 = vadd.f32 0.0, %v4655
  %4657 = vmatmul.f32.gmra.mxu0 %v1431
  %v4658 = vpop.f32.mrf.mxu0
  %v4659 = vadd.f32 0.0, %v4658
  %4660 = vmatmul.f32.gmra.mxu0 %v1434
  %v4661 = vpop.f32.mrf.mxu0
  %v4662 = vadd.f32 0.0, %v4661
  %4663 = vmatmul.f32.gmra.mxu0 %v1437
  %v4664 = vpop.f32.mrf.mxu0
  %v4665 = vadd.f32 0.0, %v4664
  %4666 = vmatmul.f32.gmra.mxu0 %v1440
  %v4667 = vpop.f32.mrf.mxu0
  %v4668 = vadd.f32 0.0, %v4667
  %4669 = vmatmul.f32.gmra.mxu0 %v1443
  %v4670 = vpop.f32.mrf.mxu0
  %v4671 = vadd.f32 0.0, %v4670
  %4672 = vmatmul.f32.gmra.mxu0 %v1446
  %v4673 = vpop.f32.mrf.mxu0
  %v4674 = vadd.f32 0.0, %v4673
  %4675 = vmatmul.f32.gmra.mxu0 %v1449
  %v4676 = vpop.f32.mrf.mxu0
  %v4677 = vadd.f32 0.0, %v4676
  %4678 = vmatmul.f32.gmra.mxu0 %v1452
  %v4679 = vpop.f32.mrf.mxu0
  %v4680 = vadd.f32 0.0, %v4679
  %4681 = vdwg.mxu0
  %v4682 = vadd.f32 %v4617, %v4647
  %v4683 = vadd.f32 %v4618, %v4650
  %v4684 = vadd.f32 %v4619, %v4653
  %v4685 = vadd.f32 %v4620, %v4656
  %v4686 = vadd.f32 %v4621, %v4659
  %v4687 = vadd.f32 %v4622, %v4662
  %v4688 = vadd.f32 %v4623, %v4665
  %v4689 = vadd.f32 %v4624, %v4668
  %v4690 = vxor.u32 %v4682, 2147483648
  %v4691 = vxor.u32 %v4683, 2147483648
  %v4692 = vxor.u32 %v4684, 2147483648
  %v4693 = vxor.u32 %v4685, 2147483648
  %v4694 = vxor.u32 %v4686, 2147483648
  %v4695 = vxor.u32 %v4687, 2147483648
  %v4696 = vxor.u32 %v4688, 2147483648
  %v4697 = vxor.u32 %v4689, 2147483648
  %v4698 = vmul.f32 %v4690, 1.442695
  %v4699 = vpow.pop %v4698
  %v4700 = vmul.f32 %v4691, 1.442695
  %v4701 = vpow.pop %v4700
  %v4702 = vmul.f32 %v4692, 1.442695
  %v4703 = vpow.pop %v4702
  %v4704 = vmul.f32 %v4693, 1.442695
  %v4705 = vpow.pop %v4704
  %v4706 = vmul.f32 %v4694, 1.442695
  %v4707 = vpow.pop %v4706
  %v4708 = vmul.f32 %v4695, 1.442695
  %v4709 = vpow.pop %v4708
  %v4710 = vmul.f32 %v4696, 1.442695
  %v4711 = vpow.pop %v4710
  %v4712 = vmul.f32 %v4697, 1.442695
  %v4713 = vpow.pop %v4712
  %v4714 = vadd.f32 %v4699, 1.0
  %v4715 = vadd.f32 %v4701, 1.0
  %v4716 = vadd.f32 %v4703, 1.0
  %v4717 = vadd.f32 %v4705, 1.0
  %v4718 = vadd.f32 %v4707, 1.0
  %v4719 = vadd.f32 %v4709, 1.0
  %v4720 = vadd.f32 %v4711, 1.0
  %v4721 = vadd.f32 %v4713, 1.0
  %v4722 = vrcp.pop %v4714
  %v4723 = vmul.f32 %v4714, %v4722
  %v4724 = vsub.f32 1.0, %v4723
  %v4725 = vmul.f32 %v4722, %v4724
  %v4726 = vadd.f32 %v4722, %v4725
  %vm4727 = vweird.f32 %v4714
  %vm4728 = vweird.f32 %v4722
  %vm4729 = vmor %vm4727, %vm4728
  %v4730 = vsel %vm4729, %v4722, %v4726
  %v4731 = vand.u32 2147483647, %v4714
  %vm4732 = vcmp.eq.f32.partialorder %v4731, 8.507059e+37
  %v4733 = vand.u32 %v4714, 2147483648
  %v4734 = vor.u32 1.1754944e-38, %v4733
  %v4735 = vsel %vm4732, %v4734, %v4730
  %v4736 = vmul.f32 1.0, %v4735
  %v4737 = vrcp.pop %v4715
  %v4738 = vmul.f32 %v4715, %v4737
  %v4739 = vsub.f32 1.0, %v4738
  %v4740 = vmul.f32 %v4737, %v4739
  %v4741 = vadd.f32 %v4737, %v4740
  %vm4742 = vweird.f32 %v4715
  %vm4743 = vweird.f32 %v4737
  %vm4744 = vmor %vm4742, %vm4743
  %v4745 = vsel %vm4744, %v4737, %v4741
  %v4746 = vand.u32 2147483647, %v4715
  %vm4747 = vcmp.eq.f32.partialorder %v4746, 8.507059e+37
  %v4748 = vand.u32 %v4715, 2147483648
  %v4749 = vor.u32 1.1754944e-38, %v4748
  %v4750 = vsel %vm4747, %v4749, %v4745
  %v4751 = vmul.f32 1.0, %v4750
  %v4752 = vrcp.pop %v4716
  %v4753 = vmul.f32 %v4716, %v4752
  %v4754 = vsub.f32 1.0, %v4753
  %v4755 = vmul.f32 %v4752, %v4754
  %v4756 = vadd.f32 %v4752, %v4755
  %vm4757 = vweird.f32 %v4716
  %vm4758 = vweird.f32 %v4752
  %vm4759 = vmor %vm4757, %vm4758
  %v4760 = vsel %vm4759, %v4752, %v4756
  %v4761 = vand.u32 2147483647, %v4716
  %vm4762 = vcmp.eq.f32.partialorder %v4761, 8.507059e+37
  %v4763 = vand.u32 %v4716, 2147483648
  %v4764 = vor.u32 1.1754944e-38, %v4763
  %v4765 = vsel %vm4762, %v4764, %v4760
  %v4766 = vmul.f32 1.0, %v4765
  %v4767 = vrcp.pop %v4717
  %v4768 = vmul.f32 %v4717, %v4767
  %v4769 = vsub.f32 1.0, %v4768
  %v4770 = vmul.f32 %v4767, %v4769
  %v4771 = vadd.f32 %v4767, %v4770
  %vm4772 = vweird.f32 %v4717
  %vm4773 = vweird.f32 %v4767
  %vm4774 = vmor %vm4772, %vm4773
  %v4775 = vsel %vm4774, %v4767, %v4771
  %v4776 = vand.u32 2147483647, %v4717
  %vm4777 = vcmp.eq.f32.partialorder %v4776, 8.507059e+37
  %v4778 = vand.u32 %v4717, 2147483648
  %v4779 = vor.u32 1.1754944e-38, %v4778
  %v4780 = vsel %vm4777, %v4779, %v4775
  %v4781 = vmul.f32 1.0, %v4780
  %v4782 = vrcp.pop %v4718
  %v4783 = vmul.f32 %v4718, %v4782
  %v4784 = vsub.f32 1.0, %v4783
  %v4785 = vmul.f32 %v4782, %v4784
  %v4786 = vadd.f32 %v4782, %v4785
  %vm4787 = vweird.f32 %v4718
  %vm4788 = vweird.f32 %v4782
  %vm4789 = vmor %vm4787, %vm4788
  %v4790 = vsel %vm4789, %v4782, %v4786
  %v4791 = vand.u32 2147483647, %v4718
  %vm4792 = vcmp.eq.f32.partialorder %v4791, 8.507059e+37
  %v4793 = vand.u32 %v4718, 2147483648
  %v4794 = vor.u32 1.1754944e-38, %v4793
  %v4795 = vsel %vm4792, %v4794, %v4790
  %v4796 = vmul.f32 1.0, %v4795
  %v4797 = vrcp.pop %v4719
  %v4798 = vmul.f32 %v4719, %v4797
  %v4799 = vsub.f32 1.0, %v4798
  %v4800 = vmul.f32 %v4797, %v4799
  %v4801 = vadd.f32 %v4797, %v4800
  %vm4802 = vweird.f32 %v4719
  %vm4803 = vweird.f32 %v4797
  %vm4804 = vmor %vm4802, %vm4803
  %v4805 = vsel %vm4804, %v4797, %v4801
  %v4806 = vand.u32 2147483647, %v4719
  %vm4807 = vcmp.eq.f32.partialorder %v4806, 8.507059e+37
  %v4808 = vand.u32 %v4719, 2147483648
  %v4809 = vor.u32 1.1754944e-38, %v4808
  %v4810 = vsel %vm4807, %v4809, %v4805
  %v4811 = vmul.f32 1.0, %v4810
  %v4812 = vrcp.pop %v4720
  %v4813 = vmul.f32 %v4720, %v4812
  %v4814 = vsub.f32 1.0, %v4813
  %v4815 = vmul.f32 %v4812, %v4814
  %v4816 = vadd.f32 %v4812, %v4815
  %vm4817 = vweird.f32 %v4720
  %vm4818 = vweird.f32 %v4812
  %vm4819 = vmor %vm4817, %vm4818
  %v4820 = vsel %vm4819, %v4812, %v4816
  %v4821 = vand.u32 2147483647, %v4720
  %vm4822 = vcmp.eq.f32.partialorder %v4821, 8.507059e+37
  %v4823 = vand.u32 %v4720, 2147483648
  %v4824 = vor.u32 1.1754944e-38, %v4823
  %v4825 = vsel %vm4822, %v4824, %v4820
  %v4826 = vmul.f32 1.0, %v4825
  %v4827 = vrcp.pop %v4721
  %v4828 = vmul.f32 %v4721, %v4827
  %v4829 = vsub.f32 1.0, %v4828
  %v4830 = vmul.f32 %v4827, %v4829
  %v4831 = vadd.f32 %v4827, %v4830
  %vm4832 = vweird.f32 %v4721
  %vm4833 = vweird.f32 %v4827
  %vm4834 = vmor %vm4832, %vm4833
  %v4835 = vsel %vm4834, %v4827, %v4831
  %v4836 = vand.u32 2147483647, %v4721
  %vm4837 = vcmp.eq.f32.partialorder %v4836, 8.507059e+37
  %v4838 = vand.u32 %v4721, 2147483648
  %v4839 = vor.u32 1.1754944e-38, %v4838
  %v4840 = vsel %vm4837, %v4839, %v4835
  %v4841 = vmul.f32 1.0, %v4840
  %v4842 = vadd.f32 %v4671, %v1354
  %v4843 = vadd.f32 %v4674, %v1359
  %v4844 = vadd.f32 %v4677, %v1364
  %v4845 = vadd.f32 %v4680, %v1369
  %v4846 = vmul.f32 %v4736, %v4842
  %v4847 = vmul.f32 %v4751, %v4843
  %v4848 = vmul.f32 %v4766, %v4844
  %v4849 = vmul.f32 %v4781, %v4845
  %v4850 = vadd.f32 %v4625, %v4846
  %v4851 = vadd.f32 %v4626, %v4847
  %v4852 = vadd.f32 %v4627, %v4848
  %v4853 = vadd.f32 %v4628, %v4849
  %v4854 = vtanh.pop %v4850
  %v4855 = vtanh.pop %v4851
  %v4856 = vtanh.pop %v4852
  %v4857 = vtanh.pop %v4853
  %v4858 = vsub.f32 1.0, %v4796
  %v4859 = vsub.f32 1.0, %v4811
  %v4860 = vsub.f32 1.0, %v4826
  %v4861 = vsub.f32 1.0, %v4841
  %v4862 = vmul.f32 %v4858, %v4854
  %v4863 = vmul.f32 %v4859, %v4855
  %v4864 = vmul.f32 %v4860, %v4856
  %v4865 = vmul.f32 %v4861, %v4857
  %v4866 = vmul.f32 %v4796, %v4348
  %v4867 = vmul.f32 %v4811, %v4349
  %v4868 = vmul.f32 %v4826, %v4350
  %v4869 = vmul.f32 %v4841, %v4351
  %v4870 = vadd.f32 %v4862, %v4866
  %v4871 = vadd.f32 %v4863, %v4867
  %v4872 = vadd.f32 %v4864, %v4868
  %v4873 = vadd.f32 %v4865, %v4869
  %v4874 = vld [vmem:[%s535 + $0x60] sm:$0xff]
  %v4875 = vld [vmem:[%s535 + $0x68] sm:$0xff]
  %v4876 = vld [vmem:[%s535 + $0x70] sm:$0xff]
  %v4877 = vld [vmem:[%s535 + $0x78] sm:$0xff]
  %v4878 = vld [vmem:[%s535 + $0x80] sm:$0xff]
  %v4879 = vld [vmem:[%s535 + $0x88] sm:$0xff]
  %v4880 = vld [vmem:[%s535 + $0x90] sm:$0xff]
  %v4881 = vld [vmem:[%s535 + $0x98] sm:$0xff]
  %v4882 = vld [vmem:[%s535 + $0xa0] sm:$0xff]
  %v4883 = vld [vmem:[%s535 + $0xa8] sm:$0xff]
  %v4884 = vld [vmem:[%s535 + $0xb0] sm:$0xff]
  %v4885 = vld [vmem:[%s535 + $0xb8] sm:$0xff]
  %4886 = vmatpush.msra.mxu0 0.0
  %4887 = vmatpush.msra.mxu0 0.0
  %4888 = vmatpush.msra.mxu0 0.0
  %4889 = vmatpush.msra.mxu0 0.0
  %4890 = vmatpush.msra.mxu0 0.0
  %4891 = vmatpush.msra.mxu0 0.0
  %4892 = vmatpush.msra.mxu0 0.0
  %4893 = vmatpush.msra.mxu0 0.0
  %4894 = vmatpush.msra.mxu0 0.0
  %4895 = vmatpush.msra.mxu0 0.0
  %4896 = vmatpush.msra.mxu0 0.0
  %4897 = vmatpush.msra.mxu0 0.0
  %4898 = vmatpush.msra.mxu0 %v4608
  %4899 = vmatpush.msra.mxu0 %v4607
  %4900 = vmatpush.msra.mxu0 %v4606
  %4901 = vmatpush.msra.mxu0 %v4605
  %4902 = vmatmul.f32.gmra.mxu0 %v1712
  %v4903 = vpop.f32.mrf.mxu0
  %v4904 = vadd.f32 0.0, %v4903
  %4905 = vmatmul.f32.gmra.mxu0 %v1715
  %v4906 = vpop.f32.mrf.mxu0
  %v4907 = vadd.f32 0.0, %v4906
  %4908 = vmatmul.f32.gmra.mxu0 %v1718
  %v4909 = vpop.f32.mrf.mxu0
  %v4910 = vadd.f32 0.0, %v4909
  %4911 = vmatmul.f32.gmra.mxu0 %v1721
  %v4912 = vpop.f32.mrf.mxu0
  %v4913 = vadd.f32 0.0, %v4912
  %4914 = vmatmul.f32.gmra.mxu0 %v1724
  %v4915 = vpop.f32.mrf.mxu0
  %v4916 = vadd.f32 0.0, %v4915
  %4917 = vmatmul.f32.gmra.mxu0 %v1727
  %v4918 = vpop.f32.mrf.mxu0
  %v4919 = vadd.f32 0.0, %v4918
  %4920 = vmatmul.f32.gmra.mxu0 %v1730
  %v4921 = vpop.f32.mrf.mxu0
  %v4922 = vadd.f32 0.0, %v4921
  %4923 = vmatmul.f32.gmra.mxu0 %v1733
  %v4924 = vpop.f32.mrf.mxu0
  %v4925 = vadd.f32 0.0, %v4924
  %4926 = vmatmul.f32.gmra.mxu0 %v1736
  %v4927 = vpop.f32.mrf.mxu0
  %v4928 = vadd.f32 0.0, %v4927
  %4929 = vmatmul.f32.gmra.mxu0 %v1739
  %v4930 = vpop.f32.mrf.mxu0
  %v4931 = vadd.f32 0.0, %v4930
  %4932 = vmatmul.f32.gmra.mxu0 %v1742
  %v4933 = vpop.f32.mrf.mxu0
  %v4934 = vadd.f32 0.0, %v4933
  %4935 = vmatmul.f32.gmra.mxu0 %v1745
  %v4936 = vpop.f32.mrf.mxu0
  %v4937 = vadd.f32 0.0, %v4936
  %4938 = vdwg.mxu0
  %v4939 = vadd.f32 %v4874, %v4904
  %v4940 = vadd.f32 %v4875, %v4907
  %v4941 = vadd.f32 %v4876, %v4910
  %v4942 = vadd.f32 %v4877, %v4913
  %v4943 = vadd.f32 %v4878, %v4916
  %v4944 = vadd.f32 %v4879, %v4919
  %v4945 = vadd.f32 %v4880, %v4922
  %v4946 = vadd.f32 %v4881, %v4925
  %v4947 = vxor.u32 %v4939, 2147483648
  %v4948 = vxor.u32 %v4940, 2147483648
  %v4949 = vxor.u32 %v4941, 2147483648
  %v4950 = vxor.u32 %v4942, 2147483648
  %v4951 = vxor.u32 %v4943, 2147483648
  %v4952 = vxor.u32 %v4944, 2147483648
  %v4953 = vxor.u32 %v4945, 2147483648
  %v4954 = vxor.u32 %v4946, 2147483648
  %v4955 = vmul.f32 %v4947, 1.442695
  %v4956 = vpow.pop %v4955
  %v4957 = vmul.f32 %v4948, 1.442695
  %v4958 = vpow.pop %v4957
  %v4959 = vmul.f32 %v4949, 1.442695
  %v4960 = vpow.pop %v4959
  %v4961 = vmul.f32 %v4950, 1.442695
  %v4962 = vpow.pop %v4961
  %v4963 = vmul.f32 %v4951, 1.442695
  %v4964 = vpow.pop %v4963
  %v4965 = vmul.f32 %v4952, 1.442695
  %v4966 = vpow.pop %v4965
  %v4967 = vmul.f32 %v4953, 1.442695
  %v4968 = vpow.pop %v4967
  %v4969 = vmul.f32 %v4954, 1.442695
  %v4970 = vpow.pop %v4969
  %v4971 = vadd.f32 %v4956, 1.0
  %v4972 = vadd.f32 %v4958, 1.0
  %v4973 = vadd.f32 %v4960, 1.0
  %v4974 = vadd.f32 %v4962, 1.0
  %v4975 = vadd.f32 %v4964, 1.0
  %v4976 = vadd.f32 %v4966, 1.0
  %v4977 = vadd.f32 %v4968, 1.0
  %v4978 = vadd.f32 %v4970, 1.0
  %v4979 = vrcp.pop %v4971
  %v4980 = vmul.f32 %v4971, %v4979
  %v4981 = vsub.f32 1.0, %v4980
  %v4982 = vmul.f32 %v4979, %v4981
  %v4983 = vadd.f32 %v4979, %v4982
  %vm4984 = vweird.f32 %v4971
  %vm4985 = vweird.f32 %v4979
  %vm4986 = vmor %vm4984, %vm4985
  %v4987 = vsel %vm4986, %v4979, %v4983
  %v4988 = vand.u32 2147483647, %v4971
  %vm4989 = vcmp.eq.f32.partialorder %v4988, 8.507059e+37
  %v4990 = vand.u32 %v4971, 2147483648
  %v4991 = vor.u32 1.1754944e-38, %v4990
  %v4992 = vsel %vm4989, %v4991, %v4987
  %v4993 = vmul.f32 1.0, %v4992
  %v4994 = vrcp.pop %v4972
  %v4995 = vmul.f32 %v4972, %v4994
  %v4996 = vsub.f32 1.0, %v4995
  %v4997 = vmul.f32 %v4994, %v4996
  %v4998 = vadd.f32 %v4994, %v4997
  %vm4999 = vweird.f32 %v4972
  %vm5000 = vweird.f32 %v4994
  %vm5001 = vmor %vm4999, %vm5000
  %v5002 = vsel %vm5001, %v4994, %v4998
  %v5003 = vand.u32 2147483647, %v4972
  %vm5004 = vcmp.eq.f32.partialorder %v5003, 8.507059e+37
  %v5005 = vand.u32 %v4972, 2147483648
  %v5006 = vor.u32 1.1754944e-38, %v5005
  %v5007 = vsel %vm5004, %v5006, %v5002
  %v5008 = vmul.f32 1.0, %v5007
  %v5009 = vrcp.pop %v4973
  %v5010 = vmul.f32 %v4973, %v5009
  %v5011 = vsub.f32 1.0, %v5010
  %v5012 = vmul.f32 %v5009, %v5011
  %v5013 = vadd.f32 %v5009, %v5012
  %vm5014 = vweird.f32 %v4973
  %vm5015 = vweird.f32 %v5009
  %vm5016 = vmor %vm5014, %vm5015
  %v5017 = vsel %vm5016, %v5009, %v5013
  %v5018 = vand.u32 2147483647, %v4973
  %vm5019 = vcmp.eq.f32.partialorder %v5018, 8.507059e+37
  %v5020 = vand.u32 %v4973, 2147483648
  %v5021 = vor.u32 1.1754944e-38, %v5020
  %v5022 = vsel %vm5019, %v5021, %v5017
  %v5023 = vmul.f32 1.0, %v5022
  %v5024 = vrcp.pop %v4974
  %v5025 = vmul.f32 %v4974, %v5024
  %v5026 = vsub.f32 1.0, %v5025
  %v5027 = vmul.f32 %v5024, %v5026
  %v5028 = vadd.f32 %v5024, %v5027
  %vm5029 = vweird.f32 %v4974
  %vm5030 = vweird.f32 %v5024
  %vm5031 = vmor %vm5029, %vm5030
  %v5032 = vsel %vm5031, %v5024, %v5028
  %v5033 = vand.u32 2147483647, %v4974
  %vm5034 = vcmp.eq.f32.partialorder %v5033, 8.507059e+37
  %v5035 = vand.u32 %v4974, 2147483648
  %v5036 = vor.u32 1.1754944e-38, %v5035
  %v5037 = vsel %vm5034, %v5036, %v5032
  %v5038 = vmul.f32 1.0, %v5037
  %v5039 = vrcp.pop %v4975
  %v5040 = vmul.f32 %v4975, %v5039
  %v5041 = vsub.f32 1.0, %v5040
  %v5042 = vmul.f32 %v5039, %v5041
  %v5043 = vadd.f32 %v5039, %v5042
  %vm5044 = vweird.f32 %v4975
  %vm5045 = vweird.f32 %v5039
  %vm5046 = vmor %vm5044, %vm5045
  %v5047 = vsel %vm5046, %v5039, %v5043
  %v5048 = vand.u32 2147483647, %v4975
  %vm5049 = vcmp.eq.f32.partialorder %v5048, 8.507059e+37
  %v5050 = vand.u32 %v4975, 2147483648
  %v5051 = vor.u32 1.1754944e-38, %v5050
  %v5052 = vsel %vm5049, %v5051, %v5047
  %v5053 = vmul.f32 1.0, %v5052
  %v5054 = vrcp.pop %v4976
  %v5055 = vmul.f32 %v4976, %v5054
  %v5056 = vsub.f32 1.0, %v5055
  %v5057 = vmul.f32 %v5054, %v5056
  %v5058 = vadd.f32 %v5054, %v5057
  %vm5059 = vweird.f32 %v4976
  %vm5060 = vweird.f32 %v5054
  %vm5061 = vmor %vm5059, %vm5060
  %v5062 = vsel %vm5061, %v5054, %v5058
  %v5063 = vand.u32 2147483647, %v4976
  %vm5064 = vcmp.eq.f32.partialorder %v5063, 8.507059e+37
  %v5065 = vand.u32 %v4976, 2147483648
  %v5066 = vor.u32 1.1754944e-38, %v5065
  %v5067 = vsel %vm5064, %v5066, %v5062
  %v5068 = vmul.f32 1.0, %v5067
  %v5069 = vrcp.pop %v4977
  %v5070 = vmul.f32 %v4977, %v5069
  %v5071 = vsub.f32 1.0, %v5070
  %v5072 = vmul.f32 %v5069, %v5071
  %v5073 = vadd.f32 %v5069, %v5072
  %vm5074 = vweird.f32 %v4977
  %vm5075 = vweird.f32 %v5069
  %vm5076 = vmor %vm5074, %vm5075
  %v5077 = vsel %vm5076, %v5069, %v5073
  %v5078 = vand.u32 2147483647, %v4977
  %vm5079 = vcmp.eq.f32.partialorder %v5078, 8.507059e+37
  %v5080 = vand.u32 %v4977, 2147483648
  %v5081 = vor.u32 1.1754944e-38, %v5080
  %v5082 = vsel %vm5079, %v5081, %v5077
  %v5083 = vmul.f32 1.0, %v5082
  %v5084 = vrcp.pop %v4978
  %v5085 = vmul.f32 %v4978, %v5084
  %v5086 = vsub.f32 1.0, %v5085
  %v5087 = vmul.f32 %v5084, %v5086
  %v5088 = vadd.f32 %v5084, %v5087
  %vm5089 = vweird.f32 %v4978
  %vm5090 = vweird.f32 %v5084
  %vm5091 = vmor %vm5089, %vm5090
  %v5092 = vsel %vm5091, %v5084, %v5088
  %v5093 = vand.u32 2147483647, %v4978
  %vm5094 = vcmp.eq.f32.partialorder %v5093, 8.507059e+37
  %v5095 = vand.u32 %v4978, 2147483648
  %v5096 = vor.u32 1.1754944e-38, %v5095
  %v5097 = vsel %vm5094, %v5096, %v5092
  %v5098 = vmul.f32 1.0, %v5097
  %v5099 = vadd.f32 %v4928, %v1379
  %v5100 = vadd.f32 %v4931, %v1384
  %v5101 = vadd.f32 %v4934, %v1389
  %v5102 = vadd.f32 %v4937, %v1394
  %v5103 = vmul.f32 %v4993, %v5099
  %v5104 = vmul.f32 %v5008, %v5100
  %v5105 = vmul.f32 %v5023, %v5101
  %v5106 = vmul.f32 %v5038, %v5102
  %v5107 = vadd.f32 %v4882, %v5103
  %v5108 = vadd.f32 %v4883, %v5104
  %v5109 = vadd.f32 %v4884, %v5105
  %v5110 = vadd.f32 %v4885, %v5106
  %v5111 = vtanh.pop %v5107
  %v5112 = vtanh.pop %v5108
  %v5113 = vtanh.pop %v5109
  %v5114 = vtanh.pop %v5110
  %v5115 = vsub.f32 1.0, %v5053
  %v5116 = vsub.f32 1.0, %v5068
  %v5117 = vsub.f32 1.0, %v5083
  %v5118 = vsub.f32 1.0, %v5098
  %v5119 = vmul.f32 %v5115, %v5111
  %v5120 = vmul.f32 %v5116, %v5112
  %v5121 = vmul.f32 %v5117, %v5113
  %v5122 = vmul.f32 %v5118, %v5114
  %v5123 = vmul.f32 %v5053, %v4605
  %v5124 = vmul.f32 %v5068, %v4606
  %v5125 = vmul.f32 %v5083, %v4607
  %v5126 = vmul.f32 %v5098, %v4608
  %v5127 = vadd.f32 %v5119, %v5123
  %v5128 = vadd.f32 %v5120, %v5124
  %v5129 = vadd.f32 %v5121, %v5125
  %v5130 = vadd.f32 %v5122, %v5126
  %5131 = vst [vmem:[%s2520] sm:$0xff] %v4870
  %5132 = vst [vmem:[%s2520 + $0x8] sm:$0xff] %v4871
  %5133 = vst [vmem:[%s2520 + $0x10] sm:$0xff] %v4872
  %5134 = vst [vmem:[%s2520 + $0x18] sm:$0xff] %v4873
  %5135 = vst [vmem:[%s2515 + $0x20] sm:$0xff] %v5127
  %5136 = vst [vmem:[%s2515 + $0x28] sm:$0xff] %v5128
  %5137 = vst [vmem:[%s2515 + $0x30] sm:$0xff] %v5129
  %5138 = vst [vmem:[%s2515 + $0x38] sm:$0xff] %v5130
  %v5139 = vld [vmem:[%s1297] sm:$0xff]
  %v5140 = vld [vmem:[%s1297 + $0x8] sm:$0xff]
  %v5141 = vld [vmem:[%s1297 + $0x10] sm:$0xff]
  %v5142 = vld [vmem:[%s1297 + $0x18] sm:$0xff]
  %v5143 = vld [vmem:[%s1297 + $0x20] sm:$0xff]
  %v5144 = vld [vmem:[%s1297 + $0x28] sm:$0xff]
  %v5145 = vld [vmem:[%s1297 + $0x30] sm:$0xff]
  %v5146 = vld [vmem:[%s1297 + $0x38] sm:$0xff]
  %v5147 = vld [vmem:[%s1297 + $0x40] sm:$0xff]
  %v5148 = vld [vmem:[%s1297 + $0x48] sm:$0xff]
  %v5149 = vld [vmem:[%s1297 + $0x50] sm:$0xff]
  %v5150 = vld [vmem:[%s1297 + $0x58] sm:$0xff]
  %5151 = vmatpush.msra.mxu0 0.0
  %5152 = vmatpush.msra.mxu0 0.0
  %5153 = vmatpush.msra.mxu0 0.0
  %5154 = vmatpush.msra.mxu0 0.0
  %5155 = vmatpush.msra.mxu0 0.0
  %5156 = vmatpush.msra.mxu0 0.0
  %5157 = vmatpush.msra.mxu0 0.0
  %5158 = vmatpush.msra.mxu0 0.0
  %5159 = vmatpush.msra.mxu0 0.0
  %5160 = vmatpush.msra.mxu0 0.0
  %5161 = vmatpush.msra.mxu0 0.0
  %5162 = vmatpush.msra.mxu0 0.0
  %5163 = vmatpush.msra.mxu0 %v4873
  %5164 = vmatpush.msra.mxu0 %v4872
  %5165 = vmatpush.msra.mxu0 %v4871
  %5166 = vmatpush.msra.mxu0 %v4870
  %5167 = vmatmul.f32.gmra.mxu0 %v1419
  %v5168 = vpop.f32.mrf.mxu0
  %v5169 = vadd.f32 0.0, %v5168
  %5170 = vmatmul.f32.gmra.mxu0 %v1422
  %v5171 = vpop.f32.mrf.mxu0
  %v5172 = vadd.f32 0.0, %v5171
  %5173 = vmatmul.f32.gmra.mxu0 %v1425
  %v5174 = vpop.f32.mrf.mxu0
  %v5175 = vadd.f32 0.0, %v5174
  %5176 = vmatmul.f32.gmra.mxu0 %v1428
  %v5177 = vpop.f32.mrf.mxu0
  %v5178 = vadd.f32 0.0, %v5177
  %5179 = vmatmul.f32.gmra.mxu0 %v1431
  %v5180 = vpop.f32.mrf.mxu0
  %v5181 = vadd.f32 0.0, %v5180
  %5182 = vmatmul.f32.gmra.mxu0 %v1434
  %v5183 = vpop.f32.mrf.mxu0
  %v5184 = vadd.f32 0.0, %v5183
  %5185 = vmatmul.f32.gmra.mxu0 %v1437
  %v5186 = vpop.f32.mrf.mxu0
  %v5187 = vadd.f32 0.0, %v5186
  %5188 = vmatmul.f32.gmra.mxu0 %v1440
  %v5189 = vpop.f32.mrf.mxu0
  %v5190 = vadd.f32 0.0, %v5189
  %5191 = vmatmul.f32.gmra.mxu0 %v1443
  %v5192 = vpop.f32.mrf.mxu0
  %v5193 = vadd.f32 0.0, %v5192
  %5194 = vmatmul.f32.gmra.mxu0 %v1446
  %v5195 = vpop.f32.mrf.mxu0
  %v5196 = vadd.f32 0.0, %v5195
  %5197 = vmatmul.f32.gmra.mxu0 %v1449
  %v5198 = vpop.f32.mrf.mxu0
  %v5199 = vadd.f32 0.0, %v5198
  %5200 = vmatmul.f32.gmra.mxu0 %v1452
  %v5201 = vpop.f32.mrf.mxu0
  %v5202 = vadd.f32 0.0, %v5201
  %5203 = vdwg.mxu0
  %v5204 = vadd.f32 %v5139, %v5169
  %v5205 = vadd.f32 %v5140, %v5172
  %v5206 = vadd.f32 %v5141, %v5175
  %v5207 = vadd.f32 %v5142, %v5178
  %v5208 = vadd.f32 %v5143, %v5181
  %v5209 = vadd.f32 %v5144, %v5184
  %v5210 = vadd.f32 %v5145, %v5187
  %v5211 = vadd.f32 %v5146, %v5190
  %v5212 = vxor.u32 %v5204, 2147483648
  %v5213 = vxor.u32 %v5205, 2147483648
  %v5214 = vxor.u32 %v5206, 2147483648
  %v5215 = vxor.u32 %v5207, 2147483648
  %v5216 = vxor.u32 %v5208, 2147483648
  %v5217 = vxor.u32 %v5209, 2147483648
  %v5218 = vxor.u32 %v5210, 2147483648
  %v5219 = vxor.u32 %v5211, 2147483648
  %v5220 = vmul.f32 %v5212, 1.442695
  %v5221 = vpow.pop %v5220
  %v5222 = vmul.f32 %v5213, 1.442695
  %v5223 = vpow.pop %v5222
  %v5224 = vmul.f32 %v5214, 1.442695
  %v5225 = vpow.pop %v5224
  %v5226 = vmul.f32 %v5215, 1.442695
  %v5227 = vpow.pop %v5226
  %v5228 = vmul.f32 %v5216, 1.442695
  %v5229 = vpow.pop %v5228
  %v5230 = vmul.f32 %v5217, 1.442695
  %v5231 = vpow.pop %v5230
  %v5232 = vmul.f32 %v5218, 1.442695
  %v5233 = vpow.pop %v5232
  %v5234 = vmul.f32 %v5219, 1.442695
  %v5235 = vpow.pop %v5234
  %v5236 = vadd.f32 %v5221, 1.0
  %v5237 = vadd.f32 %v5223, 1.0
  %v5238 = vadd.f32 %v5225, 1.0
  %v5239 = vadd.f32 %v5227, 1.0
  %v5240 = vadd.f32 %v5229, 1.0
  %v5241 = vadd.f32 %v5231, 1.0
  %v5242 = vadd.f32 %v5233, 1.0
  %v5243 = vadd.f32 %v5235, 1.0
  %v5244 = vrcp.pop %v5236
  %v5245 = vmul.f32 %v5236, %v5244
  %v5246 = vsub.f32 1.0, %v5245
  %v5247 = vmul.f32 %v5244, %v5246
  %v5248 = vadd.f32 %v5244, %v5247
  %vm5249 = vweird.f32 %v5236
  %vm5250 = vweird.f32 %v5244
  %vm5251 = vmor %vm5249, %vm5250
  %v5252 = vsel %vm5251, %v5244, %v5248
  %v5253 = vand.u32 2147483647, %v5236
  %vm5254 = vcmp.eq.f32.partialorder %v5253, 8.507059e+37
  %v5255 = vand.u32 %v5236, 2147483648
  %v5256 = vor.u32 1.1754944e-38, %v5255
  %v5257 = vsel %vm5254, %v5256, %v5252
  %v5258 = vmul.f32 1.0, %v5257
  %v5259 = vrcp.pop %v5237
  %v5260 = vmul.f32 %v5237, %v5259
  %v5261 = vsub.f32 1.0, %v5260
  %v5262 = vmul.f32 %v5259, %v5261
  %v5263 = vadd.f32 %v5259, %v5262
  %vm5264 = vweird.f32 %v5237
  %vm5265 = vweird.f32 %v5259
  %vm5266 = vmor %vm5264, %vm5265
  %v5267 = vsel %vm5266, %v5259, %v5263
  %v5268 = vand.u32 2147483647, %v5237
  %vm5269 = vcmp.eq.f32.partialorder %v5268, 8.507059e+37
  %v5270 = vand.u32 %v5237, 2147483648
  %v5271 = vor.u32 1.1754944e-38, %v5270
  %v5272 = vsel %vm5269, %v5271, %v5267
  %v5273 = vmul.f32 1.0, %v5272
  %v5274 = vrcp.pop %v5238
  %v5275 = vmul.f32 %v5238, %v5274
  %v5276 = vsub.f32 1.0, %v5275
  %v5277 = vmul.f32 %v5274, %v5276
  %v5278 = vadd.f32 %v5274, %v5277
  %vm5279 = vweird.f32 %v5238
  %vm5280 = vweird.f32 %v5274
  %vm5281 = vmor %vm5279, %vm5280
  %v5282 = vsel %vm5281, %v5274, %v5278
  %v5283 = vand.u32 2147483647, %v5238
  %vm5284 = vcmp.eq.f32.partialorder %v5283, 8.507059e+37
  %v5285 = vand.u32 %v5238, 2147483648
  %v5286 = vor.u32 1.1754944e-38, %v5285
  %v5287 = vsel %vm5284, %v5286, %v5282
  %v5288 = vmul.f32 1.0, %v5287
  %v5289 = vrcp.pop %v5239
  %v5290 = vmul.f32 %v5239, %v5289
  %v5291 = vsub.f32 1.0, %v5290
  %v5292 = vmul.f32 %v5289, %v5291
  %v5293 = vadd.f32 %v5289, %v5292
  %vm5294 = vweird.f32 %v5239
  %vm5295 = vweird.f32 %v5289
  %vm5296 = vmor %vm5294, %vm5295
  %v5297 = vsel %vm5296, %v5289, %v5293
  %v5298 = vand.u32 2147483647, %v5239
  %vm5299 = vcmp.eq.f32.partialorder %v5298, 8.507059e+37
  %v5300 = vand.u32 %v5239, 2147483648
  %v5301 = vor.u32 1.1754944e-38, %v5300
  %v5302 = vsel %vm5299, %v5301, %v5297
  %v5303 = vmul.f32 1.0, %v5302
  %v5304 = vrcp.pop %v5240
  %v5305 = vmul.f32 %v5240, %v5304
  %v5306 = vsub.f32 1.0, %v5305
  %v5307 = vmul.f32 %v5304, %v5306
  %v5308 = vadd.f32 %v5304, %v5307
  %vm5309 = vweird.f32 %v5240
  %vm5310 = vweird.f32 %v5304
  %vm5311 = vmor %vm5309, %vm5310
  %v5312 = vsel %vm5311, %v5304, %v5308
  %v5313 = vand.u32 2147483647, %v5240
  %vm5314 = vcmp.eq.f32.partialorder %v5313, 8.507059e+37
  %v5315 = vand.u32 %v5240, 2147483648
  %v5316 = vor.u32 1.1754944e-38, %v5315
  %v5317 = vsel %vm5314, %v5316, %v5312
  %v5318 = vmul.f32 1.0, %v5317
  %v5319 = vrcp.pop %v5241
  %v5320 = vmul.f32 %v5241, %v5319
  %v5321 = vsub.f32 1.0, %v5320
  %v5322 = vmul.f32 %v5319, %v5321
  %v5323 = vadd.f32 %v5319, %v5322
  %vm5324 = vweird.f32 %v5241
  %vm5325 = vweird.f32 %v5319
  %vm5326 = vmor %vm5324, %vm5325
  %v5327 = vsel %vm5326, %v5319, %v5323
  %v5328 = vand.u32 2147483647, %v5241
  %vm5329 = vcmp.eq.f32.partialorder %v5328, 8.507059e+37
  %v5330 = vand.u32 %v5241, 2147483648
  %v5331 = vor.u32 1.1754944e-38, %v5330
  %v5332 = vsel %vm5329, %v5331, %v5327
  %v5333 = vmul.f32 1.0, %v5332
  %v5334 = vrcp.pop %v5242
  %v5335 = vmul.f32 %v5242, %v5334
  %v5336 = vsub.f32 1.0, %v5335
  %v5337 = vmul.f32 %v5334, %v5336
  %v5338 = vadd.f32 %v5334, %v5337
  %vm5339 = vweird.f32 %v5242
  %vm5340 = vweird.f32 %v5334
  %vm5341 = vmor %vm5339, %vm5340
  %v5342 = vsel %vm5341, %v5334, %v5338
  %v5343 = vand.u32 2147483647, %v5242
  %vm5344 = vcmp.eq.f32.partialorder %v5343, 8.507059e+37
  %v5345 = vand.u32 %v5242, 2147483648
  %v5346 = vor.u32 1.1754944e-38, %v5345
  %v5347 = vsel %vm5344, %v5346, %v5342
  %v5348 = vmul.f32 1.0, %v5347
  %v5349 = vrcp.pop %v5243
  %v5350 = vmul.f32 %v5243, %v5349
  %v5351 = vsub.f32 1.0, %v5350
  %v5352 = vmul.f32 %v5349, %v5351
  %v5353 = vadd.f32 %v5349, %v5352
  %vm5354 = vweird.f32 %v5243
  %vm5355 = vweird.f32 %v5349
  %vm5356 = vmor %vm5354, %vm5355
  %v5357 = vsel %vm5356, %v5349, %v5353
  %v5358 = vand.u32 2147483647, %v5243
  %vm5359 = vcmp.eq.f32.partialorder %v5358, 8.507059e+37
  %v5360 = vand.u32 %v5243, 2147483648
  %v5361 = vor.u32 1.1754944e-38, %v5360
  %v5362 = vsel %vm5359, %v5361, %v5357
  %v5363 = vmul.f32 1.0, %v5362
  %v5364 = vadd.f32 %v5193, %v1354
  %v5365 = vadd.f32 %v5196, %v1359
  %v5366 = vadd.f32 %v5199, %v1364
  %v5367 = vadd.f32 %v5202, %v1369
  %v5368 = vmul.f32 %v5258, %v5364
  %v5369 = vmul.f32 %v5273, %v5365
  %v5370 = vmul.f32 %v5288, %v5366
  %v5371 = vmul.f32 %v5303, %v5367
  %v5372 = vadd.f32 %v5147, %v5368
  %v5373 = vadd.f32 %v5148, %v5369
  %v5374 = vadd.f32 %v5149, %v5370
  %v5375 = vadd.f32 %v5150, %v5371
  %v5376 = vtanh.pop %v5372
  %v5377 = vtanh.pop %v5373
  %v5378 = vtanh.pop %v5374
  %v5379 = vtanh.pop %v5375
  %v5380 = vsub.f32 1.0, %v5318
  %v5381 = vsub.f32 1.0, %v5333
  %v5382 = vsub.f32 1.0, %v5348
  %v5383 = vsub.f32 1.0, %v5363
  %v5384 = vmul.f32 %v5380, %v5376
  %v5385 = vmul.f32 %v5381, %v5377
  %v5386 = vmul.f32 %v5382, %v5378
  %v5387 = vmul.f32 %v5383, %v5379
  %v5388 = vmul.f32 %v5318, %v4870
  %v5389 = vmul.f32 %v5333, %v4871
  %v5390 = vmul.f32 %v5348, %v4872
  %v5391 = vmul.f32 %v5363, %v4873
  %v5392 = vadd.f32 %v5384, %v5388
  %v5393 = vadd.f32 %v5385, %v5389
  %v5394 = vadd.f32 %v5386, %v5390
  %v5395 = vadd.f32 %v5387, %v5391
  %v5396 = vld [vmem:[#allocation2 + $0x60] sm:$0xff]
  %v5397 = vld [vmem:[#allocation2 + $0x68] sm:$0xff]
  %v5398 = vld [vmem:[#allocation2 + $0x70] sm:$0xff]
  %v5399 = vld [vmem:[#allocation2 + $0x78] sm:$0xff]
  %v5400 = vld [vmem:[#allocation2 + $0x80] sm:$0xff]
  %v5401 = vld [vmem:[#allocation2 + $0x88] sm:$0xff]
  %v5402 = vld [vmem:[#allocation2 + $0x90] sm:$0xff]
  %v5403 = vld [vmem:[#allocation2 + $0x98] sm:$0xff]
  %v5404 = vld [vmem:[#allocation2 + $0xa0] sm:$0xff]
  %v5405 = vld [vmem:[#allocation2 + $0xa8] sm:$0xff]
  %v5406 = vld [vmem:[#allocation2 + $0xb0] sm:$0xff]
  %v5407 = vld [vmem:[#allocation2 + $0xb8] sm:$0xff]
  %5408 = vmatpush.msra.mxu0 0.0
  %5409 = vmatpush.msra.mxu0 0.0
  %5410 = vmatpush.msra.mxu0 0.0
  %5411 = vmatpush.msra.mxu0 0.0
  %5412 = vmatpush.msra.mxu0 0.0
  %5413 = vmatpush.msra.mxu0 0.0
  %5414 = vmatpush.msra.mxu0 0.0
  %5415 = vmatpush.msra.mxu0 0.0
  %5416 = vmatpush.msra.mxu0 0.0
  %5417 = vmatpush.msra.mxu0 0.0
  %5418 = vmatpush.msra.mxu0 0.0
  %5419 = vmatpush.msra.mxu0 0.0
  %5420 = vmatpush.msra.mxu0 %v5130
  %5421 = vmatpush.msra.mxu0 %v5129
  %5422 = vmatpush.msra.mxu0 %v5128
  %5423 = vmatpush.msra.mxu0 %v5127
  %5424 = vmatmul.f32.gmra.mxu0 %v1712
  %v5425 = vpop.f32.mrf.mxu0
  %v5426 = vadd.f32 0.0, %v5425
  %5427 = vmatmul.f32.gmra.mxu0 %v1715
  %v5428 = vpop.f32.mrf.mxu0
  %v5429 = vadd.f32 0.0, %v5428
  %5430 = vmatmul.f32.gmra.mxu0 %v1718
  %v5431 = vpop.f32.mrf.mxu0
  %v5432 = vadd.f32 0.0, %v5431
  %5433 = vmatmul.f32.gmra.mxu0 %v1721
  %v5434 = vpop.f32.mrf.mxu0
  %v5435 = vadd.f32 0.0, %v5434
  %5436 = vmatmul.f32.gmra.mxu0 %v1724
  %v5437 = vpop.f32.mrf.mxu0
  %v5438 = vadd.f32 0.0, %v5437
  %5439 = vmatmul.f32.gmra.mxu0 %v1727
  %v5440 = vpop.f32.mrf.mxu0
  %v5441 = vadd.f32 0.0, %v5440
  %5442 = vmatmul.f32.gmra.mxu0 %v1730
  %v5443 = vpop.f32.mrf.mxu0
  %v5444 = vadd.f32 0.0, %v5443
  %5445 = vmatmul.f32.gmra.mxu0 %v1733
  %v5446 = vpop.f32.mrf.mxu0
  %v5447 = vadd.f32 0.0, %v5446
  %5448 = vmatmul.f32.gmra.mxu0 %v1736
  %v5449 = vpop.f32.mrf.mxu0
  %v5450 = vadd.f32 0.0, %v5449
  %5451 = vmatmul.f32.gmra.mxu0 %v1739
  %v5452 = vpop.f32.mrf.mxu0
  %v5453 = vadd.f32 0.0, %v5452
  %5454 = vmatmul.f32.gmra.mxu0 %v1742
  %v5455 = vpop.f32.mrf.mxu0
  %v5456 = vadd.f32 0.0, %v5455
  %5457 = vmatmul.f32.gmra.mxu0 %v1745
  %v5458 = vpop.f32.mrf.mxu0
  %v5459 = vadd.f32 0.0, %v5458
  %5460 = vdwg.mxu0
  %v5461 = vadd.f32 %v5396, %v5426
  %v5462 = vadd.f32 %v5397, %v5429
  %v5463 = vadd.f32 %v5398, %v5432
  %v5464 = vadd.f32 %v5399, %v5435
  %v5465 = vadd.f32 %v5400, %v5438
  %v5466 = vadd.f32 %v5401, %v5441
  %v5467 = vadd.f32 %v5402, %v5444
  %v5468 = vadd.f32 %v5403, %v5447
  %v5469 = vxor.u32 %v5461, 2147483648
  %v5470 = vxor.u32 %v5462, 2147483648
  %v5471 = vxor.u32 %v5463, 2147483648
  %v5472 = vxor.u32 %v5464, 2147483648
  %v5473 = vxor.u32 %v5465, 2147483648
  %v5474 = vxor.u32 %v5466, 2147483648
  %v5475 = vxor.u32 %v5467, 2147483648
  %v5476 = vxor.u32 %v5468, 2147483648
  %v5477 = vmul.f32 %v5469, 1.442695
  %v5478 = vpow.pop %v5477
  %v5479 = vmul.f32 %v5470, 1.442695
  %v5480 = vpow.pop %v5479
  %v5481 = vmul.f32 %v5471, 1.442695
  %v5482 = vpow.pop %v5481
  %v5483 = vmul.f32 %v5472, 1.442695
  %v5484 = vpow.pop %v5483
  %v5485 = vmul.f32 %v5473, 1.442695
  %v5486 = vpow.pop %v5485
  %v5487 = vmul.f32 %v5474, 1.442695
  %v5488 = vpow.pop %v5487
  %v5489 = vmul.f32 %v5475, 1.442695
  %v5490 = vpow.pop %v5489
  %v5491 = vmul.f32 %v5476, 1.442695
  %v5492 = vpow.pop %v5491
  %v5493 = vadd.f32 %v5478, 1.0
  %v5494 = vadd.f32 %v5480, 1.0
  %v5495 = vadd.f32 %v5482, 1.0
  %v5496 = vadd.f32 %v5484, 1.0
  %v5497 = vadd.f32 %v5486, 1.0
  %v5498 = vadd.f32 %v5488, 1.0
  %v5499 = vadd.f32 %v5490, 1.0
  %v5500 = vadd.f32 %v5492, 1.0
  %v5501 = vrcp.pop %v5493
  %v5502 = vmul.f32 %v5493, %v5501
  %v5503 = vsub.f32 1.0, %v5502
  %v5504 = vmul.f32 %v5501, %v5503
  %v5505 = vadd.f32 %v5501, %v5504
  %vm5506 = vweird.f32 %v5493
  %vm5507 = vweird.f32 %v5501
  %vm5508 = vmor %vm5506, %vm5507
  %v5509 = vsel %vm5508, %v5501, %v5505
  %v5510 = vand.u32 2147483647, %v5493
  %vm5511 = vcmp.eq.f32.partialorder %v5510, 8.507059e+37
  %v5512 = vand.u32 %v5493, 2147483648
  %v5513 = vor.u32 1.1754944e-38, %v5512
  %v5514 = vsel %vm5511, %v5513, %v5509
  %v5515 = vmul.f32 1.0, %v5514
  %v5516 = vrcp.pop %v5494
  %v5517 = vmul.f32 %v5494, %v5516
  %v5518 = vsub.f32 1.0, %v5517
  %v5519 = vmul.f32 %v5516, %v5518
  %v5520 = vadd.f32 %v5516, %v5519
  %vm5521 = vweird.f32 %v5494
  %vm5522 = vweird.f32 %v5516
  %vm5523 = vmor %vm5521, %vm5522
  %v5524 = vsel %vm5523, %v5516, %v5520
  %v5525 = vand.u32 2147483647, %v5494
  %vm5526 = vcmp.eq.f32.partialorder %v5525, 8.507059e+37
  %v5527 = vand.u32 %v5494, 2147483648
  %v5528 = vor.u32 1.1754944e-38, %v5527
  %v5529 = vsel %vm5526, %v5528, %v5524
  %v5530 = vmul.f32 1.0, %v5529
  %v5531 = vrcp.pop %v5495
  %v5532 = vmul.f32 %v5495, %v5531
  %v5533 = vsub.f32 1.0, %v5532
  %v5534 = vmul.f32 %v5531, %v5533
  %v5535 = vadd.f32 %v5531, %v5534
  %vm5536 = vweird.f32 %v5495
  %vm5537 = vweird.f32 %v5531
  %vm5538 = vmor %vm5536, %vm5537
  %v5539 = vsel %vm5538, %v5531, %v5535
  %v5540 = vand.u32 2147483647, %v5495
  %vm5541 = vcmp.eq.f32.partialorder %v5540, 8.507059e+37
  %v5542 = vand.u32 %v5495, 2147483648
  %v5543 = vor.u32 1.1754944e-38, %v5542
  %v5544 = vsel %vm5541, %v5543, %v5539
  %v5545 = vmul.f32 1.0, %v5544
  %v5546 = vrcp.pop %v5496
  %v5547 = vmul.f32 %v5496, %v5546
  %v5548 = vsub.f32 1.0, %v5547
  %v5549 = vmul.f32 %v5546, %v5548
  %v5550 = vadd.f32 %v5546, %v5549
  %vm5551 = vweird.f32 %v5496
  %vm5552 = vweird.f32 %v5546
  %vm5553 = vmor %vm5551, %vm5552
  %v5554 = vsel %vm5553, %v5546, %v5550
  %v5555 = vand.u32 2147483647, %v5496
  %vm5556 = vcmp.eq.f32.partialorder %v5555, 8.507059e+37
  %v5557 = vand.u32 %v5496, 2147483648
  %v5558 = vor.u32 1.1754944e-38, %v5557
  %v5559 = vsel %vm5556, %v5558, %v5554
  %v5560 = vmul.f32 1.0, %v5559
  %v5561 = vrcp.pop %v5497
  %v5562 = vmul.f32 %v5497, %v5561
  %v5563 = vsub.f32 1.0, %v5562
  %v5564 = vmul.f32 %v5561, %v5563
  %v5565 = vadd.f32 %v5561, %v5564
  %vm5566 = vweird.f32 %v5497
  %vm5567 = vweird.f32 %v5561
  %vm5568 = vmor %vm5566, %vm5567
  %v5569 = vsel %vm5568, %v5561, %v5565
  %v5570 = vand.u32 2147483647, %v5497
  %vm5571 = vcmp.eq.f32.partialorder %v5570, 8.507059e+37
  %v5572 = vand.u32 %v5497, 2147483648
  %v5573 = vor.u32 1.1754944e-38, %v5572
  %v5574 = vsel %vm5571, %v5573, %v5569
  %v5575 = vmul.f32 1.0, %v5574
  %v5576 = vrcp.pop %v5498
  %v5577 = vmul.f32 %v5498, %v5576
  %v5578 = vsub.f32 1.0, %v5577
  %v5579 = vmul.f32 %v5576, %v5578
  %v5580 = vadd.f32 %v5576, %v5579
  %vm5581 = vweird.f32 %v5498
  %vm5582 = vweird.f32 %v5576
  %vm5583 = vmor %vm5581, %vm5582
  %v5584 = vsel %vm5583, %v5576, %v5580
  %v5585 = vand.u32 2147483647, %v5498
  %vm5586 = vcmp.eq.f32.partialorder %v5585, 8.507059e+37
  %v5587 = vand.u32 %v5498, 2147483648
  %v5588 = vor.u32 1.1754944e-38, %v5587
  %v5589 = vsel %vm5586, %v5588, %v5584
  %v5590 = vmul.f32 1.0, %v5589
  %v5591 = vrcp.pop %v5499
  %v5592 = vmul.f32 %v5499, %v5591
  %v5593 = vsub.f32 1.0, %v5592
  %v5594 = vmul.f32 %v5591, %v5593
  %v5595 = vadd.f32 %v5591, %v5594
  %vm5596 = vweird.f32 %v5499
  %vm5597 = vweird.f32 %v5591
  %vm5598 = vmor %vm5596, %vm5597
  %v5599 = vsel %vm5598, %v5591, %v5595
  %v5600 = vand.u32 2147483647, %v5499
  %vm5601 = vcmp.eq.f32.partialorder %v5600, 8.507059e+37
  %v5602 = vand.u32 %v5499, 2147483648
  %v5603 = vor.u32 1.1754944e-38, %v5602
  %v5604 = vsel %vm5601, %v5603, %v5599
  %v5605 = vmul.f32 1.0, %v5604
  %v5606 = vrcp.pop %v5500
  %v5607 = vmul.f32 %v5500, %v5606
  %v5608 = vsub.f32 1.0, %v5607
  %v5609 = vmul.f32 %v5606, %v5608
  %v5610 = vadd.f32 %v5606, %v5609
  %vm5611 = vweird.f32 %v5500
  %vm5612 = vweird.f32 %v5606
  %vm5613 = vmor %vm5611, %vm5612
  %v5614 = vsel %vm5613, %v5606, %v5610
  %v5615 = vand.u32 2147483647, %v5500
  %vm5616 = vcmp.eq.f32.partialorder %v5615, 8.507059e+37
  %v5617 = vand.u32 %v5500, 2147483648
  %v5618 = vor.u32 1.1754944e-38, %v5617
  %v5619 = vsel %vm5616, %v5618, %v5614
  %v5620 = vmul.f32 1.0, %v5619
  %v5621 = vadd.f32 %v5450, %v1379
  %v5622 = vadd.f32 %v5453, %v1384
  %v5623 = vadd.f32 %v5456, %v1389
  %v5624 = vadd.f32 %v5459, %v1394
  %v5625 = vmul.f32 %v5515, %v5621
  %v5626 = vmul.f32 %v5530, %v5622
  %v5627 = vmul.f32 %v5545, %v5623
  %v5628 = vmul.f32 %v5560, %v5624
  %v5629 = vadd.f32 %v5404, %v5625
  %v5630 = vadd.f32 %v5405, %v5626
  %v5631 = vadd.f32 %v5406, %v5627
  %v5632 = vadd.f32 %v5407, %v5628
  %v5633 = vtanh.pop %v5629
  %v5634 = vtanh.pop %v5630
  %v5635 = vtanh.pop %v5631
  %v5636 = vtanh.pop %v5632
  %v5637 = vsub.f32 1.0, %v5575
  %v5638 = vsub.f32 1.0, %v5590
  %v5639 = vsub.f32 1.0, %v5605
  %v5640 = vsub.f32 1.0, %v5620
  %v5641 = vmul.f32 %v5637, %v5633
  %v5642 = vmul.f32 %v5638, %v5634
  %v5643 = vmul.f32 %v5639, %v5635
  %v5644 = vmul.f32 %v5640, %v5636
  %v5645 = vmul.f32 %v5575, %v5127
  %v5646 = vmul.f32 %v5590, %v5128
  %v5647 = vmul.f32 %v5605, %v5129
  %v5648 = vmul.f32 %v5620, %v5130
  %v5649 = vadd.f32 %v5641, %v5645
  %v5650 = vadd.f32 %v5642, %v5646
  %v5651 = vadd.f32 %v5643, %v5647
  %v5652 = vadd.f32 %v5644, %v5648
  %5653 = vst [vmem:[%s1996] sm:$0xff] %v5392
  %5654 = vst [vmem:[%s1996 + $0x8] sm:$0xff] %v5393
  %5655 = vst [vmem:[%s1996 + $0x10] sm:$0xff] %v5394
  %5656 = vst [vmem:[%s1996 + $0x18] sm:$0xff] %v5395
  %5657 = vst [vmem:[#allocation3 + $0x20] sm:$0xff] %v5649
  %5658 = vst [vmem:[#allocation3 + $0x28] sm:$0xff] %v5650
  %5659 = vst [vmem:[#allocation3 + $0x30] sm:$0xff] %v5651
  %5660 = vst [vmem:[#allocation3 + $0x38] sm:$0xff] %v5652
  %5661 = vst [vmem:[%s12] sm:$0xff] %v5392
  %5662 = vst [vmem:[%s12 + $0x8] sm:$0xff] %v5393
  %5663 = vst [vmem:[%s12 + $0x10] sm:$0xff] %v5394
  %5664 = vst [vmem:[%s12 + $0x18] sm:$0xff] %v5395
  %s5665 = scalar_lea.vmem %s12, 32
  %5666 = vst [vmem:[%s5665] sm:$0xff] %v5649
  %5667 = vst [vmem:[%s5665 + $0x8] sm:$0xff] %v5650
  %5668 = vst [vmem:[%s5665 + $0x10] sm:$0xff] %v5651
  %5669 = vst [vmem:[%s5665 + $0x18] sm:$0xff] %v5652
  %v5670 = vld [vmem:[%s6] sm:$0xff]
  %v5671 = vld [vmem:[%s6 + $0x8] sm:$0xff]
  %v5672 = vld [vmem:[%s6 + $0x10] sm:$0xff]
  %v5673 = vld [vmem:[%s6 + $0x18] sm:$0xff]
  %v5674 = vld [vmem:[%s6 + $0x20] sm:$0xff]
  %v5675 = vld [vmem:[%s6 + $0x28] sm:$0xff]
  %v5676 = vld [vmem:[%s6 + $0x30] sm:$0xff]
  %v5677 = vld [vmem:[%s6 + $0x38] sm:$0xff]
  %v5678 = vld [vmem:[%s7] sm:$0xff]
  %v5679 = vld [vmem:[%s7 + $0x8] sm:$0xff]
  %v5680 = vld [vmem:[%s7 + $0x10] sm:$0xff]
  %v5681 = vld [vmem:[%s7 + $0x18] sm:$0xff]
  %v5682 = vld [vmem:[%s7 + $0x20] sm:$0xff]
  %v5683 = vld [vmem:[%s7 + $0x28] sm:$0xff]
  %v5684 = vld [vmem:[%s7 + $0x30] sm:$0xff]
  %v5685 = vld [vmem:[%s7 + $0x38] sm:$0xff]
  %5687 = vset.pattern.permute.xlu0 0
  %5688 = vperm.xlu0 %5687, %v5678
  %v5689 = vpop.permute.xlu0 %5688
  %5692 = vset.pattern.permute.xlu0 0
  %5693 = vperm.xlu0 %5692, %v5679
  %v5694 = vpop.permute.xlu0 %5693
  %5697 = vset.pattern.permute.xlu0 0
  %5698 = vperm.xlu0 %5697, %v5680
  %v5699 = vpop.permute.xlu0 %5698
  %5702 = vset.pattern.permute.xlu0 0
  %5703 = vperm.xlu0 %5702, %v5681
  %v5704 = vpop.permute.xlu0 %5703
  %5707 = vset.pattern.permute.xlu0 0
  %5708 = vperm.xlu0 %5707, %v5682
  %v5709 = vpop.permute.xlu0 %5708
  %5712 = vset.pattern.permute.xlu0 0
  %5713 = vperm.xlu0 %5712, %v5683
  %v5714 = vpop.permute.xlu0 %5713
  %5717 = vset.pattern.permute.xlu0 0
  %5718 = vperm.xlu0 %5717, %v5684
  %v5719 = vpop.permute.xlu0 %5718
  %5722 = vset.pattern.permute.xlu0 0
  %5723 = vperm.xlu0 %5722, %v5685
  %v5724 = vpop.permute.xlu0 %5723
  %v5726 = vld [vmem:[%s8] sm:$0xff]
  %v5727 = vld [vmem:[%s8 + $0x8] sm:$0xff]
  %v5728 = vld [vmem:[%s8 + $0x10] sm:$0xff]
  %v5729 = vld [vmem:[%s8 + $0x18] sm:$0xff]
  %v5730 = vld [vmem:[%s8 + $0x20] sm:$0xff]
  %v5731 = vld [vmem:[%s8 + $0x28] sm:$0xff]
  %v5732 = vld [vmem:[%s8 + $0x30] sm:$0xff]
  %v5733 = vld [vmem:[%s8 + $0x38] sm:$0xff]
  %5735 = vset.pattern.permute.xlu0 0
  %5736 = vperm.xlu0 %5735, %v5726
  %v5737 = vpop.permute.xlu0 %5736
  %5740 = vset.pattern.permute.xlu0 0
  %5741 = vperm.xlu0 %5740, %v5727
  %v5742 = vpop.permute.xlu0 %5741
  %5745 = vset.pattern.permute.xlu0 0
  %5746 = vperm.xlu0 %5745, %v5728
  %v5747 = vpop.permute.xlu0 %5746
  %5750 = vset.pattern.permute.xlu0 0
  %5751 = vperm.xlu0 %5750, %v5729
  %v5752 = vpop.permute.xlu0 %5751
  %5755 = vset.pattern.permute.xlu0 0
  %5756 = vperm.xlu0 %5755, %v5730
  %v5757 = vpop.permute.xlu0 %5756
  %5760 = vset.pattern.permute.xlu0 0
  %5761 = vperm.xlu0 %5760, %v5731
  %v5762 = vpop.permute.xlu0 %5761
  %5765 = vset.pattern.permute.xlu0 0
  %5766 = vperm.xlu0 %5765, %v5732
  %v5767 = vpop.permute.xlu0 %5766
  %5770 = vset.pattern.permute.xlu0 0
  %5771 = vperm.xlu0 %5770, %v5733
  %v5772 = vpop.permute.xlu0 %5771
  %v5774 = vld [vmem:[#allocation3] sm:$0xff]
  %v5775 = vld [vmem:[#allocation3 + $0x8] sm:$0xff]
  %v5776 = vld [vmem:[#allocation3 + $0x10] sm:$0xff]
  %v5777 = vld [vmem:[#allocation3 + $0x18] sm:$0xff]
  %v5778 = vld [vmem:[#allocation3 + $0x20] sm:$0xff]
  %v5779 = vld [vmem:[#allocation3 + $0x28] sm:$0xff]
  %v5780 = vld [vmem:[#allocation3 + $0x30] sm:$0xff]
  %v5781 = vld [vmem:[#allocation3 + $0x38] sm:$0xff]
  %v5783 = vsel %vm303, %v5670, 0
  %v5786 = vsel %vm303, %v5671, 0
  %v5789 = vsel %vm303, %v5672, 0
  %v5792 = vsel %vm303, %v5673, 0
  %v5795 = vsel %vm303, %v5674, 0
  %v5798 = vsel %vm303, %v5675, 0
  %v5801 = vsel %vm303, %v5676, 0
  %v5804 = vsel %vm303, %v5677, 0
  %5806 = vmatpush.msra.mxu0 0.0
  %5807 = vmatpush.msra.mxu0 0.0
  %5808 = vmatpush.msra.mxu0 0.0
  %5809 = vmatpush.msra.mxu0 0.0
  %5810 = vmatpush.msra.mxu0 0.0
  %5811 = vmatpush.msra.mxu0 0.0
  %5812 = vmatpush.msra.mxu0 0.0
  %5813 = vmatpush.msra.mxu0 0.0
  %5814 = vmatpush.msra.mxu0 %v5781
  %5815 = vmatpush.msra.mxu0 %v5780
  %5816 = vmatpush.msra.mxu0 %v5779
  %5817 = vmatpush.msra.mxu0 %v5778
  %5818 = vmatpush.msra.mxu0 %v5777
  %5819 = vmatpush.msra.mxu0 %v5776
  %5820 = vmatpush.msra.mxu0 %v5775
  %5821 = vmatpush.msra.mxu0 %v5774
  %5822 = vmatmul.f32.gmra.mxu0 %v5783
  %v5823 = vpop.f32.mrf.mxu0
  %v5824 = vadd.f32 %v5689, %v5823
  %5825 = vmatmul.f32.gmra.mxu0 %v5786
  %v5826 = vpop.f32.mrf.mxu0
  %v5827 = vadd.f32 %v5694, %v5826
  %5828 = vmatmul.f32.gmra.mxu0 %v5789
  %v5829 = vpop.f32.mrf.mxu0
  %v5830 = vadd.f32 %v5699, %v5829
  %5831 = vmatmul.f32.gmra.mxu0 %v5792
  %v5832 = vpop.f32.mrf.mxu0
  %v5833 = vadd.f32 %v5704, %v5832
  %5834 = vmatmul.f32.gmra.mxu0 %v5795
  %v5835 = vpop.f32.mrf.mxu0
  %v5836 = vadd.f32 %v5709, %v5835
  %5837 = vmatmul.f32.gmra.mxu0 %v5798
  %v5838 = vpop.f32.mrf.mxu0
  %v5839 = vadd.f32 %v5714, %v5838
  %5840 = vmatmul.f32.gmra.mxu0 %v5801
  %v5841 = vpop.f32.mrf.mxu0
  %v5842 = vadd.f32 %v5719, %v5841
  %5843 = vmatmul.f32.gmra.mxu0 %v5804
  %v5844 = vpop.f32.mrf.mxu0
  %v5845 = vadd.f32 %v5724, %v5844
  %5846 = vdwg.mxu0
  %v5847 = vtanh.pop %v5824
  %v5848 = vtanh.pop %v5827
  %v5849 = vtanh.pop %v5830
  %v5850 = vtanh.pop %v5833
  %v5851 = vtanh.pop %v5836
  %v5852 = vtanh.pop %v5839
  %v5853 = vtanh.pop %v5842
  %v5854 = vtanh.pop %v5845
  %v5855 = vmul.f32 %v5847, %v5737
  %v5856 = vmul.f32 %v5848, %v5742
  %v5857 = vmul.f32 %v5849, %v5747
  %v5858 = vmul.f32 %v5850, %v5752
  %v5859 = vmul.f32 %v5851, %v5757
  %v5860 = vmul.f32 %v5852, %v5762
  %v5861 = vmul.f32 %v5853, %v5767
  %v5862 = vmul.f32 %v5854, %v5772
  %v5863 = vadd.f32 %v5855, %v5856
  %v5864 = vadd.f32 %v5863, %v5857
  %v5865 = vadd.f32 %v5864, %v5858
  %v5866 = vadd.f32 %v5865, %v5859
  %v5867 = vadd.f32 %v5866, %v5860
  %v5868 = vadd.f32 %v5867, %v5861
  %v5869 = vadd.f32 %v5868, %v5862
  %v5870 = vrot.slane %v5869, 4
  %v5871 = vadd.f32 %v5869, %v5870
  %v5872 = vrot.slane %v5871, 2
  %v5873 = vadd.f32 %v5871, %v5872
  %v5874 = vrot.slane %v5873, 1
  %v5875 = vadd.f32 %v5873, %v5874
  %v5876 = vtanh.pop %v5875
  %v5877 = vld [vmem:[%s2515] sm:$0xff]
  %v5878 = vld [vmem:[%s2515 + $0x8] sm:$0xff]
  %v5879 = vld [vmem:[%s2515 + $0x10] sm:$0xff]
  %v5880 = vld [vmem:[%s2515 + $0x18] sm:$0xff]
  %v5881 = vld [vmem:[%s2515 + $0x20] sm:$0xff]
  %v5882 = vld [vmem:[%s2515 + $0x28] sm:$0xff]
  %v5883 = vld [vmem:[%s2515 + $0x30] sm:$0xff]
  %v5884 = vld [vmem:[%s2515 + $0x38] sm:$0xff]
  %5885 = vmatpush.msra.mxu0 0.0
  %5886 = vmatpush.msra.mxu0 0.0
  %5887 = vmatpush.msra.mxu0 0.0
  %5888 = vmatpush.msra.mxu0 0.0
  %5889 = vmatpush.msra.mxu0 0.0
  %5890 = vmatpush.msra.mxu0 0.0
  %5891 = vmatpush.msra.mxu0 0.0
  %5892 = vmatpush.msra.mxu0 0.0
  %5893 = vmatpush.msra.mxu0 %v5884
  %5894 = vmatpush.msra.mxu0 %v5883
  %5895 = vmatpush.msra.mxu0 %v5882
  %5896 = vmatpush.msra.mxu0 %v5881
  %5897 = vmatpush.msra.mxu0 %v5880
  %5898 = vmatpush.msra.mxu0 %v5879
  %5899 = vmatpush.msra.mxu0 %v5878
  %5900 = vmatpush.msra.mxu0 %v5877
  %5901 = vmatmul.f32.gmra.mxu0 %v5783
  %v5902 = vpop.f32.mrf.mxu0
  %v5903 = vadd.f32 %v5689, %v5902
  %5904 = vmatmul.f32.gmra.mxu0 %v5786
  %v5905 = vpop.f32.mrf.mxu0
  %v5906 = vadd.f32 %v5694, %v5905
  %5907 = vmatmul.f32.gmra.mxu0 %v5789
  %v5908 = vpop.f32.mrf.mxu0
  %v5909 = vadd.f32 %v5699, %v5908
  %5910 = vmatmul.f32.gmra.mxu0 %v5792
  %v5911 = vpop.f32.mrf.mxu0
  %v5912 = vadd.f32 %v5704, %v5911
  %5913 = vmatmul.f32.gmra.mxu0 %v5795
  %v5914 = vpop.f32.mrf.mxu0
  %v5915 = vadd.f32 %v5709, %v5914
  %5916 = vmatmul.f32.gmra.mxu0 %v5798
  %v5917 = vpop.f32.mrf.mxu0
  %v5918 = vadd.f32 %v5714, %v5917
  %5919 = vmatmul.f32.gmra.mxu0 %v5801
  %v5920 = vpop.f32.mrf.mxu0
  %v5921 = vadd.f32 %v5719, %v5920
  %5922 = vmatmul.f32.gmra.mxu0 %v5804
  %v5923 = vpop.f32.mrf.mxu0
  %v5924 = vadd.f32 %v5724, %v5923
  %5925 = vdwg.mxu0
  %v5926 = vtanh.pop %v5903
  %v5927 = vtanh.pop %v5906
  %v5928 = vtanh.pop %v5909
  %v5929 = vtanh.pop %v5912
  %v5930 = vtanh.pop %v5915
  %v5931 = vtanh.pop %v5918
  %v5932 = vtanh.pop %v5921
  %v5933 = vtanh.pop %v5924
  %v5934 = vmul.f32 %v5926, %v5737
  %v5935 = vmul.f32 %v5927, %v5742
  %v5936 = vmul.f32 %v5928, %v5747
  %v5937 = vmul.f32 %v5929, %v5752
  %v5938 = vmul.f32 %v5930, %v5757
  %v5939 = vmul.f32 %v5931, %v5762
  %v5940 = vmul.f32 %v5932, %v5767
  %v5941 = vmul.f32 %v5933, %v5772
  %v5942 = vadd.f32 %v5934, %v5935
  %v5943 = vadd.f32 %v5942, %v5936
  %v5944 = vadd.f32 %v5943, %v5937
  %v5945 = vadd.f32 %v5944, %v5938
  %v5946 = vadd.f32 %v5945, %v5939
  %v5947 = vadd.f32 %v5946, %v5940
  %v5948 = vadd.f32 %v5947, %v5941
  %v5949 = vrot.slane %v5948, 4
  %v5950 = vadd.f32 %v5948, %v5949
  %v5951 = vrot.slane %v5950, 2
  %v5952 = vadd.f32 %v5950, %v5951
  %v5953 = vrot.slane %v5952, 1
  %v5954 = vadd.f32 %v5952, %v5953
  %v5955 = vtanh.pop %v5954
  %v5956 = vld [vmem:[%s3039] sm:$0xff]
  %v5957 = vld [vmem:[%s3039 + $0x8] sm:$0xff]
  %v5958 = vld [vmem:[%s3039 + $0x10] sm:$0xff]
  %v5959 = vld [vmem:[%s3039 + $0x18] sm:$0xff]
  %v5960 = vld [vmem:[%s3039 + $0x20] sm:$0xff]
  %v5961 = vld [vmem:[%s3039 + $0x28] sm:$0xff]
  %v5962 = vld [vmem:[%s3039 + $0x30] sm:$0xff]
  %v5963 = vld [vmem:[%s3039 + $0x38] sm:$0xff]
  %5964 = vmatpush.msra.mxu0 0.0
  %5965 = vmatpush.msra.mxu0 0.0
  %5966 = vmatpush.msra.mxu0 0.0
  %5967 = vmatpush.msra.mxu0 0.0
  %5968 = vmatpush.msra.mxu0 0.0
  %5969 = vmatpush.msra.mxu0 0.0
  %5970 = vmatpush.msra.mxu0 0.0
  %5971 = vmatpush.msra.mxu0 0.0
  %5972 = vmatpush.msra.mxu0 %v5963
  %5973 = vmatpush.msra.mxu0 %v5962
  %5974 = vmatpush.msra.mxu0 %v5961
  %5975 = vmatpush.msra.mxu0 %v5960
  %5976 = vmatpush.msra.mxu0 %v5959
  %5977 = vmatpush.msra.mxu0 %v5958
  %5978 = vmatpush.msra.mxu0 %v5957
  %5979 = vmatpush.msra.mxu0 %v5956
  %5980 = vmatmul.f32.gmra.mxu0 %v5783
  %v5981 = vpop.f32.mrf.mxu0
  %v5982 = vadd.f32 %v5689, %v5981
  %5983 = vmatmul.f32.gmra.mxu0 %v5786
  %v5984 = vpop.f32.mrf.mxu0
  %v5985 = vadd.f32 %v5694, %v5984
  %5986 = vmatmul.f32.gmra.mxu0 %v5789
  %v5987 = vpop.f32.mrf.mxu0
  %v5988 = vadd.f32 %v5699, %v5987
  %5989 = vmatmul.f32.gmra.mxu0 %v5792
  %v5990 = vpop.f32.mrf.mxu0
  %v5991 = vadd.f32 %v5704, %v5990
  %5992 = vmatmul.f32.gmra.mxu0 %v5795
  %v5993 = vpop.f32.mrf.mxu0
  %v5994 = vadd.f32 %v5709, %v5993
  %5995 = vmatmul.f32.gmra.mxu0 %v5798
  %v5996 = vpop.f32.mrf.mxu0
  %v5997 = vadd.f32 %v5714, %v5996
  %5998 = vmatmul.f32.gmra.mxu0 %v5801
  %v5999 = vpop.f32.mrf.mxu0
  %v6000 = vadd.f32 %v5719, %v5999
  %6001 = vmatmul.f32.gmra.mxu0 %v5804
  %v6002 = vpop.f32.mrf.mxu0
  %v6003 = vadd.f32 %v5724, %v6002
  %6004 = vdwg.mxu0
  %v6005 = vtanh.pop %v5982
  %v6006 = vtanh.pop %v5985
  %v6007 = vtanh.pop %v5988
  %v6008 = vtanh.pop %v5991
  %v6009 = vtanh.pop %v5994
  %v6010 = vtanh.pop %v5997
  %v6011 = vtanh.pop %v6000
  %v6012 = vtanh.pop %v6003
  %v6013 = vmul.f32 %v6005, %v5737
  %v6014 = vmul.f32 %v6006, %v5742
  %v6015 = vmul.f32 %v6007, %v5747
  %v6016 = vmul.f32 %v6008, %v5752
  %v6017 = vmul.f32 %v6009, %v5757
  %v6018 = vmul.f32 %v6010, %v5762
  %v6019 = vmul.f32 %v6011, %v5767
  %v6020 = vmul.f32 %v6012, %v5772
  %v6021 = vadd.f32 %v6013, %v6014
  %v6022 = vadd.f32 %v6021, %v6015
  %v6023 = vadd.f32 %v6022, %v6016
  %v6024 = vadd.f32 %v6023, %v6017
  %v6025 = vadd.f32 %v6024, %v6018
  %v6026 = vadd.f32 %v6025, %v6019
  %v6027 = vadd.f32 %v6026, %v6020
  %v6028 = vrot.slane %v6027, 4
  %v6029 = vadd.f32 %v6027, %v6028
  %v6030 = vrot.slane %v6029, 2
  %v6031 = vadd.f32 %v6029, %v6030
  %v6032 = vrot.slane %v6031, 1
  %v6033 = vadd.f32 %v6031, %v6032
  %v6034 = vtanh.pop %v6033
  %v6035 = vld [vmem:[%s3563] sm:$0xff]
  %v6036 = vld [vmem:[%s3563 + $0x8] sm:$0xff]
  %v6037 = vld [vmem:[%s3563 + $0x10] sm:$0xff]
  %v6038 = vld [vmem:[%s3563 + $0x18] sm:$0xff]
  %v6039 = vld [vmem:[%s3563 + $0x20] sm:$0xff]
  %v6040 = vld [vmem:[%s3563 + $0x28] sm:$0xff]
  %v6041 = vld [vmem:[%s3563 + $0x30] sm:$0xff]
  %v6042 = vld [vmem:[%s3563 + $0x38] sm:$0xff]
  %6043 = vmatpush.msra.mxu0 0.0
  %6044 = vmatpush.msra.mxu0 0.0
  %6045 = vmatpush.msra.mxu0 0.0
  %6046 = vmatpush.msra.mxu0 0.0
  %6047 = vmatpush.msra.mxu0 0.0
  %6048 = vmatpush.msra.mxu0 0.0
  %6049 = vmatpush.msra.mxu0 0.0
  %6050 = vmatpush.msra.mxu0 0.0
  %6051 = vmatpush.msra.mxu0 %v6042
  %6052 = vmatpush.msra.mxu0 %v6041
  %6053 = vmatpush.msra.mxu0 %v6040
  %6054 = vmatpush.msra.mxu0 %v6039
  %6055 = vmatpush.msra.mxu0 %v6038
  %6056 = vmatpush.msra.mxu0 %v6037
  %6057 = vmatpush.msra.mxu0 %v6036
  %6058 = vmatpush.msra.mxu0 %v6035
  %6059 = vmatmul.f32.gmra.mxu0 %v5783
  %v6060 = vpop.f32.mrf.mxu0
  %v6061 = vadd.f32 %v5689, %v6060
  %6062 = vmatmul.f32.gmra.mxu0 %v5786
  %v6063 = vpop.f32.mrf.mxu0
  %v6064 = vadd.f32 %v5694, %v6063
  %6065 = vmatmul.f32.gmra.mxu0 %v5789
  %v6066 = vpop.f32.mrf.mxu0
  %v6067 = vadd.f32 %v5699, %v6066
  %6068 = vmatmul.f32.gmra.mxu0 %v5792
  %v6069 = vpop.f32.mrf.mxu0
  %v6070 = vadd.f32 %v5704, %v6069
  %6071 = vmatmul.f32.gmra.mxu0 %v5795
  %v6072 = vpop.f32.mrf.mxu0
  %v6073 = vadd.f32 %v5709, %v6072
  %6074 = vmatmul.f32.gmra.mxu0 %v5798
  %v6075 = vpop.f32.mrf.mxu0
  %v6076 = vadd.f32 %v5714, %v6075
  %6077 = vmatmul.f32.gmra.mxu0 %v5801
  %v6078 = vpop.f32.mrf.mxu0
  %v6079 = vadd.f32 %v5719, %v6078
  %6080 = vmatmul.f32.gmra.mxu0 %v5804
  %v6081 = vpop.f32.mrf.mxu0
  %v6082 = vadd.f32 %v5724, %v6081
  %6083 = vdwg.mxu0
  %v6084 = vtanh.pop %v6061
  %v6085 = vtanh.pop %v6064
  %v6086 = vtanh.pop %v6067
  %v6087 = vtanh.pop %v6070
  %v6088 = vtanh.pop %v6073
  %v6089 = vtanh.pop %v6076
  %v6090 = vtanh.pop %v6079
  %v6091 = vtanh.pop %v6082
  %v6092 = vmul.f32 %v6084, %v5737
  %v6093 = vmul.f32 %v6085, %v5742
  %v6094 = vmul.f32 %v6086, %v5747
  %v6095 = vmul.f32 %v6087, %v5752
  %v6096 = vmul.f32 %v6088, %v5757
  %v6097 = vmul.f32 %v6089, %v5762
  %v6098 = vmul.f32 %v6090, %v5767
  %v6099 = vmul.f32 %v6091, %v5772
  %v6100 = vadd.f32 %v6092, %v6093
  %v6101 = vadd.f32 %v6100, %v6094
  %v6102 = vadd.f32 %v6101, %v6095
  %v6103 = vadd.f32 %v6102, %v6096
  %v6104 = vadd.f32 %v6103, %v6097
  %v6105 = vadd.f32 %v6104, %v6098
  %v6106 = vadd.f32 %v6105, %v6099
  %v6107 = vrot.slane %v6106, 4
  %v6108 = vadd.f32 %v6106, %v6107
  %v6109 = vrot.slane %v6108, 2
  %v6110 = vadd.f32 %v6108, %v6109
  %v6111 = vrot.slane %v6110, 1
  %v6112 = vadd.f32 %v6110, %v6111
  %v6113 = vtanh.pop %v6112
  %v6114 = vld [vmem:[%s3568] sm:$0xff]
  %v6115 = vld [vmem:[%s3568 + $0x8] sm:$0xff]
  %v6116 = vld [vmem:[%s3568 + $0x10] sm:$0xff]
  %v6117 = vld [vmem:[%s3568 + $0x18] sm:$0xff]
  %v6118 = vld [vmem:[%s3568 + $0x20] sm:$0xff]
  %v6119 = vld [vmem:[%s3568 + $0x28] sm:$0xff]
  %v6120 = vld [vmem:[%s3568 + $0x30] sm:$0xff]
  %v6121 = vld [vmem:[%s3568 + $0x38] sm:$0xff]
  %6122 = vmatpush.msra.mxu0 0.0
  %6123 = vmatpush.msra.mxu0 0.0
  %6124 = vmatpush.msra.mxu0 0.0
  %6125 = vmatpush.msra.mxu0 0.0
  %6126 = vmatpush.msra.mxu0 0.0
  %6127 = vmatpush.msra.mxu0 0.0
  %6128 = vmatpush.msra.mxu0 0.0
  %6129 = vmatpush.msra.mxu0 0.0
  %6130 = vmatpush.msra.mxu0 %v6121
  %6131 = vmatpush.msra.mxu0 %v6120
  %6132 = vmatpush.msra.mxu0 %v6119
  %6133 = vmatpush.msra.mxu0 %v6118
  %6134 = vmatpush.msra.mxu0 %v6117
  %6135 = vmatpush.msra.mxu0 %v6116
  %6136 = vmatpush.msra.mxu0 %v6115
  %6137 = vmatpush.msra.mxu0 %v6114
  %6138 = vmatmul.f32.gmra.mxu0 %v5783
  %v6139 = vpop.f32.mrf.mxu0
  %v6140 = vadd.f32 %v5689, %v6139
  %6141 = vmatmul.f32.gmra.mxu0 %v5786
  %v6142 = vpop.f32.mrf.mxu0
  %v6143 = vadd.f32 %v5694, %v6142
  %6144 = vmatmul.f32.gmra.mxu0 %v5789
  %v6145 = vpop.f32.mrf.mxu0
  %v6146 = vadd.f32 %v5699, %v6145
  %6147 = vmatmul.f32.gmra.mxu0 %v5792
  %v6148 = vpop.f32.mrf.mxu0
  %v6149 = vadd.f32 %v5704, %v6148
  %6150 = vmatmul.f32.gmra.mxu0 %v5795
  %v6151 = vpop.f32.mrf.mxu0
  %v6152 = vadd.f32 %v5709, %v6151
  %6153 = vmatmul.f32.gmra.mxu0 %v5798
  %v6154 = vpop.f32.mrf.mxu0
  %v6155 = vadd.f32 %v5714, %v6154
  %6156 = vmatmul.f32.gmra.mxu0 %v5801
  %v6157 = vpop.f32.mrf.mxu0
  %v6158 = vadd.f32 %v5719, %v6157
  %6159 = vmatmul.f32.gmra.mxu0 %v5804
  %v6160 = vpop.f32.mrf.mxu0
  %v6161 = vadd.f32 %v5724, %v6160
  %6162 = vdwg.mxu0
  %v6163 = vtanh.pop %v6140
  %v6164 = vtanh.pop %v6143
  %v6165 = vtanh.pop %v6146
  %v6166 = vtanh.pop %v6149
  %v6167 = vtanh.pop %v6152
  %v6168 = vtanh.pop %v6155
  %v6169 = vtanh.pop %v6158
  %v6170 = vtanh.pop %v6161
  %v6171 = vmul.f32 %v6163, %v5737
  %v6172 = vmul.f32 %v6164, %v5742
  %v6173 = vmul.f32 %v6165, %v5747
  %v6174 = vmul.f32 %v6166, %v5752
  %v6175 = vmul.f32 %v6167, %v5757
  %v6176 = vmul.f32 %v6168, %v5762
  %v6177 = vmul.f32 %v6169, %v5767
  %v6178 = vmul.f32 %v6170, %v5772
  %v6179 = vadd.f32 %v6171, %v6172
  %v6180 = vadd.f32 %v6179, %v6173
  %v6181 = vadd.f32 %v6180, %v6174
  %v6182 = vadd.f32 %v6181, %v6175
  %v6183 = vadd.f32 %v6182, %v6176
  %v6184 = vadd.f32 %v6183, %v6177
  %v6185 = vadd.f32 %v6184, %v6178
  %v6186 = vrot.slane %v6185, 4
  %v6187 = vadd.f32 %v6185, %v6186
  %v6188 = vrot.slane %v6187, 2
  %v6189 = vadd.f32 %v6187, %v6188
  %v6190 = vrot.slane %v6189, 1
  %v6191 = vadd.f32 %v6189, %v6190
  %v6192 = vtanh.pop %v6191
  %v6193 = vld [vmem:[%s3044] sm:$0xff]
  %v6194 = vld [vmem:[%s3044 + $0x8] sm:$0xff]
  %v6195 = vld [vmem:[%s3044 + $0x10] sm:$0xff]
  %v6196 = vld [vmem:[%s3044 + $0x18] sm:$0xff]
  %v6197 = vld [vmem:[%s3044 + $0x20] sm:$0xff]
  %v6198 = vld [vmem:[%s3044 + $0x28] sm:$0xff]
  %v6199 = vld [vmem:[%s3044 + $0x30] sm:$0xff]
  %v6200 = vld [vmem:[%s3044 + $0x38] sm:$0xff]
  %6201 = vmatpush.msra.mxu0 0.0
  %6202 = vmatpush.msra.mxu0 0.0
  %6203 = vmatpush.msra.mxu0 0.0
  %6204 = vmatpush.msra.mxu0 0.0
  %6205 = vmatpush.msra.mxu0 0.0
  %6206 = vmatpush.msra.mxu0 0.0
  %6207 = vmatpush.msra.mxu0 0.0
  %6208 = vmatpush.msra.mxu0 0.0
  %6209 = vmatpush.msra.mxu0 %v6200
  %6210 = vmatpush.msra.mxu0 %v6199
  %6211 = vmatpush.msra.mxu0 %v6198
  %6212 = vmatpush.msra.mxu0 %v6197
  %6213 = vmatpush.msra.mxu0 %v6196
  %6214 = vmatpush.msra.mxu0 %v6195
  %6215 = vmatpush.msra.mxu0 %v6194
  %6216 = vmatpush.msra.mxu0 %v6193
  %6217 = vmatmul.f32.gmra.mxu0 %v5783
  %v6218 = vpop.f32.mrf.mxu0
  %v6219 = vadd.f32 %v5689, %v6218
  %6220 = vmatmul.f32.gmra.mxu0 %v5786
  %v6221 = vpop.f32.mrf.mxu0
  %v6222 = vadd.f32 %v5694, %v6221
  %6223 = vmatmul.f32.gmra.mxu0 %v5789
  %v6224 = vpop.f32.mrf.mxu0
  %v6225 = vadd.f32 %v5699, %v6224
  %6226 = vmatmul.f32.gmra.mxu0 %v5792
  %v6227 = vpop.f32.mrf.mxu0
  %v6228 = vadd.f32 %v5704, %v6227
  %6229 = vmatmul.f32.gmra.mxu0 %v5795
  %v6230 = vpop.f32.mrf.mxu0
  %v6231 = vadd.f32 %v5709, %v6230
  %6232 = vmatmul.f32.gmra.mxu0 %v5798
  %v6233 = vpop.f32.mrf.mxu0
  %v6234 = vadd.f32 %v5714, %v6233
  %6235 = vmatmul.f32.gmra.mxu0 %v5801
  %v6236 = vpop.f32.mrf.mxu0
  %v6237 = vadd.f32 %v5719, %v6236
  %6238 = vmatmul.f32.gmra.mxu0 %v5804
  %v6239 = vpop.f32.mrf.mxu0
  %v6240 = vadd.f32 %v5724, %v6239
  %6241 = vdwg.mxu0
  %v6242 = vtanh.pop %v6219
  %v6243 = vtanh.pop %v6222
  %v6244 = vtanh.pop %v6225
  %v6245 = vtanh.pop %v6228
  %v6246 = vtanh.pop %v6231
  %v6247 = vtanh.pop %v6234
  %v6248 = vtanh.pop %v6237
  %v6249 = vtanh.pop %v6240
  %v6250 = vmul.f32 %v6242, %v5737
  %v6251 = vmul.f32 %v6243, %v5742
  %v6252 = vmul.f32 %v6244, %v5747
  %v6253 = vmul.f32 %v6245, %v5752
  %v6254 = vmul.f32 %v6246, %v5757
  %v6255 = vmul.f32 %v6247, %v5762
  %v6256 = vmul.f32 %v6248, %v5767
  %v6257 = vmul.f32 %v6249, %v5772
  %v6258 = vadd.f32 %v6250, %v6251
  %v6259 = vadd.f32 %v6258, %v6252
  %v6260 = vadd.f32 %v6259, %v6253
  %v6261 = vadd.f32 %v6260, %v6254
  %v6262 = vadd.f32 %v6261, %v6255
  %v6263 = vadd.f32 %v6262, %v6256
  %v6264 = vadd.f32 %v6263, %v6257
  %v6265 = vrot.slane %v6264, 4
  %v6266 = vadd.f32 %v6264, %v6265
  %v6267 = vrot.slane %v6266, 2
  %v6268 = vadd.f32 %v6266, %v6267
  %v6269 = vrot.slane %v6268, 1
  %v6270 = vadd.f32 %v6268, %v6269
  %v6271 = vtanh.pop %v6270
  %v6272 = vld [vmem:[%s2520] sm:$0xff]
  %v6273 = vld [vmem:[%s2520 + $0x8] sm:$0xff]
  %v6274 = vld [vmem:[%s2520 + $0x10] sm:$0xff]
  %v6275 = vld [vmem:[%s2520 + $0x18] sm:$0xff]
  %v6276 = vld [vmem:[%s2520 + $0x20] sm:$0xff]
  %v6277 = vld [vmem:[%s2520 + $0x28] sm:$0xff]
  %v6278 = vld [vmem:[%s2520 + $0x30] sm:$0xff]
  %v6279 = vld [vmem:[%s2520 + $0x38] sm:$0xff]
  %6280 = vmatpush.msra.mxu0 0.0
  %6281 = vmatpush.msra.mxu0 0.0
  %6282 = vmatpush.msra.mxu0 0.0
  %6283 = vmatpush.msra.mxu0 0.0
  %6284 = vmatpush.msra.mxu0 0.0
  %6285 = vmatpush.msra.mxu0 0.0
  %6286 = vmatpush.msra.mxu0 0.0
  %6287 = vmatpush.msra.mxu0 0.0
  %6288 = vmatpush.msra.mxu0 %v6279
  %6289 = vmatpush.msra.mxu0 %v6278
  %6290 = vmatpush.msra.mxu0 %v6277
  %6291 = vmatpush.msra.mxu0 %v6276
  %6292 = vmatpush.msra.mxu0 %v6275
  %6293 = vmatpush.msra.mxu0 %v6274
  %6294 = vmatpush.msra.mxu0 %v6273
  %6295 = vmatpush.msra.mxu0 %v6272
  %6296 = vmatmul.f32.gmra.mxu0 %v5783
  %v6297 = vpop.f32.mrf.mxu0
  %v6298 = vadd.f32 %v5689, %v6297
  %6299 = vmatmul.f32.gmra.mxu0 %v5786
  %v6300 = vpop.f32.mrf.mxu0
  %v6301 = vadd.f32 %v5694, %v6300
  %6302 = vmatmul.f32.gmra.mxu0 %v5789
  %v6303 = vpop.f32.mrf.mxu0
  %v6304 = vadd.f32 %v5699, %v6303
  %6305 = vmatmul.f32.gmra.mxu0 %v5792
  %v6306 = vpop.f32.mrf.mxu0
  %v6307 = vadd.f32 %v5704, %v6306
  %6308 = vmatmul.f32.gmra.mxu0 %v5795
  %v6309 = vpop.f32.mrf.mxu0
  %v6310 = vadd.f32 %v5709, %v6309
  %6311 = vmatmul.f32.gmra.mxu0 %v5798
  %v6312 = vpop.f32.mrf.mxu0
  %v6313 = vadd.f32 %v5714, %v6312
  %6314 = vmatmul.f32.gmra.mxu0 %v5801
  %v6315 = vpop.f32.mrf.mxu0
  %v6316 = vadd.f32 %v5719, %v6315
  %6317 = vmatmul.f32.gmra.mxu0 %v5804
  %v6318 = vpop.f32.mrf.mxu0
  %v6319 = vadd.f32 %v5724, %v6318
  %6320 = vdwg.mxu0
  %v6321 = vtanh.pop %v6298
  %v6322 = vtanh.pop %v6301
  %v6323 = vtanh.pop %v6304
  %v6324 = vtanh.pop %v6307
  %v6325 = vtanh.pop %v6310
  %v6326 = vtanh.pop %v6313
  %v6327 = vtanh.pop %v6316
  %v6328 = vtanh.pop %v6319
  %v6329 = vmul.f32 %v6321, %v5737
  %v6330 = vmul.f32 %v6322, %v5742
  %v6331 = vmul.f32 %v6323, %v5747
  %v6332 = vmul.f32 %v6324, %v5752
  %v6333 = vmul.f32 %v6325, %v5757
  %v6334 = vmul.f32 %v6326, %v5762
  %v6335 = vmul.f32 %v6327, %v5767
  %v6336 = vmul.f32 %v6328, %v5772
  %v6337 = vadd.f32 %v6329, %v6330
  %v6338 = vadd.f32 %v6337, %v6331
  %v6339 = vadd.f32 %v6338, %v6332
  %v6340 = vadd.f32 %v6339, %v6333
  %v6341 = vadd.f32 %v6340, %v6334
  %v6342 = vadd.f32 %v6341, %v6335
  %v6343 = vadd.f32 %v6342, %v6336
  %v6344 = vrot.slane %v6343, 4
  %v6345 = vadd.f32 %v6343, %v6344
  %v6346 = vrot.slane %v6345, 2
  %v6347 = vadd.f32 %v6345, %v6346
  %v6348 = vrot.slane %v6347, 1
  %v6349 = vadd.f32 %v6347, %v6348
  %v6350 = vtanh.pop %v6349
  %v6351 = vld [vmem:[%s1996] sm:$0xff]
  %v6352 = vld [vmem:[%s1996 + $0x8] sm:$0xff]
  %v6353 = vld [vmem:[%s1996 + $0x10] sm:$0xff]
  %v6354 = vld [vmem:[%s1996 + $0x18] sm:$0xff]
  %v6355 = vld [vmem:[%s1996 + $0x20] sm:$0xff]
  %v6356 = vld [vmem:[%s1996 + $0x28] sm:$0xff]
  %v6357 = vld [vmem:[%s1996 + $0x30] sm:$0xff]
  %v6358 = vld [vmem:[%s1996 + $0x38] sm:$0xff]
  %6359 = vmatpush.msra.mxu0 0.0
  %6360 = vmatpush.msra.mxu0 0.0
  %6361 = vmatpush.msra.mxu0 0.0
  %6362 = vmatpush.msra.mxu0 0.0
  %6363 = vmatpush.msra.mxu0 0.0
  %6364 = vmatpush.msra.mxu0 0.0
  %6365 = vmatpush.msra.mxu0 0.0
  %6366 = vmatpush.msra.mxu0 0.0
  %6367 = vmatpush.msra.mxu0 %v6358
  %6368 = vmatpush.msra.mxu0 %v6357
  %6369 = vmatpush.msra.mxu0 %v6356
  %6370 = vmatpush.msra.mxu0 %v6355
  %6371 = vmatpush.msra.mxu0 %v6354
  %6372 = vmatpush.msra.mxu0 %v6353
  %6373 = vmatpush.msra.mxu0 %v6352
  %6374 = vmatpush.msra.mxu0 %v6351
  %6375 = vmatmul.f32.gmra.mxu0 %v5783
  %v6376 = vpop.f32.mrf.mxu0
  %v6377 = vadd.f32 %v5689, %v6376
  %6378 = vmatmul.f32.gmra.mxu0 %v5786
  %v6379 = vpop.f32.mrf.mxu0
  %v6380 = vadd.f32 %v5694, %v6379
  %6381 = vmatmul.f32.gmra.mxu0 %v5789
  %v6382 = vpop.f32.mrf.mxu0
  %v6383 = vadd.f32 %v5699, %v6382
  %6384 = vmatmul.f32.gmra.mxu0 %v5792
  %v6385 = vpop.f32.mrf.mxu0
  %v6386 = vadd.f32 %v5704, %v6385
  %6387 = vmatmul.f32.gmra.mxu0 %v5795
  %v6388 = vpop.f32.mrf.mxu0
  %v6389 = vadd.f32 %v5709, %v6388
  %6390 = vmatmul.f32.gmra.mxu0 %v5798
  %v6391 = vpop.f32.mrf.mxu0
  %v6392 = vadd.f32 %v5714, %v6391
  %6393 = vmatmul.f32.gmra.mxu0 %v5801
  %v6394 = vpop.f32.mrf.mxu0
  %v6395 = vadd.f32 %v5719, %v6394
  %6396 = vmatmul.f32.gmra.mxu0 %v5804
  %v6397 = vpop.f32.mrf.mxu0
  %v6398 = vadd.f32 %v5724, %v6397
  %6399 = vdwg.mxu0
  %v6400 = vtanh.pop %v6377
  %v6401 = vtanh.pop %v6380
  %v6402 = vtanh.pop %v6383
  %v6403 = vtanh.pop %v6386
  %v6404 = vtanh.pop %v6389
  %v6405 = vtanh.pop %v6392
  %v6406 = vtanh.pop %v6395
  %v6407 = vtanh.pop %v6398
  %v6408 = vmul.f32 %v6400, %v5737
  %v6409 = vmul.f32 %v6401, %v5742
  %v6410 = vmul.f32 %v6402, %v5747
  %v6411 = vmul.f32 %v6403, %v5752
  %v6412 = vmul.f32 %v6404, %v5757
  %v6413 = vmul.f32 %v6405, %v5762
  %v6414 = vmul.f32 %v6406, %v5767
  %v6415 = vmul.f32 %v6407, %v5772
  %v6416 = vadd.f32 %v6408, %v6409
  %v6417 = vadd.f32 %v6416, %v6410
  %v6418 = vadd.f32 %v6417, %v6411
  %v6419 = vadd.f32 %v6418, %v6412
  %v6420 = vadd.f32 %v6419, %v6413
  %v6421 = vadd.f32 %v6420, %v6414
  %v6422 = vadd.f32 %v6421, %v6415
  %v6423 = vrot.slane %v6422, 4
  %v6424 = vadd.f32 %v6422, %v6423
  %v6425 = vrot.slane %v6424, 2
  %v6426 = vadd.f32 %v6424, %v6425
  %v6427 = vrot.slane %v6426, 1
  %v6428 = vadd.f32 %v6426, %v6427
  %v6429 = vtanh.pop %v6428
  %v6430 = vmax.f32 %v5876, %v5955
  %v6431 = vmax.f32 %v6430, %v6034
  %v6432 = vmax.f32 %v6431, %v6113
  %v6433 = vmax.f32 %v6432, %v6192
  %v6434 = vmax.f32 %v6433, %v6271
  %v6435 = vmax.f32 %v6434, %v6350
  %v6436 = vmax.f32 %v6435, %v6429
  %v6437 = vsub.f32 %v5876, %v6436
  %v6438 = vmul.f32 %v6437, 1.442695
  %v6439 = vpow.pop %v6438
  %v6440 = vsub.f32 %v5955, %v6436
  %v6441 = vmul.f32 %v6440, 1.442695
  %v6442 = vpow.pop %v6441
  %v6443 = vsub.f32 %v6034, %v6436
  %v6444 = vmul.f32 %v6443, 1.442695
  %v6445 = vpow.pop %v6444
  %v6446 = vsub.f32 %v6113, %v6436
  %v6447 = vmul.f32 %v6446, 1.442695
  %v6448 = vpow.pop %v6447
  %v6449 = vsub.f32 %v6192, %v6436
  %v6450 = vmul.f32 %v6449, 1.442695
  %v6451 = vpow.pop %v6450
  %v6452 = vsub.f32 %v6271, %v6436
  %v6453 = vmul.f32 %v6452, 1.442695
  %v6454 = vpow.pop %v6453
  %v6455 = vsub.f32 %v6350, %v6436
  %v6456 = vmul.f32 %v6455, 1.442695
  %v6457 = vpow.pop %v6456
  %v6458 = vsub.f32 %v6429, %v6436
  %v6459 = vmul.f32 %v6458, 1.442695
  %v6460 = vpow.pop %v6459
  %v6461 = vadd.f32 %v6439, %v6442
  %v6462 = vadd.f32 %v6461, %v6445
  %v6463 = vadd.f32 %v6462, %v6448
  %v6464 = vadd.f32 %v6463, %v6451
  %v6465 = vadd.f32 %v6464, %v6454
  %v6466 = vadd.f32 %v6465, %v6457
  %v6467 = vadd.f32 %v6466, %v6460
  %v6468 = vrcp.pop %v6467
  %v6469 = vmul.f32 %v6467, %v6468
  %v6470 = vsub.f32 1.0, %v6469
  %v6471 = vmul.f32 %v6468, %v6470
  %v6472 = vadd.f32 %v6468, %v6471
  %vm6473 = vweird.f32 %v6467
  %vm6474 = vweird.f32 %v6468
  %vm6475 = vmor %vm6473, %vm6474
  %v6476 = vsel %vm6475, %v6468, %v6472
  %v6477 = vand.u32 2147483647, %v6467
  %vm6478 = vcmp.eq.f32.partialorder %v6477, 8.507059e+37
  %v6479 = vand.u32 %v6467, 2147483648
  %v6480 = vor.u32 1.1754944e-38, %v6479
  %v6481 = vsel %vm6478, %v6480, %v6476
  %v6482 = vmul.f32 %v6439, %v6481
  %v6483 = vmul.f32 %v5774, %v6482
  %v6484 = vmul.f32 %v5775, %v6482
  %v6485 = vmul.f32 %v5776, %v6482
  %v6486 = vmul.f32 %v5777, %v6482
  %v6487 = vmul.f32 %v5778, %v6482
  %v6488 = vmul.f32 %v5779, %v6482
  %v6489 = vmul.f32 %v5780, %v6482
  %v6490 = vmul.f32 %v5781, %v6482
  %v6491 = vadd.f32 %v6483, 0.0
  %v6492 = vadd.f32 %v6484, 0.0
  %v6493 = vadd.f32 %v6485, 0.0
  %v6494 = vadd.f32 %v6486, 0.0
  %v6495 = vadd.f32 %v6487, 0.0
  %v6496 = vadd.f32 %v6488, 0.0
  %v6497 = vadd.f32 %v6489, 0.0
  %v6498 = vadd.f32 %v6490, 0.0
  %v6499 = vmul.f32 %v6442, %v6481
  %v6500 = vmul.f32 %v5877, %v6499
  %v6501 = vmul.f32 %v5878, %v6499
  %v6502 = vmul.f32 %v5879, %v6499
  %v6503 = vmul.f32 %v5880, %v6499
  %v6504 = vmul.f32 %v5881, %v6499
  %v6505 = vmul.f32 %v5882, %v6499
  %v6506 = vmul.f32 %v5883, %v6499
  %v6507 = vmul.f32 %v5884, %v6499
  %v6508 = vadd.f32 %v6491, %v6500
  %v6509 = vadd.f32 %v6492, %v6501
  %v6510 = vadd.f32 %v6493, %v6502
  %v6511 = vadd.f32 %v6494, %v6503
  %v6512 = vadd.f32 %v6495, %v6504
  %v6513 = vadd.f32 %v6496, %v6505
  %v6514 = vadd.f32 %v6497, %v6506
  %v6515 = vadd.f32 %v6498, %v6507
  %v6516 = vmul.f32 %v6445, %v6481
  %v6517 = vmul.f32 %v5956, %v6516
  %v6518 = vmul.f32 %v5957, %v6516
  %v6519 = vmul.f32 %v5958, %v6516
  %v6520 = vmul.f32 %v5959, %v6516
  %v6521 = vmul.f32 %v5960, %v6516
  %v6522 = vmul.f32 %v5961, %v6516
  %v6523 = vmul.f32 %v5962, %v6516
  %v6524 = vmul.f32 %v5963, %v6516
  %v6525 = vadd.f32 %v6508, %v6517
  %v6526 = vadd.f32 %v6509, %v6518
  %v6527 = vadd.f32 %v6510, %v6519
  %v6528 = vadd.f32 %v6511, %v6520
  %v6529 = vadd.f32 %v6512, %v6521
  %v6530 = vadd.f32 %v6513, %v6522
  %v6531 = vadd.f32 %v6514, %v6523
  %v6532 = vadd.f32 %v6515, %v6524
  %v6533 = vmul.f32 %v6448, %v6481
  %v6534 = vmul.f32 %v6035, %v6533
  %v6535 = vmul.f32 %v6036, %v6533
  %v6536 = vmul.f32 %v6037, %v6533
  %v6537 = vmul.f32 %v6038, %v6533
  %v6538 = vmul.f32 %v6039, %v6533
  %v6539 = vmul.f32 %v6040, %v6533
  %v6540 = vmul.f32 %v6041, %v6533
  %v6541 = vmul.f32 %v6042, %v6533
  %v6542 = vadd.f32 %v6525, %v6534
  %v6543 = vadd.f32 %v6526, %v6535
  %v6544 = vadd.f32 %v6527, %v6536
  %v6545 = vadd.f32 %v6528, %v6537
  %v6546 = vadd.f32 %v6529, %v6538
  %v6547 = vadd.f32 %v6530, %v6539
  %v6548 = vadd.f32 %v6531, %v6540
  %v6549 = vadd.f32 %v6532, %v6541
  %v6550 = vmul.f32 %v6451, %v6481
  %v6551 = vmul.f32 %v6114, %v6550
  %v6552 = vmul.f32 %v6115, %v6550
  %v6553 = vmul.f32 %v6116, %v6550
  %v6554 = vmul.f32 %v6117, %v6550
  %v6555 = vmul.f32 %v6118, %v6550
  %v6556 = vmul.f32 %v6119, %v6550
  %v6557 = vmul.f32 %v6120, %v6550
  %v6558 = vmul.f32 %v6121, %v6550
  %v6559 = vadd.f32 %v6542, %v6551
  %v6560 = vadd.f32 %v6543, %v6552
  %v6561 = vadd.f32 %v6544, %v6553
  %v6562 = vadd.f32 %v6545, %v6554
  %v6563 = vadd.f32 %v6546, %v6555
  %v6564 = vadd.f32 %v6547, %v6556
  %v6565 = vadd.f32 %v6548, %v6557
  %v6566 = vadd.f32 %v6549, %v6558
  %v6567 = vmul.f32 %v6454, %v6481
  %v6568 = vmul.f32 %v6193, %v6567
  %v6569 = vmul.f32 %v6194, %v6567
  %v6570 = vmul.f32 %v6195, %v6567
  %v6571 = vmul.f32 %v6196, %v6567
  %v6572 = vmul.f32 %v6197, %v6567
  %v6573 = vmul.f32 %v6198, %v6567
  %v6574 = vmul.f32 %v6199, %v6567
  %v6575 = vmul.f32 %v6200, %v6567
  %v6576 = vadd.f32 %v6559, %v6568
  %v6577 = vadd.f32 %v6560, %v6569
  %v6578 = vadd.f32 %v6561, %v6570
  %v6579 = vadd.f32 %v6562, %v6571
  %v6580 = vadd.f32 %v6563, %v6572
  %v6581 = vadd.f32 %v6564, %v6573
  %v6582 = vadd.f32 %v6565, %v6574
  %v6583 = vadd.f32 %v6566, %v6575
  %v6584 = vmul.f32 %v6457, %v6481
  %v6585 = vmul.f32 %v6272, %v6584
  %v6586 = vmul.f32 %v6273, %v6584
  %v6587 = vmul.f32 %v6274, %v6584
  %v6588 = vmul.f32 %v6275, %v6584
  %v6589 = vmul.f32 %v6276, %v6584
  %v6590 = vmul.f32 %v6277, %v6584
  %v6591 = vmul.f32 %v6278, %v6584
  %v6592 = vmul.f32 %v6279, %v6584
  %v6593 = vadd.f32 %v6576, %v6585
  %v6594 = vadd.f32 %v6577, %v6586
  %v6595 = vadd.f32 %v6578, %v6587
  %v6596 = vadd.f32 %v6579, %v6588
  %v6597 = vadd.f32 %v6580, %v6589
  %v6598 = vadd.f32 %v6581, %v6590
  %v6599 = vadd.f32 %v6582, %v6591
  %v6600 = vadd.f32 %v6583, %v6592
  %v6601 = vmul.f32 %v6460, %v6481
  %v6602 = vmul.f32 %v6351, %v6601
  %v6603 = vmul.f32 %v6352, %v6601
  %v6604 = vmul.f32 %v6353, %v6601
  %v6605 = vmul.f32 %v6354, %v6601
  %v6606 = vmul.f32 %v6355, %v6601
  %v6607 = vmul.f32 %v6356, %v6601
  %v6608 = vmul.f32 %v6357, %v6601
  %v6609 = vmul.f32 %v6358, %v6601
  %v6610 = vadd.f32 %v6593, %v6602
  %v6611 = vadd.f32 %v6594, %v6603
  %v6612 = vadd.f32 %v6595, %v6604
  %v6613 = vadd.f32 %v6596, %v6605
  %v6614 = vadd.f32 %v6597, %v6606
  %v6615 = vadd.f32 %v6598, %v6607
  %v6616 = vadd.f32 %v6599, %v6608
  %v6617 = vadd.f32 %v6600, %v6609
  %v6618 = vld [vmem:[%s9] sm:$0xff]
  %v6619 = vld [vmem:[%s9 + $0x8] sm:$0xff]
  %v6620 = vld [vmem:[%s9 + $0x10] sm:$0xff]
  %v6621 = vld [vmem:[%s9 + $0x18] sm:$0xff]
  %v6622 = vld [vmem:[%s9 + $0x20] sm:$0xff]
  %v6623 = vld [vmem:[%s9 + $0x28] sm:$0xff]
  %v6624 = vld [vmem:[%s9 + $0x30] sm:$0xff]
  %v6625 = vld [vmem:[%s9 + $0x38] sm:$0xff]
  %6627 = vset.pattern.permute.xlu0 0
  %6628 = vperm.xlu0 %6627, %v6618
  %v6629 = vpop.permute.xlu0 %6628
  %6632 = vset.pattern.permute.xlu0 0
  %6633 = vperm.xlu0 %6632, %v6619
  %v6634 = vpop.permute.xlu0 %6633
  %6637 = vset.pattern.permute.xlu0 0
  %6638 = vperm.xlu0 %6637, %v6620
  %v6639 = vpop.permute.xlu0 %6638
  %6642 = vset.pattern.permute.xlu0 0
  %6643 = vperm.xlu0 %6642, %v6621
  %v6644 = vpop.permute.xlu0 %6643
  %6647 = vset.pattern.permute.xlu0 0
  %6648 = vperm.xlu0 %6647, %v6622
  %v6649 = vpop.permute.xlu0 %6648
  %6652 = vset.pattern.permute.xlu0 0
  %6653 = vperm.xlu0 %6652, %v6623
  %v6654 = vpop.permute.xlu0 %6653
  %6657 = vset.pattern.permute.xlu0 0
  %6658 = vperm.xlu0 %6657, %v6624
  %v6659 = vpop.permute.xlu0 %6658
  %6662 = vset.pattern.permute.xlu0 0
  %6663 = vperm.xlu0 %6662, %v6625
  %v6664 = vpop.permute.xlu0 %6663
  %v6666 = vmul.f32 %v6610, %v6629
  %v6667 = vmul.f32 %v6611, %v6634
  %v6668 = vmul.f32 %v6612, %v6639
  %v6669 = vmul.f32 %v6613, %v6644
  %v6670 = vmul.f32 %v6614, %v6649
  %v6671 = vmul.f32 %v6615, %v6654
  %v6672 = vmul.f32 %v6616, %v6659
  %v6673 = vmul.f32 %v6617, %v6664
  %v6674 = vadd.f32 %v6666, %v6667
  %v6675 = vadd.f32 %v6674, %v6668
  %v6676 = vadd.f32 %v6675, %v6669
  %v6677 = vadd.f32 %v6676, %v6670
  %v6678 = vadd.f32 %v6677, %v6671
  %v6679 = vadd.f32 %v6678, %v6672
  %v6680 = vadd.f32 %v6679, %v6673
  %v6681 = vrot.slane %v6680, 4
  %v6682 = vadd.f32 %v6680, %v6681
  %v6683 = vrot.slane %v6682, 2
  %v6684 = vadd.f32 %v6682, %v6683
  %v6685 = vrot.slane %v6684, 1
  %v6686 = vadd.f32 %v6684, %v6685
  %v6687 = vld [vmem:[#allocation4] sm:$0x1]
  %6689 = vset.pattern.permute.xlu0 0
  %6690 = vperm.xlu0 %6689, %v6687
  %v6691 = vpop.permute.xlu0 %6690
  %v6693 = vperm.slane %v6691, 0
  %v6694 = vadd.f32 %v6686, %v6693
  %6695 = vst [vmem:[%s11] sm:$0x1] %v6694
  // Predicated region
  $region46: #{_lambda_.1} parent=0 // pred_check
    _
  $region47: #{_lambda_.1} parent=0 // pred_check_branch
    %6697 = sbr.rel (0) target = $region49
  $region48: #{_lambda_.1} parent=0 // pred_region
    _
  $region49: #{_lambda_.1} parent=0 // pred_fallthru
    _
  // Predicated region
  $region50: #{_lambda_.1} parent=0 // pred_check
    _
  $region51: #{_lambda_.1} parent=0 // pred_check_branch
    %6699 = sbr.rel (0) target = $region53
  $region52: #{_lambda_.1} parent=0 // pred_region
    _
  $region53: #{_lambda_.1} parent=0 // pred_fallthru
    _
  // Predicated region
  $region54: #{_lambda_.1} parent=0 // pred_check
    _
  $region55: #{_lambda_.1} parent=0 // pred_check_branch
    %6701 = sbr.rel (0) target = $region57
  $region56: #{_lambda_.1} parent=0 // pred_region
    _
  $region57: #{_lambda_.1} parent=0 // pred_fallthru
    _
  // Predicated region
  $region58: #{_lambda_.1} parent=0 // pred_check
    _
  $region59: #{_lambda_.1} parent=0 // pred_check_branch
    %6703 = sbr.rel (0) target = $region61
  $region60: #{_lambda_.1} parent=0 // pred_region
    _
  $region61: #{_lambda_.1} parent=0 // pred_fallthru
    _

</llo_original>
